<compile_context>
chip_gen: v6e
topology: v6e:2x2x1
jax: 0.10.0
libtpu: 0.0.40
codegen_flags: <defaults>
</compile_context>

<pallas_src>
import math
import functools

import jax
import jax.numpy as jnp
from jax.experimental import pallas as pl
from jax.experimental.pallas import tpu as pltpu


def _round_up(x, m):
    return (x + m - 1) // m * m


def _gat_kernel(hdp,
                h_ref, e_ref, wqkv_ref, bqkv_ref, we_ref, be_ref,
                src_ref, dst_ref, s_ref, st_ref,
                hout_ref, eout_ref,
                qkv_scr, wv_scr, z_scr):
    f32 = jnp.float32
    i = pl.program_id(0)
    N = h_ref.shape[0]
    TM = src_ref.shape[0]

    @pl.when(i == 0)
    def _init():
        # Node projections Q|K|V computed once, kept resident in VMEM scratch.
        qkv_scr[...] = (jnp.dot(h_ref[...], wqkv_ref[...],
                                preferred_element_type=f32) + bqkv_ref[...])
        wv_scr[...] = jnp.zeros_like(wv_scr)
        z_scr[...] = jnp.zeros_like(z_scr)

    qkv = qkv_scr[...]
    Q = qkv[:, :hdp]                   # [N, hdp]
    KV = qkv[:, hdp:]                  # [N, 2*hdp]  (K | V adjacent -> one gather)

    # Edge projection; 1/sqrt(out_dim) is already folded into W_E / b_E.
    E = (jnp.dot(e_ref[...], we_ref[...], preferred_element_type=f32)
         + be_ref[...])                                               # [TM, hdp]

    # Build gather / scatter masks in-kernel (VPU) from the int32 index
    # columns: no [M, N] one-hot arrays ever touch HBM.  Padded edge rows use
    # index -1 -> all-zero rows -> contribute nothing.
    node_iota = jax.lax.broadcasted_iota(jnp.int32, (TM, N), 1)
    gsrc = (src_ref[...] == node_iota).astype(f32)                    # [TM, N]
    gdst = (dst_ref[...] == node_iota).astype(f32)                    # [TM, N]

    kv_e = jnp.dot(gsrc, KV, preferred_element_type=f32)              # [TM, 2*hdp]
    K_e = kv_e[:, :hdp]
    V_e = kv_e[:, hdp:]
    Q_e = jnp.dot(gdst, Q, preferred_element_type=f32)                # [TM, hdp]

    score = K_e * Q_e * E                                             # [TM, hdp]
    eout_ref[...] = score                                             # == e_out

    # Per-head reduction over out_dim (MXU), clamp, exp (EUP), broadcast back.
    s_head = jnp.dot(score, s_ref[...], preferred_element_type=f32)       # [TM, HP]
    s_head = jnp.exp(jnp.clip(s_head, -5.0, 5.0))
    s_bcast = jnp.dot(s_head, st_ref[...], preferred_element_type=f32)    # [TM, hdp]

    # Scatter-add to destination nodes: transposed-LHS contractions over the
    # edge axis.  z is accumulated per head (HP lanes), not per channel.
    wv_scr[...] += jax.lax.dot_general(
        gdst, V_e * s_bcast, (((0,), (0,)), ((), ())),
        preferred_element_type=f32)                                   # [N, hdp]
    z_scr[...] += jax.lax.dot_general(
        gdst, s_head, (((0,), (0,)), ((), ())),
        preferred_element_type=f32)                                   # [N, HP]

    @pl.when(i == pl.num_programs(0) - 1)
    def _finalize():
        # Broadcast per-head z over out_dim lanes once (tiny matmul), divide.
        zb = jnp.dot(z_scr[...], st_ref[...], preferred_element_type=f32)  # [N, hdp]
        denom = zb + 1e-6
        r = pl.reciprocal(denom, approx=True)     # EUP slot (free next to MXU)
        r = r * (2.0 - denom * r)                 # one Newton step -> f32 accuracy
        hout_ref[...] = wv_scr[...] * r


class GraphAttentionLayerPallas:
    """JAX/Pallas port of the DGL GraphAttentionLayer forward pass."""

    def __init__(self, in_dim, out_dim, num_heads, key, edge_tile=256):
        assert edge_tile % 8 == 0
        self.in_dim = in_dim
        self.out_dim = out_dim
        self.num_heads = num_heads
        self.edge_tile = edge_tile
        self.scale_constant = math.sqrt(out_dim)

        hd = out_dim * num_heads
        self.hd = hd
        self.hdp = _round_up(hd, 128)            # lane-dense padded width
        self.hp = _round_up(num_heads, 128)      # lane-dense per-head width
        pad = self.hdp - hd

        # Deterministic init mimicking nn.Linear default (uniform +- 1/sqrt(in_dim))
        bound = 1.0 / math.sqrt(in_dim)
        ks = jax.random.split(key, 8)

        def lin(kw, kb):
            w = jax.random.uniform(kw, (in_dim, hd), jnp.float32, -bound, bound)
            b = jax.random.uniform(kb, (1, hd), jnp.float32, -bound, bound)
            return w, b

        # Original (unpadded, unscaled) parameters — used by the pure-JAX reference.
        self.Wq, self.bq = lin(ks[0], ks[1])
        self.Wk, self.bk = lin(ks[2], ks[3])
        self.Wv, self.bv = lin(ks[4], ks[5])
        self.We, self.be = lin(ks[6], ks[7])

        def pad_cols(x):
            return jnp.pad(x, ((0, 0), (0, pad)))

        # Packed Q|K|V projection: one lane-dense matmul in the kernel.
        self.W_qkv = jnp.concatenate(
            [pad_cols(self.Wq), pad_cols(self.Wk), pad_cols(self.Wv)], axis=1)
        self.b_qkv = jnp.concatenate(
            [pad_cols(self.bq), pad_cols(self.bk), pad_cols(self.bv)], axis=1)

        # Fold 1/sqrt(out_dim) into the edge projection (one-time, host side).
        inv_scale = 1.0 / self.scale_constant
        self.W_e_s = pad_cols(self.We) * inv_scale
        self.b_e_s = pad_cols(self.be) * inv_scale

        # Per-head summing matrix S [hdp, HP] (pad rows/cols map nowhere) and S^T.
        head_ids = jnp.concatenate(
            [jnp.repeat(jnp.arange(num_heads, dtype=jnp.int32), out_dim),
             jnp.full((pad,), -1, jnp.int32)])
        self.S = jax.nn.one_hot(head_ids, self.hp, dtype=jnp.float32)   # [hdp, HP]
        self.ST = self.S.T                                              # [HP, hdp]

    def __call__(self, src, dst, h, e):
        N = h.shape[0]
        M = e.shape[0]
        in_dim = self.in_dim
        hdp = self.hdp
        hp = self.hp

        # Edge-tile size (multiple of 8); pad M up to a whole number of tiles.
        TM = min(self.edge_tile, _round_up(M, 8))
        Mp = _round_up(M, TM)
        grid_m = Mp // TM
        pad_m = Mp - M

        # Padded edge rows use index -1 -> all-zero mask rows -> no contribution.
        src_p = jnp.concatenate([src.astype(jnp.int32),
                                 jnp.full((pad_m,), -1, jnp.int32)]).reshape(Mp, 1)
        dst_p = jnp.concatenate([dst.astype(jnp.int32),
                                 jnp.full((pad_m,), -1, jnp.int32)]).reshape(Mp, 1)
        e_p = jnp.pad(e, ((0, pad_m), (0, 0)))

        # VMEM budget estimate (resident params + double-buffered tiles +
        # scratch + kernel temporaries), with headroom; capped at 64 MiB so it
        # also fits v7x physical VMEM.
        f32b = 4
        resident = f32b * (N * in_dim + in_dim * 3 * hdp + 3 * hdp
                           + in_dim * hdp + hdp + 2 * hdp * hp + N * hdp)
        per_tile = f32b * (TM * in_dim + TM * hdp + 2 * TM * 128)
        scratch = f32b * (N * 3 * hdp + N * hdp + N * hp)
        temps = f32b * (2 * TM * N + TM * (3 * hdp + 2 * hp) + 2 * TM * hdp)
        est = resident + 2 * per_tile + scratch + temps
        vmem_limit = int(min(64 << 20, max(32 << 20, 2 * est)))

        # Advisory cost hint for XLA's scheduler around the custom call.
        flops = 2 * (N * in_dim * 3 * hdp
                     + Mp * in_dim * hdp
                     + Mp * N * (3 * hdp + hdp + hp)
                     + 2 * Mp * hdp * hp
                     + N * hp * hdp)
        cost = pl.CostEstimate(
            flops=int(flops),
            transcendentals=int(Mp * hp),
            bytes_accessed=int(f32b * (N * in_dim + Mp * in_dim
                                       + in_dim * 4 * hdp
                                       + N * hdp + Mp * hdp) + 8 * Mp))

        kernel = functools.partial(_gat_kernel, hdp)

        grid_spec = pltpu.PrefetchScalarGridSpec(
            num_scalar_prefetch=0,
            grid=(grid_m,),
            in_specs=[
                pl.BlockSpec((N, in_dim), lambda i: (0, 0)),          # h (resident)
                pl.BlockSpec((TM, in_dim), lambda i: (i, 0)),         # e tile
                pl.BlockSpec((in_dim, 3 * hdp), lambda i: (0, 0)),    # W_QKV packed
                pl.BlockSpec((1, 3 * hdp), lambda i: (0, 0)),         # b_QKV packed
                pl.BlockSpec((in_dim, hdp), lambda i: (0, 0)),        # W_E (pre-scaled)
                pl.BlockSpec((1, hdp), lambda i: (0, 0)),             # b_E (pre-scaled)
                pl.BlockSpec((TM, 1), lambda i: (i, 0)),              # src idx tile
                pl.BlockSpec((TM, 1), lambda i: (i, 0)),              # dst idx tile
                pl.BlockSpec((hdp, hp), lambda i: (0, 0)),            # S
                pl.BlockSpec((hp, hdp), lambda i: (0, 0)),            # S^T
            ],
            out_specs=(
                pl.BlockSpec((N, hdp), lambda i: (0, 0)),             # h_out (resident)
                pl.BlockSpec((TM, hdp), lambda i: (i, 0)),            # e_out tile
            ),
            scratch_shapes=[
                pltpu.VMEM((N, 3 * hdp), jnp.float32),                # Q|K|V
                pltpu.VMEM((N, hdp), jnp.float32),                    # wV accumulator
                pltpu.VMEM((N, hp), jnp.float32),                     # z accumulator
            ],
        )

        h_out_p, e_out_p = pl.pallas_call(
            kernel,
            grid_spec=grid_spec,
            out_shape=(
                jax.ShapeDtypeStruct((N, hdp), jnp.float32),
                jax.ShapeDtypeStruct((Mp, hdp), jnp.float32),
            ),
            compiler_params=pltpu.CompilerParams(
                # single grid axis carries the h_out reduction -> "arbitrary"
                dimension_semantics=("arbitrary",),
                vmem_limit_bytes=vmem_limit,
            ),
            cost_estimate=cost,
        )(h, e_p, self.W_qkv, self.b_qkv, self.W_e_s, self.b_e_s,
          src_p, dst_p, self.S, self.ST)

        hd = self.hd
        h_out = h_out_p[:, :hd].reshape(N, self.num_heads, self.out_dim)
        e_out = e_out_p[:M, :hd].reshape(M, self.num_heads, self.out_dim)
        return h_out, e_out


def _reference(layer, src, dst, h, e):
    """Pure-JAX reference for correctness checking (original semantics)."""
    H, D = layer.num_heads, layer.out_dim
    N = h.shape[0]
    Q = (h @ layer.Wq + layer.bq).reshape(-1, H, D)
    K = (h @ layer.Wk + layer.bk).reshape(-1, H, D)
    V = (h @ layer.Wv + layer.bv).reshape(-1, H, D)
    E = (e @ layer.We + layer.be).reshape(-1, H, D)
    score = K[src] * Q[dst] / layer.scale_constant * E               # [M, H, D]
    e_out = score
    s = jnp.exp(jnp.clip(score.sum(-1, keepdims=True), -5.0, 5.0))   # [M, H, 1]
    wV = jax.ops.segment_sum(V[src] * s, dst, num_segments=N)        # [N, H, D]
    z = jax.ops.segment_sum(s, dst, num_segments=N)                  # [N, H, 1]
    h_out = wV / (z + 1e-6)
    return h_out, e_out


if __name__ == "__main__":
    # Make the pure-JAX reference use true f32 matmuls so it matches the
    # kernel's preferred_element_type=f32 accumulation.
    jax.config.update("jax_default_matmul_precision", "highest")

    key = jax.random.PRNGKey(0)
    k_param, k_h, k_e = jax.random.split(key, 3)

    # Small synthetic graph
    in_dim, out_dim, num_heads = 16, 8, 4
    n_nodes, n_edges = 24, 160

    # edge_tile=64 -> 3 edge tiles (with padding), exercises the grid +
    # persistent accumulator path.
    layer = GraphAttentionLayerPallas(in_dim, out_dim, num_heads, k_param,
                                      edge_tile=64)

    h = jax.random.normal(k_h, (n_nodes, in_dim), jnp.float32)
    e = jax.random.normal(k_e, (n_edges, in_dim), jnp.float32)
    # deterministic connectivity; dst covers all nodes (gcd(5, 24) == 1)
    src = jnp.arange(n_edges, dtype=jnp.int32) % n_nodes
    dst = (5 * jnp.arange(n_edges, dtype=jnp.int32) + 2) % n_nodes

    h_out, e_out = layer(src, dst, h, e)
    jax.block_until_ready((h_out, e_out))

    h_ref, e_ref = _reference(layer, src, dst, h, e)
    assert h_out.shape == (n_nodes, num_heads, out_dim)
    assert e_out.shape == (n_edges, num_heads, out_dim)
    assert jnp.allclose(e_out, e_ref, atol=1e-4, rtol=1e-4), \
        float(jnp.max(jnp.abs(e_out - e_ref)))
    assert jnp.allclose(h_out, h_ref, atol=1e-3, rtol=1e-3), \
        float(jnp.max(jnp.abs(h_out - h_ref)))

    print("KERNEL_OK")
</pallas_src>

<mosaic_0001>
module attributes {stable_mosaic.version = 11 : i64} {
  func.func @_gat_kernel(%arg0: i32, %arg1: memref<24x16xf32, #tpu.memory_space<vmem>>, %arg2: memref<64x16xf32, #tpu.memory_space<vmem>>, %arg3: memref<16x384xf32, #tpu.memory_space<vmem>>, %arg4: memref<1x384xf32, #tpu.memory_space<vmem>>, %arg5: memref<16x128xf32, #tpu.memory_space<vmem>>, %arg6: memref<1x128xf32, #tpu.memory_space<vmem>>, %arg7: memref<64x1xi32, #tpu.memory_space<vmem>>, %arg8: memref<64x1xi32, #tpu.memory_space<vmem>>, %arg9: memref<128x128xf32, #tpu.memory_space<vmem>>, %arg10: memref<128x128xf32, #tpu.memory_space<vmem>>, %arg11: memref<24x128xf32, #tpu.memory_space<vmem>>, %arg12: memref<64x128xf32, #tpu.memory_space<vmem>>, %arg13: memref<24x384xf32, #tpu.memory_space<vmem>>, %arg14: memref<24x128xf32, #tpu.memory_space<vmem>>, %arg15: memref<24x128xf32, #tpu.memory_space<vmem>>) attributes {dimension_semantics = [#tpu.dimension_semantics<arbitrary>], iteration_bounds = array<i64: 3>, scalar_prefetch = 0 : i64, scratch_operands = 3 : i64, tpu.core_type = #tpu.core_type<tc>, window_params = [{pipeline_mode = #tpu.pipeline_mode<synchronous>, transform_indices = @transform_0, window_bounds = array<i64: 24, 16>}, {transform_indices = @transform_1, window_bounds = array<i64: 64, 16>}, {pipeline_mode = #tpu.pipeline_mode<synchronous>, transform_indices = @transform_2, window_bounds = array<i64: 16, 384>}, {pipeline_mode = #tpu.pipeline_mode<synchronous>, transform_indices = @transform_3, window_bounds = array<i64: 1, 384>}, {pipeline_mode = #tpu.pipeline_mode<synchronous>, transform_indices = @transform_4, window_bounds = array<i64: 16, 128>}, {pipeline_mode = #tpu.pipeline_mode<synchronous>, transform_indices = @transform_5, window_bounds = array<i64: 1, 128>}, {transform_indices = @transform_6, window_bounds = array<i64: 64, 1>}, {transform_indices = @transform_7, window_bounds = array<i64: 64, 1>}, {pipeline_mode = #tpu.pipeline_mode<synchronous>, transform_indices = @transform_8, window_bounds = array<i64: 128, 128>}, {pipeline_mode = #tpu.pipeline_mode<synchronous>, transform_indices = @transform_9, window_bounds = array<i64: 128, 128>}, {pipeline_mode = #tpu.pipeline_mode<synchronous>, transform_indices = @transform_10, window_bounds = array<i64: 24, 128>}, {transform_indices = @transform_11, window_bounds = array<i64: 64, 128>}]} {
    %c0_i32 = arith.constant 0 : i32
    %0 = arith.cmpi eq, %arg0, %c0_i32 : i32
    %1 = arith.extui %0 : i1 to i32
    %c0_i32_0 = arith.constant 0 : i32
    %2 = arith.cmpi ne, %1, %c0_i32_0 : i32
    scf.if %2 {
      %c0_35 = arith.constant 0 : index
      %c0_36 = arith.constant 0 : index
      %51 = vector.load %arg1[%c0_35, %c0_36] : memref<24x16xf32, #tpu.memory_space<vmem>>, vector<24x16xf32>
      %c0_37 = arith.constant 0 : index
      %c0_38 = arith.constant 0 : index
      %52 = vector.load %arg3[%c0_37, %c0_38] : memref<16x384xf32, #tpu.memory_space<vmem>>, vector<16x384xf32>
      %cst_39 = arith.constant dense<0.000000e+00> : vector<24x384xf32>
      %53 = tpu.matmul %51, %52, %cst_39 {dimension_numbers = #tpu.dot_dimension_numbers<[1], [0], [0], [1], [0, 0, 1, 1], [], []>, precision = #tpu.contract_precision<fp32>} : vector<24x16xf32>, vector<16x384xf32>, vector<24x384xf32> -> vector<24x384xf32>
      %c0_40 = arith.constant 0 : index
      %c0_41 = arith.constant 0 : index
      %54 = vector.load %arg4[%c0_40, %c0_41] : memref<1x384xf32, #tpu.memory_space<vmem>>, vector<1x384xf32>
      %55 = vector.broadcast %54 : vector<1x384xf32> to vector<24x384xf32>
      %56 = arith.addf %53, %55 : vector<24x384xf32>
      %c0_42 = arith.constant 0 : index
      %c0_43 = arith.constant 0 : index
      %57 = vector.load %arg13[%c0_42, %c0_43] : memref<24x384xf32, #tpu.memory_space<vmem>>, vector<24x384xf32>
      tpu.vector_store %arg13[%c0_42, %c0_43], %56 {strides = array<i32>} : memref<24x384xf32, #tpu.memory_space<vmem>>, vector<24x384xf32>,
      %cst_44 = arith.constant 0.000000e+00 : f32
      %58 = vector.broadcast %cst_44 : f32 to vector<24x128xf32>
      %c0_45 = arith.constant 0 : index
      %c0_46 = arith.constant 0 : index
      %59 = vector.load %arg14[%c0_45, %c0_46] : memref<24x128xf32, #tpu.memory_space<vmem>>, vector<24x128xf32>
      tpu.vector_store %arg14[%c0_45, %c0_46], %58 {strides = array<i32>} : memref<24x128xf32, #tpu.memory_space<vmem>>, vector<24x128xf32>,
      %cst_47 = arith.constant 0.000000e+00 : f32
      %60 = vector.broadcast %cst_47 : f32 to vector<24x128xf32>
      %c0_48 = arith.constant 0 : index
      %c0_49 = arith.constant 0 : index
      %61 = vector.load %arg15[%c0_48, %c0_49] : memref<24x128xf32, #tpu.memory_space<vmem>>, vector<24x128xf32>
      tpu.vector_store %arg15[%c0_48, %c0_49], %60 {strides = array<i32>} : memref<24x128xf32, #tpu.memory_space<vmem>>, vector<24x128xf32>,
    } else {
    }
    %c0 = arith.constant 0 : index
    %c0_1 = arith.constant 0 : index
    %3 = vector.load %arg13[%c0, %c0_1] : memref<24x384xf32, #tpu.memory_space<vmem>>, vector<24x384xf32>
    %4 = vector.extract_strided_slice %3 {offsets = [0, 0], sizes = [24, 128], strides = [1, 1]} : vector<24x384xf32> to vector<24x128xf32>
    %5 = vector.extract_strided_slice %3 {offsets = [0, 128], sizes = [24, 256], strides = [1, 1]} : vector<24x384xf32> to vector<24x256xf32>
    %c0_2 = arith.constant 0 : index
    %c0_3 = arith.constant 0 : index
    %6 = vector.load %arg2[%c0_2, %c0_3] : memref<64x16xf32, #tpu.memory_space<vmem>>, vector<64x16xf32>
    %c0_4 = arith.constant 0 : index
    %c0_5 = arith.constant 0 : index
    %7 = vector.load %arg5[%c0_4, %c0_5] : memref<16x128xf32, #tpu.memory_space<vmem>>, vector<16x128xf32>
    %cst = arith.constant dense<0.000000e+00> : vector<64x128xf32>
    %8 = tpu.matmul %6, %7, %cst {dimension_numbers = #tpu.dot_dimension_numbers<[1], [0], [0], [1], [0, 0, 1, 1], [], []>, precision = #tpu.contract_precision<fp32>} : vector<64x16xf32>, vector<16x128xf32>, vector<64x128xf32> -> vector<64x128xf32>
    %c0_6 = arith.constant 0 : index
    %c0_7 = arith.constant 0 : index
    %9 = vector.load %arg6[%c0_6, %c0_7] : memref<1x128xf32, #tpu.memory_space<vmem>>, vector<1x128xf32>
    %10 = vector.broadcast %9 : vector<1x128xf32> to vector<64x128xf32>
    %11 = arith.addf %8, %10 : vector<64x128xf32>
    %12 = tpu.iota {dimensions = array<i32: 1>} : vector<64x24xi32>
    %c0_8 = arith.constant 0 : index
    %c0_9 = arith.constant 0 : index
    %13 = vector.load %arg7[%c0_8, %c0_9] : memref<64x1xi32, #tpu.memory_space<vmem>>, vector<64x1xi32>
    %14 = vector.broadcast %13 : vector<64x1xi32> to vector<64x24xi32>
    %15 = arith.cmpi eq, %14, %12 : vector<64x24xi32>
    %16 = arith.extui %15 : vector<64x24xi1> to vector<64x24xi32>
    %17 = arith.sitofp %16 : vector<64x24xi32> to vector<64x24xf32>
    %c0_10 = arith.constant 0 : index
    %c0_11 = arith.constant 0 : index
    %18 = vector.load %arg8[%c0_10, %c0_11] : memref<64x1xi32, #tpu.memory_space<vmem>>, vector<64x1xi32>
    %19 = vector.broadcast %18 : vector<64x1xi32> to vector<64x24xi32>
    %20 = arith.cmpi eq, %19, %12 : vector<64x24xi32>
    %21 = arith.extui %20 : vector<64x24xi1> to vector<64x24xi32>
    %22 = arith.sitofp %21 : vector<64x24xi32> to vector<64x24xf32>
    %cst_12 = arith.constant dense<0.000000e+00> : vector<64x256xf32>
    %23 = tpu.matmul %17, %5, %cst_12 {dimension_numbers = #tpu.dot_dimension_numbers<[1], [0], [0], [1], [0, 0, 1, 1], [], []>, precision = #tpu.contract_precision<fp32>} : vector<64x24xf32>, vector<24x256xf32>, vector<64x256xf32> -> vector<64x256xf32>
    %24 = vector.extract_strided_slice %23 {offsets = [0, 0], sizes = [64, 128], strides = [1, 1]} : vector<64x256xf32> to vector<64x128xf32>
    %25 = vector.extract_strided_slice %23 {offsets = [0, 128], sizes = [64, 128], strides = [1, 1]} : vector<64x256xf32> to vector<64x128xf32>
    %cst_13 = arith.constant dense<0.000000e+00> : vector<64x128xf32>
    %26 = tpu.matmul %22, %4, %cst_13 {dimension_numbers = #tpu.dot_dimension_numbers<[1], [0], [0], [1], [0, 0, 1, 1], [], []>, precision = #tpu.contract_precision<fp32>} : vector<64x24xf32>, vector<24x128xf32>, vector<64x128xf32> -> vector<64x128xf32>
    %27 = arith.mulf %24, %26 : vector<64x128xf32>
    %28 = arith.mulf %27, %11 : vector<64x128xf32>
    %c0_14 = arith.constant 0 : index
    %c0_15 = arith.constant 0 : index
    %29 = vector.load %arg12[%c0_14, %c0_15] : memref<64x128xf32, #tpu.memory_space<vmem>>, vector<64x128xf32>
    tpu.vector_store %arg12[%c0_14, %c0_15], %28 {strides = array<i32>} : memref<64x128xf32, #tpu.memory_space<vmem>>, vector<64x128xf32>,
    %c0_16 = arith.constant 0 : index
    %c0_17 = arith.constant 0 : index
    %30 = vector.load %arg9[%c0_16, %c0_17] : memref<128x128xf32, #tpu.memory_space<vmem>>, vector<128x128xf32>
    %cst_18 = arith.constant dense<0.000000e+00> : vector<64x128xf32>
    %31 = tpu.matmul %28, %30, %cst_18 {dimension_numbers = #tpu.dot_dimension_numbers<[1], [0], [0], [1], [0, 0, 1, 1], [], []>, precision = #tpu.contract_precision<fp32>} : vector<64x128xf32>, vector<128x128xf32>, vector<64x128xf32> -> vector<64x128xf32>
    %cst_19 = arith.constant -5.000000e+00 : f32
    %cst_20 = arith.constant 5.000000e+00 : f32
    %32 = vector.broadcast %cst_19 : f32 to vector<64x128xf32>
    %33 = arith.maximumf %32, %31 : vector<64x128xf32>
    %34 = vector.broadcast %cst_20 : f32 to vector<64x128xf32>
    %35 = arith.minimumf %34, %33 : vector<64x128xf32>
    %36 = math.exp %35 : vector<64x128xf32>
    %c0_21 = arith.constant 0 : index
    %c0_22 = arith.constant 0 : index
    %37 = vector.load %arg10[%c0_21, %c0_22] : memref<128x128xf32, #tpu.memory_space<vmem>>, vector<128x128xf32>
    %cst_23 = arith.constant dense<0.000000e+00> : vector<64x128xf32>
    %38 = tpu.matmul %36, %37, %cst_23 {dimension_numbers = #tpu.dot_dimension_numbers<[1], [0], [0], [1], [0, 0, 1, 1], [], []>, precision = #tpu.contract_precision<fp32>} : vector<64x128xf32>, vector<128x128xf32>, vector<64x128xf32> -> vector<64x128xf32>
    %c0_24 = arith.constant 0 : index
    %c0_25 = arith.constant 0 : index
    %39 = vector.load %arg14[%c0_24, %c0_25] : memref<24x128xf32, #tpu.memory_space<vmem>>, vector<24x128xf32>
    %40 = arith.mulf %25, %38 : vector<64x128xf32>
    %cst_26 = arith.constant dense<0.000000e+00> : vector<24x128xf32>
    %41 = tpu.matmul %22, %40, %cst_26 {dimension_numbers = #tpu.dot_dimension_numbers<[0], [0], [1], [1], [0, 1, 1, 1], [], []>, precision = #tpu.contract_precision<fp32>} : vector<64x24xf32>, vector<64x128xf32>, vector<24x128xf32> -> vector<24x128xf32>
    %42 = arith.addf %39, %41 : vector<24x128xf32>
    %c0_27 = arith.constant 0 : index
    %c0_28 = arith.constant 0 : index
    %43 = vector.load %arg14[%c0_27, %c0_28] : memref<24x128xf32, #tpu.memory_space<vmem>>, vector<24x128xf32>
    tpu.vector_store %arg14[%c0_27, %c0_28], %42 {strides = array<i32>} : memref<24x128xf32, #tpu.memory_space<vmem>>, vector<24x128xf32>,
    %c0_29 = arith.constant 0 : index
    %c0_30 = arith.constant 0 : index
    %44 = vector.load %arg15[%c0_29, %c0_30] : memref<24x128xf32, #tpu.memory_space<vmem>>, vector<24x128xf32>
    %cst_31 = arith.constant dense<0.000000e+00> : vector<24x128xf32>
    %45 = tpu.matmul %22, %36, %cst_31 {dimension_numbers = #tpu.dot_dimension_numbers<[0], [0], [1], [1], [0, 1, 1, 1], [], []>, precision = #tpu.contract_precision<fp32>} : vector<64x24xf32>, vector<64x128xf32>, vector<24x128xf32> -> vector<24x128xf32>
    %46 = arith.addf %44, %45 : vector<24x128xf32>
    %c0_32 = arith.constant 0 : index
    %c0_33 = arith.constant 0 : index
    %47 = vector.load %arg15[%c0_32, %c0_33] : memref<24x128xf32, #tpu.memory_space<vmem>>, vector<24x128xf32>
    tpu.vector_store %arg15[%c0_32, %c0_33], %46 {strides = array<i32>} : memref<24x128xf32, #tpu.memory_space<vmem>>, vector<24x128xf32>,
    %c2_i32 = arith.constant 2 : i32
    %48 = arith.cmpi eq, %arg0, %c2_i32 : i32
    %49 = arith.extui %48 : i1 to i32
    %c0_i32_34 = arith.constant 0 : i32
    %50 = arith.cmpi ne, %49, %c0_i32_34 : i32
    scf.if %50 {
      %c0_35 = arith.constant 0 : index
      %c0_36 = arith.constant 0 : index
      %51 = vector.load %arg15[%c0_35, %c0_36] : memref<24x128xf32, #tpu.memory_space<vmem>>, vector<24x128xf32>
      %c0_37 = arith.constant 0 : index
      %c0_38 = arith.constant 0 : index
      %52 = vector.load %arg10[%c0_37, %c0_38] : memref<128x128xf32, #tpu.memory_space<vmem>>, vector<128x128xf32>
      %cst_39 = arith.constant dense<0.000000e+00> : vector<24x128xf32>
      %53 = tpu.matmul %51, %52, %cst_39 {dimension_numbers = #tpu.dot_dimension_numbers<[1], [0], [0], [1], [0, 0, 1, 1], [], []>, precision = #tpu.contract_precision<fp32>} : vector<24x128xf32>, vector<128x128xf32>, vector<24x128xf32> -> vector<24x128xf32>
      %cst_40 = arith.constant 9.99999997E-7 : f32
      %54 = vector.broadcast %cst_40 : f32 to vector<24x128xf32>
      %55 = arith.addf %53, %54 : vector<24x128xf32>
      %56 = tpu.reciprocal %55 {approx = true} : vector<24x128xf32> -> vector<24x128xf32>
      %57 = arith.mulf %55, %56 : vector<24x128xf32>
      %cst_41 = arith.constant 2.000000e+00 : f32
      %58 = vector.broadcast %cst_41 : f32 to vector<24x128xf32>
      %59 = arith.subf %58, %57 : vector<24x128xf32>
      %60 = arith.mulf %56, %59 : vector<24x128xf32>
      %c0_42 = arith.constant 0 : index
      %c0_43 = arith.constant 0 : index
      %61 = vector.load %arg14[%c0_42, %c0_43] : memref<24x128xf32, #tpu.memory_space<vmem>>, vector<24x128xf32>
      %62 = arith.mulf %61, %60 : vector<24x128xf32>
      %c0_44 = arith.constant 0 : index
      %c0_45 = arith.constant 0 : index
      %63 = vector.load %arg11[%c0_44, %c0_45] : memref<24x128xf32, #tpu.memory_space<vmem>>, vector<24x128xf32>
      tpu.vector_store %arg11[%c0_44, %c0_45], %62 {strides = array<i32>} : memref<24x128xf32, #tpu.memory_space<vmem>>, vector<24x128xf32>,
    } else {
    }
    return
  }
  func.func @transform_0(%arg0: i32) -> (i32, i32) {
    %c0_i32 = arith.constant 0 : i32
    %c0_i32_0 = arith.constant 0 : i32
    %c0_i32_1 = arith.constant 0 : i32
    return %c0_i32, %c0_i32_0 : i32, i32
  }
  func.func @transform_1(%arg0: i32) -> (i32, i32) {
    %c0_i32 = arith.constant 0 : i32
    %c0_i32_0 = arith.constant 0 : i32
    return %arg0, %c0_i32 : i32, i32
  }
  func.func @transform_2(%arg0: i32) -> (i32, i32) {
    %c0_i32 = arith.constant 0 : i32
    %c0_i32_0 = arith.constant 0 : i32
    %c0_i32_1 = arith.constant 0 : i32
    return %c0_i32, %c0_i32_0 : i32, i32
  }
  func.func @transform_3(%arg0: i32) -> (i32, i32) {
    %c0_i32 = arith.constant 0 : i32
    %c0_i32_0 = arith.constant 0 : i32
    %c0_i32_1 = arith.constant 0 : i32
    return %c0_i32, %c0_i32_0 : i32, i32
  }
  func.func @transform_4(%arg0: i32) -> (i32, i32) {
    %c0_i32 = arith.constant 0 : i32
    %c0_i32_0 = arith.constant 0 : i32
    %c0_i32_1 = arith.constant 0 : i32
    return %c0_i32, %c0_i32_0 : i32, i32
  }
  func.func @transform_5(%arg0: i32) -> (i32, i32) {
    %c0_i32 = arith.constant 0 : i32
    %c0_i32_0 = arith.constant 0 : i32
    %c0_i32_1 = arith.constant 0 : i32
    return %c0_i32, %c0_i32_0 : i32, i32
  }
  func.func @transform_6(%arg0: i32) -> (i32, i32) {
    %c0_i32 = arith.constant 0 : i32
    %c0_i32_0 = arith.constant 0 : i32
    return %arg0, %c0_i32 : i32, i32
  }
  func.func @transform_7(%arg0: i32) -> (i32, i32) {
    %c0_i32 = arith.constant 0 : i32
    %c0_i32_0 = arith.constant 0 : i32
    return %arg0, %c0_i32 : i32, i32
  }
  func.func @transform_8(%arg0: i32) -> (i32, i32) {
    %c0_i32 = arith.constant 0 : i32
    %c0_i32_0 = arith.constant 0 : i32
    %c0_i32_1 = arith.constant 0 : i32
    return %c0_i32, %c0_i32_0 : i32, i32
  }
  func.func @transform_9(%arg0: i32) -> (i32, i32) {
    %c0_i32 = arith.constant 0 : i32
    %c0_i32_0 = arith.constant 0 : i32
    %c0_i32_1 = arith.constant 0 : i32
    return %c0_i32, %c0_i32_0 : i32, i32
  }
  func.func @transform_10(%arg0: i32) -> (i32, i32) {
    %c0_i32 = arith.constant 0 : i32
    %c0_i32_0 = arith.constant 0 : i32
    %c0_i32_1 = arith.constant 0 : i32
    return %c0_i32, %c0_i32_0 : i32, i32
  }
  func.func @transform_11(%arg0: i32) -> (i32, i32) {
    %c0_i32 = arith.constant 0 : i32
    %c0_i32_0 = arith.constant 0 : i32
    return %arg0, %c0_i32 : i32, i32
  }
}

</mosaic_0001>

<llo_original>
// kernel: tpu_custom_call.1
$region0: #{tpu_custom_call.1}
  #allocation0 [shape = 'u32[]', space=smem, size = 0x4, offset = 0x4, fixed_abs, tag = 'smem constant byte address 0x4 - core index']
  #allocation1 [shape = 'u32[144,128]{1,0:T(1,128)}', space=vmem, size = 0x12000, scoped, tag = 'internal scratch']
  #allocation2 [shape = 'f32[24,384]{1,0:T(8,128)}', space=vmem, size = 0x9000, scoped, tag = 'scratch operand']
  #allocation3 [shape = 'f32[24,128]{1,0:T(8,128)}', space=vmem, size = 0x3000, scoped, tag = 'scratch operand']
  #allocation4 [shape = 'f32[24,128]{1,0:T(8,128)}', space=vmem, size = 0x3000, scoped, tag = 'scratch operand']
  %s0 = inlined_call_operand.vmem [shape: f32[24,16], index: 0, kind: input, shape index: {}]
  %s1 = inlined_call_operand.vmem [shape: f32[192,16], index: 1, kind: input, shape index: {}]
  %s2 = inlined_call_operand.vmem [shape: f32[16,384], index: 2, kind: input, shape index: {}]
  %s3 = inlined_call_operand.vmem [shape: f32[1,384], index: 3, kind: input, shape index: {}]
  %s4 = inlined_call_operand.vmem [shape: f32[16,128], index: 4, kind: input, shape index: {}]
  %s5 = inlined_call_operand.vmem [shape: f32[1,128], index: 5, kind: input, shape index: {}]
  %s6 = inlined_call_operand.vmem [shape: s32[192,1], index: 6, kind: input, shape index: {}]
  %s7 = inlined_call_operand.vmem [shape: s32[192,1], index: 7, kind: input, shape index: {}]
  %s8 = inlined_call_operand.vmem [shape: f32[128,128], index: 8, kind: input, shape index: {}]
  %s9 = inlined_call_operand.vmem [shape: f32[128,128], index: 9, kind: input, shape index: {}]
  %s10 = inlined_call_operand.hbm [shape: f32[24,128], index: 10, kind: output, shape index: {0}]
  %s11 = inlined_call_operand.hbm [shape: f32[192,128], index: 11, kind: output, shape index: {1}]
  %12 = xla_tuple %s10, %s11
  %s13 = sld [smem:[#allocation0]]
  $region89: #{tpu_custom_call.1} parent=0
    _
  %s15 = ssub.s32 1, %s13
  %s16 = scalar_select 0, %s15, %s13
  $region1: #{tpu_custom_call.1} parent=0
    #allocation5 [shape = 'u8[12288]{0}', space=vmem, size = 0x3000, scoped, tag = 'output window, operand 0, single buffered']
    #allocation6 [shape = 's32[2]{0}', space=sflag, size = 0x8, scoped, tag = 'scoped memory for tpu_custom_call.1']
    #allocation7 [shape = 'u8[65536]{0}', space=vmem, size = 0x10000, scoped, tag = 'output window, operand 1']
    #allocation8 [shape = 's32[2]{0}', space=sflag, size = 0x8, scoped, tag = 'scoped memory for tpu_custom_call.1']
    %17 = vsyncpa [#allocation6], 0
    %18 = vsyncpa [#allocation8], 0
    %s19 = scalar_lea.sflag [#allocation8], 1
    %20 = vsyncpa %s19, 0
    loop: start=0, step=1, limit=5
    $region2: #{tpu_custom_call.1} parent=1 // loop_pre_header
      _
    $region3: #{tpu_custom_call.1} parent=1 // loop_header
      %s22 = sphi 0, %s26
      %p23 = scmp.ge.s32.totalorder %s22, 5
      %s30 = sphi 0, %s30
      %s32 = sphi 0, %s30
      %s33 = sphi 0, %s32
      %s47 = sphi 0, %s33
      %s53 = sphi 0, %s55
      %s56 = sphi 0, %s53
      %s57 = sphi 0, %s56
      %s73 = sphi 0, %s57
      %s77 = sphi 0, %s77
      %s79 = sphi 0, %s77
      %s80 = sphi 0, %s79
      %s94 = sphi 0, %s80
      %s98 = sphi 0, %s98
      %s100 = sphi 0, %s98
      %s101 = sphi 0, %s100
      %s115 = sphi 0, %s101
      %s119 = sphi 0, %s119
      %s121 = sphi 0, %s119
      %s122 = sphi 0, %s121
      %s136 = sphi 0, %s122
      %s140 = sphi 0, %s140
      %s142 = sphi 0, %s140
      %s143 = sphi 0, %s142
      %s157 = sphi 0, %s143
      %s163 = sphi 0, %s165
      %s166 = sphi 0, %s163
      %s167 = sphi 0, %s166
      %s183 = sphi 0, %s167
      %s189 = sphi 0, %s191
      %s192 = sphi 0, %s189
      %s193 = sphi 0, %s192
      %s209 = sphi 0, %s193
      %s213 = sphi 0, %s213
      %s215 = sphi 0, %s213
      %s216 = sphi 0, %s215
      %s230 = sphi 0, %s216
      %s234 = sphi 0, %s234
      %s236 = sphi 0, %s234
      %s237 = sphi 0, %s236
      %s251 = sphi 0, %s237
      %s255 = sphi 0, %s255
      %s257 = sphi 0, %s255
      %s258 = sphi 0, %s257
      %s272 = sphi 0, %s258
      %s278 = sphi 0, %s280
      %s281 = sphi 0, %s278
      %s282 = sphi 0, %s281
      %s298 = sphi 0, %s282
    $region4: #{tpu_custom_call.1} parent=1 // loop_header_branch
      %25 = sbr.rel (%p23) target = $region8
    $region5: #{tpu_custom_call.1} parent=1 // loop_body
      %s27 = ssub.s32 %s22, 1
      %s28 = ssub.s32 %s22, 2
      %s29 = sadd.s32 %s22, 1
      %s31 = sadd.s32 %s30, 1
      %p34 = scmp.eq.s32.totalorder %s22, 2
      %p35 = scmp.ne.s32.totalorder %s30, %s32
      %p36 = scmp.eq.s32.totalorder %s22, 0
      %p37 = por %p35, %p36
      %p38 = scmp.ne.s32.totalorder %s30, %s32
      %p39 = scmp.eq.s32.totalorder %s27, 2
      %p40 = por %p38, %p39
      %p41 = scmp.ne.s32.totalorder %s32, %s33
      %p42 = scmp.eq.s32.totalorder %s27, 0
      %p43 = por %p41, %p42
      %p44 = scmp.ne.s32.totalorder %s32, %s33
      %p45 = scmp.eq.s32.totalorder %s28, 2
      %p46 = por %p44, %p45
      %p48 = scmp.ne.s32.totalorder %s33, %s47
      %p49 = scmp.eq.s32.totalorder %s28, 0
      %p50 = por %p48, %p49
      %s51 = ssub.s32 %s22, %s29
      %p52 = scmp.eq.s32.totalorder %s51, 0
      %s54 = sadd.s32 %s53, 1
      %s55 = scalar_select %p52, %s53, %s54
      %p58 = pneg %p52
      %p59 = scmp.eq.s32.totalorder %s22, 2
      %p60 = por %p58, %p59
      %p61 = scmp.ne.s32.totalorder %s53, %s56
      %p62 = scmp.eq.s32.totalorder %s22, 0
      %p63 = por %p61, %p62
      %p64 = scmp.ne.s32.totalorder %s53, %s56
      %p65 = scmp.eq.s32.totalorder %s27, 2
      %p66 = por %p64, %p65
      %p67 = scmp.ne.s32.totalorder %s56, %s57
      %p68 = scmp.eq.s32.totalorder %s27, 0
      %p69 = por %p67, %p68
      %p70 = scmp.ne.s32.totalorder %s56, %s57
      %p71 = scmp.eq.s32.totalorder %s28, 2
      %p72 = por %p70, %p71
      %p74 = scmp.ne.s32.totalorder %s57, %s73
      %p75 = scmp.eq.s32.totalorder %s28, 0
      %p76 = por %p74, %p75
      %s78 = sadd.s32 %s77, 1
      %p81 = scmp.eq.s32.totalorder %s22, 2
      %p82 = scmp.ne.s32.totalorder %s77, %s79
      %p83 = scmp.eq.s32.totalorder %s22, 0
      %p84 = por %p82, %p83
      %p85 = scmp.ne.s32.totalorder %s77, %s79
      %p86 = scmp.eq.s32.totalorder %s27, 2
      %p87 = por %p85, %p86
      %p88 = scmp.ne.s32.totalorder %s79, %s80
      %p89 = scmp.eq.s32.totalorder %s27, 0
      %p90 = por %p88, %p89
      %p91 = scmp.ne.s32.totalorder %s79, %s80
      %p92 = scmp.eq.s32.totalorder %s28, 2
      %p93 = por %p91, %p92
      %p95 = scmp.ne.s32.totalorder %s80, %s94
      %p96 = scmp.eq.s32.totalorder %s28, 0
      %p97 = por %p95, %p96
      %s99 = sadd.s32 %s98, 1
      %p102 = scmp.eq.s32.totalorder %s22, 2
      %p103 = scmp.ne.s32.totalorder %s98, %s100
      %p104 = scmp.eq.s32.totalorder %s22, 0
      %p105 = por %p103, %p104
      %p106 = scmp.ne.s32.totalorder %s98, %s100
      %p107 = scmp.eq.s32.totalorder %s27, 2
      %p108 = por %p106, %p107
      %p109 = scmp.ne.s32.totalorder %s100, %s101
      %p110 = scmp.eq.s32.totalorder %s27, 0
      %p111 = por %p109, %p110
      %p112 = scmp.ne.s32.totalorder %s100, %s101
      %p113 = scmp.eq.s32.totalorder %s28, 2
      %p114 = por %p112, %p113
      %p116 = scmp.ne.s32.totalorder %s101, %s115
      %p117 = scmp.eq.s32.totalorder %s28, 0
      %p118 = por %p116, %p117
      %s120 = sadd.s32 %s119, 1
      %p123 = scmp.eq.s32.totalorder %s22, 2
      %p124 = scmp.ne.s32.totalorder %s119, %s121
      %p125 = scmp.eq.s32.totalorder %s22, 0
      %p126 = por %p124, %p125
      %p127 = scmp.ne.s32.totalorder %s119, %s121
      %p128 = scmp.eq.s32.totalorder %s27, 2
      %p129 = por %p127, %p128
      %p130 = scmp.ne.s32.totalorder %s121, %s122
      %p131 = scmp.eq.s32.totalorder %s27, 0
      %p132 = por %p130, %p131
      %p133 = scmp.ne.s32.totalorder %s121, %s122
      %p134 = scmp.eq.s32.totalorder %s28, 2
      %p135 = por %p133, %p134
      %p137 = scmp.ne.s32.totalorder %s122, %s136
      %p138 = scmp.eq.s32.totalorder %s28, 0
      %p139 = por %p137, %p138
      %s141 = sadd.s32 %s140, 1
      %p144 = scmp.eq.s32.totalorder %s22, 2
      %p145 = scmp.ne.s32.totalorder %s140, %s142
      %p146 = scmp.eq.s32.totalorder %s22, 0
      %p147 = por %p145, %p146
      %p148 = scmp.ne.s32.totalorder %s140, %s142
      %p149 = scmp.eq.s32.totalorder %s27, 2
      %p150 = por %p148, %p149
      %p151 = scmp.ne.s32.totalorder %s142, %s143
      %p152 = scmp.eq.s32.totalorder %s27, 0
      %p153 = por %p151, %p152
      %p154 = scmp.ne.s32.totalorder %s142, %s143
      %p155 = scmp.eq.s32.totalorder %s28, 2
      %p156 = por %p154, %p155
      %p158 = scmp.ne.s32.totalorder %s143, %s157
      %p159 = scmp.eq.s32.totalorder %s28, 0
      %p160 = por %p158, %p159
      %s161 = ssub.s32 %s22, %s29
      %p162 = scmp.eq.s32.totalorder %s161, 0
      %s164 = sadd.s32 %s163, 1
      %s165 = scalar_select %p162, %s163, %s164
      %p168 = pneg %p162
      %p169 = scmp.eq.s32.totalorder %s22, 2
      %p170 = por %p168, %p169
      %p171 = scmp.ne.s32.totalorder %s163, %s166
      %p172 = scmp.eq.s32.totalorder %s22, 0
      %p173 = por %p171, %p172
      %p174 = scmp.ne.s32.totalorder %s163, %s166
      %p175 = scmp.eq.s32.totalorder %s27, 2
      %p176 = por %p174, %p175
      %p177 = scmp.ne.s32.totalorder %s166, %s167
      %p178 = scmp.eq.s32.totalorder %s27, 0
      %p179 = por %p177, %p178
      %p180 = scmp.ne.s32.totalorder %s166, %s167
      %p181 = scmp.eq.s32.totalorder %s28, 2
      %p182 = por %p180, %p181
      %p184 = scmp.ne.s32.totalorder %s167, %s183
      %p185 = scmp.eq.s32.totalorder %s28, 0
      %p186 = por %p184, %p185
      %s187 = ssub.s32 %s22, %s29
      %p188 = scmp.eq.s32.totalorder %s187, 0
      %s190 = sadd.s32 %s189, 1
      %s191 = scalar_select %p188, %s189, %s190
      %p194 = pneg %p188
      %p195 = scmp.eq.s32.totalorder %s22, 2
      %p196 = por %p194, %p195
      %p197 = scmp.ne.s32.totalorder %s189, %s192
      %p198 = scmp.eq.s32.totalorder %s22, 0
      %p199 = por %p197, %p198
      %p200 = scmp.ne.s32.totalorder %s189, %s192
      %p201 = scmp.eq.s32.totalorder %s27, 2
      %p202 = por %p200, %p201
      %p203 = scmp.ne.s32.totalorder %s192, %s193
      %p204 = scmp.eq.s32.totalorder %s27, 0
      %p205 = por %p203, %p204
      %p206 = scmp.ne.s32.totalorder %s192, %s193
      %p207 = scmp.eq.s32.totalorder %s28, 2
      %p208 = por %p206, %p207
      %p210 = scmp.ne.s32.totalorder %s193, %s209
      %p211 = scmp.eq.s32.totalorder %s28, 0
      %p212 = por %p210, %p211
      %s214 = sadd.s32 %s213, 1
      %p217 = scmp.eq.s32.totalorder %s22, 2
      %p218 = scmp.ne.s32.totalorder %s213, %s215
      %p219 = scmp.eq.s32.totalorder %s22, 0
      %p220 = por %p218, %p219
      %p221 = scmp.ne.s32.totalorder %s213, %s215
      %p222 = scmp.eq.s32.totalorder %s27, 2
      %p223 = por %p221, %p222
      %p224 = scmp.ne.s32.totalorder %s215, %s216
      %p225 = scmp.eq.s32.totalorder %s27, 0
      %p226 = por %p224, %p225
      %p227 = scmp.ne.s32.totalorder %s215, %s216
      %p228 = scmp.eq.s32.totalorder %s28, 2
      %p229 = por %p227, %p228
      %p231 = scmp.ne.s32.totalorder %s216, %s230
      %p232 = scmp.eq.s32.totalorder %s28, 0
      %p233 = por %p231, %p232
      %s235 = sadd.s32 %s234, 1
      %p238 = scmp.eq.s32.totalorder %s22, 2
      %p239 = scmp.ne.s32.totalorder %s234, %s236
      %p240 = scmp.eq.s32.totalorder %s22, 0
      %p241 = por %p239, %p240
      %p242 = scmp.ne.s32.totalorder %s234, %s236
      %p243 = scmp.eq.s32.totalorder %s27, 2
      %p244 = por %p242, %p243
      %p245 = scmp.ne.s32.totalorder %s236, %s237
      %p246 = scmp.eq.s32.totalorder %s27, 0
      %p247 = por %p245, %p246
      %p248 = scmp.ne.s32.totalorder %s236, %s237
      %p249 = scmp.eq.s32.totalorder %s28, 2
      %p250 = por %p248, %p249
      %p252 = scmp.ne.s32.totalorder %s237, %s251
      %p253 = scmp.eq.s32.totalorder %s28, 0
      %p254 = por %p252, %p253
      %s256 = sadd.s32 %s255, 1
      %p259 = scmp.eq.s32.totalorder %s22, 2
      %p260 = scmp.ne.s32.totalorder %s255, %s257
      %p261 = scmp.eq.s32.totalorder %s22, 0
      %p262 = por %p260, %p261
      %p263 = scmp.ne.s32.totalorder %s255, %s257
      %p264 = scmp.eq.s32.totalorder %s27, 2
      %p265 = por %p263, %p264
      %p266 = scmp.ne.s32.totalorder %s257, %s258
      %p267 = scmp.eq.s32.totalorder %s27, 0
      %p268 = por %p266, %p267
      %p269 = scmp.ne.s32.totalorder %s257, %s258
      %p270 = scmp.eq.s32.totalorder %s28, 2
      %p271 = por %p269, %p270
      %p273 = scmp.ne.s32.totalorder %s258, %s272
      %p274 = scmp.eq.s32.totalorder %s28, 0
      %p275 = por %p273, %p274
      %s276 = ssub.s32 %s22, %s29
      %p277 = scmp.eq.s32.totalorder %s276, 0
      %s279 = sadd.s32 %s278, 1
      %s280 = scalar_select %p277, %s278, %s279
      %p283 = pneg %p277
      %p284 = scmp.eq.s32.totalorder %s22, 2
      %p285 = por %p283, %p284
      %p286 = scmp.ne.s32.totalorder %s278, %s281
      %p287 = scmp.eq.s32.totalorder %s22, 0
      %p288 = por %p286, %p287
      %p289 = scmp.ne.s32.totalorder %s278, %s281
      %p290 = scmp.eq.s32.totalorder %s27, 2
      %p291 = por %p289, %p290
      %p292 = scmp.ne.s32.totalorder %s281, %s282
      %p293 = scmp.eq.s32.totalorder %s27, 0
      %p294 = por %p292, %p293
      %p295 = scmp.ne.s32.totalorder %s281, %s282
      %p296 = scmp.eq.s32.totalorder %s28, 2
      %p297 = por %p295, %p296
      %p299 = scmp.ne.s32.totalorder %s282, %s298
      %p300 = scmp.eq.s32.totalorder %s28, 0
      %p301 = por %p299, %p300
      %p302 = scmp.le.s32.totalorder 1, %s22
      %p303 = scmp.lt.s32.totalorder %s22, 4
      %p304 = pnand %p302, %p303
      %p305 = pneg %p304
      // Predicated region
      $region9: #{tpu_custom_call.1} parent=5 // pred_check
        _
      $region10: #{tpu_custom_call.1} parent=5 // pred_check_branch
        %307 = sbr.rel (%p304) target = $region12
      $region11: #{tpu_custom_call.1} parent=5 // pred_region
        %s308 = ssub.s32 %s22, 1
        // Predicated region
        $region13: #{tpu_custom_call.1} parent=11 // pred_check
          %p309 = pneg %p43
        $region14: #{tpu_custom_call.1} parent=11 // pred_check_branch
          %311 = sbr.rel (%p309) target = $region16
        $region15: #{tpu_custom_call.1} parent=11 // pred_region
          _
        $region16: #{tpu_custom_call.1} parent=11 // pred_fallthru
          _
        // Predicated region
        $region17: #{tpu_custom_call.1} parent=11 // pred_check
          %p312 = pneg %p90
        $region18: #{tpu_custom_call.1} parent=11 // pred_check_branch
          %314 = sbr.rel (%p312) target = $region20
        $region19: #{tpu_custom_call.1} parent=11 // pred_region
          _
        $region20: #{tpu_custom_call.1} parent=11 // pred_fallthru
          _
        // Predicated region
        $region21: #{tpu_custom_call.1} parent=11 // pred_check
          %p315 = pneg %p111
        $region22: #{tpu_custom_call.1} parent=11 // pred_check_branch
          %317 = sbr.rel (%p315) target = $region24
        $region23: #{tpu_custom_call.1} parent=11 // pred_region
          _
        $region24: #{tpu_custom_call.1} parent=11 // pred_fallthru
          _
        // Predicated region
        $region25: #{tpu_custom_call.1} parent=11 // pred_check
          %p318 = pneg %p132
        $region26: #{tpu_custom_call.1} parent=11 // pred_check_branch
          %320 = sbr.rel (%p318) target = $region28
        $region27: #{tpu_custom_call.1} parent=11 // pred_region
          _
        $region28: #{tpu_custom_call.1} parent=11 // pred_fallthru
          _
        // Predicated region
        $region29: #{tpu_custom_call.1} parent=11 // pred_check
          %p321 = pneg %p153
        $region30: #{tpu_custom_call.1} parent=11 // pred_check_branch
          %323 = sbr.rel (%p321) target = $region32
        $region31: #{tpu_custom_call.1} parent=11 // pred_region
          _
        $region32: #{tpu_custom_call.1} parent=11 // pred_fallthru
          _
        // Predicated region
        $region33: #{tpu_custom_call.1} parent=11 // pred_check
          %p324 = pneg %p226
        $region34: #{tpu_custom_call.1} parent=11 // pred_check_branch
          %326 = sbr.rel (%p324) target = $region36
        $region35: #{tpu_custom_call.1} parent=11 // pred_region
          _
        $region36: #{tpu_custom_call.1} parent=11 // pred_fallthru
          _
        // Predicated region
        $region37: #{tpu_custom_call.1} parent=11 // pred_check
          %p327 = pneg %p247
        $region38: #{tpu_custom_call.1} parent=11 // pred_check_branch
          %329 = sbr.rel (%p327) target = $region40
        $region39: #{tpu_custom_call.1} parent=11 // pred_region
          _
        $region40: #{tpu_custom_call.1} parent=11 // pred_fallthru
          _
      $region12: #{tpu_custom_call.1} parent=5 // pred_fallthru
        _
      %p330 = scmp.lt.s32.totalorder %s22, 3
      // Predicated region
      $region41: #{tpu_custom_call.1} parent=5 // pred_check
        %p331 = pneg %p330
      $region42: #{tpu_custom_call.1} parent=5 // pred_check_branch
        %333 = sbr.rel (%p331) target = $region44
      $region43: #{tpu_custom_call.1} parent=5 // pred_region
        // Predicated region
        $region45: #{tpu_custom_call.1} parent=43 // pred_check
          %p334 = pneg %p63
        $region46: #{tpu_custom_call.1} parent=43 // pred_check_branch
          %336 = sbr.rel (%p334) target = $region48
        $region47: #{tpu_custom_call.1} parent=43 // pred_region
          %s337 = smul.u32 8, %s22
          %p338 = scmp.lt.s32.totalorder %s337, 23
          %s339 = scalar_select %p338, %s337, 23
          %s340 = smul.addr %s339, 8
          %s341 = scalar_lea.vmem %s1, %s340
          %s342 = smul.u32 8, %s22
        $region48: #{tpu_custom_call.1} parent=43 // pred_fallthru
          _
        // Predicated region
        $region49: #{tpu_custom_call.1} parent=43 // pred_check
          %p343 = pneg %p173
        $region50: #{tpu_custom_call.1} parent=43 // pred_check_branch
          %345 = sbr.rel (%p343) target = $region52
        $region51: #{tpu_custom_call.1} parent=43 // pred_region
          %s346 = smul.u32 8, %s22
          %p347 = scmp.lt.s32.totalorder %s346, 23
          %s348 = scalar_select %p347, %s346, 23
          %s349 = smul.addr %s348, 8
          %s350 = scalar_lea.vmem %s6, %s349
          %s351 = smul.u32 8, %s22
        $region52: #{tpu_custom_call.1} parent=43 // pred_fallthru
          _
        // Predicated region
        $region53: #{tpu_custom_call.1} parent=43 // pred_check
          %p352 = pneg %p199
        $region54: #{tpu_custom_call.1} parent=43 // pred_check_branch
          %354 = sbr.rel (%p352) target = $region56
        $region55: #{tpu_custom_call.1} parent=43 // pred_region
          %s355 = smul.u32 8, %s22
          %p356 = scmp.lt.s32.totalorder %s355, 23
          %s357 = scalar_select %p356, %s355, 23
          %s358 = smul.addr %s357, 8
          %s359 = scalar_lea.vmem %s7, %s358
          %s360 = smul.u32 8, %s22
        $region56: #{tpu_custom_call.1} parent=43 // pred_fallthru
          _
      $region44: #{tpu_custom_call.1} parent=5 // pred_fallthru
        _
      %p361 = scmp.le.s32.totalorder 1, %s22
      %p362 = scmp.lt.s32.totalorder %s22, 4
      %p363 = pnand %p361, %p362
      %p364 = pneg %p363
      // Predicated region
      $region57: #{tpu_custom_call.1} parent=5 // pred_check
        _
      $region58: #{tpu_custom_call.1} parent=5 // pred_check_branch
        %366 = sbr.rel (%p363) target = $region60
      $region59: #{tpu_custom_call.1} parent=5 // pred_region
        %s367 = ssub.s32 %s22, 1
        %p368 = pneg %p43
        %p369 = pneg %p40
        %s370 = smul.u32 8, %s27
        %p371 = scmp.lt.s32.totalorder %s370, 23
        %s372 = scalar_select %p371, %s370, 23
        %s373 = smul.addr %s372, 8
        %s374 = scalar_lea.vmem %s1, %s373
        %p375 = pneg %p69
        %p376 = pneg %p66
        %p377 = pneg %p90
        %p378 = pneg %p87
        %p379 = pneg %p111
        %p380 = pneg %p108
        %p381 = pneg %p132
        %p382 = pneg %p129
        %p383 = pneg %p153
        %p384 = pneg %p150
        %s385 = smul.u32 8, %s27
        %p386 = scmp.lt.s32.totalorder %s385, 23
        %s387 = scalar_select %p386, %s385, 23
        %s388 = smul.addr %s387, 8
        %s389 = scalar_lea.vmem %s6, %s388
        %p390 = pneg %p179
        %p391 = pneg %p176
        %s392 = smul.u32 8, %s27
        %p393 = scmp.lt.s32.totalorder %s392, 23
        %s394 = scalar_select %p393, %s392, 23
        %s395 = smul.addr %s394, 8
        %s396 = scalar_lea.vmem %s7, %s395
        %p397 = pneg %p205
        %p398 = pneg %p202
        %p399 = pneg %p226
        %p400 = pneg %p223
        %p401 = pneg %p247
        %p402 = pneg %p244
        %p403 = pneg %p268
        %p404 = pneg %p265
        %p405 = pneg %p294
        %p406 = pneg %p291
        %s407 = sand.u32 %s281, 1
        %s408 = scalar_lea.sflag [#allocation8], %s407
        %s409 = sand.u32 %s281, 1
        %s410 = smul.addr %s409, 64
        %s411 = scalar_lea.vmem [#allocation7], %s410
        %s412 = smul.u32 8, %s27
        %p413 = scmp.lt.s32.totalorder %s412, 23
        %s414 = scalar_select %p413, %s412, 23
        %s415 = smul.addr %s414, 8
        %s416 = scalar_lea.vmem %s1, %s415
        %s417 = smul.u32 8, %s27
        %s418 = smul.u32 8, %s27
        %p419 = scmp.lt.s32.totalorder %s418, 23
        %s420 = scalar_select %p419, %s418, 23
        %s421 = smul.addr %s420, 8
        %s422 = scalar_lea.vmem %s6, %s421
        %s423 = smul.u32 8, %s27
        %s424 = smul.u32 8, %s27
        %p425 = scmp.lt.s32.totalorder %s424, 23
        %s426 = scalar_select %p425, %s424, 23
        %s427 = smul.addr %s426, 8
        %s428 = scalar_lea.vmem %s7, %s427
        %s429 = smul.u32 8, %s27
        %s430 = smul.u32 8, %s27
        %p431 = scmp.eq.s32.totalorder %s27, 0
        // Predicated region
        $region61: #{tpu_custom_call.1} parent=59 // pred_check
          %p432 = pneg %p431
        $region62: #{tpu_custom_call.1} parent=59 // pred_check_branch
          %434 = sbr.rel (%p432) target = $region64
        $region63: #{tpu_custom_call.1} parent=59 // pred_region
          %v435 = vld [vmem:[%s0] sm:$0xff]
          %v436 = vld [vmem:[%s0 + $0x8] sm:$0xff]
          %v437 = vld [vmem:[%s0 + $0x10] sm:$0xff]
          %v438 = vld [vmem:[%s2] sm:$0xff]
          %v439 = vld [vmem:[%s2 + $0x8] sm:$0xff]
          %v440 = vld [vmem:[%s2 + $0x10] sm:$0xff]
          %v441 = vld [vmem:[%s2 + $0x18] sm:$0xff]
          %v442 = vld [vmem:[%s2 + $0x20] sm:$0xff]
          %v443 = vld [vmem:[%s2 + $0x28] sm:$0xff]
          %v444 = vld [vmem:[%s3] sm:$0x7]
          %v446 = vlaneseq
          %v447 = vshrl.u32 %v446, 7
          %v448 = vsub.s32 0, %v447
          %v449 = vrot.slane %v444, %v448
          %v450 = vlaneseq
          %v451 = vshrl.u32 %v450, 7
          %v452 = vsub.s32 1, %v451
          %v453 = vrot.slane %v444, %v452
          %v454 = vlaneseq
          %v455 = vshrl.u32 %v454, 7
          %v456 = vsub.s32 2, %v455
          %v457 = vrot.slane %v444, %v456
          %vm461 = vcmask 130048
          %v463 = vsel %vm461, %v435, 0
          %v466 = vsel %vm461, %v436, 0
          %v469 = vsel %vm461, %v437, 0
          %471 = vmatprep.subr.mxu0 0.0
          %472 = vmatpush1.msra.mxu0 0.0
          %473 = vmatprep.subr.mxu0 0.0
          %474 = vmatpush1.msra.mxu0 0.0
          %475 = vmatprep.subr.mxu0 0.0
          %476 = vmatpush1.msra.mxu0 0.0
          %477 = vmatprep.subr.mxu0 0.0
          %478 = vmatpush1.msra.mxu0 0.0
          %479 = vmatprep.subr.mxu0 0.0
          %480 = vmatpush1.msra.mxu0 0.0
          %481 = vmatprep.subr.mxu0 0.0
          %482 = vmatpush1.msra.mxu0 0.0
          %483 = vmatprep.subr.mxu0 0.0
          %484 = vmatpush1.msra.mxu0 0.0
          %485 = vmatprep.subr.mxu0 0.0
          %486 = vmatpush1.msra.mxu0 0.0
          %487 = vmatprep.subr.mxu0 0.0
          %488 = vmatpush1.msra.mxu0 0.0
          %489 = vmatprep.subr.mxu0 0.0
          %490 = vmatpush1.msra.mxu0 0.0
          %491 = vmatprep.subr.mxu0 0.0
          %492 = vmatpush1.msra.mxu0 0.0
          %493 = vmatprep.subr.mxu0 0.0
          %494 = vmatpush1.msra.mxu0 0.0
          %495 = vmatprep.subr.mxu0 0.0
          %496 = vmatpush1.msra.mxu0 0.0
          %497 = vmatprep.subr.mxu0 0.0
          %498 = vmatpush1.msra.mxu0 0.0
          %v499 = vand.u32 %v442, 4294901760
          %500 = vmatprep.subr.mxu0 %v499
          %v501 = vand.u32 %v441, 4294901760
          %502 = vmatpush1.msra.mxu0 %v501
          %v503 = vand.u32 %v439, 4294901760
          %504 = vmatprep.subr.mxu0 %v503
          %v505 = vand.u32 %v438, 4294901760
          %506 = vmatpush1.msra.mxu0 %v505
          %507 = vmatprep.subr.mxu0 0.0
          %508 = vmatpush2.msra.mxu0 0.0
          %509 = vmatprep.subr.mxu0 0.0
          %510 = vmatpush2.msra.mxu0 0.0
          %511 = vmatprep.subr.mxu0 0.0
          %512 = vmatpush2.msra.mxu0 0.0
          %513 = vmatprep.subr.mxu0 0.0
          %514 = vmatpush2.msra.mxu0 0.0
          %515 = vmatprep.subr.mxu0 0.0
          %516 = vmatpush2.msra.mxu0 0.0
          %517 = vmatprep.subr.mxu0 0.0
          %518 = vmatpush2.msra.mxu0 0.0
          %519 = vmatprep.subr.mxu0 0.0
          %520 = vmatpush2.msra.mxu0 0.0
          %521 = vmatprep.subr.mxu0 0.0
          %522 = vmatpush2.msra.mxu0 0.0
          %523 = vmatprep.subr.mxu0 0.0
          %524 = vmatpush2.msra.mxu0 0.0
          %525 = vmatprep.subr.mxu0 0.0
          %526 = vmatpush2.msra.mxu0 0.0
          %527 = vmatprep.subr.mxu0 0.0
          %528 = vmatpush2.msra.mxu0 0.0
          %529 = vmatprep.subr.mxu0 0.0
          %530 = vmatpush2.msra.mxu0 0.0
          %531 = vmatprep.subr.mxu0 0.0
          %532 = vmatpush2.msra.mxu0 0.0
          %533 = vmatprep.subr.mxu0 0.0
          %534 = vmatpush2.msra.mxu0 0.0
          %535 = vmatprep.subr.mxu0 0.0
          %536 = vmatpush2.msra.mxu0 0.0
          %537 = vmatprep.subr.mxu0 0.0
          %538 = vmatpush2.msra.mxu0 0.0
          %539 = vmatprep.mubr.f32.mxu0 0.0
          %v540 = vand.u32 %v463, 4294901760
          %v541 = vsub.f32 %v463, %v540
          %v542 = vand.u32 %v541, 4294901760
          %v543 = vsub.f32 %v541, %v542
          %v544 = vand.u32 %v543, 4294901760
          %545 = vmatmul.mubr.f32.gmra.mxu0 %v544
          %v546 = vpop.f32.mrf.mxu0
          %v547 = vadd.f32 %v449, %v546
          %v548 = vpop.f32.mrf.mxu0
          %v549 = vadd.f32 %v453, %v548
          %550 = vmatprep.mubr.f32.mxu0 0.0
          %v551 = vand.u32 %v466, 4294901760
          %v552 = vsub.f32 %v466, %v551
          %v553 = vand.u32 %v552, 4294901760
          %v554 = vsub.f32 %v552, %v553
          %v555 = vand.u32 %v554, 4294901760
          %556 = vmatmul.mubr.f32.gmra.mxu0 %v555
          %v557 = vpop.f32.mrf.mxu0
          %v558 = vadd.f32 %v449, %v557
          %v559 = vpop.f32.mrf.mxu0
          %v560 = vadd.f32 %v453, %v559
          %561 = vmatprep.mubr.f32.mxu0 0.0
          %v562 = vand.u32 %v469, 4294901760
          %v563 = vsub.f32 %v469, %v562
          %v564 = vand.u32 %v563, 4294901760
          %v565 = vsub.f32 %v563, %v564
          %v566 = vand.u32 %v565, 4294901760
          %567 = vmatmul.mubr.f32.gmra.mxu0 %v566
          %v568 = vpop.f32.mrf.mxu0
          %v569 = vadd.f32 %v449, %v568
          %v570 = vpop.f32.mrf.mxu0
          %v571 = vadd.f32 %v453, %v570
          %572 = vdwg.mxu0
          %573 = vmatprep.subr.mxu0 0.0
          %574 = vmatpush1.msra.mxu0 0.0
          %575 = vmatprep.subr.mxu0 0.0
          %576 = vmatpush1.msra.mxu0 0.0
          %577 = vmatprep.subr.mxu0 0.0
          %578 = vmatpush1.msra.mxu0 0.0
          %579 = vmatprep.subr.mxu0 0.0
          %580 = vmatpush1.msra.mxu0 0.0
          %581 = vmatprep.subr.mxu0 0.0
          %582 = vmatpush1.msra.mxu0 0.0
          %583 = vmatprep.subr.mxu0 0.0
          %584 = vmatpush1.msra.mxu0 0.0
          %585 = vmatprep.subr.mxu0 0.0
          %586 = vmatpush1.msra.mxu0 0.0
          %587 = vmatprep.subr.mxu0 0.0
          %588 = vmatpush1.msra.mxu0 0.0
          %589 = vmatprep.subr.mxu0 0.0
          %590 = vmatpush1.msra.mxu0 0.0
          %591 = vmatprep.subr.mxu0 0.0
          %592 = vmatpush1.msra.mxu0 0.0
          %593 = vmatprep.subr.mxu0 0.0
          %594 = vmatpush1.msra.mxu0 0.0
          %595 = vmatprep.subr.mxu0 0.0
          %596 = vmatpush1.msra.mxu0 0.0
          %597 = vmatprep.subr.mxu0 0.0
          %598 = vmatpush1.msra.mxu0 0.0
          %599 = vmatprep.subr.mxu0 0.0
          %600 = vmatpush1.msra.mxu0 0.0
          %v601 = vand.u32 %v442, 4294901760
          %v602 = vsub.f32 %v442, %v601
          %v603 = vand.u32 %v602, 4294901760
          %v604 = vsub.f32 %v602, %v603
          %v605 = vand.u32 %v604, 4294901760
          %606 = vmatprep.subr.mxu0 %v605
          %v607 = vand.u32 %v441, 4294901760
          %v608 = vsub.f32 %v441, %v607
          %v609 = vand.u32 %v608, 4294901760
          %v610 = vsub.f32 %v608, %v609
          %v611 = vand.u32 %v610, 4294901760
          %612 = vmatpush1.msra.mxu0 %v611
          %v613 = vand.u32 %v439, 4294901760
          %v614 = vsub.f32 %v439, %v613
          %v615 = vand.u32 %v614, 4294901760
          %v616 = vsub.f32 %v614, %v615
          %v617 = vand.u32 %v616, 4294901760
          %618 = vmatprep.subr.mxu0 %v617
          %v619 = vand.u32 %v438, 4294901760
          %v620 = vsub.f32 %v438, %v619
          %v621 = vand.u32 %v620, 4294901760
          %v622 = vsub.f32 %v620, %v621
          %v623 = vand.u32 %v622, 4294901760
          %624 = vmatpush1.msra.mxu0 %v623
          %625 = vmatprep.subr.mxu0 0.0
          %626 = vmatpush2.msra.mxu0 0.0
          %627 = vmatprep.subr.mxu0 0.0
          %628 = vmatpush2.msra.mxu0 0.0
          %629 = vmatprep.subr.mxu0 0.0
          %630 = vmatpush2.msra.mxu0 0.0
          %631 = vmatprep.subr.mxu0 0.0
          %632 = vmatpush2.msra.mxu0 0.0
          %633 = vmatprep.subr.mxu0 0.0
          %634 = vmatpush2.msra.mxu0 0.0
          %635 = vmatprep.subr.mxu0 0.0
          %636 = vmatpush2.msra.mxu0 0.0
          %637 = vmatprep.subr.mxu0 0.0
          %638 = vmatpush2.msra.mxu0 0.0
          %639 = vmatprep.subr.mxu0 0.0
          %640 = vmatpush2.msra.mxu0 0.0
          %641 = vmatprep.subr.mxu0 0.0
          %642 = vmatpush2.msra.mxu0 0.0
          %643 = vmatprep.subr.mxu0 0.0
          %644 = vmatpush2.msra.mxu0 0.0
          %645 = vmatprep.subr.mxu0 0.0
          %646 = vmatpush2.msra.mxu0 0.0
          %647 = vmatprep.subr.mxu0 0.0
          %648 = vmatpush2.msra.mxu0 0.0
          %649 = vmatprep.subr.mxu0 0.0
          %650 = vmatpush2.msra.mxu0 0.0
          %651 = vmatprep.subr.mxu0 0.0
          %652 = vmatpush2.msra.mxu0 0.0
          %653 = vmatprep.subr.mxu0 0.0
          %654 = vmatpush2.msra.mxu0 0.0
          %655 = vmatprep.subr.mxu0 0.0
          %656 = vmatpush2.msra.mxu0 0.0
          %657 = vmatprep.mubr.f32.mxu0 0.0
          %v658 = vand.u32 %v463, 4294901760
          %659 = vmatmul.mubr.f32.gmra.mxu0 %v658
          %v660 = vpop.f32.mrf.mxu0
          %v661 = vadd.f32 %v547, %v660
          %v662 = vpop.f32.mrf.mxu0
          %v663 = vadd.f32 %v549, %v662
          %664 = vmatprep.mubr.f32.mxu0 0.0
          %v665 = vand.u32 %v466, 4294901760
          %666 = vmatmul.mubr.f32.gmra.mxu0 %v665
          %v667 = vpop.f32.mrf.mxu0
          %v668 = vadd.f32 %v558, %v667
          %v669 = vpop.f32.mrf.mxu0
          %v670 = vadd.f32 %v560, %v669
          %671 = vmatprep.mubr.f32.mxu0 0.0
          %v672 = vand.u32 %v469, 4294901760
          %673 = vmatmul.mubr.f32.gmra.mxu0 %v672
          %v674 = vpop.f32.mrf.mxu0
          %v675 = vadd.f32 %v569, %v674
          %v676 = vpop.f32.mrf.mxu0
          %v677 = vadd.f32 %v571, %v676
          %678 = vdwg.mxu0
          %679 = vmatprep.subr.mxu0 0.0
          %680 = vmatpush1.msra.mxu0 0.0
          %681 = vmatprep.subr.mxu0 0.0
          %682 = vmatpush1.msra.mxu0 0.0
          %683 = vmatprep.subr.mxu0 0.0
          %684 = vmatpush1.msra.mxu0 0.0
          %685 = vmatprep.subr.mxu0 0.0
          %686 = vmatpush1.msra.mxu0 0.0
          %687 = vmatprep.subr.mxu0 0.0
          %688 = vmatpush1.msra.mxu0 0.0
          %689 = vmatprep.subr.mxu0 0.0
          %690 = vmatpush1.msra.mxu0 0.0
          %691 = vmatprep.subr.mxu0 0.0
          %692 = vmatpush1.msra.mxu0 0.0
          %693 = vmatprep.subr.mxu0 0.0
          %694 = vmatpush1.msra.mxu0 0.0
          %695 = vmatprep.subr.mxu0 0.0
          %696 = vmatpush1.msra.mxu0 0.0
          %697 = vmatprep.subr.mxu0 0.0
          %698 = vmatpush1.msra.mxu0 0.0
          %699 = vmatprep.subr.mxu0 0.0
          %700 = vmatpush1.msra.mxu0 0.0
          %701 = vmatprep.subr.mxu0 0.0
          %702 = vmatpush1.msra.mxu0 0.0
          %703 = vmatprep.subr.mxu0 0.0
          %704 = vmatpush1.msra.mxu0 0.0
          %705 = vmatprep.subr.mxu0 0.0
          %706 = vmatpush1.msra.mxu0 0.0
          %v707 = vand.u32 %v442, 4294901760
          %v708 = vsub.f32 %v442, %v707
          %709 = vmatprep.subr.mxu0 %v708
          %v710 = vand.u32 %v441, 4294901760
          %v711 = vsub.f32 %v441, %v710
          %712 = vmatpush1.msra.mxu0 %v711
          %v713 = vand.u32 %v439, 4294901760
          %v714 = vsub.f32 %v439, %v713
          %715 = vmatprep.subr.mxu0 %v714
          %v716 = vand.u32 %v438, 4294901760
          %v717 = vsub.f32 %v438, %v716
          %718 = vmatpush1.msra.mxu0 %v717
          %719 = vmatprep.subr.mxu0 0.0
          %720 = vmatpush2.msra.mxu0 0.0
          %721 = vmatprep.subr.mxu0 0.0
          %722 = vmatpush2.msra.mxu0 0.0
          %723 = vmatprep.subr.mxu0 0.0
          %724 = vmatpush2.msra.mxu0 0.0
          %725 = vmatprep.subr.mxu0 0.0
          %726 = vmatpush2.msra.mxu0 0.0
          %727 = vmatprep.subr.mxu0 0.0
          %728 = vmatpush2.msra.mxu0 0.0
          %729 = vmatprep.subr.mxu0 0.0
          %730 = vmatpush2.msra.mxu0 0.0
          %731 = vmatprep.subr.mxu0 0.0
          %732 = vmatpush2.msra.mxu0 0.0
          %733 = vmatprep.subr.mxu0 0.0
          %734 = vmatpush2.msra.mxu0 0.0
          %735 = vmatprep.subr.mxu0 0.0
          %736 = vmatpush2.msra.mxu0 0.0
          %737 = vmatprep.subr.mxu0 0.0
          %738 = vmatpush2.msra.mxu0 0.0
          %739 = vmatprep.subr.mxu0 0.0
          %740 = vmatpush2.msra.mxu0 0.0
          %741 = vmatprep.subr.mxu0 0.0
          %742 = vmatpush2.msra.mxu0 0.0
          %743 = vmatprep.subr.mxu0 0.0
          %744 = vmatpush2.msra.mxu0 0.0
          %745 = vmatprep.subr.mxu0 0.0
          %746 = vmatpush2.msra.mxu0 0.0
          %747 = vmatprep.subr.mxu0 0.0
          %748 = vmatpush2.msra.mxu0 0.0
          %749 = vmatprep.subr.mxu0 0.0
          %750 = vmatpush2.msra.mxu0 0.0
          %751 = vmatprep.mubr.f32.mxu0 0.0
          %v752 = vand.u32 %v463, 4294901760
          %v753 = vsub.f32 %v463, %v752
          %754 = vmatmul.mubr.f32.gmra.mxu0 %v753
          %v755 = vpop.f32.mrf.mxu0
          %v756 = vadd.f32 %v661, %v755
          %v757 = vpop.f32.mrf.mxu0
          %v758 = vadd.f32 %v663, %v757
          %759 = vmatprep.mubr.f32.mxu0 0.0
          %v760 = vand.u32 %v466, 4294901760
          %v761 = vsub.f32 %v466, %v760
          %762 = vmatmul.mubr.f32.gmra.mxu0 %v761
          %v763 = vpop.f32.mrf.mxu0
          %v764 = vadd.f32 %v668, %v763
          %v765 = vpop.f32.mrf.mxu0
          %v766 = vadd.f32 %v670, %v765
          %767 = vmatprep.mubr.f32.mxu0 0.0
          %v768 = vand.u32 %v469, 4294901760
          %v769 = vsub.f32 %v469, %v768
          %770 = vmatmul.mubr.f32.gmra.mxu0 %v769
          %v771 = vpop.f32.mrf.mxu0
          %v772 = vadd.f32 %v675, %v771
          %v773 = vpop.f32.mrf.mxu0
          %v774 = vadd.f32 %v677, %v773
          %775 = vdwg.mxu0
          %776 = vmatprep.subr.mxu0 0.0
          %777 = vmatpush1.msra.mxu0 0.0
          %778 = vmatprep.subr.mxu0 0.0
          %779 = vmatpush1.msra.mxu0 0.0
          %780 = vmatprep.subr.mxu0 0.0
          %781 = vmatpush1.msra.mxu0 0.0
          %782 = vmatprep.subr.mxu0 0.0
          %783 = vmatpush1.msra.mxu0 0.0
          %784 = vmatprep.subr.mxu0 0.0
          %785 = vmatpush1.msra.mxu0 0.0
          %786 = vmatprep.subr.mxu0 0.0
          %787 = vmatpush1.msra.mxu0 0.0
          %788 = vmatprep.subr.mxu0 0.0
          %789 = vmatpush1.msra.mxu0 0.0
          %790 = vmatprep.subr.mxu0 0.0
          %791 = vmatpush1.msra.mxu0 0.0
          %792 = vmatprep.subr.mxu0 0.0
          %793 = vmatpush1.msra.mxu0 0.0
          %794 = vmatprep.subr.mxu0 0.0
          %795 = vmatpush1.msra.mxu0 0.0
          %796 = vmatprep.subr.mxu0 0.0
          %797 = vmatpush1.msra.mxu0 0.0
          %798 = vmatprep.subr.mxu0 0.0
          %799 = vmatpush1.msra.mxu0 0.0
          %800 = vmatprep.subr.mxu0 0.0
          %801 = vmatpush1.msra.mxu0 0.0
          %802 = vmatprep.subr.mxu0 0.0
          %803 = vmatpush1.msra.mxu0 0.0
          %v804 = vand.u32 %v442, 4294901760
          %805 = vmatprep.subr.mxu0 %v804
          %v806 = vand.u32 %v441, 4294901760
          %807 = vmatpush1.msra.mxu0 %v806
          %v808 = vand.u32 %v439, 4294901760
          %809 = vmatprep.subr.mxu0 %v808
          %v810 = vand.u32 %v438, 4294901760
          %811 = vmatpush1.msra.mxu0 %v810
          %812 = vmatprep.subr.mxu0 0.0
          %813 = vmatpush2.msra.mxu0 0.0
          %814 = vmatprep.subr.mxu0 0.0
          %815 = vmatpush2.msra.mxu0 0.0
          %816 = vmatprep.subr.mxu0 0.0
          %817 = vmatpush2.msra.mxu0 0.0
          %818 = vmatprep.subr.mxu0 0.0
          %819 = vmatpush2.msra.mxu0 0.0
          %820 = vmatprep.subr.mxu0 0.0
          %821 = vmatpush2.msra.mxu0 0.0
          %822 = vmatprep.subr.mxu0 0.0
          %823 = vmatpush2.msra.mxu0 0.0
          %824 = vmatprep.subr.mxu0 0.0
          %825 = vmatpush2.msra.mxu0 0.0
          %826 = vmatprep.subr.mxu0 0.0
          %827 = vmatpush2.msra.mxu0 0.0
          %828 = vmatprep.subr.mxu0 0.0
          %829 = vmatpush2.msra.mxu0 0.0
          %830 = vmatprep.subr.mxu0 0.0
          %831 = vmatpush2.msra.mxu0 0.0
          %832 = vmatprep.subr.mxu0 0.0
          %833 = vmatpush2.msra.mxu0 0.0
          %834 = vmatprep.subr.mxu0 0.0
          %835 = vmatpush2.msra.mxu0 0.0
          %836 = vmatprep.subr.mxu0 0.0
          %837 = vmatpush2.msra.mxu0 0.0
          %838 = vmatprep.subr.mxu0 0.0
          %839 = vmatpush2.msra.mxu0 0.0
          %840 = vmatprep.subr.mxu0 0.0
          %841 = vmatpush2.msra.mxu0 0.0
          %842 = vmatprep.subr.mxu0 0.0
          %843 = vmatpush2.msra.mxu0 0.0
          %844 = vmatprep.mubr.f32.mxu0 0.0
          %v845 = vand.u32 %v463, 4294901760
          %v846 = vsub.f32 %v463, %v845
          %v847 = vand.u32 %v846, 4294901760
          %848 = vmatmul.mubr.f32.gmra.mxu0 %v847
          %v849 = vpop.f32.mrf.mxu0
          %v850 = vadd.f32 %v756, %v849
          %v851 = vpop.f32.mrf.mxu0
          %v852 = vadd.f32 %v758, %v851
          %853 = vmatprep.mubr.f32.mxu0 0.0
          %v854 = vand.u32 %v466, 4294901760
          %v855 = vsub.f32 %v466, %v854
          %v856 = vand.u32 %v855, 4294901760
          %857 = vmatmul.mubr.f32.gmra.mxu0 %v856
          %v858 = vpop.f32.mrf.mxu0
          %v859 = vadd.f32 %v764, %v858
          %v860 = vpop.f32.mrf.mxu0
          %v861 = vadd.f32 %v766, %v860
          %862 = vmatprep.mubr.f32.mxu0 0.0
          %v863 = vand.u32 %v469, 4294901760
          %v864 = vsub.f32 %v469, %v863
          %v865 = vand.u32 %v864, 4294901760
          %866 = vmatmul.mubr.f32.gmra.mxu0 %v865
          %v867 = vpop.f32.mrf.mxu0
          %v868 = vadd.f32 %v772, %v867
          %v869 = vpop.f32.mrf.mxu0
          %v870 = vadd.f32 %v774, %v869
          %871 = vdwg.mxu0
          %872 = vmatprep.subr.mxu0 0.0
          %873 = vmatpush1.msra.mxu0 0.0
          %874 = vmatprep.subr.mxu0 0.0
          %875 = vmatpush1.msra.mxu0 0.0
          %876 = vmatprep.subr.mxu0 0.0
          %877 = vmatpush1.msra.mxu0 0.0
          %878 = vmatprep.subr.mxu0 0.0
          %879 = vmatpush1.msra.mxu0 0.0
          %880 = vmatprep.subr.mxu0 0.0
          %881 = vmatpush1.msra.mxu0 0.0
          %882 = vmatprep.subr.mxu0 0.0
          %883 = vmatpush1.msra.mxu0 0.0
          %884 = vmatprep.subr.mxu0 0.0
          %885 = vmatpush1.msra.mxu0 0.0
          %886 = vmatprep.subr.mxu0 0.0
          %887 = vmatpush1.msra.mxu0 0.0
          %888 = vmatprep.subr.mxu0 0.0
          %889 = vmatpush1.msra.mxu0 0.0
          %890 = vmatprep.subr.mxu0 0.0
          %891 = vmatpush1.msra.mxu0 0.0
          %892 = vmatprep.subr.mxu0 0.0
          %893 = vmatpush1.msra.mxu0 0.0
          %894 = vmatprep.subr.mxu0 0.0
          %895 = vmatpush1.msra.mxu0 0.0
          %896 = vmatprep.subr.mxu0 0.0
          %897 = vmatpush1.msra.mxu0 0.0
          %898 = vmatprep.subr.mxu0 0.0
          %899 = vmatpush1.msra.mxu0 0.0
          %v900 = vand.u32 %v442, 4294901760
          %v901 = vsub.f32 %v442, %v900
          %v902 = vand.u32 %v901, 4294901760
          %903 = vmatprep.subr.mxu0 %v902
          %v904 = vand.u32 %v441, 4294901760
          %v905 = vsub.f32 %v441, %v904
          %v906 = vand.u32 %v905, 4294901760
          %907 = vmatpush1.msra.mxu0 %v906
          %v908 = vand.u32 %v439, 4294901760
          %v909 = vsub.f32 %v439, %v908
          %v910 = vand.u32 %v909, 4294901760
          %911 = vmatprep.subr.mxu0 %v910
          %v912 = vand.u32 %v438, 4294901760
          %v913 = vsub.f32 %v438, %v912
          %v914 = vand.u32 %v913, 4294901760
          %915 = vmatpush1.msra.mxu0 %v914
          %916 = vmatprep.subr.mxu0 0.0
          %917 = vmatpush2.msra.mxu0 0.0
          %918 = vmatprep.subr.mxu0 0.0
          %919 = vmatpush2.msra.mxu0 0.0
          %920 = vmatprep.subr.mxu0 0.0
          %921 = vmatpush2.msra.mxu0 0.0
          %922 = vmatprep.subr.mxu0 0.0
          %923 = vmatpush2.msra.mxu0 0.0
          %924 = vmatprep.subr.mxu0 0.0
          %925 = vmatpush2.msra.mxu0 0.0
          %926 = vmatprep.subr.mxu0 0.0
          %927 = vmatpush2.msra.mxu0 0.0
          %928 = vmatprep.subr.mxu0 0.0
          %929 = vmatpush2.msra.mxu0 0.0
          %930 = vmatprep.subr.mxu0 0.0
          %931 = vmatpush2.msra.mxu0 0.0
          %932 = vmatprep.subr.mxu0 0.0
          %933 = vmatpush2.msra.mxu0 0.0
          %934 = vmatprep.subr.mxu0 0.0
          %935 = vmatpush2.msra.mxu0 0.0
          %936 = vmatprep.subr.mxu0 0.0
          %937 = vmatpush2.msra.mxu0 0.0
          %938 = vmatprep.subr.mxu0 0.0
          %939 = vmatpush2.msra.mxu0 0.0
          %940 = vmatprep.subr.mxu0 0.0
          %941 = vmatpush2.msra.mxu0 0.0
          %942 = vmatprep.subr.mxu0 0.0
          %943 = vmatpush2.msra.mxu0 0.0
          %944 = vmatprep.subr.mxu0 0.0
          %945 = vmatpush2.msra.mxu0 0.0
          %946 = vmatprep.subr.mxu0 0.0
          %947 = vmatpush2.msra.mxu0 0.0
          %948 = vmatprep.mubr.f32.mxu0 0.0
          %v949 = vand.u32 %v463, 4294901760
          %950 = vmatmul.mubr.f32.gmra.mxu0 %v949
          %v951 = vpop.f32.mrf.mxu0
          %v952 = vadd.f32 %v850, %v951
          %v953 = vpop.f32.mrf.mxu0
          %v954 = vadd.f32 %v852, %v953
          %955 = vmatprep.mubr.f32.mxu0 0.0
          %v956 = vand.u32 %v466, 4294901760
          %957 = vmatmul.mubr.f32.gmra.mxu0 %v956
          %v958 = vpop.f32.mrf.mxu0
          %v959 = vadd.f32 %v859, %v958
          %v960 = vpop.f32.mrf.mxu0
          %v961 = vadd.f32 %v861, %v960
          %962 = vmatprep.mubr.f32.mxu0 0.0
          %v963 = vand.u32 %v469, 4294901760
          %964 = vmatmul.mubr.f32.gmra.mxu0 %v963
          %v965 = vpop.f32.mrf.mxu0
          %v966 = vadd.f32 %v868, %v965
          %v967 = vpop.f32.mrf.mxu0
          %v968 = vadd.f32 %v870, %v967
          %969 = vdwg.mxu0
          %970 = vmatprep.subr.mxu0 0.0
          %971 = vmatpush1.msra.mxu0 0.0
          %972 = vmatprep.subr.mxu0 0.0
          %973 = vmatpush1.msra.mxu0 0.0
          %974 = vmatprep.subr.mxu0 0.0
          %975 = vmatpush1.msra.mxu0 0.0
          %976 = vmatprep.subr.mxu0 0.0
          %977 = vmatpush1.msra.mxu0 0.0
          %978 = vmatprep.subr.mxu0 0.0
          %979 = vmatpush1.msra.mxu0 0.0
          %980 = vmatprep.subr.mxu0 0.0
          %981 = vmatpush1.msra.mxu0 0.0
          %982 = vmatprep.subr.mxu0 0.0
          %983 = vmatpush1.msra.mxu0 0.0
          %984 = vmatprep.subr.mxu0 0.0
          %985 = vmatpush1.msra.mxu0 0.0
          %986 = vmatprep.subr.mxu0 0.0
          %987 = vmatpush1.msra.mxu0 0.0
          %988 = vmatprep.subr.mxu0 0.0
          %989 = vmatpush1.msra.mxu0 0.0
          %990 = vmatprep.subr.mxu0 0.0
          %991 = vmatpush1.msra.mxu0 0.0
          %992 = vmatprep.subr.mxu0 0.0
          %993 = vmatpush1.msra.mxu0 0.0
          %994 = vmatprep.subr.mxu0 0.0
          %995 = vmatpush1.msra.mxu0 0.0
          %996 = vmatprep.subr.mxu0 0.0
          %997 = vmatpush1.msra.mxu0 0.0
          %v998 = vand.u32 %v442, 4294901760
          %999 = vmatprep.subr.mxu0 %v998
          %v1000 = vand.u32 %v441, 4294901760
          %1001 = vmatpush1.msra.mxu0 %v1000
          %v1002 = vand.u32 %v439, 4294901760
          %1003 = vmatprep.subr.mxu0 %v1002
          %v1004 = vand.u32 %v438, 4294901760
          %1005 = vmatpush1.msra.mxu0 %v1004
          %1006 = vmatprep.subr.mxu0 0.0
          %1007 = vmatpush2.msra.mxu0 0.0
          %1008 = vmatprep.subr.mxu0 0.0
          %1009 = vmatpush2.msra.mxu0 0.0
          %1010 = vmatprep.subr.mxu0 0.0
          %1011 = vmatpush2.msra.mxu0 0.0
          %1012 = vmatprep.subr.mxu0 0.0
          %1013 = vmatpush2.msra.mxu0 0.0
          %1014 = vmatprep.subr.mxu0 0.0
          %1015 = vmatpush2.msra.mxu0 0.0
          %1016 = vmatprep.subr.mxu0 0.0
          %1017 = vmatpush2.msra.mxu0 0.0
          %1018 = vmatprep.subr.mxu0 0.0
          %1019 = vmatpush2.msra.mxu0 0.0
          %1020 = vmatprep.subr.mxu0 0.0
          %1021 = vmatpush2.msra.mxu0 0.0
          %1022 = vmatprep.subr.mxu0 0.0
          %1023 = vmatpush2.msra.mxu0 0.0
          %1024 = vmatprep.subr.mxu0 0.0
          %1025 = vmatpush2.msra.mxu0 0.0
          %1026 = vmatprep.subr.mxu0 0.0
          %1027 = vmatpush2.msra.mxu0 0.0
          %1028 = vmatprep.subr.mxu0 0.0
          %1029 = vmatpush2.msra.mxu0 0.0
          %1030 = vmatprep.subr.mxu0 0.0
          %1031 = vmatpush2.msra.mxu0 0.0
          %1032 = vmatprep.subr.mxu0 0.0
          %1033 = vmatpush2.msra.mxu0 0.0
          %1034 = vmatprep.subr.mxu0 0.0
          %1035 = vmatpush2.msra.mxu0 0.0
          %1036 = vmatprep.subr.mxu0 0.0
          %1037 = vmatpush2.msra.mxu0 0.0
          %1038 = vmatprep.mubr.f32.mxu0 0.0
          %v1039 = vand.u32 %v463, 4294901760
          %1040 = vmatmul.mubr.f32.gmra.mxu0 %v1039
          %v1041 = vpop.f32.mrf.mxu0
          %v1042 = vadd.f32 %v952, %v1041
          %v1043 = vpop.f32.mrf.mxu0
          %v1044 = vadd.f32 %v954, %v1043
          %1045 = vmatprep.mubr.f32.mxu0 0.0
          %v1046 = vand.u32 %v466, 4294901760
          %1047 = vmatmul.mubr.f32.gmra.mxu0 %v1046
          %v1048 = vpop.f32.mrf.mxu0
          %v1049 = vadd.f32 %v959, %v1048
          %v1050 = vpop.f32.mrf.mxu0
          %v1051 = vadd.f32 %v961, %v1050
          %1052 = vmatprep.mubr.f32.mxu0 0.0
          %v1053 = vand.u32 %v469, 4294901760
          %1054 = vmatmul.mubr.f32.gmra.mxu0 %v1053
          %v1055 = vpop.f32.mrf.mxu0
          %v1056 = vadd.f32 %v966, %v1055
          %v1057 = vpop.f32.mrf.mxu0
          %v1058 = vadd.f32 %v968, %v1057
          %1059 = vdwg.mxu0
          %1060 = vmatprep.subr.mxu0 0.0
          %1061 = vmatpush1.msra.mxu0 0.0
          %1062 = vmatprep.subr.mxu0 0.0
          %1063 = vmatpush1.msra.mxu0 0.0
          %1064 = vmatprep.subr.mxu0 0.0
          %1065 = vmatpush1.msra.mxu0 0.0
          %1066 = vmatprep.subr.mxu0 0.0
          %1067 = vmatpush1.msra.mxu0 0.0
          %1068 = vmatprep.subr.mxu0 0.0
          %1069 = vmatpush1.msra.mxu0 0.0
          %1070 = vmatprep.subr.mxu0 0.0
          %1071 = vmatpush1.msra.mxu0 0.0
          %1072 = vmatprep.subr.mxu0 0.0
          %1073 = vmatpush1.msra.mxu0 0.0
          %1074 = vmatprep.subr.mxu0 0.0
          %1075 = vmatpush1.msra.mxu0 0.0
          %1076 = vmatprep.subr.mxu0 0.0
          %1077 = vmatpush1.msra.mxu0 0.0
          %1078 = vmatprep.subr.mxu0 0.0
          %1079 = vmatpush1.msra.mxu0 0.0
          %1080 = vmatprep.subr.mxu0 0.0
          %1081 = vmatpush1.msra.mxu0 0.0
          %1082 = vmatprep.subr.mxu0 0.0
          %1083 = vmatpush1.msra.mxu0 0.0
          %1084 = vmatprep.subr.mxu0 0.0
          %1085 = vmatpush1.msra.mxu0 0.0
          %1086 = vmatprep.subr.mxu0 0.0
          %1087 = vmatpush1.msra.mxu0 0.0
          %1088 = vmatprep.subr.mxu0 0.0
          %v1089 = vand.u32 %v443, 4294901760
          %1090 = vmatpush1.msra.mxu0 %v1089
          %1091 = vmatprep.subr.mxu0 0.0
          %v1092 = vand.u32 %v440, 4294901760
          %1093 = vmatpush1.msra.mxu0 %v1092
          %1094 = vmatprep.subr.mxu0 0.0
          %1095 = vmatpush2.msra.mxu0 0.0
          %1096 = vmatprep.subr.mxu0 0.0
          %1097 = vmatpush2.msra.mxu0 0.0
          %1098 = vmatprep.subr.mxu0 0.0
          %1099 = vmatpush2.msra.mxu0 0.0
          %1100 = vmatprep.subr.mxu0 0.0
          %1101 = vmatpush2.msra.mxu0 0.0
          %1102 = vmatprep.subr.mxu0 0.0
          %1103 = vmatpush2.msra.mxu0 0.0
          %1104 = vmatprep.subr.mxu0 0.0
          %1105 = vmatpush2.msra.mxu0 0.0
          %1106 = vmatprep.subr.mxu0 0.0
          %1107 = vmatpush2.msra.mxu0 0.0
          %1108 = vmatprep.subr.mxu0 0.0
          %1109 = vmatpush2.msra.mxu0 0.0
          %1110 = vmatprep.subr.mxu0 0.0
          %1111 = vmatpush2.msra.mxu0 0.0
          %1112 = vmatprep.subr.mxu0 0.0
          %1113 = vmatpush2.msra.mxu0 0.0
          %1114 = vmatprep.subr.mxu0 0.0
          %1115 = vmatpush2.msra.mxu0 0.0
          %1116 = vmatprep.subr.mxu0 0.0
          %1117 = vmatpush2.msra.mxu0 0.0
          %1118 = vmatprep.subr.mxu0 0.0
          %1119 = vmatpush2.msra.mxu0 0.0
          %1120 = vmatprep.subr.mxu0 0.0
          %1121 = vmatpush2.msra.mxu0 0.0
          %1122 = vmatprep.subr.mxu0 0.0
          %1123 = vmatpush2.msra.mxu0 0.0
          %1124 = vmatprep.subr.mxu0 0.0
          %1125 = vmatpush2.msra.mxu0 0.0
          %1126 = vmatprep.mubr.f32.mxu0 0.0
          %v1127 = vand.u32 %v463, 4294901760
          %v1128 = vsub.f32 %v463, %v1127
          %v1129 = vand.u32 %v1128, 4294901760
          %v1130 = vsub.f32 %v1128, %v1129
          %v1131 = vand.u32 %v1130, 4294901760
          %1132 = vmatmul.mubr.f32.gmra.mxu0 %v1131
          %v1133 = vpop.f32.mrf.mxu0
          %v1134 = vadd.f32 %v457, %v1133
          %v1135 = vpop.f32.mrf.mxu0
          %1136 = vmatprep.mubr.f32.mxu0 0.0
          %v1137 = vand.u32 %v466, 4294901760
          %v1138 = vsub.f32 %v466, %v1137
          %v1139 = vand.u32 %v1138, 4294901760
          %v1140 = vsub.f32 %v1138, %v1139
          %v1141 = vand.u32 %v1140, 4294901760
          %1142 = vmatmul.mubr.f32.gmra.mxu0 %v1141
          %v1143 = vpop.f32.mrf.mxu0
          %v1144 = vadd.f32 %v457, %v1143
          %v1145 = vpop.f32.mrf.mxu0
          %1146 = vmatprep.mubr.f32.mxu0 0.0
          %v1147 = vand.u32 %v469, 4294901760
          %v1148 = vsub.f32 %v469, %v1147
          %v1149 = vand.u32 %v1148, 4294901760
          %v1150 = vsub.f32 %v1148, %v1149
          %v1151 = vand.u32 %v1150, 4294901760
          %1152 = vmatmul.mubr.f32.gmra.mxu0 %v1151
          %v1153 = vpop.f32.mrf.mxu0
          %v1154 = vadd.f32 %v457, %v1153
          %v1155 = vpop.f32.mrf.mxu0
          %1156 = vdwg.mxu0
          %1157 = vmatprep.subr.mxu0 0.0
          %1158 = vmatpush1.msra.mxu0 0.0
          %1159 = vmatprep.subr.mxu0 0.0
          %1160 = vmatpush1.msra.mxu0 0.0
          %1161 = vmatprep.subr.mxu0 0.0
          %1162 = vmatpush1.msra.mxu0 0.0
          %1163 = vmatprep.subr.mxu0 0.0
          %1164 = vmatpush1.msra.mxu0 0.0
          %1165 = vmatprep.subr.mxu0 0.0
          %1166 = vmatpush1.msra.mxu0 0.0
          %1167 = vmatprep.subr.mxu0 0.0
          %1168 = vmatpush1.msra.mxu0 0.0
          %1169 = vmatprep.subr.mxu0 0.0
          %1170 = vmatpush1.msra.mxu0 0.0
          %1171 = vmatprep.subr.mxu0 0.0
          %1172 = vmatpush1.msra.mxu0 0.0
          %1173 = vmatprep.subr.mxu0 0.0
          %1174 = vmatpush1.msra.mxu0 0.0
          %1175 = vmatprep.subr.mxu0 0.0
          %1176 = vmatpush1.msra.mxu0 0.0
          %1177 = vmatprep.subr.mxu0 0.0
          %1178 = vmatpush1.msra.mxu0 0.0
          %1179 = vmatprep.subr.mxu0 0.0
          %1180 = vmatpush1.msra.mxu0 0.0
          %1181 = vmatprep.subr.mxu0 0.0
          %1182 = vmatpush1.msra.mxu0 0.0
          %1183 = vmatprep.subr.mxu0 0.0
          %1184 = vmatpush1.msra.mxu0 0.0
          %1185 = vmatprep.subr.mxu0 0.0
          %v1186 = vand.u32 %v443, 4294901760
          %v1187 = vsub.f32 %v443, %v1186
          %v1188 = vand.u32 %v1187, 4294901760
          %v1189 = vsub.f32 %v1187, %v1188
          %v1190 = vand.u32 %v1189, 4294901760
          %1191 = vmatpush1.msra.mxu0 %v1190
          %1192 = vmatprep.subr.mxu0 0.0
          %v1193 = vand.u32 %v440, 4294901760
          %v1194 = vsub.f32 %v440, %v1193
          %v1195 = vand.u32 %v1194, 4294901760
          %v1196 = vsub.f32 %v1194, %v1195
          %v1197 = vand.u32 %v1196, 4294901760
          %1198 = vmatpush1.msra.mxu0 %v1197
          %1199 = vmatprep.subr.mxu0 0.0
          %1200 = vmatpush2.msra.mxu0 0.0
          %1201 = vmatprep.subr.mxu0 0.0
          %1202 = vmatpush2.msra.mxu0 0.0
          %1203 = vmatprep.subr.mxu0 0.0
          %1204 = vmatpush2.msra.mxu0 0.0
          %1205 = vmatprep.subr.mxu0 0.0
          %1206 = vmatpush2.msra.mxu0 0.0
          %1207 = vmatprep.subr.mxu0 0.0
          %1208 = vmatpush2.msra.mxu0 0.0
          %1209 = vmatprep.subr.mxu0 0.0
          %1210 = vmatpush2.msra.mxu0 0.0
          %1211 = vmatprep.subr.mxu0 0.0
          %1212 = vmatpush2.msra.mxu0 0.0
          %1213 = vmatprep.subr.mxu0 0.0
          %1214 = vmatpush2.msra.mxu0 0.0
          %1215 = vmatprep.subr.mxu0 0.0
          %1216 = vmatpush2.msra.mxu0 0.0
          %1217 = vmatprep.subr.mxu0 0.0
          %1218 = vmatpush2.msra.mxu0 0.0
          %1219 = vmatprep.subr.mxu0 0.0
          %1220 = vmatpush2.msra.mxu0 0.0
          %1221 = vmatprep.subr.mxu0 0.0
          %1222 = vmatpush2.msra.mxu0 0.0
          %1223 = vmatprep.subr.mxu0 0.0
          %1224 = vmatpush2.msra.mxu0 0.0
          %1225 = vmatprep.subr.mxu0 0.0
          %1226 = vmatpush2.msra.mxu0 0.0
          %1227 = vmatprep.subr.mxu0 0.0
          %1228 = vmatpush2.msra.mxu0 0.0
          %1229 = vmatprep.subr.mxu0 0.0
          %1230 = vmatpush2.msra.mxu0 0.0
          %1231 = vmatprep.mubr.f32.mxu0 0.0
          %v1232 = vand.u32 %v463, 4294901760
          %1233 = vmatmul.mubr.f32.gmra.mxu0 %v1232
          %v1234 = vpop.f32.mrf.mxu0
          %v1235 = vadd.f32 %v1134, %v1234
          %v1236 = vpop.f32.mrf.mxu0
          %1237 = vmatprep.mubr.f32.mxu0 0.0
          %v1238 = vand.u32 %v466, 4294901760
          %1239 = vmatmul.mubr.f32.gmra.mxu0 %v1238
          %v1240 = vpop.f32.mrf.mxu0
          %v1241 = vadd.f32 %v1144, %v1240
          %v1242 = vpop.f32.mrf.mxu0
          %1243 = vmatprep.mubr.f32.mxu0 0.0
          %v1244 = vand.u32 %v469, 4294901760
          %1245 = vmatmul.mubr.f32.gmra.mxu0 %v1244
          %v1246 = vpop.f32.mrf.mxu0
          %v1247 = vadd.f32 %v1154, %v1246
          %v1248 = vpop.f32.mrf.mxu0
          %1249 = vdwg.mxu0
          %1250 = vmatprep.subr.mxu0 0.0
          %1251 = vmatpush1.msra.mxu0 0.0
          %1252 = vmatprep.subr.mxu0 0.0
          %1253 = vmatpush1.msra.mxu0 0.0
          %1254 = vmatprep.subr.mxu0 0.0
          %1255 = vmatpush1.msra.mxu0 0.0
          %1256 = vmatprep.subr.mxu0 0.0
          %1257 = vmatpush1.msra.mxu0 0.0
          %1258 = vmatprep.subr.mxu0 0.0
          %1259 = vmatpush1.msra.mxu0 0.0
          %1260 = vmatprep.subr.mxu0 0.0
          %1261 = vmatpush1.msra.mxu0 0.0
          %1262 = vmatprep.subr.mxu0 0.0
          %1263 = vmatpush1.msra.mxu0 0.0
          %1264 = vmatprep.subr.mxu0 0.0
          %1265 = vmatpush1.msra.mxu0 0.0
          %1266 = vmatprep.subr.mxu0 0.0
          %1267 = vmatpush1.msra.mxu0 0.0
          %1268 = vmatprep.subr.mxu0 0.0
          %1269 = vmatpush1.msra.mxu0 0.0
          %1270 = vmatprep.subr.mxu0 0.0
          %1271 = vmatpush1.msra.mxu0 0.0
          %1272 = vmatprep.subr.mxu0 0.0
          %1273 = vmatpush1.msra.mxu0 0.0
          %1274 = vmatprep.subr.mxu0 0.0
          %1275 = vmatpush1.msra.mxu0 0.0
          %1276 = vmatprep.subr.mxu0 0.0
          %1277 = vmatpush1.msra.mxu0 0.0
          %1278 = vmatprep.subr.mxu0 0.0
          %v1279 = vand.u32 %v443, 4294901760
          %v1280 = vsub.f32 %v443, %v1279
          %1281 = vmatpush1.msra.mxu0 %v1280
          %1282 = vmatprep.subr.mxu0 0.0
          %v1283 = vand.u32 %v440, 4294901760
          %v1284 = vsub.f32 %v440, %v1283
          %1285 = vmatpush1.msra.mxu0 %v1284
          %1286 = vmatprep.subr.mxu0 0.0
          %1287 = vmatpush2.msra.mxu0 0.0
          %1288 = vmatprep.subr.mxu0 0.0
          %1289 = vmatpush2.msra.mxu0 0.0
          %1290 = vmatprep.subr.mxu0 0.0
          %1291 = vmatpush2.msra.mxu0 0.0
          %1292 = vmatprep.subr.mxu0 0.0
          %1293 = vmatpush2.msra.mxu0 0.0
          %1294 = vmatprep.subr.mxu0 0.0
          %1295 = vmatpush2.msra.mxu0 0.0
          %1296 = vmatprep.subr.mxu0 0.0
          %1297 = vmatpush2.msra.mxu0 0.0
          %1298 = vmatprep.subr.mxu0 0.0
          %1299 = vmatpush2.msra.mxu0 0.0
          %1300 = vmatprep.subr.mxu0 0.0
          %1301 = vmatpush2.msra.mxu0 0.0
          %1302 = vmatprep.subr.mxu0 0.0
          %1303 = vmatpush2.msra.mxu0 0.0
          %1304 = vmatprep.subr.mxu0 0.0
          %1305 = vmatpush2.msra.mxu0 0.0
          %1306 = vmatprep.subr.mxu0 0.0
          %1307 = vmatpush2.msra.mxu0 0.0
          %1308 = vmatprep.subr.mxu0 0.0
          %1309 = vmatpush2.msra.mxu0 0.0
          %1310 = vmatprep.subr.mxu0 0.0
          %1311 = vmatpush2.msra.mxu0 0.0
          %1312 = vmatprep.subr.mxu0 0.0
          %1313 = vmatpush2.msra.mxu0 0.0
          %1314 = vmatprep.subr.mxu0 0.0
          %1315 = vmatpush2.msra.mxu0 0.0
          %1316 = vmatprep.subr.mxu0 0.0
          %1317 = vmatpush2.msra.mxu0 0.0
          %1318 = vmatprep.mubr.f32.mxu0 0.0
          %v1319 = vand.u32 %v463, 4294901760
          %v1320 = vsub.f32 %v463, %v1319
          %1321 = vmatmul.mubr.f32.gmra.mxu0 %v1320
          %v1322 = vpop.f32.mrf.mxu0
          %v1323 = vadd.f32 %v1235, %v1322
          %v1324 = vpop.f32.mrf.mxu0
          %1325 = vmatprep.mubr.f32.mxu0 0.0
          %v1326 = vand.u32 %v466, 4294901760
          %v1327 = vsub.f32 %v466, %v1326
          %1328 = vmatmul.mubr.f32.gmra.mxu0 %v1327
          %v1329 = vpop.f32.mrf.mxu0
          %v1330 = vadd.f32 %v1241, %v1329
          %v1331 = vpop.f32.mrf.mxu0
          %1332 = vmatprep.mubr.f32.mxu0 0.0
          %v1333 = vand.u32 %v469, 4294901760
          %v1334 = vsub.f32 %v469, %v1333
          %1335 = vmatmul.mubr.f32.gmra.mxu0 %v1334
          %v1336 = vpop.f32.mrf.mxu0
          %v1337 = vadd.f32 %v1247, %v1336
          %v1338 = vpop.f32.mrf.mxu0
          %1339 = vdwg.mxu0
          %1340 = vmatprep.subr.mxu0 0.0
          %1341 = vmatpush1.msra.mxu0 0.0
          %1342 = vmatprep.subr.mxu0 0.0
          %1343 = vmatpush1.msra.mxu0 0.0
          %1344 = vmatprep.subr.mxu0 0.0
          %1345 = vmatpush1.msra.mxu0 0.0
          %1346 = vmatprep.subr.mxu0 0.0
          %1347 = vmatpush1.msra.mxu0 0.0
          %1348 = vmatprep.subr.mxu0 0.0
          %1349 = vmatpush1.msra.mxu0 0.0
          %1350 = vmatprep.subr.mxu0 0.0
          %1351 = vmatpush1.msra.mxu0 0.0
          %1352 = vmatprep.subr.mxu0 0.0
          %1353 = vmatpush1.msra.mxu0 0.0
          %1354 = vmatprep.subr.mxu0 0.0
          %1355 = vmatpush1.msra.mxu0 0.0
          %1356 = vmatprep.subr.mxu0 0.0
          %1357 = vmatpush1.msra.mxu0 0.0
          %1358 = vmatprep.subr.mxu0 0.0
          %1359 = vmatpush1.msra.mxu0 0.0
          %1360 = vmatprep.subr.mxu0 0.0
          %1361 = vmatpush1.msra.mxu0 0.0
          %1362 = vmatprep.subr.mxu0 0.0
          %1363 = vmatpush1.msra.mxu0 0.0
          %1364 = vmatprep.subr.mxu0 0.0
          %1365 = vmatpush1.msra.mxu0 0.0
          %1366 = vmatprep.subr.mxu0 0.0
          %1367 = vmatpush1.msra.mxu0 0.0
          %1368 = vmatprep.subr.mxu0 0.0
          %v1369 = vand.u32 %v443, 4294901760
          %1370 = vmatpush1.msra.mxu0 %v1369
          %1371 = vmatprep.subr.mxu0 0.0
          %v1372 = vand.u32 %v440, 4294901760
          %1373 = vmatpush1.msra.mxu0 %v1372
          %1374 = vmatprep.subr.mxu0 0.0
          %1375 = vmatpush2.msra.mxu0 0.0
          %1376 = vmatprep.subr.mxu0 0.0
          %1377 = vmatpush2.msra.mxu0 0.0
          %1378 = vmatprep.subr.mxu0 0.0
          %1379 = vmatpush2.msra.mxu0 0.0
          %1380 = vmatprep.subr.mxu0 0.0
          %1381 = vmatpush2.msra.mxu0 0.0
          %1382 = vmatprep.subr.mxu0 0.0
          %1383 = vmatpush2.msra.mxu0 0.0
          %1384 = vmatprep.subr.mxu0 0.0
          %1385 = vmatpush2.msra.mxu0 0.0
          %1386 = vmatprep.subr.mxu0 0.0
          %1387 = vmatpush2.msra.mxu0 0.0
          %1388 = vmatprep.subr.mxu0 0.0
          %1389 = vmatpush2.msra.mxu0 0.0
          %1390 = vmatprep.subr.mxu0 0.0
          %1391 = vmatpush2.msra.mxu0 0.0
          %1392 = vmatprep.subr.mxu0 0.0
          %1393 = vmatpush2.msra.mxu0 0.0
          %1394 = vmatprep.subr.mxu0 0.0
          %1395 = vmatpush2.msra.mxu0 0.0
          %1396 = vmatprep.subr.mxu0 0.0
          %1397 = vmatpush2.msra.mxu0 0.0
          %1398 = vmatprep.subr.mxu0 0.0
          %1399 = vmatpush2.msra.mxu0 0.0
          %1400 = vmatprep.subr.mxu0 0.0
          %1401 = vmatpush2.msra.mxu0 0.0
          %1402 = vmatprep.subr.mxu0 0.0
          %1403 = vmatpush2.msra.mxu0 0.0
          %1404 = vmatprep.subr.mxu0 0.0
          %1405 = vmatpush2.msra.mxu0 0.0
          %1406 = vmatprep.mubr.f32.mxu0 0.0
          %v1407 = vand.u32 %v463, 4294901760
          %v1408 = vsub.f32 %v463, %v1407
          %v1409 = vand.u32 %v1408, 4294901760
          %1410 = vmatmul.mubr.f32.gmra.mxu0 %v1409
          %v1411 = vpop.f32.mrf.mxu0
          %v1412 = vadd.f32 %v1323, %v1411
          %v1413 = vpop.f32.mrf.mxu0
          %1414 = vmatprep.mubr.f32.mxu0 0.0
          %v1415 = vand.u32 %v466, 4294901760
          %v1416 = vsub.f32 %v466, %v1415
          %v1417 = vand.u32 %v1416, 4294901760
          %1418 = vmatmul.mubr.f32.gmra.mxu0 %v1417
          %v1419 = vpop.f32.mrf.mxu0
          %v1420 = vadd.f32 %v1330, %v1419
          %v1421 = vpop.f32.mrf.mxu0
          %1422 = vmatprep.mubr.f32.mxu0 0.0
          %v1423 = vand.u32 %v469, 4294901760
          %v1424 = vsub.f32 %v469, %v1423
          %v1425 = vand.u32 %v1424, 4294901760
          %1426 = vmatmul.mubr.f32.gmra.mxu0 %v1425
          %v1427 = vpop.f32.mrf.mxu0
          %v1428 = vadd.f32 %v1337, %v1427
          %v1429 = vpop.f32.mrf.mxu0
          %1430 = vdwg.mxu0
          %1431 = vmatprep.subr.mxu0 0.0
          %1432 = vmatpush1.msra.mxu0 0.0
          %1433 = vmatprep.subr.mxu0 0.0
          %1434 = vmatpush1.msra.mxu0 0.0
          %1435 = vmatprep.subr.mxu0 0.0
          %1436 = vmatpush1.msra.mxu0 0.0
          %1437 = vmatprep.subr.mxu0 0.0
          %1438 = vmatpush1.msra.mxu0 0.0
          %1439 = vmatprep.subr.mxu0 0.0
          %1440 = vmatpush1.msra.mxu0 0.0
          %1441 = vmatprep.subr.mxu0 0.0
          %1442 = vmatpush1.msra.mxu0 0.0
          %1443 = vmatprep.subr.mxu0 0.0
          %1444 = vmatpush1.msra.mxu0 0.0
          %1445 = vmatprep.subr.mxu0 0.0
          %1446 = vmatpush1.msra.mxu0 0.0
          %1447 = vmatprep.subr.mxu0 0.0
          %1448 = vmatpush1.msra.mxu0 0.0
          %1449 = vmatprep.subr.mxu0 0.0
          %1450 = vmatpush1.msra.mxu0 0.0
          %1451 = vmatprep.subr.mxu0 0.0
          %1452 = vmatpush1.msra.mxu0 0.0
          %1453 = vmatprep.subr.mxu0 0.0
          %1454 = vmatpush1.msra.mxu0 0.0
          %1455 = vmatprep.subr.mxu0 0.0
          %1456 = vmatpush1.msra.mxu0 0.0
          %1457 = vmatprep.subr.mxu0 0.0
          %1458 = vmatpush1.msra.mxu0 0.0
          %1459 = vmatprep.subr.mxu0 0.0
          %v1460 = vand.u32 %v443, 4294901760
          %v1461 = vsub.f32 %v443, %v1460
          %v1462 = vand.u32 %v1461, 4294901760
          %1463 = vmatpush1.msra.mxu0 %v1462
          %1464 = vmatprep.subr.mxu0 0.0
          %v1465 = vand.u32 %v440, 4294901760
          %v1466 = vsub.f32 %v440, %v1465
          %v1467 = vand.u32 %v1466, 4294901760
          %1468 = vmatpush1.msra.mxu0 %v1467
          %1469 = vmatprep.subr.mxu0 0.0
          %1470 = vmatpush2.msra.mxu0 0.0
          %1471 = vmatprep.subr.mxu0 0.0
          %1472 = vmatpush2.msra.mxu0 0.0
          %1473 = vmatprep.subr.mxu0 0.0
          %1474 = vmatpush2.msra.mxu0 0.0
          %1475 = vmatprep.subr.mxu0 0.0
          %1476 = vmatpush2.msra.mxu0 0.0
          %1477 = vmatprep.subr.mxu0 0.0
          %1478 = vmatpush2.msra.mxu0 0.0
          %1479 = vmatprep.subr.mxu0 0.0
          %1480 = vmatpush2.msra.mxu0 0.0
          %1481 = vmatprep.subr.mxu0 0.0
          %1482 = vmatpush2.msra.mxu0 0.0
          %1483 = vmatprep.subr.mxu0 0.0
          %1484 = vmatpush2.msra.mxu0 0.0
          %1485 = vmatprep.subr.mxu0 0.0
          %1486 = vmatpush2.msra.mxu0 0.0
          %1487 = vmatprep.subr.mxu0 0.0
          %1488 = vmatpush2.msra.mxu0 0.0
          %1489 = vmatprep.subr.mxu0 0.0
          %1490 = vmatpush2.msra.mxu0 0.0
          %1491 = vmatprep.subr.mxu0 0.0
          %1492 = vmatpush2.msra.mxu0 0.0
          %1493 = vmatprep.subr.mxu0 0.0
          %1494 = vmatpush2.msra.mxu0 0.0
          %1495 = vmatprep.subr.mxu0 0.0
          %1496 = vmatpush2.msra.mxu0 0.0
          %1497 = vmatprep.subr.mxu0 0.0
          %1498 = vmatpush2.msra.mxu0 0.0
          %1499 = vmatprep.subr.mxu0 0.0
          %1500 = vmatpush2.msra.mxu0 0.0
          %1501 = vmatprep.mubr.f32.mxu0 0.0
          %v1502 = vand.u32 %v463, 4294901760
          %1503 = vmatmul.mubr.f32.gmra.mxu0 %v1502
          %v1504 = vpop.f32.mrf.mxu0
          %v1505 = vadd.f32 %v1412, %v1504
          %v1506 = vpop.f32.mrf.mxu0
          %1507 = vmatprep.mubr.f32.mxu0 0.0
          %v1508 = vand.u32 %v466, 4294901760
          %1509 = vmatmul.mubr.f32.gmra.mxu0 %v1508
          %v1510 = vpop.f32.mrf.mxu0
          %v1511 = vadd.f32 %v1420, %v1510
          %v1512 = vpop.f32.mrf.mxu0
          %1513 = vmatprep.mubr.f32.mxu0 0.0
          %v1514 = vand.u32 %v469, 4294901760
          %1515 = vmatmul.mubr.f32.gmra.mxu0 %v1514
          %v1516 = vpop.f32.mrf.mxu0
          %v1517 = vadd.f32 %v1428, %v1516
          %v1518 = vpop.f32.mrf.mxu0
          %1519 = vdwg.mxu0
          %1520 = vmatprep.subr.mxu0 0.0
          %1521 = vmatpush1.msra.mxu0 0.0
          %1522 = vmatprep.subr.mxu0 0.0
          %1523 = vmatpush1.msra.mxu0 0.0
          %1524 = vmatprep.subr.mxu0 0.0
          %1525 = vmatpush1.msra.mxu0 0.0
          %1526 = vmatprep.subr.mxu0 0.0
          %1527 = vmatpush1.msra.mxu0 0.0
          %1528 = vmatprep.subr.mxu0 0.0
          %1529 = vmatpush1.msra.mxu0 0.0
          %1530 = vmatprep.subr.mxu0 0.0
          %1531 = vmatpush1.msra.mxu0 0.0
          %1532 = vmatprep.subr.mxu0 0.0
          %1533 = vmatpush1.msra.mxu0 0.0
          %1534 = vmatprep.subr.mxu0 0.0
          %1535 = vmatpush1.msra.mxu0 0.0
          %1536 = vmatprep.subr.mxu0 0.0
          %1537 = vmatpush1.msra.mxu0 0.0
          %1538 = vmatprep.subr.mxu0 0.0
          %1539 = vmatpush1.msra.mxu0 0.0
          %1540 = vmatprep.subr.mxu0 0.0
          %1541 = vmatpush1.msra.mxu0 0.0
          %1542 = vmatprep.subr.mxu0 0.0
          %1543 = vmatpush1.msra.mxu0 0.0
          %1544 = vmatprep.subr.mxu0 0.0
          %1545 = vmatpush1.msra.mxu0 0.0
          %1546 = vmatprep.subr.mxu0 0.0
          %1547 = vmatpush1.msra.mxu0 0.0
          %1548 = vmatprep.subr.mxu0 0.0
          %v1549 = vand.u32 %v443, 4294901760
          %1550 = vmatpush1.msra.mxu0 %v1549
          %1551 = vmatprep.subr.mxu0 0.0
          %v1552 = vand.u32 %v440, 4294901760
          %1553 = vmatpush1.msra.mxu0 %v1552
          %1554 = vmatprep.subr.mxu0 0.0
          %1555 = vmatpush2.msra.mxu0 0.0
          %1556 = vmatprep.subr.mxu0 0.0
          %1557 = vmatpush2.msra.mxu0 0.0
          %1558 = vmatprep.subr.mxu0 0.0
          %1559 = vmatpush2.msra.mxu0 0.0
          %1560 = vmatprep.subr.mxu0 0.0
          %1561 = vmatpush2.msra.mxu0 0.0
          %1562 = vmatprep.subr.mxu0 0.0
          %1563 = vmatpush2.msra.mxu0 0.0
          %1564 = vmatprep.subr.mxu0 0.0
          %1565 = vmatpush2.msra.mxu0 0.0
          %1566 = vmatprep.subr.mxu0 0.0
          %1567 = vmatpush2.msra.mxu0 0.0
          %1568 = vmatprep.subr.mxu0 0.0
          %1569 = vmatpush2.msra.mxu0 0.0
          %1570 = vmatprep.subr.mxu0 0.0
          %1571 = vmatpush2.msra.mxu0 0.0
          %1572 = vmatprep.subr.mxu0 0.0
          %1573 = vmatpush2.msra.mxu0 0.0
          %1574 = vmatprep.subr.mxu0 0.0
          %1575 = vmatpush2.msra.mxu0 0.0
          %1576 = vmatprep.subr.mxu0 0.0
          %1577 = vmatpush2.msra.mxu0 0.0
          %1578 = vmatprep.subr.mxu0 0.0
          %1579 = vmatpush2.msra.mxu0 0.0
          %1580 = vmatprep.subr.mxu0 0.0
          %1581 = vmatpush2.msra.mxu0 0.0
          %1582 = vmatprep.subr.mxu0 0.0
          %1583 = vmatpush2.msra.mxu0 0.0
          %1584 = vmatprep.subr.mxu0 0.0
          %1585 = vmatpush2.msra.mxu0 0.0
          %1586 = vmatprep.mubr.f32.mxu0 0.0
          %v1587 = vand.u32 %v463, 4294901760
          %1588 = vmatmul.mubr.f32.gmra.mxu0 %v1587
          %v1589 = vpop.f32.mrf.mxu0
          %v1590 = vadd.f32 %v1505, %v1589
          %v1591 = vpop.f32.mrf.mxu0
          %1592 = vmatprep.mubr.f32.mxu0 0.0
          %v1593 = vand.u32 %v466, 4294901760
          %1594 = vmatmul.mubr.f32.gmra.mxu0 %v1593
          %v1595 = vpop.f32.mrf.mxu0
          %v1596 = vadd.f32 %v1511, %v1595
          %v1597 = vpop.f32.mrf.mxu0
          %1598 = vmatprep.mubr.f32.mxu0 0.0
          %v1599 = vand.u32 %v469, 4294901760
          %1600 = vmatmul.mubr.f32.gmra.mxu0 %v1599
          %v1601 = vpop.f32.mrf.mxu0
          %v1602 = vadd.f32 %v1517, %v1601
          %v1603 = vpop.f32.mrf.mxu0
          %1604 = vdwg.mxu0
          %1605 = vst [vmem:[#allocation2] sm:$0xff] %v1042
          %1606 = vst [vmem:[#allocation2 + $0x8] sm:$0xff] %v1044
          %1607 = vst [vmem:[#allocation2 + $0x10] sm:$0xff] %v1590
          %1608 = vst [vmem:[#allocation2 + $0x18] sm:$0xff] %v1049
          %1609 = vst [vmem:[#allocation2 + $0x20] sm:$0xff] %v1051
          %1610 = vst [vmem:[#allocation2 + $0x28] sm:$0xff] %v1596
          %1611 = vst [vmem:[#allocation2 + $0x30] sm:$0xff] %v1056
          %1612 = vst [vmem:[#allocation2 + $0x38] sm:$0xff] %v1058
          %1613 = vst [vmem:[#allocation2 + $0x40] sm:$0xff] %v1602
          %1614 = vst [vmem:[#allocation3] sm:$0xff] 0.0
          %1615 = vst [vmem:[#allocation3 + $0x8] sm:$0xff] 0.0
          %1616 = vst [vmem:[#allocation3 + $0x10] sm:$0xff] 0.0
          %1617 = vst [vmem:[#allocation4] sm:$0xff] 0.0
          %1618 = vst [vmem:[#allocation4 + $0x8] sm:$0xff] 0.0
          %1619 = vst [vmem:[#allocation4 + $0x10] sm:$0xff] 0.0
        $region64: #{tpu_custom_call.1} parent=59 // pred_fallthru
          _
        %v1620 = vld [vmem:[#allocation2] sm:$0xff]
        %v1621 = vld [vmem:[#allocation2 + $0x8] sm:$0xff]
        %v1622 = vld [vmem:[#allocation2 + $0x10] sm:$0xff]
        %v1623 = vld [vmem:[#allocation2 + $0x18] sm:$0xff]
        %v1624 = vld [vmem:[#allocation2 + $0x20] sm:$0xff]
        %v1625 = vld [vmem:[#allocation2 + $0x28] sm:$0xff]
        %v1626 = vld [vmem:[#allocation2 + $0x30] sm:$0xff]
        %v1627 = vld [vmem:[#allocation2 + $0x38] sm:$0xff]
        %v1628 = vld [vmem:[#allocation2 + $0x40] sm:$0xff]
        %v1629 = vld [vmem:[%s416] sm:$0xff]
        %v1630 = vld [vmem:[%s416 + $0x8] sm:$0xff]
        %v1631 = vld [vmem:[%s416 + $0x10] sm:$0xff]
        %v1632 = vld [vmem:[%s416 + $0x18] sm:$0xff]
        %v1633 = vld [vmem:[%s416 + $0x20] sm:$0xff]
        %v1634 = vld [vmem:[%s416 + $0x28] sm:$0xff]
        %v1635 = vld [vmem:[%s416 + $0x30] sm:$0xff]
        %v1636 = vld [vmem:[%s416 + $0x38] sm:$0xff]
        %v1637 = vld [vmem:[%s4] sm:$0xff]
        %v1638 = vld [vmem:[%s4 + $0x8] sm:$0xff]
        %v1639 = vld [vmem:[%s5] sm:$0x1]
        %v1641 = vlaneseq
        %v1642 = vshrl.u32 %v1641, 7
        %v1643 = vsub.s32 0, %v1642
        %v1644 = vrot.slane %v1639, %v1643
        %vm1646 = vcmask 130048
        %v1648 = vsel %vm1646, %v1629, 0
        %v1651 = vsel %vm1646, %v1630, 0
        %v1654 = vsel %vm1646, %v1631, 0
        %v1657 = vsel %vm1646, %v1632, 0
        %v1660 = vsel %vm1646, %v1633, 0
        %v1663 = vsel %vm1646, %v1634, 0
        %v1666 = vsel %vm1646, %v1635, 0
        %v1669 = vsel %vm1646, %v1636, 0
        %1671 = vmatprep.subr.mxu0 0.0
        %1672 = vmatpush1.msra.mxu0 0.0
        %1673 = vmatprep.subr.mxu0 0.0
        %1674 = vmatpush1.msra.mxu0 0.0
        %1675 = vmatprep.subr.mxu0 0.0
        %1676 = vmatpush1.msra.mxu0 0.0
        %1677 = vmatprep.subr.mxu0 0.0
        %1678 = vmatpush1.msra.mxu0 0.0
        %1679 = vmatprep.subr.mxu0 0.0
        %1680 = vmatpush1.msra.mxu0 0.0
        %1681 = vmatprep.subr.mxu0 0.0
        %1682 = vmatpush1.msra.mxu0 0.0
        %1683 = vmatprep.subr.mxu0 0.0
        %1684 = vmatpush1.msra.mxu0 0.0
        %1685 = vmatprep.subr.mxu0 0.0
        %1686 = vmatpush1.msra.mxu0 0.0
        %1687 = vmatprep.subr.mxu0 0.0
        %1688 = vmatpush1.msra.mxu0 0.0
        %1689 = vmatprep.subr.mxu0 0.0
        %1690 = vmatpush1.msra.mxu0 0.0
        %1691 = vmatprep.subr.mxu0 0.0
        %1692 = vmatpush1.msra.mxu0 0.0
        %1693 = vmatprep.subr.mxu0 0.0
        %1694 = vmatpush1.msra.mxu0 0.0
        %1695 = vmatprep.subr.mxu0 0.0
        %1696 = vmatpush1.msra.mxu0 0.0
        %1697 = vmatprep.subr.mxu0 0.0
        %1698 = vmatpush1.msra.mxu0 0.0
        %1699 = vmatprep.subr.mxu0 0.0
        %v1700 = vand.u32 %v1638, 4294901760
        %1701 = vmatpush1.msra.mxu0 %v1700
        %1702 = vmatprep.subr.mxu0 0.0
        %v1703 = vand.u32 %v1637, 4294901760
        %1704 = vmatpush1.msra.mxu0 %v1703
        %1705 = vmatprep.subr.mxu0 0.0
        %1706 = vmatpush2.msra.mxu0 0.0
        %1707 = vmatprep.subr.mxu0 0.0
        %1708 = vmatpush2.msra.mxu0 0.0
        %1709 = vmatprep.subr.mxu0 0.0
        %1710 = vmatpush2.msra.mxu0 0.0
        %1711 = vmatprep.subr.mxu0 0.0
        %1712 = vmatpush2.msra.mxu0 0.0
        %1713 = vmatprep.subr.mxu0 0.0
        %1714 = vmatpush2.msra.mxu0 0.0
        %1715 = vmatprep.subr.mxu0 0.0
        %1716 = vmatpush2.msra.mxu0 0.0
        %1717 = vmatprep.subr.mxu0 0.0
        %1718 = vmatpush2.msra.mxu0 0.0
        %1719 = vmatprep.subr.mxu0 0.0
        %1720 = vmatpush2.msra.mxu0 0.0
        %1721 = vmatprep.subr.mxu0 0.0
        %1722 = vmatpush2.msra.mxu0 0.0
        %1723 = vmatprep.subr.mxu0 0.0
        %1724 = vmatpush2.msra.mxu0 0.0
        %1725 = vmatprep.subr.mxu0 0.0
        %1726 = vmatpush2.msra.mxu0 0.0
        %1727 = vmatprep.subr.mxu0 0.0
        %1728 = vmatpush2.msra.mxu0 0.0
        %1729 = vmatprep.subr.mxu0 0.0
        %1730 = vmatpush2.msra.mxu0 0.0
        %1731 = vmatprep.subr.mxu0 0.0
        %1732 = vmatpush2.msra.mxu0 0.0
        %1733 = vmatprep.subr.mxu0 0.0
        %1734 = vmatpush2.msra.mxu0 0.0
        %1735 = vmatprep.subr.mxu0 0.0
        %1736 = vmatpush2.msra.mxu0 0.0
        %1737 = vmatprep.mubr.f32.mxu0 0.0
        %v1738 = vand.u32 %v1648, 4294901760
        %v1739 = vsub.f32 %v1648, %v1738
        %v1740 = vand.u32 %v1739, 4294901760
        %v1741 = vsub.f32 %v1739, %v1740
        %v1742 = vand.u32 %v1741, 4294901760
        %1743 = vmatmul.mubr.f32.gmra.mxu0 %v1742
        %v1744 = vpop.f32.mrf.mxu0
        %v1745 = vadd.f32 %v1644, %v1744
        %v1746 = vpop.f32.mrf.mxu0
        %1747 = vmatprep.mubr.f32.mxu0 0.0
        %v1748 = vand.u32 %v1651, 4294901760
        %v1749 = vsub.f32 %v1651, %v1748
        %v1750 = vand.u32 %v1749, 4294901760
        %v1751 = vsub.f32 %v1749, %v1750
        %v1752 = vand.u32 %v1751, 4294901760
        %1753 = vmatmul.mubr.f32.gmra.mxu0 %v1752
        %v1754 = vpop.f32.mrf.mxu0
        %v1755 = vadd.f32 %v1644, %v1754
        %v1756 = vpop.f32.mrf.mxu0
        %1757 = vmatprep.mubr.f32.mxu0 0.0
        %v1758 = vand.u32 %v1654, 4294901760
        %v1759 = vsub.f32 %v1654, %v1758
        %v1760 = vand.u32 %v1759, 4294901760
        %v1761 = vsub.f32 %v1759, %v1760
        %v1762 = vand.u32 %v1761, 4294901760
        %1763 = vmatmul.mubr.f32.gmra.mxu0 %v1762
        %v1764 = vpop.f32.mrf.mxu0
        %v1765 = vadd.f32 %v1644, %v1764
        %v1766 = vpop.f32.mrf.mxu0
        %1767 = vmatprep.mubr.f32.mxu0 0.0
        %v1768 = vand.u32 %v1657, 4294901760
        %v1769 = vsub.f32 %v1657, %v1768
        %v1770 = vand.u32 %v1769, 4294901760
        %v1771 = vsub.f32 %v1769, %v1770
        %v1772 = vand.u32 %v1771, 4294901760
        %1773 = vmatmul.mubr.f32.gmra.mxu0 %v1772
        %v1774 = vpop.f32.mrf.mxu0
        %v1775 = vadd.f32 %v1644, %v1774
        %v1776 = vpop.f32.mrf.mxu0
        %1777 = vmatprep.mubr.f32.mxu0 0.0
        %v1778 = vand.u32 %v1660, 4294901760
        %v1779 = vsub.f32 %v1660, %v1778
        %v1780 = vand.u32 %v1779, 4294901760
        %v1781 = vsub.f32 %v1779, %v1780
        %v1782 = vand.u32 %v1781, 4294901760
        %1783 = vmatmul.mubr.f32.gmra.mxu0 %v1782
        %v1784 = vpop.f32.mrf.mxu0
        %v1785 = vadd.f32 %v1644, %v1784
        %v1786 = vpop.f32.mrf.mxu0
        %1787 = vmatprep.mubr.f32.mxu0 0.0
        %v1788 = vand.u32 %v1663, 4294901760
        %v1789 = vsub.f32 %v1663, %v1788
        %v1790 = vand.u32 %v1789, 4294901760
        %v1791 = vsub.f32 %v1789, %v1790
        %v1792 = vand.u32 %v1791, 4294901760
        %1793 = vmatmul.mubr.f32.gmra.mxu0 %v1792
        %v1794 = vpop.f32.mrf.mxu0
        %v1795 = vadd.f32 %v1644, %v1794
        %v1796 = vpop.f32.mrf.mxu0
        %1797 = vmatprep.mubr.f32.mxu0 0.0
        %v1798 = vand.u32 %v1666, 4294901760
        %v1799 = vsub.f32 %v1666, %v1798
        %v1800 = vand.u32 %v1799, 4294901760
        %v1801 = vsub.f32 %v1799, %v1800
        %v1802 = vand.u32 %v1801, 4294901760
        %1803 = vmatmul.mubr.f32.gmra.mxu0 %v1802
        %v1804 = vpop.f32.mrf.mxu0
        %v1805 = vadd.f32 %v1644, %v1804
        %v1806 = vpop.f32.mrf.mxu0
        %1807 = vmatprep.mubr.f32.mxu0 0.0
        %v1808 = vand.u32 %v1669, 4294901760
        %v1809 = vsub.f32 %v1669, %v1808
        %v1810 = vand.u32 %v1809, 4294901760
        %v1811 = vsub.f32 %v1809, %v1810
        %v1812 = vand.u32 %v1811, 4294901760
        %1813 = vmatmul.mubr.f32.gmra.mxu0 %v1812
        %v1814 = vpop.f32.mrf.mxu0
        %v1815 = vadd.f32 %v1644, %v1814
        %v1816 = vpop.f32.mrf.mxu0
        %1817 = vdwg.mxu0
        %1818 = vmatprep.subr.mxu0 0.0
        %1819 = vmatpush1.msra.mxu0 0.0
        %1820 = vmatprep.subr.mxu0 0.0
        %1821 = vmatpush1.msra.mxu0 0.0
        %1822 = vmatprep.subr.mxu0 0.0
        %1823 = vmatpush1.msra.mxu0 0.0
        %1824 = vmatprep.subr.mxu0 0.0
        %1825 = vmatpush1.msra.mxu0 0.0
        %1826 = vmatprep.subr.mxu0 0.0
        %1827 = vmatpush1.msra.mxu0 0.0
        %1828 = vmatprep.subr.mxu0 0.0
        %1829 = vmatpush1.msra.mxu0 0.0
        %1830 = vmatprep.subr.mxu0 0.0
        %1831 = vmatpush1.msra.mxu0 0.0
        %1832 = vmatprep.subr.mxu0 0.0
        %1833 = vmatpush1.msra.mxu0 0.0
        %1834 = vmatprep.subr.mxu0 0.0
        %1835 = vmatpush1.msra.mxu0 0.0
        %1836 = vmatprep.subr.mxu0 0.0
        %1837 = vmatpush1.msra.mxu0 0.0
        %1838 = vmatprep.subr.mxu0 0.0
        %1839 = vmatpush1.msra.mxu0 0.0
        %1840 = vmatprep.subr.mxu0 0.0
        %1841 = vmatpush1.msra.mxu0 0.0
        %1842 = vmatprep.subr.mxu0 0.0
        %1843 = vmatpush1.msra.mxu0 0.0
        %1844 = vmatprep.subr.mxu0 0.0
        %1845 = vmatpush1.msra.mxu0 0.0
        %1846 = vmatprep.subr.mxu0 0.0
        %v1847 = vand.u32 %v1638, 4294901760
        %v1848 = vsub.f32 %v1638, %v1847
        %v1849 = vand.u32 %v1848, 4294901760
        %v1850 = vsub.f32 %v1848, %v1849
        %v1851 = vand.u32 %v1850, 4294901760
        %1852 = vmatpush1.msra.mxu0 %v1851
        %1853 = vmatprep.subr.mxu0 0.0
        %v1854 = vand.u32 %v1637, 4294901760
        %v1855 = vsub.f32 %v1637, %v1854
        %v1856 = vand.u32 %v1855, 4294901760
        %v1857 = vsub.f32 %v1855, %v1856
        %v1858 = vand.u32 %v1857, 4294901760
        %1859 = vmatpush1.msra.mxu0 %v1858
        %1860 = vmatprep.subr.mxu0 0.0
        %1861 = vmatpush2.msra.mxu0 0.0
        %1862 = vmatprep.subr.mxu0 0.0
        %1863 = vmatpush2.msra.mxu0 0.0
        %1864 = vmatprep.subr.mxu0 0.0
        %1865 = vmatpush2.msra.mxu0 0.0
        %1866 = vmatprep.subr.mxu0 0.0
        %1867 = vmatpush2.msra.mxu0 0.0
        %1868 = vmatprep.subr.mxu0 0.0
        %1869 = vmatpush2.msra.mxu0 0.0
        %1870 = vmatprep.subr.mxu0 0.0
        %1871 = vmatpush2.msra.mxu0 0.0
        %1872 = vmatprep.subr.mxu0 0.0
        %1873 = vmatpush2.msra.mxu0 0.0
        %1874 = vmatprep.subr.mxu0 0.0
        %1875 = vmatpush2.msra.mxu0 0.0
        %1876 = vmatprep.subr.mxu0 0.0
        %1877 = vmatpush2.msra.mxu0 0.0
        %1878 = vmatprep.subr.mxu0 0.0
        %1879 = vmatpush2.msra.mxu0 0.0
        %1880 = vmatprep.subr.mxu0 0.0
        %1881 = vmatpush2.msra.mxu0 0.0
        %1882 = vmatprep.subr.mxu0 0.0
        %1883 = vmatpush2.msra.mxu0 0.0
        %1884 = vmatprep.subr.mxu0 0.0
        %1885 = vmatpush2.msra.mxu0 0.0
        %1886 = vmatprep.subr.mxu0 0.0
        %1887 = vmatpush2.msra.mxu0 0.0
        %1888 = vmatprep.subr.mxu0 0.0
        %1889 = vmatpush2.msra.mxu0 0.0
        %1890 = vmatprep.subr.mxu0 0.0
        %1891 = vmatpush2.msra.mxu0 0.0
        %1892 = vmatprep.mubr.f32.mxu0 0.0
        %v1893 = vand.u32 %v1648, 4294901760
        %1894 = vmatmul.mubr.f32.gmra.mxu0 %v1893
        %v1895 = vpop.f32.mrf.mxu0
        %v1896 = vadd.f32 %v1745, %v1895
        %v1897 = vpop.f32.mrf.mxu0
        %1898 = vmatprep.mubr.f32.mxu0 0.0
        %v1899 = vand.u32 %v1651, 4294901760
        %1900 = vmatmul.mubr.f32.gmra.mxu0 %v1899
        %v1901 = vpop.f32.mrf.mxu0
        %v1902 = vadd.f32 %v1755, %v1901
        %v1903 = vpop.f32.mrf.mxu0
        %1904 = vmatprep.mubr.f32.mxu0 0.0
        %v1905 = vand.u32 %v1654, 4294901760
        %1906 = vmatmul.mubr.f32.gmra.mxu0 %v1905
        %v1907 = vpop.f32.mrf.mxu0
        %v1908 = vadd.f32 %v1765, %v1907
        %v1909 = vpop.f32.mrf.mxu0
        %1910 = vmatprep.mubr.f32.mxu0 0.0
        %v1911 = vand.u32 %v1657, 4294901760
        %1912 = vmatmul.mubr.f32.gmra.mxu0 %v1911
        %v1913 = vpop.f32.mrf.mxu0
        %v1914 = vadd.f32 %v1775, %v1913
        %v1915 = vpop.f32.mrf.mxu0
        %1916 = vmatprep.mubr.f32.mxu0 0.0
        %v1917 = vand.u32 %v1660, 4294901760
        %1918 = vmatmul.mubr.f32.gmra.mxu0 %v1917
        %v1919 = vpop.f32.mrf.mxu0
        %v1920 = vadd.f32 %v1785, %v1919
        %v1921 = vpop.f32.mrf.mxu0
        %1922 = vmatprep.mubr.f32.mxu0 0.0
        %v1923 = vand.u32 %v1663, 4294901760
        %1924 = vmatmul.mubr.f32.gmra.mxu0 %v1923
        %v1925 = vpop.f32.mrf.mxu0
        %v1926 = vadd.f32 %v1795, %v1925
        %v1927 = vpop.f32.mrf.mxu0
        %1928 = vmatprep.mubr.f32.mxu0 0.0
        %v1929 = vand.u32 %v1666, 4294901760
        %1930 = vmatmul.mubr.f32.gmra.mxu0 %v1929
        %v1931 = vpop.f32.mrf.mxu0
        %v1932 = vadd.f32 %v1805, %v1931
        %v1933 = vpop.f32.mrf.mxu0
        %1934 = vmatprep.mubr.f32.mxu0 0.0
        %v1935 = vand.u32 %v1669, 4294901760
        %1936 = vmatmul.mubr.f32.gmra.mxu0 %v1935
        %v1937 = vpop.f32.mrf.mxu0
        %v1938 = vadd.f32 %v1815, %v1937
        %v1939 = vpop.f32.mrf.mxu0
        %1940 = vdwg.mxu0
        %1941 = vmatprep.subr.mxu0 0.0
        %1942 = vmatpush1.msra.mxu0 0.0
        %1943 = vmatprep.subr.mxu0 0.0
        %1944 = vmatpush1.msra.mxu0 0.0
        %1945 = vmatprep.subr.mxu0 0.0
        %1946 = vmatpush1.msra.mxu0 0.0
        %1947 = vmatprep.subr.mxu0 0.0
        %1948 = vmatpush1.msra.mxu0 0.0
        %1949 = vmatprep.subr.mxu0 0.0
        %1950 = vmatpush1.msra.mxu0 0.0
        %1951 = vmatprep.subr.mxu0 0.0
        %1952 = vmatpush1.msra.mxu0 0.0
        %1953 = vmatprep.subr.mxu0 0.0
        %1954 = vmatpush1.msra.mxu0 0.0
        %1955 = vmatprep.subr.mxu0 0.0
        %1956 = vmatpush1.msra.mxu0 0.0
        %1957 = vmatprep.subr.mxu0 0.0
        %1958 = vmatpush1.msra.mxu0 0.0
        %1959 = vmatprep.subr.mxu0 0.0
        %1960 = vmatpush1.msra.mxu0 0.0
        %1961 = vmatprep.subr.mxu0 0.0
        %1962 = vmatpush1.msra.mxu0 0.0
        %1963 = vmatprep.subr.mxu0 0.0
        %1964 = vmatpush1.msra.mxu0 0.0
        %1965 = vmatprep.subr.mxu0 0.0
        %1966 = vmatpush1.msra.mxu0 0.0
        %1967 = vmatprep.subr.mxu0 0.0
        %1968 = vmatpush1.msra.mxu0 0.0
        %1969 = vmatprep.subr.mxu0 0.0
        %v1970 = vand.u32 %v1638, 4294901760
        %v1971 = vsub.f32 %v1638, %v1970
        %1972 = vmatpush1.msra.mxu0 %v1971
        %1973 = vmatprep.subr.mxu0 0.0
        %v1974 = vand.u32 %v1637, 4294901760
        %v1975 = vsub.f32 %v1637, %v1974
        %1976 = vmatpush1.msra.mxu0 %v1975
        %1977 = vmatprep.subr.mxu0 0.0
        %1978 = vmatpush2.msra.mxu0 0.0
        %1979 = vmatprep.subr.mxu0 0.0
        %1980 = vmatpush2.msra.mxu0 0.0
        %1981 = vmatprep.subr.mxu0 0.0
        %1982 = vmatpush2.msra.mxu0 0.0
        %1983 = vmatprep.subr.mxu0 0.0
        %1984 = vmatpush2.msra.mxu0 0.0
        %1985 = vmatprep.subr.mxu0 0.0
        %1986 = vmatpush2.msra.mxu0 0.0
        %1987 = vmatprep.subr.mxu0 0.0
        %1988 = vmatpush2.msra.mxu0 0.0
        %1989 = vmatprep.subr.mxu0 0.0
        %1990 = vmatpush2.msra.mxu0 0.0
        %1991 = vmatprep.subr.mxu0 0.0
        %1992 = vmatpush2.msra.mxu0 0.0
        %1993 = vmatprep.subr.mxu0 0.0
        %1994 = vmatpush2.msra.mxu0 0.0
        %1995 = vmatprep.subr.mxu0 0.0
        %1996 = vmatpush2.msra.mxu0 0.0
        %1997 = vmatprep.subr.mxu0 0.0
        %1998 = vmatpush2.msra.mxu0 0.0
        %1999 = vmatprep.subr.mxu0 0.0
        %2000 = vmatpush2.msra.mxu0 0.0
        %2001 = vmatprep.subr.mxu0 0.0
        %2002 = vmatpush2.msra.mxu0 0.0
        %2003 = vmatprep.subr.mxu0 0.0
        %2004 = vmatpush2.msra.mxu0 0.0
        %2005 = vmatprep.subr.mxu0 0.0
        %2006 = vmatpush2.msra.mxu0 0.0
        %2007 = vmatprep.subr.mxu0 0.0
        %2008 = vmatpush2.msra.mxu0 0.0
        %2009 = vmatprep.mubr.f32.mxu0 0.0
        %v2010 = vand.u32 %v1648, 4294901760
        %v2011 = vsub.f32 %v1648, %v2010
        %2012 = vmatmul.mubr.f32.gmra.mxu0 %v2011
        %v2013 = vpop.f32.mrf.mxu0
        %v2014 = vadd.f32 %v1896, %v2013
        %v2015 = vpop.f32.mrf.mxu0
        %2016 = vmatprep.mubr.f32.mxu0 0.0
        %v2017 = vand.u32 %v1651, 4294901760
        %v2018 = vsub.f32 %v1651, %v2017
        %2019 = vmatmul.mubr.f32.gmra.mxu0 %v2018
        %v2020 = vpop.f32.mrf.mxu0
        %v2021 = vadd.f32 %v1902, %v2020
        %v2022 = vpop.f32.mrf.mxu0
        %2023 = vmatprep.mubr.f32.mxu0 0.0
        %v2024 = vand.u32 %v1654, 4294901760
        %v2025 = vsub.f32 %v1654, %v2024
        %2026 = vmatmul.mubr.f32.gmra.mxu0 %v2025
        %v2027 = vpop.f32.mrf.mxu0
        %v2028 = vadd.f32 %v1908, %v2027
        %v2029 = vpop.f32.mrf.mxu0
        %2030 = vmatprep.mubr.f32.mxu0 0.0
        %v2031 = vand.u32 %v1657, 4294901760
        %v2032 = vsub.f32 %v1657, %v2031
        %2033 = vmatmul.mubr.f32.gmra.mxu0 %v2032
        %v2034 = vpop.f32.mrf.mxu0
        %v2035 = vadd.f32 %v1914, %v2034
        %v2036 = vpop.f32.mrf.mxu0
        %2037 = vmatprep.mubr.f32.mxu0 0.0
        %v2038 = vand.u32 %v1660, 4294901760
        %v2039 = vsub.f32 %v1660, %v2038
        %2040 = vmatmul.mubr.f32.gmra.mxu0 %v2039
        %v2041 = vpop.f32.mrf.mxu0
        %v2042 = vadd.f32 %v1920, %v2041
        %v2043 = vpop.f32.mrf.mxu0
        %2044 = vmatprep.mubr.f32.mxu0 0.0
        %v2045 = vand.u32 %v1663, 4294901760
        %v2046 = vsub.f32 %v1663, %v2045
        %2047 = vmatmul.mubr.f32.gmra.mxu0 %v2046
        %v2048 = vpop.f32.mrf.mxu0
        %v2049 = vadd.f32 %v1926, %v2048
        %v2050 = vpop.f32.mrf.mxu0
        %2051 = vmatprep.mubr.f32.mxu0 0.0
        %v2052 = vand.u32 %v1666, 4294901760
        %v2053 = vsub.f32 %v1666, %v2052
        %2054 = vmatmul.mubr.f32.gmra.mxu0 %v2053
        %v2055 = vpop.f32.mrf.mxu0
        %v2056 = vadd.f32 %v1932, %v2055
        %v2057 = vpop.f32.mrf.mxu0
        %2058 = vmatprep.mubr.f32.mxu0 0.0
        %v2059 = vand.u32 %v1669, 4294901760
        %v2060 = vsub.f32 %v1669, %v2059
        %2061 = vmatmul.mubr.f32.gmra.mxu0 %v2060
        %v2062 = vpop.f32.mrf.mxu0
        %v2063 = vadd.f32 %v1938, %v2062
        %v2064 = vpop.f32.mrf.mxu0
        %2065 = vdwg.mxu0
        %2066 = vmatprep.subr.mxu0 0.0
        %2067 = vmatpush1.msra.mxu0 0.0
        %2068 = vmatprep.subr.mxu0 0.0
        %2069 = vmatpush1.msra.mxu0 0.0
        %2070 = vmatprep.subr.mxu0 0.0
        %2071 = vmatpush1.msra.mxu0 0.0
        %2072 = vmatprep.subr.mxu0 0.0
        %2073 = vmatpush1.msra.mxu0 0.0
        %2074 = vmatprep.subr.mxu0 0.0
        %2075 = vmatpush1.msra.mxu0 0.0
        %2076 = vmatprep.subr.mxu0 0.0
        %2077 = vmatpush1.msra.mxu0 0.0
        %2078 = vmatprep.subr.mxu0 0.0
        %2079 = vmatpush1.msra.mxu0 0.0
        %2080 = vmatprep.subr.mxu0 0.0
        %2081 = vmatpush1.msra.mxu0 0.0
        %2082 = vmatprep.subr.mxu0 0.0
        %2083 = vmatpush1.msra.mxu0 0.0
        %2084 = vmatprep.subr.mxu0 0.0
        %2085 = vmatpush1.msra.mxu0 0.0
        %2086 = vmatprep.subr.mxu0 0.0
        %2087 = vmatpush1.msra.mxu0 0.0
        %2088 = vmatprep.subr.mxu0 0.0
        %2089 = vmatpush1.msra.mxu0 0.0
        %2090 = vmatprep.subr.mxu0 0.0
        %2091 = vmatpush1.msra.mxu0 0.0
        %2092 = vmatprep.subr.mxu0 0.0
        %2093 = vmatpush1.msra.mxu0 0.0
        %2094 = vmatprep.subr.mxu0 0.0
        %v2095 = vand.u32 %v1638, 4294901760
        %2096 = vmatpush1.msra.mxu0 %v2095
        %2097 = vmatprep.subr.mxu0 0.0
        %v2098 = vand.u32 %v1637, 4294901760
        %2099 = vmatpush1.msra.mxu0 %v2098
        %2100 = vmatprep.subr.mxu0 0.0
        %2101 = vmatpush2.msra.mxu0 0.0
        %2102 = vmatprep.subr.mxu0 0.0
        %2103 = vmatpush2.msra.mxu0 0.0
        %2104 = vmatprep.subr.mxu0 0.0
        %2105 = vmatpush2.msra.mxu0 0.0
        %2106 = vmatprep.subr.mxu0 0.0
        %2107 = vmatpush2.msra.mxu0 0.0
        %2108 = vmatprep.subr.mxu0 0.0
        %2109 = vmatpush2.msra.mxu0 0.0
        %2110 = vmatprep.subr.mxu0 0.0
        %2111 = vmatpush2.msra.mxu0 0.0
        %2112 = vmatprep.subr.mxu0 0.0
        %2113 = vmatpush2.msra.mxu0 0.0
        %2114 = vmatprep.subr.mxu0 0.0
        %2115 = vmatpush2.msra.mxu0 0.0
        %2116 = vmatprep.subr.mxu0 0.0
        %2117 = vmatpush2.msra.mxu0 0.0
        %2118 = vmatprep.subr.mxu0 0.0
        %2119 = vmatpush2.msra.mxu0 0.0
        %2120 = vmatprep.subr.mxu0 0.0
        %2121 = vmatpush2.msra.mxu0 0.0
        %2122 = vmatprep.subr.mxu0 0.0
        %2123 = vmatpush2.msra.mxu0 0.0
        %2124 = vmatprep.subr.mxu0 0.0
        %2125 = vmatpush2.msra.mxu0 0.0
        %2126 = vmatprep.subr.mxu0 0.0
        %2127 = vmatpush2.msra.mxu0 0.0
        %2128 = vmatprep.subr.mxu0 0.0
        %2129 = vmatpush2.msra.mxu0 0.0
        %2130 = vmatprep.subr.mxu0 0.0
        %2131 = vmatpush2.msra.mxu0 0.0
        %2132 = vmatprep.mubr.f32.mxu0 0.0
        %v2133 = vand.u32 %v1648, 4294901760
        %v2134 = vsub.f32 %v1648, %v2133
        %v2135 = vand.u32 %v2134, 4294901760
        %2136 = vmatmul.mubr.f32.gmra.mxu0 %v2135
        %v2137 = vpop.f32.mrf.mxu0
        %v2138 = vadd.f32 %v2014, %v2137
        %v2139 = vpop.f32.mrf.mxu0
        %2140 = vmatprep.mubr.f32.mxu0 0.0
        %v2141 = vand.u32 %v1651, 4294901760
        %v2142 = vsub.f32 %v1651, %v2141
        %v2143 = vand.u32 %v2142, 4294901760
        %2144 = vmatmul.mubr.f32.gmra.mxu0 %v2143
        %v2145 = vpop.f32.mrf.mxu0
        %v2146 = vadd.f32 %v2021, %v2145
        %v2147 = vpop.f32.mrf.mxu0
        %2148 = vmatprep.mubr.f32.mxu0 0.0
        %v2149 = vand.u32 %v1654, 4294901760
        %v2150 = vsub.f32 %v1654, %v2149
        %v2151 = vand.u32 %v2150, 4294901760
        %2152 = vmatmul.mubr.f32.gmra.mxu0 %v2151
        %v2153 = vpop.f32.mrf.mxu0
        %v2154 = vadd.f32 %v2028, %v2153
        %v2155 = vpop.f32.mrf.mxu0
        %2156 = vmatprep.mubr.f32.mxu0 0.0
        %v2157 = vand.u32 %v1657, 4294901760
        %v2158 = vsub.f32 %v1657, %v2157
        %v2159 = vand.u32 %v2158, 4294901760
        %2160 = vmatmul.mubr.f32.gmra.mxu0 %v2159
        %v2161 = vpop.f32.mrf.mxu0
        %v2162 = vadd.f32 %v2035, %v2161
        %v2163 = vpop.f32.mrf.mxu0
        %2164 = vmatprep.mubr.f32.mxu0 0.0
        %v2165 = vand.u32 %v1660, 4294901760
        %v2166 = vsub.f32 %v1660, %v2165
        %v2167 = vand.u32 %v2166, 4294901760
        %2168 = vmatmul.mubr.f32.gmra.mxu0 %v2167
        %v2169 = vpop.f32.mrf.mxu0
        %v2170 = vadd.f32 %v2042, %v2169
        %v2171 = vpop.f32.mrf.mxu0
        %2172 = vmatprep.mubr.f32.mxu0 0.0
        %v2173 = vand.u32 %v1663, 4294901760
        %v2174 = vsub.f32 %v1663, %v2173
        %v2175 = vand.u32 %v2174, 4294901760
        %2176 = vmatmul.mubr.f32.gmra.mxu0 %v2175
        %v2177 = vpop.f32.mrf.mxu0
        %v2178 = vadd.f32 %v2049, %v2177
        %v2179 = vpop.f32.mrf.mxu0
        %2180 = vmatprep.mubr.f32.mxu0 0.0
        %v2181 = vand.u32 %v1666, 4294901760
        %v2182 = vsub.f32 %v1666, %v2181
        %v2183 = vand.u32 %v2182, 4294901760
        %2184 = vmatmul.mubr.f32.gmra.mxu0 %v2183
        %v2185 = vpop.f32.mrf.mxu0
        %v2186 = vadd.f32 %v2056, %v2185
        %v2187 = vpop.f32.mrf.mxu0
        %2188 = vmatprep.mubr.f32.mxu0 0.0
        %v2189 = vand.u32 %v1669, 4294901760
        %v2190 = vsub.f32 %v1669, %v2189
        %v2191 = vand.u32 %v2190, 4294901760
        %2192 = vmatmul.mubr.f32.gmra.mxu0 %v2191
        %v2193 = vpop.f32.mrf.mxu0
        %v2194 = vadd.f32 %v2063, %v2193
        %v2195 = vpop.f32.mrf.mxu0
        %2196 = vdwg.mxu0
        %2197 = vmatprep.subr.mxu0 0.0
        %2198 = vmatpush1.msra.mxu0 0.0
        %2199 = vmatprep.subr.mxu0 0.0
        %2200 = vmatpush1.msra.mxu0 0.0
        %2201 = vmatprep.subr.mxu0 0.0
        %2202 = vmatpush1.msra.mxu0 0.0
        %2203 = vmatprep.subr.mxu0 0.0
        %2204 = vmatpush1.msra.mxu0 0.0
        %2205 = vmatprep.subr.mxu0 0.0
        %2206 = vmatpush1.msra.mxu0 0.0
        %2207 = vmatprep.subr.mxu0 0.0
        %2208 = vmatpush1.msra.mxu0 0.0
        %2209 = vmatprep.subr.mxu0 0.0
        %2210 = vmatpush1.msra.mxu0 0.0
        %2211 = vmatprep.subr.mxu0 0.0
        %2212 = vmatpush1.msra.mxu0 0.0
        %2213 = vmatprep.subr.mxu0 0.0
        %2214 = vmatpush1.msra.mxu0 0.0
        %2215 = vmatprep.subr.mxu0 0.0
        %2216 = vmatpush1.msra.mxu0 0.0
        %2217 = vmatprep.subr.mxu0 0.0
        %2218 = vmatpush1.msra.mxu0 0.0
        %2219 = vmatprep.subr.mxu0 0.0
        %2220 = vmatpush1.msra.mxu0 0.0
        %2221 = vmatprep.subr.mxu0 0.0
        %2222 = vmatpush1.msra.mxu0 0.0
        %2223 = vmatprep.subr.mxu0 0.0
        %2224 = vmatpush1.msra.mxu0 0.0
        %2225 = vmatprep.subr.mxu0 0.0
        %v2226 = vand.u32 %v1638, 4294901760
        %v2227 = vsub.f32 %v1638, %v2226
        %v2228 = vand.u32 %v2227, 4294901760
        %2229 = vmatpush1.msra.mxu0 %v2228
        %2230 = vmatprep.subr.mxu0 0.0
        %v2231 = vand.u32 %v1637, 4294901760
        %v2232 = vsub.f32 %v1637, %v2231
        %v2233 = vand.u32 %v2232, 4294901760
        %2234 = vmatpush1.msra.mxu0 %v2233
        %2235 = vmatprep.subr.mxu0 0.0
        %2236 = vmatpush2.msra.mxu0 0.0
        %2237 = vmatprep.subr.mxu0 0.0
        %2238 = vmatpush2.msra.mxu0 0.0
        %2239 = vmatprep.subr.mxu0 0.0
        %2240 = vmatpush2.msra.mxu0 0.0
        %2241 = vmatprep.subr.mxu0 0.0
        %2242 = vmatpush2.msra.mxu0 0.0
        %2243 = vmatprep.subr.mxu0 0.0
        %2244 = vmatpush2.msra.mxu0 0.0
        %2245 = vmatprep.subr.mxu0 0.0
        %2246 = vmatpush2.msra.mxu0 0.0
        %2247 = vmatprep.subr.mxu0 0.0
        %2248 = vmatpush2.msra.mxu0 0.0
        %2249 = vmatprep.subr.mxu0 0.0
        %2250 = vmatpush2.msra.mxu0 0.0
        %2251 = vmatprep.subr.mxu0 0.0
        %2252 = vmatpush2.msra.mxu0 0.0
        %2253 = vmatprep.subr.mxu0 0.0
        %2254 = vmatpush2.msra.mxu0 0.0
        %2255 = vmatprep.subr.mxu0 0.0
        %2256 = vmatpush2.msra.mxu0 0.0
        %2257 = vmatprep.subr.mxu0 0.0
        %2258 = vmatpush2.msra.mxu0 0.0
        %2259 = vmatprep.subr.mxu0 0.0
        %2260 = vmatpush2.msra.mxu0 0.0
        %2261 = vmatprep.subr.mxu0 0.0
        %2262 = vmatpush2.msra.mxu0 0.0
        %2263 = vmatprep.subr.mxu0 0.0
        %2264 = vmatpush2.msra.mxu0 0.0
        %2265 = vmatprep.subr.mxu0 0.0
        %2266 = vmatpush2.msra.mxu0 0.0
        %2267 = vmatprep.mubr.f32.mxu0 0.0
        %v2268 = vand.u32 %v1648, 4294901760
        %2269 = vmatmul.mubr.f32.gmra.mxu0 %v2268
        %v2270 = vpop.f32.mrf.mxu0
        %v2271 = vadd.f32 %v2138, %v2270
        %v2272 = vpop.f32.mrf.mxu0
        %2273 = vmatprep.mubr.f32.mxu0 0.0
        %v2274 = vand.u32 %v1651, 4294901760
        %2275 = vmatmul.mubr.f32.gmra.mxu0 %v2274
        %v2276 = vpop.f32.mrf.mxu0
        %v2277 = vadd.f32 %v2146, %v2276
        %v2278 = vpop.f32.mrf.mxu0
        %2279 = vmatprep.mubr.f32.mxu0 0.0
        %v2280 = vand.u32 %v1654, 4294901760
        %2281 = vmatmul.mubr.f32.gmra.mxu0 %v2280
        %v2282 = vpop.f32.mrf.mxu0
        %v2283 = vadd.f32 %v2154, %v2282
        %v2284 = vpop.f32.mrf.mxu0
        %2285 = vmatprep.mubr.f32.mxu0 0.0
        %v2286 = vand.u32 %v1657, 4294901760
        %2287 = vmatmul.mubr.f32.gmra.mxu0 %v2286
        %v2288 = vpop.f32.mrf.mxu0
        %v2289 = vadd.f32 %v2162, %v2288
        %v2290 = vpop.f32.mrf.mxu0
        %2291 = vmatprep.mubr.f32.mxu0 0.0
        %v2292 = vand.u32 %v1660, 4294901760
        %2293 = vmatmul.mubr.f32.gmra.mxu0 %v2292
        %v2294 = vpop.f32.mrf.mxu0
        %v2295 = vadd.f32 %v2170, %v2294
        %v2296 = vpop.f32.mrf.mxu0
        %2297 = vmatprep.mubr.f32.mxu0 0.0
        %v2298 = vand.u32 %v1663, 4294901760
        %2299 = vmatmul.mubr.f32.gmra.mxu0 %v2298
        %v2300 = vpop.f32.mrf.mxu0
        %v2301 = vadd.f32 %v2178, %v2300
        %v2302 = vpop.f32.mrf.mxu0
        %2303 = vmatprep.mubr.f32.mxu0 0.0
        %v2304 = vand.u32 %v1666, 4294901760
        %2305 = vmatmul.mubr.f32.gmra.mxu0 %v2304
        %v2306 = vpop.f32.mrf.mxu0
        %v2307 = vadd.f32 %v2186, %v2306
        %v2308 = vpop.f32.mrf.mxu0
        %2309 = vmatprep.mubr.f32.mxu0 0.0
        %v2310 = vand.u32 %v1669, 4294901760
        %2311 = vmatmul.mubr.f32.gmra.mxu0 %v2310
        %v2312 = vpop.f32.mrf.mxu0
        %v2313 = vadd.f32 %v2194, %v2312
        %v2314 = vpop.f32.mrf.mxu0
        %2315 = vdwg.mxu0
        %2316 = vmatprep.subr.mxu0 0.0
        %2317 = vmatpush1.msra.mxu0 0.0
        %2318 = vmatprep.subr.mxu0 0.0
        %2319 = vmatpush1.msra.mxu0 0.0
        %2320 = vmatprep.subr.mxu0 0.0
        %2321 = vmatpush1.msra.mxu0 0.0
        %2322 = vmatprep.subr.mxu0 0.0
        %2323 = vmatpush1.msra.mxu0 0.0
        %2324 = vmatprep.subr.mxu0 0.0
        %2325 = vmatpush1.msra.mxu0 0.0
        %2326 = vmatprep.subr.mxu0 0.0
        %2327 = vmatpush1.msra.mxu0 0.0
        %2328 = vmatprep.subr.mxu0 0.0
        %2329 = vmatpush1.msra.mxu0 0.0
        %2330 = vmatprep.subr.mxu0 0.0
        %2331 = vmatpush1.msra.mxu0 0.0
        %2332 = vmatprep.subr.mxu0 0.0
        %2333 = vmatpush1.msra.mxu0 0.0
        %2334 = vmatprep.subr.mxu0 0.0
        %2335 = vmatpush1.msra.mxu0 0.0
        %2336 = vmatprep.subr.mxu0 0.0
        %2337 = vmatpush1.msra.mxu0 0.0
        %2338 = vmatprep.subr.mxu0 0.0
        %2339 = vmatpush1.msra.mxu0 0.0
        %2340 = vmatprep.subr.mxu0 0.0
        %2341 = vmatpush1.msra.mxu0 0.0
        %2342 = vmatprep.subr.mxu0 0.0
        %2343 = vmatpush1.msra.mxu0 0.0
        %2344 = vmatprep.subr.mxu0 0.0
        %v2345 = vand.u32 %v1638, 4294901760
        %2346 = vmatpush1.msra.mxu0 %v2345
        %2347 = vmatprep.subr.mxu0 0.0
        %v2348 = vand.u32 %v1637, 4294901760
        %2349 = vmatpush1.msra.mxu0 %v2348
        %2350 = vmatprep.subr.mxu0 0.0
        %2351 = vmatpush2.msra.mxu0 0.0
        %2352 = vmatprep.subr.mxu0 0.0
        %2353 = vmatpush2.msra.mxu0 0.0
        %2354 = vmatprep.subr.mxu0 0.0
        %2355 = vmatpush2.msra.mxu0 0.0
        %2356 = vmatprep.subr.mxu0 0.0
        %2357 = vmatpush2.msra.mxu0 0.0
        %2358 = vmatprep.subr.mxu0 0.0
        %2359 = vmatpush2.msra.mxu0 0.0
        %2360 = vmatprep.subr.mxu0 0.0
        %2361 = vmatpush2.msra.mxu0 0.0
        %2362 = vmatprep.subr.mxu0 0.0
        %2363 = vmatpush2.msra.mxu0 0.0
        %2364 = vmatprep.subr.mxu0 0.0
        %2365 = vmatpush2.msra.mxu0 0.0
        %2366 = vmatprep.subr.mxu0 0.0
        %2367 = vmatpush2.msra.mxu0 0.0
        %2368 = vmatprep.subr.mxu0 0.0
        %2369 = vmatpush2.msra.mxu0 0.0
        %2370 = vmatprep.subr.mxu0 0.0
        %2371 = vmatpush2.msra.mxu0 0.0
        %2372 = vmatprep.subr.mxu0 0.0
        %2373 = vmatpush2.msra.mxu0 0.0
        %2374 = vmatprep.subr.mxu0 0.0
        %2375 = vmatpush2.msra.mxu0 0.0
        %2376 = vmatprep.subr.mxu0 0.0
        %2377 = vmatpush2.msra.mxu0 0.0
        %2378 = vmatprep.subr.mxu0 0.0
        %2379 = vmatpush2.msra.mxu0 0.0
        %2380 = vmatprep.subr.mxu0 0.0
        %2381 = vmatpush2.msra.mxu0 0.0
        %2382 = vmatprep.mubr.f32.mxu0 0.0
        %v2383 = vand.u32 %v1648, 4294901760
        %2384 = vmatmul.mubr.f32.gmra.mxu0 %v2383
        %v2385 = vpop.f32.mrf.mxu0
        %v2386 = vadd.f32 %v2271, %v2385
        %v2387 = vpop.f32.mrf.mxu0
        %2388 = vmatprep.mubr.f32.mxu0 0.0
        %v2389 = vand.u32 %v1651, 4294901760
        %2390 = vmatmul.mubr.f32.gmra.mxu0 %v2389
        %v2391 = vpop.f32.mrf.mxu0
        %v2392 = vadd.f32 %v2277, %v2391
        %v2393 = vpop.f32.mrf.mxu0
        %2394 = vmatprep.mubr.f32.mxu0 0.0
        %v2395 = vand.u32 %v1654, 4294901760
        %2396 = vmatmul.mubr.f32.gmra.mxu0 %v2395
        %v2397 = vpop.f32.mrf.mxu0
        %v2398 = vadd.f32 %v2283, %v2397
        %v2399 = vpop.f32.mrf.mxu0
        %2400 = vmatprep.mubr.f32.mxu0 0.0
        %v2401 = vand.u32 %v1657, 4294901760
        %2402 = vmatmul.mubr.f32.gmra.mxu0 %v2401
        %v2403 = vpop.f32.mrf.mxu0
        %v2404 = vadd.f32 %v2289, %v2403
        %v2405 = vpop.f32.mrf.mxu0
        %2406 = vmatprep.mubr.f32.mxu0 0.0
        %v2407 = vand.u32 %v1660, 4294901760
        %2408 = vmatmul.mubr.f32.gmra.mxu0 %v2407
        %v2409 = vpop.f32.mrf.mxu0
        %v2410 = vadd.f32 %v2295, %v2409
        %v2411 = vpop.f32.mrf.mxu0
        %2412 = vmatprep.mubr.f32.mxu0 0.0
        %v2413 = vand.u32 %v1663, 4294901760
        %2414 = vmatmul.mubr.f32.gmra.mxu0 %v2413
        %v2415 = vpop.f32.mrf.mxu0
        %v2416 = vadd.f32 %v2301, %v2415
        %v2417 = vpop.f32.mrf.mxu0
        %2418 = vmatprep.mubr.f32.mxu0 0.0
        %v2419 = vand.u32 %v1666, 4294901760
        %2420 = vmatmul.mubr.f32.gmra.mxu0 %v2419
        %v2421 = vpop.f32.mrf.mxu0
        %v2422 = vadd.f32 %v2307, %v2421
        %v2423 = vpop.f32.mrf.mxu0
        %2424 = vmatprep.mubr.f32.mxu0 0.0
        %v2425 = vand.u32 %v1669, 4294901760
        %2426 = vmatmul.mubr.f32.gmra.mxu0 %v2425
        %v2427 = vpop.f32.mrf.mxu0
        %v2428 = vadd.f32 %v2313, %v2427
        %v2429 = vpop.f32.mrf.mxu0
        %2430 = vdwg.mxu0
        %v2431 = vlaneseq
        %v2432 = vand.u32 %v2431, 127
        %v2433 = vld [vmem:[%s422] sm:$0xff]
        %v2434 = vld [vmem:[%s422 + $0x8] sm:$0xff]
        %v2435 = vld [vmem:[%s422 + $0x10] sm:$0xff]
        %v2436 = vld [vmem:[%s422 + $0x18] sm:$0xff]
        %v2437 = vld [vmem:[%s422 + $0x20] sm:$0xff]
        %v2438 = vld [vmem:[%s422 + $0x28] sm:$0xff]
        %v2439 = vld [vmem:[%s422 + $0x30] sm:$0xff]
        %v2440 = vld [vmem:[%s422 + $0x38] sm:$0xff]
        %2441 = vset.pattern.permute.xlu0 0
        %2442 = vperm.xlu0 %2441, %v2433
        %v2443 = vpop.permute.xlu0 %2442
        %2444 = vset.pattern.permute.xlu0 0
        %2445 = vperm.xlu0 %2444, %v2434
        %v2446 = vpop.permute.xlu0 %2445
        %2447 = vset.pattern.permute.xlu0 0
        %2448 = vperm.xlu0 %2447, %v2435
        %v2449 = vpop.permute.xlu0 %2448
        %2450 = vset.pattern.permute.xlu0 0
        %2451 = vperm.xlu0 %2450, %v2436
        %v2452 = vpop.permute.xlu0 %2451
        %2453 = vset.pattern.permute.xlu0 0
        %2454 = vperm.xlu0 %2453, %v2437
        %v2455 = vpop.permute.xlu0 %2454
        %2456 = vset.pattern.permute.xlu0 0
        %2457 = vperm.xlu0 %2456, %v2438
        %v2458 = vpop.permute.xlu0 %2457
        %2459 = vset.pattern.permute.xlu0 0
        %2460 = vperm.xlu0 %2459, %v2439
        %v2461 = vpop.permute.xlu0 %2460
        %2462 = vset.pattern.permute.xlu0 0
        %2463 = vperm.xlu0 %2462, %v2440
        %v2464 = vpop.permute.xlu0 %2463
        %vm2465 = vcmp.eq.s32.totalorder %v2443, %v2432
        %vm2466 = vcmp.eq.s32.totalorder %v2446, %v2432
        %vm2467 = vcmp.eq.s32.totalorder %v2449, %v2432
        %vm2468 = vcmp.eq.s32.totalorder %v2452, %v2432
        %vm2469 = vcmp.eq.s32.totalorder %v2455, %v2432
        %vm2470 = vcmp.eq.s32.totalorder %v2458, %v2432
        %vm2471 = vcmp.eq.s32.totalorder %v2461, %v2432
        %vm2472 = vcmp.eq.s32.totalorder %v2464, %v2432
        %v2473 = vsel %vm2465, 1, 0
        %v2474 = vsel %vm2466, 1, 0
        %v2475 = vsel %vm2467, 1, 0
        %v2476 = vsel %vm2468, 1, 0
        %v2477 = vsel %vm2469, 1, 0
        %v2478 = vsel %vm2470, 1, 0
        %v2479 = vsel %vm2471, 1, 0
        %v2480 = vsel %vm2472, 1, 0
        %v2481 = vcvt.s32.f32 %v2473
        %v2482 = vcvt.s32.f32 %v2474
        %v2483 = vcvt.s32.f32 %v2475
        %v2484 = vcvt.s32.f32 %v2476
        %v2485 = vcvt.s32.f32 %v2477
        %v2486 = vcvt.s32.f32 %v2478
        %v2487 = vcvt.s32.f32 %v2479
        %v2488 = vcvt.s32.f32 %v2480
        %v2489 = vld [vmem:[%s428] sm:$0xff]
        %v2490 = vld [vmem:[%s428 + $0x8] sm:$0xff]
        %v2491 = vld [vmem:[%s428 + $0x10] sm:$0xff]
        %v2492 = vld [vmem:[%s428 + $0x18] sm:$0xff]
        %v2493 = vld [vmem:[%s428 + $0x20] sm:$0xff]
        %v2494 = vld [vmem:[%s428 + $0x28] sm:$0xff]
        %v2495 = vld [vmem:[%s428 + $0x30] sm:$0xff]
        %v2496 = vld [vmem:[%s428 + $0x38] sm:$0xff]
        %2497 = vset.pattern.permute.xlu0 0
        %2498 = vperm.xlu0 %2497, %v2489
        %v2499 = vpop.permute.xlu0 %2498
        %2500 = vset.pattern.permute.xlu0 0
        %2501 = vperm.xlu0 %2500, %v2490
        %v2502 = vpop.permute.xlu0 %2501
        %2503 = vset.pattern.permute.xlu0 0
        %2504 = vperm.xlu0 %2503, %v2491
        %v2505 = vpop.permute.xlu0 %2504
        %2506 = vset.pattern.permute.xlu0 0
        %2507 = vperm.xlu0 %2506, %v2492
        %v2508 = vpop.permute.xlu0 %2507
        %2509 = vset.pattern.permute.xlu0 0
        %2510 = vperm.xlu0 %2509, %v2493
        %v2511 = vpop.permute.xlu0 %2510
        %2512 = vset.pattern.permute.xlu0 0
        %2513 = vperm.xlu0 %2512, %v2494
        %v2514 = vpop.permute.xlu0 %2513
        %2515 = vset.pattern.permute.xlu0 0
        %2516 = vperm.xlu0 %2515, %v2495
        %v2517 = vpop.permute.xlu0 %2516
        %2518 = vset.pattern.permute.xlu0 0
        %2519 = vperm.xlu0 %2518, %v2496
        %v2520 = vpop.permute.xlu0 %2519
        %vm2521 = vcmp.eq.s32.totalorder %v2499, %v2432
        %vm2522 = vcmp.eq.s32.totalorder %v2502, %v2432
        %vm2523 = vcmp.eq.s32.totalorder %v2505, %v2432
        %vm2524 = vcmp.eq.s32.totalorder %v2508, %v2432
        %vm2525 = vcmp.eq.s32.totalorder %v2511, %v2432
        %vm2526 = vcmp.eq.s32.totalorder %v2514, %v2432
        %vm2527 = vcmp.eq.s32.totalorder %v2517, %v2432
        %vm2528 = vcmp.eq.s32.totalorder %v2520, %v2432
        %v2529 = vsel %vm2521, 1, 0
        %v2530 = vsel %vm2522, 1, 0
        %v2531 = vsel %vm2523, 1, 0
        %v2532 = vsel %vm2524, 1, 0
        %v2533 = vsel %vm2525, 1, 0
        %v2534 = vsel %vm2526, 1, 0
        %v2535 = vsel %vm2527, 1, 0
        %v2536 = vsel %vm2528, 1, 0
        %v2537 = vcvt.s32.f32 %v2529
        %v2538 = vcvt.s32.f32 %v2530
        %v2539 = vcvt.s32.f32 %v2531
        %v2540 = vcvt.s32.f32 %v2532
        %v2541 = vcvt.s32.f32 %v2533
        %v2542 = vcvt.s32.f32 %v2534
        %v2543 = vcvt.s32.f32 %v2535
        %v2544 = vcvt.s32.f32 %v2536
        %vm2545 = vcmask 195584
        %v2547 = vsel %vm2545, %v2481, 0
        %v2550 = vsel %vm2545, %v2482, 0
        %v2553 = vsel %vm2545, %v2483, 0
        %v2556 = vsel %vm2545, %v2484, 0
        %v2559 = vsel %vm2545, %v2485, 0
        %v2562 = vsel %vm2545, %v2486, 0
        %v2565 = vsel %vm2545, %v2487, 0
        %v2568 = vsel %vm2545, %v2488, 0
        %2570 = vmatprep.subr.mxu0 0.0
        %2571 = vmatpush1.msra.mxu0 0.0
        %2572 = vmatprep.subr.mxu0 0.0
        %2573 = vmatpush1.msra.mxu0 0.0
        %2574 = vmatprep.subr.mxu0 0.0
        %2575 = vmatpush1.msra.mxu0 0.0
        %2576 = vmatprep.subr.mxu0 0.0
        %2577 = vmatpush1.msra.mxu0 0.0
        %2578 = vmatprep.subr.mxu0 0.0
        %2579 = vmatpush1.msra.mxu0 0.0
        %2580 = vmatprep.subr.mxu0 0.0
        %2581 = vmatpush1.msra.mxu0 0.0
        %2582 = vmatprep.subr.mxu0 0.0
        %2583 = vmatpush1.msra.mxu0 0.0
        %2584 = vmatprep.subr.mxu0 0.0
        %2585 = vmatpush1.msra.mxu0 0.0
        %2586 = vmatprep.subr.mxu0 0.0
        %2587 = vmatpush1.msra.mxu0 0.0
        %2588 = vmatprep.subr.mxu0 0.0
        %2589 = vmatpush1.msra.mxu0 0.0
        %2590 = vmatprep.subr.mxu0 0.0
        %2591 = vmatpush1.msra.mxu0 0.0
        %2592 = vmatprep.subr.mxu0 0.0
        %2593 = vmatpush1.msra.mxu0 0.0
        %2594 = vmatprep.subr.mxu0 0.0
        %2595 = vmatpush1.msra.mxu0 0.0
        %v2596 = vand.u32 %v1628, 4294901760
        %2597 = vmatprep.subr.mxu0 %v2596
        %v2598 = vand.u32 %v1627, 4294901760
        %2599 = vmatpush1.msra.mxu0 %v2598
        %v2600 = vand.u32 %v1625, 4294901760
        %2601 = vmatprep.subr.mxu0 %v2600
        %v2602 = vand.u32 %v1624, 4294901760
        %2603 = vmatpush1.msra.mxu0 %v2602
        %v2604 = vand.u32 %v1622, 4294901760
        %2605 = vmatprep.subr.mxu0 %v2604
        %v2606 = vand.u32 %v1621, 4294901760
        %2607 = vmatpush1.msra.mxu0 %v2606
        %2608 = vmatprep.subr.mxu0 0.0
        %2609 = vmatpush2.msra.mxu0 0.0
        %2610 = vmatprep.subr.mxu0 0.0
        %2611 = vmatpush2.msra.mxu0 0.0
        %2612 = vmatprep.subr.mxu0 0.0
        %2613 = vmatpush2.msra.mxu0 0.0
        %2614 = vmatprep.subr.mxu0 0.0
        %2615 = vmatpush2.msra.mxu0 0.0
        %2616 = vmatprep.subr.mxu0 0.0
        %2617 = vmatpush2.msra.mxu0 0.0
        %2618 = vmatprep.subr.mxu0 0.0
        %2619 = vmatpush2.msra.mxu0 0.0
        %2620 = vmatprep.subr.mxu0 0.0
        %2621 = vmatpush2.msra.mxu0 0.0
        %2622 = vmatprep.subr.mxu0 0.0
        %2623 = vmatpush2.msra.mxu0 0.0
        %2624 = vmatprep.subr.mxu0 0.0
        %2625 = vmatpush2.msra.mxu0 0.0
        %2626 = vmatprep.subr.mxu0 0.0
        %2627 = vmatpush2.msra.mxu0 0.0
        %2628 = vmatprep.subr.mxu0 0.0
        %2629 = vmatpush2.msra.mxu0 0.0
        %2630 = vmatprep.subr.mxu0 0.0
        %2631 = vmatpush2.msra.mxu0 0.0
        %2632 = vmatprep.subr.mxu0 0.0
        %2633 = vmatpush2.msra.mxu0 0.0
        %2634 = vmatprep.subr.mxu0 0.0
        %2635 = vmatpush2.msra.mxu0 0.0
        %2636 = vmatprep.subr.mxu0 0.0
        %2637 = vmatpush2.msra.mxu0 0.0
        %2638 = vmatprep.subr.mxu0 0.0
        %2639 = vmatpush2.msra.mxu0 0.0
        %2640 = vmatprep.mubr.f32.mxu0 0.0
        %v2641 = vand.u32 %v2547, 4294901760
        %v2642 = vsub.f32 %v2547, %v2641
        %v2643 = vand.u32 %v2642, 4294901760
        %v2644 = vsub.f32 %v2642, %v2643
        %v2645 = vand.u32 %v2644, 4294901760
        %2646 = vmatmul.mubr.f32.gmra.mxu0 %v2645
        %v2647 = vpop.f32.mrf.mxu0
        %v2648 = vadd.f32 0.0, %v2647
        %v2649 = vpop.f32.mrf.mxu0
        %v2650 = vadd.f32 0.0, %v2649
        %2651 = vmatprep.mubr.f32.mxu0 0.0
        %v2652 = vand.u32 %v2550, 4294901760
        %v2653 = vsub.f32 %v2550, %v2652
        %v2654 = vand.u32 %v2653, 4294901760
        %v2655 = vsub.f32 %v2653, %v2654
        %v2656 = vand.u32 %v2655, 4294901760
        %2657 = vmatmul.mubr.f32.gmra.mxu0 %v2656
        %v2658 = vpop.f32.mrf.mxu0
        %v2659 = vadd.f32 0.0, %v2658
        %v2660 = vpop.f32.mrf.mxu0
        %v2661 = vadd.f32 0.0, %v2660
        %2662 = vmatprep.mubr.f32.mxu0 0.0
        %v2663 = vand.u32 %v2553, 4294901760
        %v2664 = vsub.f32 %v2553, %v2663
        %v2665 = vand.u32 %v2664, 4294901760
        %v2666 = vsub.f32 %v2664, %v2665
        %v2667 = vand.u32 %v2666, 4294901760
        %2668 = vmatmul.mubr.f32.gmra.mxu0 %v2667
        %v2669 = vpop.f32.mrf.mxu0
        %v2670 = vadd.f32 0.0, %v2669
        %v2671 = vpop.f32.mrf.mxu0
        %v2672 = vadd.f32 0.0, %v2671
        %2673 = vmatprep.mubr.f32.mxu0 0.0
        %v2674 = vand.u32 %v2556, 4294901760
        %v2675 = vsub.f32 %v2556, %v2674
        %v2676 = vand.u32 %v2675, 4294901760
        %v2677 = vsub.f32 %v2675, %v2676
        %v2678 = vand.u32 %v2677, 4294901760
        %2679 = vmatmul.mubr.f32.gmra.mxu0 %v2678
        %v2680 = vpop.f32.mrf.mxu0
        %v2681 = vadd.f32 0.0, %v2680
        %v2682 = vpop.f32.mrf.mxu0
        %v2683 = vadd.f32 0.0, %v2682
        %2684 = vmatprep.mubr.f32.mxu0 0.0
        %v2685 = vand.u32 %v2559, 4294901760
        %v2686 = vsub.f32 %v2559, %v2685
        %v2687 = vand.u32 %v2686, 4294901760
        %v2688 = vsub.f32 %v2686, %v2687
        %v2689 = vand.u32 %v2688, 4294901760
        %2690 = vmatmul.mubr.f32.gmra.mxu0 %v2689
        %v2691 = vpop.f32.mrf.mxu0
        %v2692 = vadd.f32 0.0, %v2691
        %v2693 = vpop.f32.mrf.mxu0
        %v2694 = vadd.f32 0.0, %v2693
        %2695 = vmatprep.mubr.f32.mxu0 0.0
        %v2696 = vand.u32 %v2562, 4294901760
        %v2697 = vsub.f32 %v2562, %v2696
        %v2698 = vand.u32 %v2697, 4294901760
        %v2699 = vsub.f32 %v2697, %v2698
        %v2700 = vand.u32 %v2699, 4294901760
        %2701 = vmatmul.mubr.f32.gmra.mxu0 %v2700
        %v2702 = vpop.f32.mrf.mxu0
        %v2703 = vadd.f32 0.0, %v2702
        %v2704 = vpop.f32.mrf.mxu0
        %v2705 = vadd.f32 0.0, %v2704
        %2706 = vmatprep.mubr.f32.mxu0 0.0
        %v2707 = vand.u32 %v2565, 4294901760
        %v2708 = vsub.f32 %v2565, %v2707
        %v2709 = vand.u32 %v2708, 4294901760
        %v2710 = vsub.f32 %v2708, %v2709
        %v2711 = vand.u32 %v2710, 4294901760
        %2712 = vmatmul.mubr.f32.gmra.mxu0 %v2711
        %v2713 = vpop.f32.mrf.mxu0
        %v2714 = vadd.f32 0.0, %v2713
        %v2715 = vpop.f32.mrf.mxu0
        %v2716 = vadd.f32 0.0, %v2715
        %2717 = vmatprep.mubr.f32.mxu0 0.0
        %v2718 = vand.u32 %v2568, 4294901760
        %v2719 = vsub.f32 %v2568, %v2718
        %v2720 = vand.u32 %v2719, 4294901760
        %v2721 = vsub.f32 %v2719, %v2720
        %v2722 = vand.u32 %v2721, 4294901760
        %2723 = vmatmul.mubr.f32.gmra.mxu0 %v2722
        %v2724 = vpop.f32.mrf.mxu0
        %v2725 = vadd.f32 0.0, %v2724
        %v2726 = vpop.f32.mrf.mxu0
        %v2727 = vadd.f32 0.0, %v2726
        %2728 = vdwg.mxu0
        %2729 = vmatprep.subr.mxu0 0.0
        %2730 = vmatpush1.msra.mxu0 0.0
        %2731 = vmatprep.subr.mxu0 0.0
        %2732 = vmatpush1.msra.mxu0 0.0
        %2733 = vmatprep.subr.mxu0 0.0
        %2734 = vmatpush1.msra.mxu0 0.0
        %2735 = vmatprep.subr.mxu0 0.0
        %2736 = vmatpush1.msra.mxu0 0.0
        %2737 = vmatprep.subr.mxu0 0.0
        %2738 = vmatpush1.msra.mxu0 0.0
        %2739 = vmatprep.subr.mxu0 0.0
        %2740 = vmatpush1.msra.mxu0 0.0
        %2741 = vmatprep.subr.mxu0 0.0
        %2742 = vmatpush1.msra.mxu0 0.0
        %2743 = vmatprep.subr.mxu0 0.0
        %2744 = vmatpush1.msra.mxu0 0.0
        %2745 = vmatprep.subr.mxu0 0.0
        %2746 = vmatpush1.msra.mxu0 0.0
        %2747 = vmatprep.subr.mxu0 0.0
        %2748 = vmatpush1.msra.mxu0 0.0
        %2749 = vmatprep.subr.mxu0 0.0
        %2750 = vmatpush1.msra.mxu0 0.0
        %2751 = vmatprep.subr.mxu0 0.0
        %2752 = vmatpush1.msra.mxu0 0.0
        %2753 = vmatprep.subr.mxu0 0.0
        %2754 = vmatpush1.msra.mxu0 0.0
        %v2755 = vand.u32 %v1628, 4294901760
        %v2756 = vsub.f32 %v1628, %v2755
        %v2757 = vand.u32 %v2756, 4294901760
        %v2758 = vsub.f32 %v2756, %v2757
        %v2759 = vand.u32 %v2758, 4294901760
        %2760 = vmatprep.subr.mxu0 %v2759
        %v2761 = vand.u32 %v1627, 4294901760
        %v2762 = vsub.f32 %v1627, %v2761
        %v2763 = vand.u32 %v2762, 4294901760
        %v2764 = vsub.f32 %v2762, %v2763
        %v2765 = vand.u32 %v2764, 4294901760
        %2766 = vmatpush1.msra.mxu0 %v2765
        %v2767 = vand.u32 %v1625, 4294901760
        %v2768 = vsub.f32 %v1625, %v2767
        %v2769 = vand.u32 %v2768, 4294901760
        %v2770 = vsub.f32 %v2768, %v2769
        %v2771 = vand.u32 %v2770, 4294901760
        %2772 = vmatprep.subr.mxu0 %v2771
        %v2773 = vand.u32 %v1624, 4294901760
        %v2774 = vsub.f32 %v1624, %v2773
        %v2775 = vand.u32 %v2774, 4294901760
        %v2776 = vsub.f32 %v2774, %v2775
        %v2777 = vand.u32 %v2776, 4294901760
        %2778 = vmatpush1.msra.mxu0 %v2777
        %v2779 = vand.u32 %v1622, 4294901760
        %v2780 = vsub.f32 %v1622, %v2779
        %v2781 = vand.u32 %v2780, 4294901760
        %v2782 = vsub.f32 %v2780, %v2781
        %v2783 = vand.u32 %v2782, 4294901760
        %2784 = vmatprep.subr.mxu0 %v2783
        %v2785 = vand.u32 %v1621, 4294901760
        %v2786 = vsub.f32 %v1621, %v2785
        %v2787 = vand.u32 %v2786, 4294901760
        %v2788 = vsub.f32 %v2786, %v2787
        %v2789 = vand.u32 %v2788, 4294901760
        %2790 = vmatpush1.msra.mxu0 %v2789
        %2791 = vmatprep.subr.mxu0 0.0
        %2792 = vmatpush2.msra.mxu0 0.0
        %2793 = vmatprep.subr.mxu0 0.0
        %2794 = vmatpush2.msra.mxu0 0.0
        %2795 = vmatprep.subr.mxu0 0.0
        %2796 = vmatpush2.msra.mxu0 0.0
        %2797 = vmatprep.subr.mxu0 0.0
        %2798 = vmatpush2.msra.mxu0 0.0
        %2799 = vmatprep.subr.mxu0 0.0
        %2800 = vmatpush2.msra.mxu0 0.0
        %2801 = vmatprep.subr.mxu0 0.0
        %2802 = vmatpush2.msra.mxu0 0.0
        %2803 = vmatprep.subr.mxu0 0.0
        %2804 = vmatpush2.msra.mxu0 0.0
        %2805 = vmatprep.subr.mxu0 0.0
        %2806 = vmatpush2.msra.mxu0 0.0
        %2807 = vmatprep.subr.mxu0 0.0
        %2808 = vmatpush2.msra.mxu0 0.0
        %2809 = vmatprep.subr.mxu0 0.0
        %2810 = vmatpush2.msra.mxu0 0.0
        %2811 = vmatprep.subr.mxu0 0.0
        %2812 = vmatpush2.msra.mxu0 0.0
        %2813 = vmatprep.subr.mxu0 0.0
        %2814 = vmatpush2.msra.mxu0 0.0
        %2815 = vmatprep.subr.mxu0 0.0
        %2816 = vmatpush2.msra.mxu0 0.0
        %2817 = vmatprep.subr.mxu0 0.0
        %2818 = vmatpush2.msra.mxu0 0.0
        %2819 = vmatprep.subr.mxu0 0.0
        %2820 = vmatpush2.msra.mxu0 0.0
        %2821 = vmatprep.subr.mxu0 0.0
        %2822 = vmatpush2.msra.mxu0 0.0
        %2823 = vmatprep.mubr.f32.mxu0 0.0
        %v2824 = vand.u32 %v2547, 4294901760
        %2825 = vmatmul.mubr.f32.gmra.mxu0 %v2824
        %v2826 = vpop.f32.mrf.mxu0
        %v2827 = vadd.f32 %v2648, %v2826
        %v2828 = vpop.f32.mrf.mxu0
        %v2829 = vadd.f32 %v2650, %v2828
        %2830 = vmatprep.mubr.f32.mxu0 0.0
        %v2831 = vand.u32 %v2550, 4294901760
        %2832 = vmatmul.mubr.f32.gmra.mxu0 %v2831
        %v2833 = vpop.f32.mrf.mxu0
        %v2834 = vadd.f32 %v2659, %v2833
        %v2835 = vpop.f32.mrf.mxu0
        %v2836 = vadd.f32 %v2661, %v2835
        %2837 = vmatprep.mubr.f32.mxu0 0.0
        %v2838 = vand.u32 %v2553, 4294901760
        %2839 = vmatmul.mubr.f32.gmra.mxu0 %v2838
        %v2840 = vpop.f32.mrf.mxu0
        %v2841 = vadd.f32 %v2670, %v2840
        %v2842 = vpop.f32.mrf.mxu0
        %v2843 = vadd.f32 %v2672, %v2842
        %2844 = vmatprep.mubr.f32.mxu0 0.0
        %v2845 = vand.u32 %v2556, 4294901760
        %2846 = vmatmul.mubr.f32.gmra.mxu0 %v2845
        %v2847 = vpop.f32.mrf.mxu0
        %v2848 = vadd.f32 %v2681, %v2847
        %v2849 = vpop.f32.mrf.mxu0
        %v2850 = vadd.f32 %v2683, %v2849
        %2851 = vmatprep.mubr.f32.mxu0 0.0
        %v2852 = vand.u32 %v2559, 4294901760
        %2853 = vmatmul.mubr.f32.gmra.mxu0 %v2852
        %v2854 = vpop.f32.mrf.mxu0
        %v2855 = vadd.f32 %v2692, %v2854
        %v2856 = vpop.f32.mrf.mxu0
        %v2857 = vadd.f32 %v2694, %v2856
        %2858 = vmatprep.mubr.f32.mxu0 0.0
        %v2859 = vand.u32 %v2562, 4294901760
        %2860 = vmatmul.mubr.f32.gmra.mxu0 %v2859
        %v2861 = vpop.f32.mrf.mxu0
        %v2862 = vadd.f32 %v2703, %v2861
        %v2863 = vpop.f32.mrf.mxu0
        %v2864 = vadd.f32 %v2705, %v2863
        %2865 = vmatprep.mubr.f32.mxu0 0.0
        %v2866 = vand.u32 %v2565, 4294901760
        %2867 = vmatmul.mubr.f32.gmra.mxu0 %v2866
        %v2868 = vpop.f32.mrf.mxu0
        %v2869 = vadd.f32 %v2714, %v2868
        %v2870 = vpop.f32.mrf.mxu0
        %v2871 = vadd.f32 %v2716, %v2870
        %2872 = vmatprep.mubr.f32.mxu0 0.0
        %v2873 = vand.u32 %v2568, 4294901760
        %2874 = vmatmul.mubr.f32.gmra.mxu0 %v2873
        %v2875 = vpop.f32.mrf.mxu0
        %v2876 = vadd.f32 %v2725, %v2875
        %v2877 = vpop.f32.mrf.mxu0
        %v2878 = vadd.f32 %v2727, %v2877
        %2879 = vdwg.mxu0
        %2880 = vmatprep.subr.mxu0 0.0
        %2881 = vmatpush1.msra.mxu0 0.0
        %2882 = vmatprep.subr.mxu0 0.0
        %2883 = vmatpush1.msra.mxu0 0.0
        %2884 = vmatprep.subr.mxu0 0.0
        %2885 = vmatpush1.msra.mxu0 0.0
        %2886 = vmatprep.subr.mxu0 0.0
        %2887 = vmatpush1.msra.mxu0 0.0
        %2888 = vmatprep.subr.mxu0 0.0
        %2889 = vmatpush1.msra.mxu0 0.0
        %2890 = vmatprep.subr.mxu0 0.0
        %2891 = vmatpush1.msra.mxu0 0.0
        %2892 = vmatprep.subr.mxu0 0.0
        %2893 = vmatpush1.msra.mxu0 0.0
        %2894 = vmatprep.subr.mxu0 0.0
        %2895 = vmatpush1.msra.mxu0 0.0
        %2896 = vmatprep.subr.mxu0 0.0
        %2897 = vmatpush1.msra.mxu0 0.0
        %2898 = vmatprep.subr.mxu0 0.0
        %2899 = vmatpush1.msra.mxu0 0.0
        %2900 = vmatprep.subr.mxu0 0.0
        %2901 = vmatpush1.msra.mxu0 0.0
        %2902 = vmatprep.subr.mxu0 0.0
        %2903 = vmatpush1.msra.mxu0 0.0
        %2904 = vmatprep.subr.mxu0 0.0
        %2905 = vmatpush1.msra.mxu0 0.0
        %v2906 = vand.u32 %v1628, 4294901760
        %v2907 = vsub.f32 %v1628, %v2906
        %2908 = vmatprep.subr.mxu0 %v2907
        %v2909 = vand.u32 %v1627, 4294901760
        %v2910 = vsub.f32 %v1627, %v2909
        %2911 = vmatpush1.msra.mxu0 %v2910
        %v2912 = vand.u32 %v1625, 4294901760
        %v2913 = vsub.f32 %v1625, %v2912
        %2914 = vmatprep.subr.mxu0 %v2913
        %v2915 = vand.u32 %v1624, 4294901760
        %v2916 = vsub.f32 %v1624, %v2915
        %2917 = vmatpush1.msra.mxu0 %v2916
        %v2918 = vand.u32 %v1622, 4294901760
        %v2919 = vsub.f32 %v1622, %v2918
        %2920 = vmatprep.subr.mxu0 %v2919
        %v2921 = vand.u32 %v1621, 4294901760
        %v2922 = vsub.f32 %v1621, %v2921
        %2923 = vmatpush1.msra.mxu0 %v2922
        %2924 = vmatprep.subr.mxu0 0.0
        %2925 = vmatpush2.msra.mxu0 0.0
        %2926 = vmatprep.subr.mxu0 0.0
        %2927 = vmatpush2.msra.mxu0 0.0
        %2928 = vmatprep.subr.mxu0 0.0
        %2929 = vmatpush2.msra.mxu0 0.0
        %2930 = vmatprep.subr.mxu0 0.0
        %2931 = vmatpush2.msra.mxu0 0.0
        %2932 = vmatprep.subr.mxu0 0.0
        %2933 = vmatpush2.msra.mxu0 0.0
        %2934 = vmatprep.subr.mxu0 0.0
        %2935 = vmatpush2.msra.mxu0 0.0
        %2936 = vmatprep.subr.mxu0 0.0
        %2937 = vmatpush2.msra.mxu0 0.0
        %2938 = vmatprep.subr.mxu0 0.0
        %2939 = vmatpush2.msra.mxu0 0.0
        %2940 = vmatprep.subr.mxu0 0.0
        %2941 = vmatpush2.msra.mxu0 0.0
        %2942 = vmatprep.subr.mxu0 0.0
        %2943 = vmatpush2.msra.mxu0 0.0
        %2944 = vmatprep.subr.mxu0 0.0
        %2945 = vmatpush2.msra.mxu0 0.0
        %2946 = vmatprep.subr.mxu0 0.0
        %2947 = vmatpush2.msra.mxu0 0.0
        %2948 = vmatprep.subr.mxu0 0.0
        %2949 = vmatpush2.msra.mxu0 0.0
        %2950 = vmatprep.subr.mxu0 0.0
        %2951 = vmatpush2.msra.mxu0 0.0
        %2952 = vmatprep.subr.mxu0 0.0
        %2953 = vmatpush2.msra.mxu0 0.0
        %2954 = vmatprep.subr.mxu0 0.0
        %2955 = vmatpush2.msra.mxu0 0.0
        %2956 = vmatprep.mubr.f32.mxu0 0.0
        %v2957 = vand.u32 %v2547, 4294901760
        %v2958 = vsub.f32 %v2547, %v2957
        %2959 = vmatmul.mubr.f32.gmra.mxu0 %v2958
        %v2960 = vpop.f32.mrf.mxu0
        %v2961 = vadd.f32 %v2827, %v2960
        %v2962 = vpop.f32.mrf.mxu0
        %v2963 = vadd.f32 %v2829, %v2962
        %2964 = vmatprep.mubr.f32.mxu0 0.0
        %v2965 = vand.u32 %v2550, 4294901760
        %v2966 = vsub.f32 %v2550, %v2965
        %2967 = vmatmul.mubr.f32.gmra.mxu0 %v2966
        %v2968 = vpop.f32.mrf.mxu0
        %v2969 = vadd.f32 %v2834, %v2968
        %v2970 = vpop.f32.mrf.mxu0
        %v2971 = vadd.f32 %v2836, %v2970
        %2972 = vmatprep.mubr.f32.mxu0 0.0
        %v2973 = vand.u32 %v2553, 4294901760
        %v2974 = vsub.f32 %v2553, %v2973
        %2975 = vmatmul.mubr.f32.gmra.mxu0 %v2974
        %v2976 = vpop.f32.mrf.mxu0
        %v2977 = vadd.f32 %v2841, %v2976
        %v2978 = vpop.f32.mrf.mxu0
        %v2979 = vadd.f32 %v2843, %v2978
        %2980 = vmatprep.mubr.f32.mxu0 0.0
        %v2981 = vand.u32 %v2556, 4294901760
        %v2982 = vsub.f32 %v2556, %v2981
        %2983 = vmatmul.mubr.f32.gmra.mxu0 %v2982
        %v2984 = vpop.f32.mrf.mxu0
        %v2985 = vadd.f32 %v2848, %v2984
        %v2986 = vpop.f32.mrf.mxu0
        %v2987 = vadd.f32 %v2850, %v2986
        %2988 = vmatprep.mubr.f32.mxu0 0.0
        %v2989 = vand.u32 %v2559, 4294901760
        %v2990 = vsub.f32 %v2559, %v2989
        %2991 = vmatmul.mubr.f32.gmra.mxu0 %v2990
        %v2992 = vpop.f32.mrf.mxu0
        %v2993 = vadd.f32 %v2855, %v2992
        %v2994 = vpop.f32.mrf.mxu0
        %v2995 = vadd.f32 %v2857, %v2994
        %2996 = vmatprep.mubr.f32.mxu0 0.0
        %v2997 = vand.u32 %v2562, 4294901760
        %v2998 = vsub.f32 %v2562, %v2997
        %2999 = vmatmul.mubr.f32.gmra.mxu0 %v2998
        %v3000 = vpop.f32.mrf.mxu0
        %v3001 = vadd.f32 %v2862, %v3000
        %v3002 = vpop.f32.mrf.mxu0
        %v3003 = vadd.f32 %v2864, %v3002
        %3004 = vmatprep.mubr.f32.mxu0 0.0
        %v3005 = vand.u32 %v2565, 4294901760
        %v3006 = vsub.f32 %v2565, %v3005
        %3007 = vmatmul.mubr.f32.gmra.mxu0 %v3006
        %v3008 = vpop.f32.mrf.mxu0
        %v3009 = vadd.f32 %v2869, %v3008
        %v3010 = vpop.f32.mrf.mxu0
        %v3011 = vadd.f32 %v2871, %v3010
        %3012 = vmatprep.mubr.f32.mxu0 0.0
        %v3013 = vand.u32 %v2568, 4294901760
        %v3014 = vsub.f32 %v2568, %v3013
        %3015 = vmatmul.mubr.f32.gmra.mxu0 %v3014
        %v3016 = vpop.f32.mrf.mxu0
        %v3017 = vadd.f32 %v2876, %v3016
        %v3018 = vpop.f32.mrf.mxu0
        %v3019 = vadd.f32 %v2878, %v3018
        %3020 = vdwg.mxu0
        %3021 = vmatprep.subr.mxu0 0.0
        %3022 = vmatpush1.msra.mxu0 0.0
        %3023 = vmatprep.subr.mxu0 0.0
        %3024 = vmatpush1.msra.mxu0 0.0
        %3025 = vmatprep.subr.mxu0 0.0
        %3026 = vmatpush1.msra.mxu0 0.0
        %3027 = vmatprep.subr.mxu0 0.0
        %3028 = vmatpush1.msra.mxu0 0.0
        %3029 = vmatprep.subr.mxu0 0.0
        %3030 = vmatpush1.msra.mxu0 0.0
        %3031 = vmatprep.subr.mxu0 0.0
        %3032 = vmatpush1.msra.mxu0 0.0
        %3033 = vmatprep.subr.mxu0 0.0
        %3034 = vmatpush1.msra.mxu0 0.0
        %3035 = vmatprep.subr.mxu0 0.0
        %3036 = vmatpush1.msra.mxu0 0.0
        %3037 = vmatprep.subr.mxu0 0.0
        %3038 = vmatpush1.msra.mxu0 0.0
        %3039 = vmatprep.subr.mxu0 0.0
        %3040 = vmatpush1.msra.mxu0 0.0
        %3041 = vmatprep.subr.mxu0 0.0
        %3042 = vmatpush1.msra.mxu0 0.0
        %3043 = vmatprep.subr.mxu0 0.0
        %3044 = vmatpush1.msra.mxu0 0.0
        %3045 = vmatprep.subr.mxu0 0.0
        %3046 = vmatpush1.msra.mxu0 0.0
        %v3047 = vand.u32 %v1628, 4294901760
        %3048 = vmatprep.subr.mxu0 %v3047
        %v3049 = vand.u32 %v1627, 4294901760
        %3050 = vmatpush1.msra.mxu0 %v3049
        %v3051 = vand.u32 %v1625, 4294901760
        %3052 = vmatprep.subr.mxu0 %v3051
        %v3053 = vand.u32 %v1624, 4294901760
        %3054 = vmatpush1.msra.mxu0 %v3053
        %v3055 = vand.u32 %v1622, 4294901760
        %3056 = vmatprep.subr.mxu0 %v3055
        %v3057 = vand.u32 %v1621, 4294901760
        %3058 = vmatpush1.msra.mxu0 %v3057
        %3059 = vmatprep.subr.mxu0 0.0
        %3060 = vmatpush2.msra.mxu0 0.0
        %3061 = vmatprep.subr.mxu0 0.0
        %3062 = vmatpush2.msra.mxu0 0.0
        %3063 = vmatprep.subr.mxu0 0.0
        %3064 = vmatpush2.msra.mxu0 0.0
        %3065 = vmatprep.subr.mxu0 0.0
        %3066 = vmatpush2.msra.mxu0 0.0
        %3067 = vmatprep.subr.mxu0 0.0
        %3068 = vmatpush2.msra.mxu0 0.0
        %3069 = vmatprep.subr.mxu0 0.0
        %3070 = vmatpush2.msra.mxu0 0.0
        %3071 = vmatprep.subr.mxu0 0.0
        %3072 = vmatpush2.msra.mxu0 0.0
        %3073 = vmatprep.subr.mxu0 0.0
        %3074 = vmatpush2.msra.mxu0 0.0
        %3075 = vmatprep.subr.mxu0 0.0
        %3076 = vmatpush2.msra.mxu0 0.0
        %3077 = vmatprep.subr.mxu0 0.0
        %3078 = vmatpush2.msra.mxu0 0.0
        %3079 = vmatprep.subr.mxu0 0.0
        %3080 = vmatpush2.msra.mxu0 0.0
        %3081 = vmatprep.subr.mxu0 0.0
        %3082 = vmatpush2.msra.mxu0 0.0
        %3083 = vmatprep.subr.mxu0 0.0
        %3084 = vmatpush2.msra.mxu0 0.0
        %3085 = vmatprep.subr.mxu0 0.0
        %3086 = vmatpush2.msra.mxu0 0.0
        %3087 = vmatprep.subr.mxu0 0.0
        %3088 = vmatpush2.msra.mxu0 0.0
        %3089 = vmatprep.subr.mxu0 0.0
        %3090 = vmatpush2.msra.mxu0 0.0
        %3091 = vmatprep.mubr.f32.mxu0 0.0
        %v3092 = vand.u32 %v2547, 4294901760
        %v3093 = vsub.f32 %v2547, %v3092
        %v3094 = vand.u32 %v3093, 4294901760
        %3095 = vmatmul.mubr.f32.gmra.mxu0 %v3094
        %v3096 = vpop.f32.mrf.mxu0
        %v3097 = vadd.f32 %v2961, %v3096
        %v3098 = vpop.f32.mrf.mxu0
        %v3099 = vadd.f32 %v2963, %v3098
        %3100 = vmatprep.mubr.f32.mxu0 0.0
        %v3101 = vand.u32 %v2550, 4294901760
        %v3102 = vsub.f32 %v2550, %v3101
        %v3103 = vand.u32 %v3102, 4294901760
        %3104 = vmatmul.mubr.f32.gmra.mxu0 %v3103
        %v3105 = vpop.f32.mrf.mxu0
        %v3106 = vadd.f32 %v2969, %v3105
        %v3107 = vpop.f32.mrf.mxu0
        %v3108 = vadd.f32 %v2971, %v3107
        %3109 = vmatprep.mubr.f32.mxu0 0.0
        %v3110 = vand.u32 %v2553, 4294901760
        %v3111 = vsub.f32 %v2553, %v3110
        %v3112 = vand.u32 %v3111, 4294901760
        %3113 = vmatmul.mubr.f32.gmra.mxu0 %v3112
        %v3114 = vpop.f32.mrf.mxu0
        %v3115 = vadd.f32 %v2977, %v3114
        %v3116 = vpop.f32.mrf.mxu0
        %v3117 = vadd.f32 %v2979, %v3116
        %3118 = vmatprep.mubr.f32.mxu0 0.0
        %v3119 = vand.u32 %v2556, 4294901760
        %v3120 = vsub.f32 %v2556, %v3119
        %v3121 = vand.u32 %v3120, 4294901760
        %3122 = vmatmul.mubr.f32.gmra.mxu0 %v3121
        %v3123 = vpop.f32.mrf.mxu0
        %v3124 = vadd.f32 %v2985, %v3123
        %v3125 = vpop.f32.mrf.mxu0
        %v3126 = vadd.f32 %v2987, %v3125
        %3127 = vmatprep.mubr.f32.mxu0 0.0
        %v3128 = vand.u32 %v2559, 4294901760
        %v3129 = vsub.f32 %v2559, %v3128
        %v3130 = vand.u32 %v3129, 4294901760
        %3131 = vmatmul.mubr.f32.gmra.mxu0 %v3130
        %v3132 = vpop.f32.mrf.mxu0
        %v3133 = vadd.f32 %v2993, %v3132
        %v3134 = vpop.f32.mrf.mxu0
        %v3135 = vadd.f32 %v2995, %v3134
        %3136 = vmatprep.mubr.f32.mxu0 0.0
        %v3137 = vand.u32 %v2562, 4294901760
        %v3138 = vsub.f32 %v2562, %v3137
        %v3139 = vand.u32 %v3138, 4294901760
        %3140 = vmatmul.mubr.f32.gmra.mxu0 %v3139
        %v3141 = vpop.f32.mrf.mxu0
        %v3142 = vadd.f32 %v3001, %v3141
        %v3143 = vpop.f32.mrf.mxu0
        %v3144 = vadd.f32 %v3003, %v3143
        %3145 = vmatprep.mubr.f32.mxu0 0.0
        %v3146 = vand.u32 %v2565, 4294901760
        %v3147 = vsub.f32 %v2565, %v3146
        %v3148 = vand.u32 %v3147, 4294901760
        %3149 = vmatmul.mubr.f32.gmra.mxu0 %v3148
        %v3150 = vpop.f32.mrf.mxu0
        %v3151 = vadd.f32 %v3009, %v3150
        %v3152 = vpop.f32.mrf.mxu0
        %v3153 = vadd.f32 %v3011, %v3152
        %3154 = vmatprep.mubr.f32.mxu0 0.0
        %v3155 = vand.u32 %v2568, 4294901760
        %v3156 = vsub.f32 %v2568, %v3155
        %v3157 = vand.u32 %v3156, 4294901760
        %3158 = vmatmul.mubr.f32.gmra.mxu0 %v3157
        %v3159 = vpop.f32.mrf.mxu0
        %v3160 = vadd.f32 %v3017, %v3159
        %v3161 = vpop.f32.mrf.mxu0
        %v3162 = vadd.f32 %v3019, %v3161
        %3163 = vdwg.mxu0
        %3164 = vmatprep.subr.mxu0 0.0
        %3165 = vmatpush1.msra.mxu0 0.0
        %3166 = vmatprep.subr.mxu0 0.0
        %3167 = vmatpush1.msra.mxu0 0.0
        %3168 = vmatprep.subr.mxu0 0.0
        %3169 = vmatpush1.msra.mxu0 0.0
        %3170 = vmatprep.subr.mxu0 0.0
        %3171 = vmatpush1.msra.mxu0 0.0
        %3172 = vmatprep.subr.mxu0 0.0
        %3173 = vmatpush1.msra.mxu0 0.0
        %3174 = vmatprep.subr.mxu0 0.0
        %3175 = vmatpush1.msra.mxu0 0.0
        %3176 = vmatprep.subr.mxu0 0.0
        %3177 = vmatpush1.msra.mxu0 0.0
        %3178 = vmatprep.subr.mxu0 0.0
        %3179 = vmatpush1.msra.mxu0 0.0
        %3180 = vmatprep.subr.mxu0 0.0
        %3181 = vmatpush1.msra.mxu0 0.0
        %3182 = vmatprep.subr.mxu0 0.0
        %3183 = vmatpush1.msra.mxu0 0.0
        %3184 = vmatprep.subr.mxu0 0.0
        %3185 = vmatpush1.msra.mxu0 0.0
        %3186 = vmatprep.subr.mxu0 0.0
        %3187 = vmatpush1.msra.mxu0 0.0
        %3188 = vmatprep.subr.mxu0 0.0
        %3189 = vmatpush1.msra.mxu0 0.0
        %v3190 = vand.u32 %v1628, 4294901760
        %v3191 = vsub.f32 %v1628, %v3190
        %v3192 = vand.u32 %v3191, 4294901760
        %3193 = vmatprep.subr.mxu0 %v3192
        %v3194 = vand.u32 %v1627, 4294901760
        %v3195 = vsub.f32 %v1627, %v3194
        %v3196 = vand.u32 %v3195, 4294901760
        %3197 = vmatpush1.msra.mxu0 %v3196
        %v3198 = vand.u32 %v1625, 4294901760
        %v3199 = vsub.f32 %v1625, %v3198
        %v3200 = vand.u32 %v3199, 4294901760
        %3201 = vmatprep.subr.mxu0 %v3200
        %v3202 = vand.u32 %v1624, 4294901760
        %v3203 = vsub.f32 %v1624, %v3202
        %v3204 = vand.u32 %v3203, 4294901760
        %3205 = vmatpush1.msra.mxu0 %v3204
        %v3206 = vand.u32 %v1622, 4294901760
        %v3207 = vsub.f32 %v1622, %v3206
        %v3208 = vand.u32 %v3207, 4294901760
        %3209 = vmatprep.subr.mxu0 %v3208
        %v3210 = vand.u32 %v1621, 4294901760
        %v3211 = vsub.f32 %v1621, %v3210
        %v3212 = vand.u32 %v3211, 4294901760
        %3213 = vmatpush1.msra.mxu0 %v3212
        %3214 = vmatprep.subr.mxu0 0.0
        %3215 = vmatpush2.msra.mxu0 0.0
        %3216 = vmatprep.subr.mxu0 0.0
        %3217 = vmatpush2.msra.mxu0 0.0
        %3218 = vmatprep.subr.mxu0 0.0
        %3219 = vmatpush2.msra.mxu0 0.0
        %3220 = vmatprep.subr.mxu0 0.0
        %3221 = vmatpush2.msra.mxu0 0.0
        %3222 = vmatprep.subr.mxu0 0.0
        %3223 = vmatpush2.msra.mxu0 0.0
        %3224 = vmatprep.subr.mxu0 0.0
        %3225 = vmatpush2.msra.mxu0 0.0
        %3226 = vmatprep.subr.mxu0 0.0
        %3227 = vmatpush2.msra.mxu0 0.0
        %3228 = vmatprep.subr.mxu0 0.0
        %3229 = vmatpush2.msra.mxu0 0.0
        %3230 = vmatprep.subr.mxu0 0.0
        %3231 = vmatpush2.msra.mxu0 0.0
        %3232 = vmatprep.subr.mxu0 0.0
        %3233 = vmatpush2.msra.mxu0 0.0
        %3234 = vmatprep.subr.mxu0 0.0
        %3235 = vmatpush2.msra.mxu0 0.0
        %3236 = vmatprep.subr.mxu0 0.0
        %3237 = vmatpush2.msra.mxu0 0.0
        %3238 = vmatprep.subr.mxu0 0.0
        %3239 = vmatpush2.msra.mxu0 0.0
        %3240 = vmatprep.subr.mxu0 0.0
        %3241 = vmatpush2.msra.mxu0 0.0
        %3242 = vmatprep.subr.mxu0 0.0
        %3243 = vmatpush2.msra.mxu0 0.0
        %3244 = vmatprep.subr.mxu0 0.0
        %3245 = vmatpush2.msra.mxu0 0.0
        %3246 = vmatprep.mubr.f32.mxu0 0.0
        %v3247 = vand.u32 %v2547, 4294901760
        %3248 = vmatmul.mubr.f32.gmra.mxu0 %v3247
        %v3249 = vpop.f32.mrf.mxu0
        %v3250 = vadd.f32 %v3097, %v3249
        %v3251 = vpop.f32.mrf.mxu0
        %v3252 = vadd.f32 %v3099, %v3251
        %3253 = vmatprep.mubr.f32.mxu0 0.0
        %v3254 = vand.u32 %v2550, 4294901760
        %3255 = vmatmul.mubr.f32.gmra.mxu0 %v3254
        %v3256 = vpop.f32.mrf.mxu0
        %v3257 = vadd.f32 %v3106, %v3256
        %v3258 = vpop.f32.mrf.mxu0
        %v3259 = vadd.f32 %v3108, %v3258
        %3260 = vmatprep.mubr.f32.mxu0 0.0
        %v3261 = vand.u32 %v2553, 4294901760
        %3262 = vmatmul.mubr.f32.gmra.mxu0 %v3261
        %v3263 = vpop.f32.mrf.mxu0
        %v3264 = vadd.f32 %v3115, %v3263
        %v3265 = vpop.f32.mrf.mxu0
        %v3266 = vadd.f32 %v3117, %v3265
        %3267 = vmatprep.mubr.f32.mxu0 0.0
        %v3268 = vand.u32 %v2556, 4294901760
        %3269 = vmatmul.mubr.f32.gmra.mxu0 %v3268
        %v3270 = vpop.f32.mrf.mxu0
        %v3271 = vadd.f32 %v3124, %v3270
        %v3272 = vpop.f32.mrf.mxu0
        %v3273 = vadd.f32 %v3126, %v3272
        %3274 = vmatprep.mubr.f32.mxu0 0.0
        %v3275 = vand.u32 %v2559, 4294901760
        %3276 = vmatmul.mubr.f32.gmra.mxu0 %v3275
        %v3277 = vpop.f32.mrf.mxu0
        %v3278 = vadd.f32 %v3133, %v3277
        %v3279 = vpop.f32.mrf.mxu0
        %v3280 = vadd.f32 %v3135, %v3279
        %3281 = vmatprep.mubr.f32.mxu0 0.0
        %v3282 = vand.u32 %v2562, 4294901760
        %3283 = vmatmul.mubr.f32.gmra.mxu0 %v3282
        %v3284 = vpop.f32.mrf.mxu0
        %v3285 = vadd.f32 %v3142, %v3284
        %v3286 = vpop.f32.mrf.mxu0
        %v3287 = vadd.f32 %v3144, %v3286
        %3288 = vmatprep.mubr.f32.mxu0 0.0
        %v3289 = vand.u32 %v2565, 4294901760
        %3290 = vmatmul.mubr.f32.gmra.mxu0 %v3289
        %v3291 = vpop.f32.mrf.mxu0
        %v3292 = vadd.f32 %v3151, %v3291
        %v3293 = vpop.f32.mrf.mxu0
        %v3294 = vadd.f32 %v3153, %v3293
        %3295 = vmatprep.mubr.f32.mxu0 0.0
        %v3296 = vand.u32 %v2568, 4294901760
        %3297 = vmatmul.mubr.f32.gmra.mxu0 %v3296
        %v3298 = vpop.f32.mrf.mxu0
        %v3299 = vadd.f32 %v3160, %v3298
        %v3300 = vpop.f32.mrf.mxu0
        %v3301 = vadd.f32 %v3162, %v3300
        %3302 = vdwg.mxu0
        %3303 = vmatprep.subr.mxu0 0.0
        %3304 = vmatpush1.msra.mxu0 0.0
        %3305 = vmatprep.subr.mxu0 0.0
        %3306 = vmatpush1.msra.mxu0 0.0
        %3307 = vmatprep.subr.mxu0 0.0
        %3308 = vmatpush1.msra.mxu0 0.0
        %3309 = vmatprep.subr.mxu0 0.0
        %3310 = vmatpush1.msra.mxu0 0.0
        %3311 = vmatprep.subr.mxu0 0.0
        %3312 = vmatpush1.msra.mxu0 0.0
        %3313 = vmatprep.subr.mxu0 0.0
        %3314 = vmatpush1.msra.mxu0 0.0
        %3315 = vmatprep.subr.mxu0 0.0
        %3316 = vmatpush1.msra.mxu0 0.0
        %3317 = vmatprep.subr.mxu0 0.0
        %3318 = vmatpush1.msra.mxu0 0.0
        %3319 = vmatprep.subr.mxu0 0.0
        %3320 = vmatpush1.msra.mxu0 0.0
        %3321 = vmatprep.subr.mxu0 0.0
        %3322 = vmatpush1.msra.mxu0 0.0
        %3323 = vmatprep.subr.mxu0 0.0
        %3324 = vmatpush1.msra.mxu0 0.0
        %3325 = vmatprep.subr.mxu0 0.0
        %3326 = vmatpush1.msra.mxu0 0.0
        %3327 = vmatprep.subr.mxu0 0.0
        %3328 = vmatpush1.msra.mxu0 0.0
        %v3329 = vand.u32 %v1628, 4294901760
        %3330 = vmatprep.subr.mxu0 %v3329
        %v3331 = vand.u32 %v1627, 4294901760
        %3332 = vmatpush1.msra.mxu0 %v3331
        %v3333 = vand.u32 %v1625, 4294901760
        %3334 = vmatprep.subr.mxu0 %v3333
        %v3335 = vand.u32 %v1624, 4294901760
        %3336 = vmatpush1.msra.mxu0 %v3335
        %v3337 = vand.u32 %v1622, 4294901760
        %3338 = vmatprep.subr.mxu0 %v3337
        %v3339 = vand.u32 %v1621, 4294901760
        %3340 = vmatpush1.msra.mxu0 %v3339
        %3341 = vmatprep.subr.mxu0 0.0
        %3342 = vmatpush2.msra.mxu0 0.0
        %3343 = vmatprep.subr.mxu0 0.0
        %3344 = vmatpush2.msra.mxu0 0.0
        %3345 = vmatprep.subr.mxu0 0.0
        %3346 = vmatpush2.msra.mxu0 0.0
        %3347 = vmatprep.subr.mxu0 0.0
        %3348 = vmatpush2.msra.mxu0 0.0
        %3349 = vmatprep.subr.mxu0 0.0
        %3350 = vmatpush2.msra.mxu0 0.0
        %3351 = vmatprep.subr.mxu0 0.0
        %3352 = vmatpush2.msra.mxu0 0.0
        %3353 = vmatprep.subr.mxu0 0.0
        %3354 = vmatpush2.msra.mxu0 0.0
        %3355 = vmatprep.subr.mxu0 0.0
        %3356 = vmatpush2.msra.mxu0 0.0
        %3357 = vmatprep.subr.mxu0 0.0
        %3358 = vmatpush2.msra.mxu0 0.0
        %3359 = vmatprep.subr.mxu0 0.0
        %3360 = vmatpush2.msra.mxu0 0.0
        %3361 = vmatprep.subr.mxu0 0.0
        %3362 = vmatpush2.msra.mxu0 0.0
        %3363 = vmatprep.subr.mxu0 0.0
        %3364 = vmatpush2.msra.mxu0 0.0
        %3365 = vmatprep.subr.mxu0 0.0
        %3366 = vmatpush2.msra.mxu0 0.0
        %3367 = vmatprep.subr.mxu0 0.0
        %3368 = vmatpush2.msra.mxu0 0.0
        %3369 = vmatprep.subr.mxu0 0.0
        %3370 = vmatpush2.msra.mxu0 0.0
        %3371 = vmatprep.subr.mxu0 0.0
        %3372 = vmatpush2.msra.mxu0 0.0
        %3373 = vmatprep.mubr.f32.mxu0 0.0
        %v3374 = vand.u32 %v2547, 4294901760
        %3375 = vmatmul.mubr.f32.gmra.mxu0 %v3374
        %v3376 = vpop.f32.mrf.mxu0
        %v3377 = vadd.f32 %v3250, %v3376
        %v3378 = vpop.f32.mrf.mxu0
        %v3379 = vadd.f32 %v3252, %v3378
        %3380 = vmatprep.mubr.f32.mxu0 0.0
        %v3381 = vand.u32 %v2550, 4294901760
        %3382 = vmatmul.mubr.f32.gmra.mxu0 %v3381
        %v3383 = vpop.f32.mrf.mxu0
        %v3384 = vadd.f32 %v3257, %v3383
        %v3385 = vpop.f32.mrf.mxu0
        %v3386 = vadd.f32 %v3259, %v3385
        %3387 = vmatprep.mubr.f32.mxu0 0.0
        %v3388 = vand.u32 %v2553, 4294901760
        %3389 = vmatmul.mubr.f32.gmra.mxu0 %v3388
        %v3390 = vpop.f32.mrf.mxu0
        %v3391 = vadd.f32 %v3264, %v3390
        %v3392 = vpop.f32.mrf.mxu0
        %v3393 = vadd.f32 %v3266, %v3392
        %3394 = vmatprep.mubr.f32.mxu0 0.0
        %v3395 = vand.u32 %v2556, 4294901760
        %3396 = vmatmul.mubr.f32.gmra.mxu0 %v3395
        %v3397 = vpop.f32.mrf.mxu0
        %v3398 = vadd.f32 %v3271, %v3397
        %v3399 = vpop.f32.mrf.mxu0
        %v3400 = vadd.f32 %v3273, %v3399
        %3401 = vmatprep.mubr.f32.mxu0 0.0
        %v3402 = vand.u32 %v2559, 4294901760
        %3403 = vmatmul.mubr.f32.gmra.mxu0 %v3402
        %v3404 = vpop.f32.mrf.mxu0
        %v3405 = vadd.f32 %v3278, %v3404
        %v3406 = vpop.f32.mrf.mxu0
        %v3407 = vadd.f32 %v3280, %v3406
        %3408 = vmatprep.mubr.f32.mxu0 0.0
        %v3409 = vand.u32 %v2562, 4294901760
        %3410 = vmatmul.mubr.f32.gmra.mxu0 %v3409
        %v3411 = vpop.f32.mrf.mxu0
        %v3412 = vadd.f32 %v3285, %v3411
        %v3413 = vpop.f32.mrf.mxu0
        %v3414 = vadd.f32 %v3287, %v3413
        %3415 = vmatprep.mubr.f32.mxu0 0.0
        %v3416 = vand.u32 %v2565, 4294901760
        %3417 = vmatmul.mubr.f32.gmra.mxu0 %v3416
        %v3418 = vpop.f32.mrf.mxu0
        %v3419 = vadd.f32 %v3292, %v3418
        %v3420 = vpop.f32.mrf.mxu0
        %v3421 = vadd.f32 %v3294, %v3420
        %3422 = vmatprep.mubr.f32.mxu0 0.0
        %v3423 = vand.u32 %v2568, 4294901760
        %3424 = vmatmul.mubr.f32.gmra.mxu0 %v3423
        %v3425 = vpop.f32.mrf.mxu0
        %v3426 = vadd.f32 %v3299, %v3425
        %v3427 = vpop.f32.mrf.mxu0
        %v3428 = vadd.f32 %v3301, %v3427
        %3429 = vdwg.mxu0
        %v3431 = vsel %vm2545, %v2537, 0
        %v3434 = vsel %vm2545, %v2538, 0
        %v3437 = vsel %vm2545, %v2539, 0
        %v3440 = vsel %vm2545, %v2540, 0
        %v3443 = vsel %vm2545, %v2541, 0
        %v3446 = vsel %vm2545, %v2542, 0
        %v3449 = vsel %vm2545, %v2543, 0
        %v3452 = vsel %vm2545, %v2544, 0
        %3454 = vmatprep.subr.mxu0 0.0
        %3455 = vmatpush1.msra.mxu0 0.0
        %3456 = vmatprep.subr.mxu0 0.0
        %3457 = vmatpush1.msra.mxu0 0.0
        %3458 = vmatprep.subr.mxu0 0.0
        %3459 = vmatpush1.msra.mxu0 0.0
        %3460 = vmatprep.subr.mxu0 0.0
        %3461 = vmatpush1.msra.mxu0 0.0
        %3462 = vmatprep.subr.mxu0 0.0
        %3463 = vmatpush1.msra.mxu0 0.0
        %3464 = vmatprep.subr.mxu0 0.0
        %3465 = vmatpush1.msra.mxu0 0.0
        %3466 = vmatprep.subr.mxu0 0.0
        %3467 = vmatpush1.msra.mxu0 0.0
        %3468 = vmatprep.subr.mxu0 0.0
        %3469 = vmatpush1.msra.mxu0 0.0
        %3470 = vmatprep.subr.mxu0 0.0
        %3471 = vmatpush1.msra.mxu0 0.0
        %3472 = vmatprep.subr.mxu0 0.0
        %3473 = vmatpush1.msra.mxu0 0.0
        %3474 = vmatprep.subr.mxu0 0.0
        %3475 = vmatpush1.msra.mxu0 0.0
        %3476 = vmatprep.subr.mxu0 0.0
        %3477 = vmatpush1.msra.mxu0 0.0
        %3478 = vmatprep.subr.mxu0 0.0
        %3479 = vmatpush1.msra.mxu0 0.0
        %3480 = vmatprep.subr.mxu0 0.0
        %v3481 = vand.u32 %v1626, 4294901760
        %3482 = vmatpush1.msra.mxu0 %v3481
        %3483 = vmatprep.subr.mxu0 0.0
        %v3484 = vand.u32 %v1623, 4294901760
        %3485 = vmatpush1.msra.mxu0 %v3484
        %3486 = vmatprep.subr.mxu0 0.0
        %v3487 = vand.u32 %v1620, 4294901760
        %3488 = vmatpush1.msra.mxu0 %v3487
        %3489 = vmatprep.subr.mxu0 0.0
        %3490 = vmatpush2.msra.mxu0 0.0
        %3491 = vmatprep.subr.mxu0 0.0
        %3492 = vmatpush2.msra.mxu0 0.0
        %3493 = vmatprep.subr.mxu0 0.0
        %3494 = vmatpush2.msra.mxu0 0.0
        %3495 = vmatprep.subr.mxu0 0.0
        %3496 = vmatpush2.msra.mxu0 0.0
        %3497 = vmatprep.subr.mxu0 0.0
        %3498 = vmatpush2.msra.mxu0 0.0
        %3499 = vmatprep.subr.mxu0 0.0
        %3500 = vmatpush2.msra.mxu0 0.0
        %3501 = vmatprep.subr.mxu0 0.0
        %3502 = vmatpush2.msra.mxu0 0.0
        %3503 = vmatprep.subr.mxu0 0.0
        %3504 = vmatpush2.msra.mxu0 0.0
        %3505 = vmatprep.subr.mxu0 0.0
        %3506 = vmatpush2.msra.mxu0 0.0
        %3507 = vmatprep.subr.mxu0 0.0
        %3508 = vmatpush2.msra.mxu0 0.0
        %3509 = vmatprep.subr.mxu0 0.0
        %3510 = vmatpush2.msra.mxu0 0.0
        %3511 = vmatprep.subr.mxu0 0.0
        %3512 = vmatpush2.msra.mxu0 0.0
        %3513 = vmatprep.subr.mxu0 0.0
        %3514 = vmatpush2.msra.mxu0 0.0
        %3515 = vmatprep.subr.mxu0 0.0
        %3516 = vmatpush2.msra.mxu0 0.0
        %3517 = vmatprep.subr.mxu0 0.0
        %3518 = vmatpush2.msra.mxu0 0.0
        %3519 = vmatprep.subr.mxu0 0.0
        %3520 = vmatpush2.msra.mxu0 0.0
        %3521 = vmatprep.mubr.f32.mxu0 0.0
        %v3522 = vand.u32 %v3431, 4294901760
        %v3523 = vsub.f32 %v3431, %v3522
        %v3524 = vand.u32 %v3523, 4294901760
        %v3525 = vsub.f32 %v3523, %v3524
        %v3526 = vand.u32 %v3525, 4294901760
        %3527 = vmatmul.mubr.f32.gmra.mxu0 %v3526
        %v3528 = vpop.f32.mrf.mxu0
        %v3529 = vadd.f32 0.0, %v3528
        %v3530 = vpop.f32.mrf.mxu0
        %3531 = vmatprep.mubr.f32.mxu0 0.0
        %v3532 = vand.u32 %v3434, 4294901760
        %v3533 = vsub.f32 %v3434, %v3532
        %v3534 = vand.u32 %v3533, 4294901760
        %v3535 = vsub.f32 %v3533, %v3534
        %v3536 = vand.u32 %v3535, 4294901760
        %3537 = vmatmul.mubr.f32.gmra.mxu0 %v3536
        %v3538 = vpop.f32.mrf.mxu0
        %v3539 = vadd.f32 0.0, %v3538
        %v3540 = vpop.f32.mrf.mxu0
        %3541 = vmatprep.mubr.f32.mxu0 0.0
        %v3542 = vand.u32 %v3437, 4294901760
        %v3543 = vsub.f32 %v3437, %v3542
        %v3544 = vand.u32 %v3543, 4294901760
        %v3545 = vsub.f32 %v3543, %v3544
        %v3546 = vand.u32 %v3545, 4294901760
        %3547 = vmatmul.mubr.f32.gmra.mxu0 %v3546
        %v3548 = vpop.f32.mrf.mxu0
        %v3549 = vadd.f32 0.0, %v3548
        %v3550 = vpop.f32.mrf.mxu0
        %3551 = vmatprep.mubr.f32.mxu0 0.0
        %v3552 = vand.u32 %v3440, 4294901760
        %v3553 = vsub.f32 %v3440, %v3552
        %v3554 = vand.u32 %v3553, 4294901760
        %v3555 = vsub.f32 %v3553, %v3554
        %v3556 = vand.u32 %v3555, 4294901760
        %3557 = vmatmul.mubr.f32.gmra.mxu0 %v3556
        %v3558 = vpop.f32.mrf.mxu0
        %v3559 = vadd.f32 0.0, %v3558
        %v3560 = vpop.f32.mrf.mxu0
        %3561 = vmatprep.mubr.f32.mxu0 0.0
        %v3562 = vand.u32 %v3443, 4294901760
        %v3563 = vsub.f32 %v3443, %v3562
        %v3564 = vand.u32 %v3563, 4294901760
        %v3565 = vsub.f32 %v3563, %v3564
        %v3566 = vand.u32 %v3565, 4294901760
        %3567 = vmatmul.mubr.f32.gmra.mxu0 %v3566
        %v3568 = vpop.f32.mrf.mxu0
        %v3569 = vadd.f32 0.0, %v3568
        %v3570 = vpop.f32.mrf.mxu0
        %3571 = vmatprep.mubr.f32.mxu0 0.0
        %v3572 = vand.u32 %v3446, 4294901760
        %v3573 = vsub.f32 %v3446, %v3572
        %v3574 = vand.u32 %v3573, 4294901760
        %v3575 = vsub.f32 %v3573, %v3574
        %v3576 = vand.u32 %v3575, 4294901760
        %3577 = vmatmul.mubr.f32.gmra.mxu0 %v3576
        %v3578 = vpop.f32.mrf.mxu0
        %v3579 = vadd.f32 0.0, %v3578
        %v3580 = vpop.f32.mrf.mxu0
        %3581 = vmatprep.mubr.f32.mxu0 0.0
        %v3582 = vand.u32 %v3449, 4294901760
        %v3583 = vsub.f32 %v3449, %v3582
        %v3584 = vand.u32 %v3583, 4294901760
        %v3585 = vsub.f32 %v3583, %v3584
        %v3586 = vand.u32 %v3585, 4294901760
        %3587 = vmatmul.mubr.f32.gmra.mxu0 %v3586
        %v3588 = vpop.f32.mrf.mxu0
        %v3589 = vadd.f32 0.0, %v3588
        %v3590 = vpop.f32.mrf.mxu0
        %3591 = vmatprep.mubr.f32.mxu0 0.0
        %v3592 = vand.u32 %v3452, 4294901760
        %v3593 = vsub.f32 %v3452, %v3592
        %v3594 = vand.u32 %v3593, 4294901760
        %v3595 = vsub.f32 %v3593, %v3594
        %v3596 = vand.u32 %v3595, 4294901760
        %3597 = vmatmul.mubr.f32.gmra.mxu0 %v3596
        %v3598 = vpop.f32.mrf.mxu0
        %v3599 = vadd.f32 0.0, %v3598
        %v3600 = vpop.f32.mrf.mxu0
        %3601 = vdwg.mxu0
        %3602 = vmatprep.subr.mxu0 0.0
        %3603 = vmatpush1.msra.mxu0 0.0
        %3604 = vmatprep.subr.mxu0 0.0
        %3605 = vmatpush1.msra.mxu0 0.0
        %3606 = vmatprep.subr.mxu0 0.0
        %3607 = vmatpush1.msra.mxu0 0.0
        %3608 = vmatprep.subr.mxu0 0.0
        %3609 = vmatpush1.msra.mxu0 0.0
        %3610 = vmatprep.subr.mxu0 0.0
        %3611 = vmatpush1.msra.mxu0 0.0
        %3612 = vmatprep.subr.mxu0 0.0
        %3613 = vmatpush1.msra.mxu0 0.0
        %3614 = vmatprep.subr.mxu0 0.0
        %3615 = vmatpush1.msra.mxu0 0.0
        %3616 = vmatprep.subr.mxu0 0.0
        %3617 = vmatpush1.msra.mxu0 0.0
        %3618 = vmatprep.subr.mxu0 0.0
        %3619 = vmatpush1.msra.mxu0 0.0
        %3620 = vmatprep.subr.mxu0 0.0
        %3621 = vmatpush1.msra.mxu0 0.0
        %3622 = vmatprep.subr.mxu0 0.0
        %3623 = vmatpush1.msra.mxu0 0.0
        %3624 = vmatprep.subr.mxu0 0.0
        %3625 = vmatpush1.msra.mxu0 0.0
        %3626 = vmatprep.subr.mxu0 0.0
        %3627 = vmatpush1.msra.mxu0 0.0
        %3628 = vmatprep.subr.mxu0 0.0
        %v3629 = vand.u32 %v1626, 4294901760
        %v3630 = vsub.f32 %v1626, %v3629
        %v3631 = vand.u32 %v3630, 4294901760
        %v3632 = vsub.f32 %v3630, %v3631
        %v3633 = vand.u32 %v3632, 4294901760
        %3634 = vmatpush1.msra.mxu0 %v3633
        %3635 = vmatprep.subr.mxu0 0.0
        %v3636 = vand.u32 %v1623, 4294901760
        %v3637 = vsub.f32 %v1623, %v3636
        %v3638 = vand.u32 %v3637, 4294901760
        %v3639 = vsub.f32 %v3637, %v3638
        %v3640 = vand.u32 %v3639, 4294901760
        %3641 = vmatpush1.msra.mxu0 %v3640
        %3642 = vmatprep.subr.mxu0 0.0
        %v3643 = vand.u32 %v1620, 4294901760
        %v3644 = vsub.f32 %v1620, %v3643
        %v3645 = vand.u32 %v3644, 4294901760
        %v3646 = vsub.f32 %v3644, %v3645
        %v3647 = vand.u32 %v3646, 4294901760
        %3648 = vmatpush1.msra.mxu0 %v3647
        %3649 = vmatprep.subr.mxu0 0.0
        %3650 = vmatpush2.msra.mxu0 0.0
        %3651 = vmatprep.subr.mxu0 0.0
        %3652 = vmatpush2.msra.mxu0 0.0
        %3653 = vmatprep.subr.mxu0 0.0
        %3654 = vmatpush2.msra.mxu0 0.0
        %3655 = vmatprep.subr.mxu0 0.0
        %3656 = vmatpush2.msra.mxu0 0.0
        %3657 = vmatprep.subr.mxu0 0.0
        %3658 = vmatpush2.msra.mxu0 0.0
        %3659 = vmatprep.subr.mxu0 0.0
        %3660 = vmatpush2.msra.mxu0 0.0
        %3661 = vmatprep.subr.mxu0 0.0
        %3662 = vmatpush2.msra.mxu0 0.0
        %3663 = vmatprep.subr.mxu0 0.0
        %3664 = vmatpush2.msra.mxu0 0.0
        %3665 = vmatprep.subr.mxu0 0.0
        %3666 = vmatpush2.msra.mxu0 0.0
        %3667 = vmatprep.subr.mxu0 0.0
        %3668 = vmatpush2.msra.mxu0 0.0
        %3669 = vmatprep.subr.mxu0 0.0
        %3670 = vmatpush2.msra.mxu0 0.0
        %3671 = vmatprep.subr.mxu0 0.0
        %3672 = vmatpush2.msra.mxu0 0.0
        %3673 = vmatprep.subr.mxu0 0.0
        %3674 = vmatpush2.msra.mxu0 0.0
        %3675 = vmatprep.subr.mxu0 0.0
        %3676 = vmatpush2.msra.mxu0 0.0
        %3677 = vmatprep.subr.mxu0 0.0
        %3678 = vmatpush2.msra.mxu0 0.0
        %3679 = vmatprep.subr.mxu0 0.0
        %3680 = vmatpush2.msra.mxu0 0.0
        %3681 = vmatprep.mubr.f32.mxu0 0.0
        %v3682 = vand.u32 %v3431, 4294901760
        %3683 = vmatmul.mubr.f32.gmra.mxu0 %v3682
        %v3684 = vpop.f32.mrf.mxu0
        %v3685 = vadd.f32 %v3529, %v3684
        %v3686 = vpop.f32.mrf.mxu0
        %3687 = vmatprep.mubr.f32.mxu0 0.0
        %v3688 = vand.u32 %v3434, 4294901760
        %3689 = vmatmul.mubr.f32.gmra.mxu0 %v3688
        %v3690 = vpop.f32.mrf.mxu0
        %v3691 = vadd.f32 %v3539, %v3690
        %v3692 = vpop.f32.mrf.mxu0
        %3693 = vmatprep.mubr.f32.mxu0 0.0
        %v3694 = vand.u32 %v3437, 4294901760
        %3695 = vmatmul.mubr.f32.gmra.mxu0 %v3694
        %v3696 = vpop.f32.mrf.mxu0
        %v3697 = vadd.f32 %v3549, %v3696
        %v3698 = vpop.f32.mrf.mxu0
        %3699 = vmatprep.mubr.f32.mxu0 0.0
        %v3700 = vand.u32 %v3440, 4294901760
        %3701 = vmatmul.mubr.f32.gmra.mxu0 %v3700
        %v3702 = vpop.f32.mrf.mxu0
        %v3703 = vadd.f32 %v3559, %v3702
        %v3704 = vpop.f32.mrf.mxu0
        %3705 = vmatprep.mubr.f32.mxu0 0.0
        %v3706 = vand.u32 %v3443, 4294901760
        %3707 = vmatmul.mubr.f32.gmra.mxu0 %v3706
        %v3708 = vpop.f32.mrf.mxu0
        %v3709 = vadd.f32 %v3569, %v3708
        %v3710 = vpop.f32.mrf.mxu0
        %3711 = vmatprep.mubr.f32.mxu0 0.0
        %v3712 = vand.u32 %v3446, 4294901760
        %3713 = vmatmul.mubr.f32.gmra.mxu0 %v3712
        %v3714 = vpop.f32.mrf.mxu0
        %v3715 = vadd.f32 %v3579, %v3714
        %v3716 = vpop.f32.mrf.mxu0
        %3717 = vmatprep.mubr.f32.mxu0 0.0
        %v3718 = vand.u32 %v3449, 4294901760
        %3719 = vmatmul.mubr.f32.gmra.mxu0 %v3718
        %v3720 = vpop.f32.mrf.mxu0
        %v3721 = vadd.f32 %v3589, %v3720
        %v3722 = vpop.f32.mrf.mxu0
        %3723 = vmatprep.mubr.f32.mxu0 0.0
        %v3724 = vand.u32 %v3452, 4294901760
        %3725 = vmatmul.mubr.f32.gmra.mxu0 %v3724
        %v3726 = vpop.f32.mrf.mxu0
        %v3727 = vadd.f32 %v3599, %v3726
        %v3728 = vpop.f32.mrf.mxu0
        %3729 = vdwg.mxu0
        %3730 = vmatprep.subr.mxu0 0.0
        %3731 = vmatpush1.msra.mxu0 0.0
        %3732 = vmatprep.subr.mxu0 0.0
        %3733 = vmatpush1.msra.mxu0 0.0
        %3734 = vmatprep.subr.mxu0 0.0
        %3735 = vmatpush1.msra.mxu0 0.0
        %3736 = vmatprep.subr.mxu0 0.0
        %3737 = vmatpush1.msra.mxu0 0.0
        %3738 = vmatprep.subr.mxu0 0.0
        %3739 = vmatpush1.msra.mxu0 0.0
        %3740 = vmatprep.subr.mxu0 0.0
        %3741 = vmatpush1.msra.mxu0 0.0
        %3742 = vmatprep.subr.mxu0 0.0
        %3743 = vmatpush1.msra.mxu0 0.0
        %3744 = vmatprep.subr.mxu0 0.0
        %3745 = vmatpush1.msra.mxu0 0.0
        %3746 = vmatprep.subr.mxu0 0.0
        %3747 = vmatpush1.msra.mxu0 0.0
        %3748 = vmatprep.subr.mxu0 0.0
        %3749 = vmatpush1.msra.mxu0 0.0
        %3750 = vmatprep.subr.mxu0 0.0
        %3751 = vmatpush1.msra.mxu0 0.0
        %3752 = vmatprep.subr.mxu0 0.0
        %3753 = vmatpush1.msra.mxu0 0.0
        %3754 = vmatprep.subr.mxu0 0.0
        %3755 = vmatpush1.msra.mxu0 0.0
        %3756 = vmatprep.subr.mxu0 0.0
        %v3757 = vand.u32 %v1626, 4294901760
        %v3758 = vsub.f32 %v1626, %v3757
        %3759 = vmatpush1.msra.mxu0 %v3758
        %3760 = vmatprep.subr.mxu0 0.0
        %v3761 = vand.u32 %v1623, 4294901760
        %v3762 = vsub.f32 %v1623, %v3761
        %3763 = vmatpush1.msra.mxu0 %v3762
        %3764 = vmatprep.subr.mxu0 0.0
        %v3765 = vand.u32 %v1620, 4294901760
        %v3766 = vsub.f32 %v1620, %v3765
        %3767 = vmatpush1.msra.mxu0 %v3766
        %3768 = vmatprep.subr.mxu0 0.0
        %3769 = vmatpush2.msra.mxu0 0.0
        %3770 = vmatprep.subr.mxu0 0.0
        %3771 = vmatpush2.msra.mxu0 0.0
        %3772 = vmatprep.subr.mxu0 0.0
        %3773 = vmatpush2.msra.mxu0 0.0
        %3774 = vmatprep.subr.mxu0 0.0
        %3775 = vmatpush2.msra.mxu0 0.0
        %3776 = vmatprep.subr.mxu0 0.0
        %3777 = vmatpush2.msra.mxu0 0.0
        %3778 = vmatprep.subr.mxu0 0.0
        %3779 = vmatpush2.msra.mxu0 0.0
        %3780 = vmatprep.subr.mxu0 0.0
        %3781 = vmatpush2.msra.mxu0 0.0
        %3782 = vmatprep.subr.mxu0 0.0
        %3783 = vmatpush2.msra.mxu0 0.0
        %3784 = vmatprep.subr.mxu0 0.0
        %3785 = vmatpush2.msra.mxu0 0.0
        %3786 = vmatprep.subr.mxu0 0.0
        %3787 = vmatpush2.msra.mxu0 0.0
        %3788 = vmatprep.subr.mxu0 0.0
        %3789 = vmatpush2.msra.mxu0 0.0
        %3790 = vmatprep.subr.mxu0 0.0
        %3791 = vmatpush2.msra.mxu0 0.0
        %3792 = vmatprep.subr.mxu0 0.0
        %3793 = vmatpush2.msra.mxu0 0.0
        %3794 = vmatprep.subr.mxu0 0.0
        %3795 = vmatpush2.msra.mxu0 0.0
        %3796 = vmatprep.subr.mxu0 0.0
        %3797 = vmatpush2.msra.mxu0 0.0
        %3798 = vmatprep.subr.mxu0 0.0
        %3799 = vmatpush2.msra.mxu0 0.0
        %3800 = vmatprep.mubr.f32.mxu0 0.0
        %v3801 = vand.u32 %v3431, 4294901760
        %v3802 = vsub.f32 %v3431, %v3801
        %3803 = vmatmul.mubr.f32.gmra.mxu0 %v3802
        %v3804 = vpop.f32.mrf.mxu0
        %v3805 = vadd.f32 %v3685, %v3804
        %v3806 = vpop.f32.mrf.mxu0
        %3807 = vmatprep.mubr.f32.mxu0 0.0
        %v3808 = vand.u32 %v3434, 4294901760
        %v3809 = vsub.f32 %v3434, %v3808
        %3810 = vmatmul.mubr.f32.gmra.mxu0 %v3809
        %v3811 = vpop.f32.mrf.mxu0
        %v3812 = vadd.f32 %v3691, %v3811
        %v3813 = vpop.f32.mrf.mxu0
        %3814 = vmatprep.mubr.f32.mxu0 0.0
        %v3815 = vand.u32 %v3437, 4294901760
        %v3816 = vsub.f32 %v3437, %v3815
        %3817 = vmatmul.mubr.f32.gmra.mxu0 %v3816
        %v3818 = vpop.f32.mrf.mxu0
        %v3819 = vadd.f32 %v3697, %v3818
        %v3820 = vpop.f32.mrf.mxu0
        %3821 = vmatprep.mubr.f32.mxu0 0.0
        %v3822 = vand.u32 %v3440, 4294901760
        %v3823 = vsub.f32 %v3440, %v3822
        %3824 = vmatmul.mubr.f32.gmra.mxu0 %v3823
        %v3825 = vpop.f32.mrf.mxu0
        %v3826 = vadd.f32 %v3703, %v3825
        %v3827 = vpop.f32.mrf.mxu0
        %3828 = vmatprep.mubr.f32.mxu0 0.0
        %v3829 = vand.u32 %v3443, 4294901760
        %v3830 = vsub.f32 %v3443, %v3829
        %3831 = vmatmul.mubr.f32.gmra.mxu0 %v3830
        %v3832 = vpop.f32.mrf.mxu0
        %v3833 = vadd.f32 %v3709, %v3832
        %v3834 = vpop.f32.mrf.mxu0
        %3835 = vmatprep.mubr.f32.mxu0 0.0
        %v3836 = vand.u32 %v3446, 4294901760
        %v3837 = vsub.f32 %v3446, %v3836
        %3838 = vmatmul.mubr.f32.gmra.mxu0 %v3837
        %v3839 = vpop.f32.mrf.mxu0
        %v3840 = vadd.f32 %v3715, %v3839
        %v3841 = vpop.f32.mrf.mxu0
        %3842 = vmatprep.mubr.f32.mxu0 0.0
        %v3843 = vand.u32 %v3449, 4294901760
        %v3844 = vsub.f32 %v3449, %v3843
        %3845 = vmatmul.mubr.f32.gmra.mxu0 %v3844
        %v3846 = vpop.f32.mrf.mxu0
        %v3847 = vadd.f32 %v3721, %v3846
        %v3848 = vpop.f32.mrf.mxu0
        %3849 = vmatprep.mubr.f32.mxu0 0.0
        %v3850 = vand.u32 %v3452, 4294901760
        %v3851 = vsub.f32 %v3452, %v3850
        %3852 = vmatmul.mubr.f32.gmra.mxu0 %v3851
        %v3853 = vpop.f32.mrf.mxu0
        %v3854 = vadd.f32 %v3727, %v3853
        %v3855 = vpop.f32.mrf.mxu0
        %3856 = vdwg.mxu0
        %3857 = vmatprep.subr.mxu0 0.0
        %3858 = vmatpush1.msra.mxu0 0.0
        %3859 = vmatprep.subr.mxu0 0.0
        %3860 = vmatpush1.msra.mxu0 0.0
        %3861 = vmatprep.subr.mxu0 0.0
        %3862 = vmatpush1.msra.mxu0 0.0
        %3863 = vmatprep.subr.mxu0 0.0
        %3864 = vmatpush1.msra.mxu0 0.0
        %3865 = vmatprep.subr.mxu0 0.0
        %3866 = vmatpush1.msra.mxu0 0.0
        %3867 = vmatprep.subr.mxu0 0.0
        %3868 = vmatpush1.msra.mxu0 0.0
        %3869 = vmatprep.subr.mxu0 0.0
        %3870 = vmatpush1.msra.mxu0 0.0
        %3871 = vmatprep.subr.mxu0 0.0
        %3872 = vmatpush1.msra.mxu0 0.0
        %3873 = vmatprep.subr.mxu0 0.0
        %3874 = vmatpush1.msra.mxu0 0.0
        %3875 = vmatprep.subr.mxu0 0.0
        %3876 = vmatpush1.msra.mxu0 0.0
        %3877 = vmatprep.subr.mxu0 0.0
        %3878 = vmatpush1.msra.mxu0 0.0
        %3879 = vmatprep.subr.mxu0 0.0
        %3880 = vmatpush1.msra.mxu0 0.0
        %3881 = vmatprep.subr.mxu0 0.0
        %3882 = vmatpush1.msra.mxu0 0.0
        %3883 = vmatprep.subr.mxu0 0.0
        %v3884 = vand.u32 %v1626, 4294901760
        %3885 = vmatpush1.msra.mxu0 %v3884
        %3886 = vmatprep.subr.mxu0 0.0
        %v3887 = vand.u32 %v1623, 4294901760
        %3888 = vmatpush1.msra.mxu0 %v3887
        %3889 = vmatprep.subr.mxu0 0.0
        %v3890 = vand.u32 %v1620, 4294901760
        %3891 = vmatpush1.msra.mxu0 %v3890
        %3892 = vmatprep.subr.mxu0 0.0
        %3893 = vmatpush2.msra.mxu0 0.0
        %3894 = vmatprep.subr.mxu0 0.0
        %3895 = vmatpush2.msra.mxu0 0.0
        %3896 = vmatprep.subr.mxu0 0.0
        %3897 = vmatpush2.msra.mxu0 0.0
        %3898 = vmatprep.subr.mxu0 0.0
        %3899 = vmatpush2.msra.mxu0 0.0
        %3900 = vmatprep.subr.mxu0 0.0
        %3901 = vmatpush2.msra.mxu0 0.0
        %3902 = vmatprep.subr.mxu0 0.0
        %3903 = vmatpush2.msra.mxu0 0.0
        %3904 = vmatprep.subr.mxu0 0.0
        %3905 = vmatpush2.msra.mxu0 0.0
        %3906 = vmatprep.subr.mxu0 0.0
        %3907 = vmatpush2.msra.mxu0 0.0
        %3908 = vmatprep.subr.mxu0 0.0
        %3909 = vmatpush2.msra.mxu0 0.0
        %3910 = vmatprep.subr.mxu0 0.0
        %3911 = vmatpush2.msra.mxu0 0.0
        %3912 = vmatprep.subr.mxu0 0.0
        %3913 = vmatpush2.msra.mxu0 0.0
        %3914 = vmatprep.subr.mxu0 0.0
        %3915 = vmatpush2.msra.mxu0 0.0
        %3916 = vmatprep.subr.mxu0 0.0
        %3917 = vmatpush2.msra.mxu0 0.0
        %3918 = vmatprep.subr.mxu0 0.0
        %3919 = vmatpush2.msra.mxu0 0.0
        %3920 = vmatprep.subr.mxu0 0.0
        %3921 = vmatpush2.msra.mxu0 0.0
        %3922 = vmatprep.subr.mxu0 0.0
        %3923 = vmatpush2.msra.mxu0 0.0
        %3924 = vmatprep.mubr.f32.mxu0 0.0
        %v3925 = vand.u32 %v3431, 4294901760
        %v3926 = vsub.f32 %v3431, %v3925
        %v3927 = vand.u32 %v3926, 4294901760
        %3928 = vmatmul.mubr.f32.gmra.mxu0 %v3927
        %v3929 = vpop.f32.mrf.mxu0
        %v3930 = vadd.f32 %v3805, %v3929
        %v3931 = vpop.f32.mrf.mxu0
        %3932 = vmatprep.mubr.f32.mxu0 0.0
        %v3933 = vand.u32 %v3434, 4294901760
        %v3934 = vsub.f32 %v3434, %v3933
        %v3935 = vand.u32 %v3934, 4294901760
        %3936 = vmatmul.mubr.f32.gmra.mxu0 %v3935
        %v3937 = vpop.f32.mrf.mxu0
        %v3938 = vadd.f32 %v3812, %v3937
        %v3939 = vpop.f32.mrf.mxu0
        %3940 = vmatprep.mubr.f32.mxu0 0.0
        %v3941 = vand.u32 %v3437, 4294901760
        %v3942 = vsub.f32 %v3437, %v3941
        %v3943 = vand.u32 %v3942, 4294901760
        %3944 = vmatmul.mubr.f32.gmra.mxu0 %v3943
        %v3945 = vpop.f32.mrf.mxu0
        %v3946 = vadd.f32 %v3819, %v3945
        %v3947 = vpop.f32.mrf.mxu0
        %3948 = vmatprep.mubr.f32.mxu0 0.0
        %v3949 = vand.u32 %v3440, 4294901760
        %v3950 = vsub.f32 %v3440, %v3949
        %v3951 = vand.u32 %v3950, 4294901760
        %3952 = vmatmul.mubr.f32.gmra.mxu0 %v3951
        %v3953 = vpop.f32.mrf.mxu0
        %v3954 = vadd.f32 %v3826, %v3953
        %v3955 = vpop.f32.mrf.mxu0
        %3956 = vmatprep.mubr.f32.mxu0 0.0
        %v3957 = vand.u32 %v3443, 4294901760
        %v3958 = vsub.f32 %v3443, %v3957
        %v3959 = vand.u32 %v3958, 4294901760
        %3960 = vmatmul.mubr.f32.gmra.mxu0 %v3959
        %v3961 = vpop.f32.mrf.mxu0
        %v3962 = vadd.f32 %v3833, %v3961
        %v3963 = vpop.f32.mrf.mxu0
        %3964 = vmatprep.mubr.f32.mxu0 0.0
        %v3965 = vand.u32 %v3446, 4294901760
        %v3966 = vsub.f32 %v3446, %v3965
        %v3967 = vand.u32 %v3966, 4294901760
        %3968 = vmatmul.mubr.f32.gmra.mxu0 %v3967
        %v3969 = vpop.f32.mrf.mxu0
        %v3970 = vadd.f32 %v3840, %v3969
        %v3971 = vpop.f32.mrf.mxu0
        %3972 = vmatprep.mubr.f32.mxu0 0.0
        %v3973 = vand.u32 %v3449, 4294901760
        %v3974 = vsub.f32 %v3449, %v3973
        %v3975 = vand.u32 %v3974, 4294901760
        %3976 = vmatmul.mubr.f32.gmra.mxu0 %v3975
        %v3977 = vpop.f32.mrf.mxu0
        %v3978 = vadd.f32 %v3847, %v3977
        %v3979 = vpop.f32.mrf.mxu0
        %3980 = vmatprep.mubr.f32.mxu0 0.0
        %v3981 = vand.u32 %v3452, 4294901760
        %v3982 = vsub.f32 %v3452, %v3981
        %v3983 = vand.u32 %v3982, 4294901760
        %3984 = vmatmul.mubr.f32.gmra.mxu0 %v3983
        %v3985 = vpop.f32.mrf.mxu0
        %v3986 = vadd.f32 %v3854, %v3985
        %v3987 = vpop.f32.mrf.mxu0
        %3988 = vdwg.mxu0
        %3989 = vmatprep.subr.mxu0 0.0
        %3990 = vmatpush1.msra.mxu0 0.0
        %3991 = vmatprep.subr.mxu0 0.0
        %3992 = vmatpush1.msra.mxu0 0.0
        %3993 = vmatprep.subr.mxu0 0.0
        %3994 = vmatpush1.msra.mxu0 0.0
        %3995 = vmatprep.subr.mxu0 0.0
        %3996 = vmatpush1.msra.mxu0 0.0
        %3997 = vmatprep.subr.mxu0 0.0
        %3998 = vmatpush1.msra.mxu0 0.0
        %3999 = vmatprep.subr.mxu0 0.0
        %4000 = vmatpush1.msra.mxu0 0.0
        %4001 = vmatprep.subr.mxu0 0.0
        %4002 = vmatpush1.msra.mxu0 0.0
        %4003 = vmatprep.subr.mxu0 0.0
        %4004 = vmatpush1.msra.mxu0 0.0
        %4005 = vmatprep.subr.mxu0 0.0
        %4006 = vmatpush1.msra.mxu0 0.0
        %4007 = vmatprep.subr.mxu0 0.0
        %4008 = vmatpush1.msra.mxu0 0.0
        %4009 = vmatprep.subr.mxu0 0.0
        %4010 = vmatpush1.msra.mxu0 0.0
        %4011 = vmatprep.subr.mxu0 0.0
        %4012 = vmatpush1.msra.mxu0 0.0
        %4013 = vmatprep.subr.mxu0 0.0
        %4014 = vmatpush1.msra.mxu0 0.0
        %4015 = vmatprep.subr.mxu0 0.0
        %v4016 = vand.u32 %v1626, 4294901760
        %v4017 = vsub.f32 %v1626, %v4016
        %v4018 = vand.u32 %v4017, 4294901760
        %4019 = vmatpush1.msra.mxu0 %v4018
        %4020 = vmatprep.subr.mxu0 0.0
        %v4021 = vand.u32 %v1623, 4294901760
        %v4022 = vsub.f32 %v1623, %v4021
        %v4023 = vand.u32 %v4022, 4294901760
        %4024 = vmatpush1.msra.mxu0 %v4023
        %4025 = vmatprep.subr.mxu0 0.0
        %v4026 = vand.u32 %v1620, 4294901760
        %v4027 = vsub.f32 %v1620, %v4026
        %v4028 = vand.u32 %v4027, 4294901760
        %4029 = vmatpush1.msra.mxu0 %v4028
        %4030 = vmatprep.subr.mxu0 0.0
        %4031 = vmatpush2.msra.mxu0 0.0
        %4032 = vmatprep.subr.mxu0 0.0
        %4033 = vmatpush2.msra.mxu0 0.0
        %4034 = vmatprep.subr.mxu0 0.0
        %4035 = vmatpush2.msra.mxu0 0.0
        %4036 = vmatprep.subr.mxu0 0.0
        %4037 = vmatpush2.msra.mxu0 0.0
        %4038 = vmatprep.subr.mxu0 0.0
        %4039 = vmatpush2.msra.mxu0 0.0
        %4040 = vmatprep.subr.mxu0 0.0
        %4041 = vmatpush2.msra.mxu0 0.0
        %4042 = vmatprep.subr.mxu0 0.0
        %4043 = vmatpush2.msra.mxu0 0.0
        %4044 = vmatprep.subr.mxu0 0.0
        %4045 = vmatpush2.msra.mxu0 0.0
        %4046 = vmatprep.subr.mxu0 0.0
        %4047 = vmatpush2.msra.mxu0 0.0
        %4048 = vmatprep.subr.mxu0 0.0
        %4049 = vmatpush2.msra.mxu0 0.0
        %4050 = vmatprep.subr.mxu0 0.0
        %4051 = vmatpush2.msra.mxu0 0.0
        %4052 = vmatprep.subr.mxu0 0.0
        %4053 = vmatpush2.msra.mxu0 0.0
        %4054 = vmatprep.subr.mxu0 0.0
        %4055 = vmatpush2.msra.mxu0 0.0
        %4056 = vmatprep.subr.mxu0 0.0
        %4057 = vmatpush2.msra.mxu0 0.0
        %4058 = vmatprep.subr.mxu0 0.0
        %4059 = vmatpush2.msra.mxu0 0.0
        %4060 = vmatprep.subr.mxu0 0.0
        %4061 = vmatpush2.msra.mxu0 0.0
        %4062 = vmatprep.mubr.f32.mxu0 0.0
        %v4063 = vand.u32 %v3431, 4294901760
        %4064 = vmatmul.mubr.f32.gmra.mxu0 %v4063
        %v4065 = vpop.f32.mrf.mxu0
        %v4066 = vadd.f32 %v3930, %v4065
        %v4067 = vpop.f32.mrf.mxu0
        %4068 = vmatprep.mubr.f32.mxu0 0.0
        %v4069 = vand.u32 %v3434, 4294901760
        %4070 = vmatmul.mubr.f32.gmra.mxu0 %v4069
        %v4071 = vpop.f32.mrf.mxu0
        %v4072 = vadd.f32 %v3938, %v4071
        %v4073 = vpop.f32.mrf.mxu0
        %4074 = vmatprep.mubr.f32.mxu0 0.0
        %v4075 = vand.u32 %v3437, 4294901760
        %4076 = vmatmul.mubr.f32.gmra.mxu0 %v4075
        %v4077 = vpop.f32.mrf.mxu0
        %v4078 = vadd.f32 %v3946, %v4077
        %v4079 = vpop.f32.mrf.mxu0
        %4080 = vmatprep.mubr.f32.mxu0 0.0
        %v4081 = vand.u32 %v3440, 4294901760
        %4082 = vmatmul.mubr.f32.gmra.mxu0 %v4081
        %v4083 = vpop.f32.mrf.mxu0
        %v4084 = vadd.f32 %v3954, %v4083
        %v4085 = vpop.f32.mrf.mxu0
        %4086 = vmatprep.mubr.f32.mxu0 0.0
        %v4087 = vand.u32 %v3443, 4294901760
        %4088 = vmatmul.mubr.f32.gmra.mxu0 %v4087
        %v4089 = vpop.f32.mrf.mxu0
        %v4090 = vadd.f32 %v3962, %v4089
        %v4091 = vpop.f32.mrf.mxu0
        %4092 = vmatprep.mubr.f32.mxu0 0.0
        %v4093 = vand.u32 %v3446, 4294901760
        %4094 = vmatmul.mubr.f32.gmra.mxu0 %v4093
        %v4095 = vpop.f32.mrf.mxu0
        %v4096 = vadd.f32 %v3970, %v4095
        %v4097 = vpop.f32.mrf.mxu0
        %4098 = vmatprep.mubr.f32.mxu0 0.0
        %v4099 = vand.u32 %v3449, 4294901760
        %4100 = vmatmul.mubr.f32.gmra.mxu0 %v4099
        %v4101 = vpop.f32.mrf.mxu0
        %v4102 = vadd.f32 %v3978, %v4101
        %v4103 = vpop.f32.mrf.mxu0
        %4104 = vmatprep.mubr.f32.mxu0 0.0
        %v4105 = vand.u32 %v3452, 4294901760
        %4106 = vmatmul.mubr.f32.gmra.mxu0 %v4105
        %v4107 = vpop.f32.mrf.mxu0
        %v4108 = vadd.f32 %v3986, %v4107
        %v4109 = vpop.f32.mrf.mxu0
        %4110 = vdwg.mxu0
        %4111 = vmatprep.subr.mxu0 0.0
        %4112 = vmatpush1.msra.mxu0 0.0
        %4113 = vmatprep.subr.mxu0 0.0
        %4114 = vmatpush1.msra.mxu0 0.0
        %4115 = vmatprep.subr.mxu0 0.0
        %4116 = vmatpush1.msra.mxu0 0.0
        %4117 = vmatprep.subr.mxu0 0.0
        %4118 = vmatpush1.msra.mxu0 0.0
        %4119 = vmatprep.subr.mxu0 0.0
        %4120 = vmatpush1.msra.mxu0 0.0
        %4121 = vmatprep.subr.mxu0 0.0
        %4122 = vmatpush1.msra.mxu0 0.0
        %4123 = vmatprep.subr.mxu0 0.0
        %4124 = vmatpush1.msra.mxu0 0.0
        %4125 = vmatprep.subr.mxu0 0.0
        %4126 = vmatpush1.msra.mxu0 0.0
        %4127 = vmatprep.subr.mxu0 0.0
        %4128 = vmatpush1.msra.mxu0 0.0
        %4129 = vmatprep.subr.mxu0 0.0
        %4130 = vmatpush1.msra.mxu0 0.0
        %4131 = vmatprep.subr.mxu0 0.0
        %4132 = vmatpush1.msra.mxu0 0.0
        %4133 = vmatprep.subr.mxu0 0.0
        %4134 = vmatpush1.msra.mxu0 0.0
        %4135 = vmatprep.subr.mxu0 0.0
        %4136 = vmatpush1.msra.mxu0 0.0
        %4137 = vmatprep.subr.mxu0 0.0
        %v4138 = vand.u32 %v1626, 4294901760
        %4139 = vmatpush1.msra.mxu0 %v4138
        %4140 = vmatprep.subr.mxu0 0.0
        %v4141 = vand.u32 %v1623, 4294901760
        %4142 = vmatpush1.msra.mxu0 %v4141
        %4143 = vmatprep.subr.mxu0 0.0
        %v4144 = vand.u32 %v1620, 4294901760
        %4145 = vmatpush1.msra.mxu0 %v4144
        %4146 = vmatprep.subr.mxu0 0.0
        %4147 = vmatpush2.msra.mxu0 0.0
        %4148 = vmatprep.subr.mxu0 0.0
        %4149 = vmatpush2.msra.mxu0 0.0
        %4150 = vmatprep.subr.mxu0 0.0
        %4151 = vmatpush2.msra.mxu0 0.0
        %4152 = vmatprep.subr.mxu0 0.0
        %4153 = vmatpush2.msra.mxu0 0.0
        %4154 = vmatprep.subr.mxu0 0.0
        %4155 = vmatpush2.msra.mxu0 0.0
        %4156 = vmatprep.subr.mxu0 0.0
        %4157 = vmatpush2.msra.mxu0 0.0
        %4158 = vmatprep.subr.mxu0 0.0
        %4159 = vmatpush2.msra.mxu0 0.0
        %4160 = vmatprep.subr.mxu0 0.0
        %4161 = vmatpush2.msra.mxu0 0.0
        %4162 = vmatprep.subr.mxu0 0.0
        %4163 = vmatpush2.msra.mxu0 0.0
        %4164 = vmatprep.subr.mxu0 0.0
        %4165 = vmatpush2.msra.mxu0 0.0
        %4166 = vmatprep.subr.mxu0 0.0
        %4167 = vmatpush2.msra.mxu0 0.0
        %4168 = vmatprep.subr.mxu0 0.0
        %4169 = vmatpush2.msra.mxu0 0.0
        %4170 = vmatprep.subr.mxu0 0.0
        %4171 = vmatpush2.msra.mxu0 0.0
        %4172 = vmatprep.subr.mxu0 0.0
        %4173 = vmatpush2.msra.mxu0 0.0
        %4174 = vmatprep.subr.mxu0 0.0
        %4175 = vmatpush2.msra.mxu0 0.0
        %4176 = vmatprep.subr.mxu0 0.0
        %4177 = vmatpush2.msra.mxu0 0.0
        %4178 = vmatprep.mubr.f32.mxu0 0.0
        %v4179 = vand.u32 %v3431, 4294901760
        %4180 = vmatmul.mubr.f32.gmra.mxu0 %v4179
        %v4181 = vpop.f32.mrf.mxu0
        %v4182 = vadd.f32 %v4066, %v4181
        %v4183 = vpop.f32.mrf.mxu0
        %4184 = vmatprep.mubr.f32.mxu0 0.0
        %v4185 = vand.u32 %v3434, 4294901760
        %4186 = vmatmul.mubr.f32.gmra.mxu0 %v4185
        %v4187 = vpop.f32.mrf.mxu0
        %v4188 = vadd.f32 %v4072, %v4187
        %v4189 = vpop.f32.mrf.mxu0
        %4190 = vmatprep.mubr.f32.mxu0 0.0
        %v4191 = vand.u32 %v3437, 4294901760
        %4192 = vmatmul.mubr.f32.gmra.mxu0 %v4191
        %v4193 = vpop.f32.mrf.mxu0
        %v4194 = vadd.f32 %v4078, %v4193
        %v4195 = vpop.f32.mrf.mxu0
        %4196 = vmatprep.mubr.f32.mxu0 0.0
        %v4197 = vand.u32 %v3440, 4294901760
        %4198 = vmatmul.mubr.f32.gmra.mxu0 %v4197
        %v4199 = vpop.f32.mrf.mxu0
        %v4200 = vadd.f32 %v4084, %v4199
        %v4201 = vpop.f32.mrf.mxu0
        %4202 = vmatprep.mubr.f32.mxu0 0.0
        %v4203 = vand.u32 %v3443, 4294901760
        %4204 = vmatmul.mubr.f32.gmra.mxu0 %v4203
        %v4205 = vpop.f32.mrf.mxu0
        %v4206 = vadd.f32 %v4090, %v4205
        %v4207 = vpop.f32.mrf.mxu0
        %4208 = vmatprep.mubr.f32.mxu0 0.0
        %v4209 = vand.u32 %v3446, 4294901760
        %4210 = vmatmul.mubr.f32.gmra.mxu0 %v4209
        %v4211 = vpop.f32.mrf.mxu0
        %v4212 = vadd.f32 %v4096, %v4211
        %v4213 = vpop.f32.mrf.mxu0
        %4214 = vmatprep.mubr.f32.mxu0 0.0
        %v4215 = vand.u32 %v3449, 4294901760
        %4216 = vmatmul.mubr.f32.gmra.mxu0 %v4215
        %v4217 = vpop.f32.mrf.mxu0
        %v4218 = vadd.f32 %v4102, %v4217
        %v4219 = vpop.f32.mrf.mxu0
        %4220 = vmatprep.mubr.f32.mxu0 0.0
        %v4221 = vand.u32 %v3452, 4294901760
        %4222 = vmatmul.mubr.f32.gmra.mxu0 %v4221
        %v4223 = vpop.f32.mrf.mxu0
        %v4224 = vadd.f32 %v4108, %v4223
        %v4225 = vpop.f32.mrf.mxu0
        %4226 = vdwg.mxu0
        %v4227 = vmul.f32 %v3377, %v4182
        %v4228 = vmul.f32 %v3384, %v4188
        %v4229 = vmul.f32 %v3391, %v4194
        %v4230 = vmul.f32 %v3398, %v4200
        %v4231 = vmul.f32 %v3405, %v4206
        %v4232 = vmul.f32 %v3412, %v4212
        %v4233 = vmul.f32 %v3419, %v4218
        %v4234 = vmul.f32 %v3426, %v4224
        %v4235 = vmul.f32 %v4227, %v2386
        %v4236 = vmul.f32 %v4228, %v2392
        %v4237 = vmul.f32 %v4229, %v2398
        %v4238 = vmul.f32 %v4230, %v2404
        %v4239 = vmul.f32 %v4231, %v2410
        %v4240 = vmul.f32 %v4232, %v2416
        %v4241 = vmul.f32 %v4233, %v2422
        %v4242 = vmul.f32 %v4234, %v2428
        %4243 = vst [vmem:[%s411] sm:$0xff] %v4235
        %4244 = vst [vmem:[%s411 + $0x8] sm:$0xff] %v4236
        %4245 = vst [vmem:[%s411 + $0x10] sm:$0xff] %v4237
        %4246 = vst [vmem:[%s411 + $0x18] sm:$0xff] %v4238
        %4247 = vst [vmem:[%s411 + $0x20] sm:$0xff] %v4239
        %4248 = vst [vmem:[%s411 + $0x28] sm:$0xff] %v4240
        %4249 = vst [vmem:[%s411 + $0x30] sm:$0xff] %v4241
        %4250 = vst [vmem:[%s411 + $0x38] sm:$0xff] %v4242
        %v4251 = vld [vmem:[%s8] sm:$0xff]
        %v4252 = vld [vmem:[%s8 + $0x8] sm:$0xff]
        %v4253 = vld [vmem:[%s8 + $0x10] sm:$0xff]
        %v4254 = vld [vmem:[%s8 + $0x18] sm:$0xff]
        %v4255 = vld [vmem:[%s8 + $0x20] sm:$0xff]
        %v4256 = vld [vmem:[%s8 + $0x28] sm:$0xff]
        %v4257 = vld [vmem:[%s8 + $0x30] sm:$0xff]
        %v4258 = vld [vmem:[%s8 + $0x38] sm:$0xff]
        %v4259 = vld [vmem:[%s8 + $0x40] sm:$0xff]
        %v4260 = vld [vmem:[%s8 + $0x48] sm:$0xff]
        %v4261 = vld [vmem:[%s8 + $0x50] sm:$0xff]
        %v4262 = vld [vmem:[%s8 + $0x58] sm:$0xff]
        %v4263 = vld [vmem:[%s8 + $0x60] sm:$0xff]
        %v4264 = vld [vmem:[%s8 + $0x68] sm:$0xff]
        %v4265 = vld [vmem:[%s8 + $0x70] sm:$0xff]
        %v4266 = vld [vmem:[%s8 + $0x78] sm:$0xff]
        %4267 = vmatprep.subr.mxu0 0.0
        %v4268 = vand.u32 %v4266, 4294901760
        %4269 = vmatpush1.msra.mxu0 %v4268
        %4270 = vmatprep.subr.mxu0 0.0
        %v4271 = vand.u32 %v4265, 4294901760
        %4272 = vmatpush1.msra.mxu0 %v4271
        %4273 = vmatprep.subr.mxu0 0.0
        %v4274 = vand.u32 %v4264, 4294901760
        %4275 = vmatpush1.msra.mxu0 %v4274
        %4276 = vmatprep.subr.mxu0 0.0
        %v4277 = vand.u32 %v4263, 4294901760
        %4278 = vmatpush1.msra.mxu0 %v4277
        %4279 = vmatprep.subr.mxu0 0.0
        %v4280 = vand.u32 %v4262, 4294901760
        %4281 = vmatpush1.msra.mxu0 %v4280
        %4282 = vmatprep.subr.mxu0 0.0
        %v4283 = vand.u32 %v4261, 4294901760
        %4284 = vmatpush1.msra.mxu0 %v4283
        %4285 = vmatprep.subr.mxu0 0.0
        %v4286 = vand.u32 %v4260, 4294901760
        %4287 = vmatpush1.msra.mxu0 %v4286
        %4288 = vmatprep.subr.mxu0 0.0
        %v4289 = vand.u32 %v4259, 4294901760
        %4290 = vmatpush1.msra.mxu0 %v4289
        %4291 = vmatprep.subr.mxu0 0.0
        %v4292 = vand.u32 %v4258, 4294901760
        %4293 = vmatpush1.msra.mxu0 %v4292
        %4294 = vmatprep.subr.mxu0 0.0
        %v4295 = vand.u32 %v4257, 4294901760
        %4296 = vmatpush1.msra.mxu0 %v4295
        %4297 = vmatprep.subr.mxu0 0.0
        %v4298 = vand.u32 %v4256, 4294901760
        %4299 = vmatpush1.msra.mxu0 %v4298
        %4300 = vmatprep.subr.mxu0 0.0
        %v4301 = vand.u32 %v4255, 4294901760
        %4302 = vmatpush1.msra.mxu0 %v4301
        %4303 = vmatprep.subr.mxu0 0.0
        %v4304 = vand.u32 %v4254, 4294901760
        %4305 = vmatpush1.msra.mxu0 %v4304
        %4306 = vmatprep.subr.mxu0 0.0
        %v4307 = vand.u32 %v4253, 4294901760
        %4308 = vmatpush1.msra.mxu0 %v4307
        %4309 = vmatprep.subr.mxu0 0.0
        %v4310 = vand.u32 %v4252, 4294901760
        %4311 = vmatpush1.msra.mxu0 %v4310
        %4312 = vmatprep.subr.mxu0 0.0
        %v4313 = vand.u32 %v4251, 4294901760
        %4314 = vmatpush1.msra.mxu0 %v4313
        %4315 = vmatprep.subr.mxu0 0.0
        %4316 = vmatpush2.msra.mxu0 0.0
        %4317 = vmatprep.subr.mxu0 0.0
        %4318 = vmatpush2.msra.mxu0 0.0
        %4319 = vmatprep.subr.mxu0 0.0
        %4320 = vmatpush2.msra.mxu0 0.0
        %4321 = vmatprep.subr.mxu0 0.0
        %4322 = vmatpush2.msra.mxu0 0.0
        %4323 = vmatprep.subr.mxu0 0.0
        %4324 = vmatpush2.msra.mxu0 0.0
        %4325 = vmatprep.subr.mxu0 0.0
        %4326 = vmatpush2.msra.mxu0 0.0
        %4327 = vmatprep.subr.mxu0 0.0
        %4328 = vmatpush2.msra.mxu0 0.0
        %4329 = vmatprep.subr.mxu0 0.0
        %4330 = vmatpush2.msra.mxu0 0.0
        %4331 = vmatprep.subr.mxu0 0.0
        %4332 = vmatpush2.msra.mxu0 0.0
        %4333 = vmatprep.subr.mxu0 0.0
        %4334 = vmatpush2.msra.mxu0 0.0
        %4335 = vmatprep.subr.mxu0 0.0
        %4336 = vmatpush2.msra.mxu0 0.0
        %4337 = vmatprep.subr.mxu0 0.0
        %4338 = vmatpush2.msra.mxu0 0.0
        %4339 = vmatprep.subr.mxu0 0.0
        %4340 = vmatpush2.msra.mxu0 0.0
        %4341 = vmatprep.subr.mxu0 0.0
        %4342 = vmatpush2.msra.mxu0 0.0
        %4343 = vmatprep.subr.mxu0 0.0
        %4344 = vmatpush2.msra.mxu0 0.0
        %4345 = vmatprep.subr.mxu0 0.0
        %4346 = vmatpush2.msra.mxu0 0.0
        %4347 = vmatprep.mubr.f32.mxu0 0.0
        %v4348 = vand.u32 %v4235, 4294901760
        %v4349 = vsub.f32 %v4235, %v4348
        %v4350 = vand.u32 %v4349, 4294901760
        %v4351 = vsub.f32 %v4349, %v4350
        %v4352 = vand.u32 %v4351, 4294901760
        %4353 = vmatmul.mubr.f32.gmra.mxu0 %v4352
        %v4354 = vpop.f32.mrf.mxu0
        %v4355 = vadd.f32 0.0, %v4354
        %v4356 = vpop.f32.mrf.mxu0
        %4357 = vmatprep.mubr.f32.mxu0 0.0
        %v4358 = vand.u32 %v4236, 4294901760
        %v4359 = vsub.f32 %v4236, %v4358
        %v4360 = vand.u32 %v4359, 4294901760
        %v4361 = vsub.f32 %v4359, %v4360
        %v4362 = vand.u32 %v4361, 4294901760
        %4363 = vmatmul.mubr.f32.gmra.mxu0 %v4362
        %v4364 = vpop.f32.mrf.mxu0
        %v4365 = vadd.f32 0.0, %v4364
        %v4366 = vpop.f32.mrf.mxu0
        %4367 = vmatprep.mubr.f32.mxu0 0.0
        %v4368 = vand.u32 %v4237, 4294901760
        %v4369 = vsub.f32 %v4237, %v4368
        %v4370 = vand.u32 %v4369, 4294901760
        %v4371 = vsub.f32 %v4369, %v4370
        %v4372 = vand.u32 %v4371, 4294901760
        %4373 = vmatmul.mubr.f32.gmra.mxu0 %v4372
        %v4374 = vpop.f32.mrf.mxu0
        %v4375 = vadd.f32 0.0, %v4374
        %v4376 = vpop.f32.mrf.mxu0
        %4377 = vmatprep.mubr.f32.mxu0 0.0
        %v4378 = vand.u32 %v4238, 4294901760
        %v4379 = vsub.f32 %v4238, %v4378
        %v4380 = vand.u32 %v4379, 4294901760
        %v4381 = vsub.f32 %v4379, %v4380
        %v4382 = vand.u32 %v4381, 4294901760
        %4383 = vmatmul.mubr.f32.gmra.mxu0 %v4382
        %v4384 = vpop.f32.mrf.mxu0
        %v4385 = vadd.f32 0.0, %v4384
        %v4386 = vpop.f32.mrf.mxu0
        %4387 = vmatprep.mubr.f32.mxu0 0.0
        %v4388 = vand.u32 %v4239, 4294901760
        %v4389 = vsub.f32 %v4239, %v4388
        %v4390 = vand.u32 %v4389, 4294901760
        %v4391 = vsub.f32 %v4389, %v4390
        %v4392 = vand.u32 %v4391, 4294901760
        %4393 = vmatmul.mubr.f32.gmra.mxu0 %v4392
        %v4394 = vpop.f32.mrf.mxu0
        %v4395 = vadd.f32 0.0, %v4394
        %v4396 = vpop.f32.mrf.mxu0
        %4397 = vmatprep.mubr.f32.mxu0 0.0
        %v4398 = vand.u32 %v4240, 4294901760
        %v4399 = vsub.f32 %v4240, %v4398
        %v4400 = vand.u32 %v4399, 4294901760
        %v4401 = vsub.f32 %v4399, %v4400
        %v4402 = vand.u32 %v4401, 4294901760
        %4403 = vmatmul.mubr.f32.gmra.mxu0 %v4402
        %v4404 = vpop.f32.mrf.mxu0
        %v4405 = vadd.f32 0.0, %v4404
        %v4406 = vpop.f32.mrf.mxu0
        %4407 = vmatprep.mubr.f32.mxu0 0.0
        %v4408 = vand.u32 %v4241, 4294901760
        %v4409 = vsub.f32 %v4241, %v4408
        %v4410 = vand.u32 %v4409, 4294901760
        %v4411 = vsub.f32 %v4409, %v4410
        %v4412 = vand.u32 %v4411, 4294901760
        %4413 = vmatmul.mubr.f32.gmra.mxu0 %v4412
        %v4414 = vpop.f32.mrf.mxu0
        %v4415 = vadd.f32 0.0, %v4414
        %v4416 = vpop.f32.mrf.mxu0
        %4417 = vmatprep.mubr.f32.mxu0 0.0
        %v4418 = vand.u32 %v4242, 4294901760
        %v4419 = vsub.f32 %v4242, %v4418
        %v4420 = vand.u32 %v4419, 4294901760
        %v4421 = vsub.f32 %v4419, %v4420
        %v4422 = vand.u32 %v4421, 4294901760
        %4423 = vmatmul.mubr.f32.gmra.mxu0 %v4422
        %v4424 = vpop.f32.mrf.mxu0
        %v4425 = vadd.f32 0.0, %v4424
        %v4426 = vpop.f32.mrf.mxu0
        %4427 = vdwg.mxu0
        %4428 = vmatprep.subr.mxu0 0.0
        %v4429 = vand.u32 %v4266, 4294901760
        %v4430 = vsub.f32 %v4266, %v4429
        %v4431 = vand.u32 %v4430, 4294901760
        %v4432 = vsub.f32 %v4430, %v4431
        %v4433 = vand.u32 %v4432, 4294901760
        %4434 = vmatpush1.msra.mxu0 %v4433
        %4435 = vmatprep.subr.mxu0 0.0
        %v4436 = vand.u32 %v4265, 4294901760
        %v4437 = vsub.f32 %v4265, %v4436
        %v4438 = vand.u32 %v4437, 4294901760
        %v4439 = vsub.f32 %v4437, %v4438
        %v4440 = vand.u32 %v4439, 4294901760
        %4441 = vmatpush1.msra.mxu0 %v4440
        %4442 = vmatprep.subr.mxu0 0.0
        %v4443 = vand.u32 %v4264, 4294901760
        %v4444 = vsub.f32 %v4264, %v4443
        %v4445 = vand.u32 %v4444, 4294901760
        %v4446 = vsub.f32 %v4444, %v4445
        %v4447 = vand.u32 %v4446, 4294901760
        %4448 = vmatpush1.msra.mxu0 %v4447
        %4449 = vmatprep.subr.mxu0 0.0
        %v4450 = vand.u32 %v4263, 4294901760
        %v4451 = vsub.f32 %v4263, %v4450
        %v4452 = vand.u32 %v4451, 4294901760
        %v4453 = vsub.f32 %v4451, %v4452
        %v4454 = vand.u32 %v4453, 4294901760
        %4455 = vmatpush1.msra.mxu0 %v4454
        %4456 = vmatprep.subr.mxu0 0.0
        %v4457 = vand.u32 %v4262, 4294901760
        %v4458 = vsub.f32 %v4262, %v4457
        %v4459 = vand.u32 %v4458, 4294901760
        %v4460 = vsub.f32 %v4458, %v4459
        %v4461 = vand.u32 %v4460, 4294901760
        %4462 = vmatpush1.msra.mxu0 %v4461
        %4463 = vmatprep.subr.mxu0 0.0
        %v4464 = vand.u32 %v4261, 4294901760
        %v4465 = vsub.f32 %v4261, %v4464
        %v4466 = vand.u32 %v4465, 4294901760
        %v4467 = vsub.f32 %v4465, %v4466
        %v4468 = vand.u32 %v4467, 4294901760
        %4469 = vmatpush1.msra.mxu0 %v4468
        %4470 = vmatprep.subr.mxu0 0.0
        %v4471 = vand.u32 %v4260, 4294901760
        %v4472 = vsub.f32 %v4260, %v4471
        %v4473 = vand.u32 %v4472, 4294901760
        %v4474 = vsub.f32 %v4472, %v4473
        %v4475 = vand.u32 %v4474, 4294901760
        %4476 = vmatpush1.msra.mxu0 %v4475
        %4477 = vmatprep.subr.mxu0 0.0
        %v4478 = vand.u32 %v4259, 4294901760
        %v4479 = vsub.f32 %v4259, %v4478
        %v4480 = vand.u32 %v4479, 4294901760
        %v4481 = vsub.f32 %v4479, %v4480
        %v4482 = vand.u32 %v4481, 4294901760
        %4483 = vmatpush1.msra.mxu0 %v4482
        %4484 = vmatprep.subr.mxu0 0.0
        %v4485 = vand.u32 %v4258, 4294901760
        %v4486 = vsub.f32 %v4258, %v4485
        %v4487 = vand.u32 %v4486, 4294901760
        %v4488 = vsub.f32 %v4486, %v4487
        %v4489 = vand.u32 %v4488, 4294901760
        %4490 = vmatpush1.msra.mxu0 %v4489
        %4491 = vmatprep.subr.mxu0 0.0
        %v4492 = vand.u32 %v4257, 4294901760
        %v4493 = vsub.f32 %v4257, %v4492
        %v4494 = vand.u32 %v4493, 4294901760
        %v4495 = vsub.f32 %v4493, %v4494
        %v4496 = vand.u32 %v4495, 4294901760
        %4497 = vmatpush1.msra.mxu0 %v4496
        %4498 = vmatprep.subr.mxu0 0.0
        %v4499 = vand.u32 %v4256, 4294901760
        %v4500 = vsub.f32 %v4256, %v4499
        %v4501 = vand.u32 %v4500, 4294901760
        %v4502 = vsub.f32 %v4500, %v4501
        %v4503 = vand.u32 %v4502, 4294901760
        %4504 = vmatpush1.msra.mxu0 %v4503
        %4505 = vmatprep.subr.mxu0 0.0
        %v4506 = vand.u32 %v4255, 4294901760
        %v4507 = vsub.f32 %v4255, %v4506
        %v4508 = vand.u32 %v4507, 4294901760
        %v4509 = vsub.f32 %v4507, %v4508
        %v4510 = vand.u32 %v4509, 4294901760
        %4511 = vmatpush1.msra.mxu0 %v4510
        %4512 = vmatprep.subr.mxu0 0.0
        %v4513 = vand.u32 %v4254, 4294901760
        %v4514 = vsub.f32 %v4254, %v4513
        %v4515 = vand.u32 %v4514, 4294901760
        %v4516 = vsub.f32 %v4514, %v4515
        %v4517 = vand.u32 %v4516, 4294901760
        %4518 = vmatpush1.msra.mxu0 %v4517
        %4519 = vmatprep.subr.mxu0 0.0
        %v4520 = vand.u32 %v4253, 4294901760
        %v4521 = vsub.f32 %v4253, %v4520
        %v4522 = vand.u32 %v4521, 4294901760
        %v4523 = vsub.f32 %v4521, %v4522
        %v4524 = vand.u32 %v4523, 4294901760
        %4525 = vmatpush1.msra.mxu0 %v4524
        %4526 = vmatprep.subr.mxu0 0.0
        %v4527 = vand.u32 %v4252, 4294901760
        %v4528 = vsub.f32 %v4252, %v4527
        %v4529 = vand.u32 %v4528, 4294901760
        %v4530 = vsub.f32 %v4528, %v4529
        %v4531 = vand.u32 %v4530, 4294901760
        %4532 = vmatpush1.msra.mxu0 %v4531
        %4533 = vmatprep.subr.mxu0 0.0
        %v4534 = vand.u32 %v4251, 4294901760
        %v4535 = vsub.f32 %v4251, %v4534
        %v4536 = vand.u32 %v4535, 4294901760
        %v4537 = vsub.f32 %v4535, %v4536
        %v4538 = vand.u32 %v4537, 4294901760
        %4539 = vmatpush1.msra.mxu0 %v4538
        %4540 = vmatprep.subr.mxu0 0.0
        %4541 = vmatpush2.msra.mxu0 0.0
        %4542 = vmatprep.subr.mxu0 0.0
        %4543 = vmatpush2.msra.mxu0 0.0
        %4544 = vmatprep.subr.mxu0 0.0
        %4545 = vmatpush2.msra.mxu0 0.0
        %4546 = vmatprep.subr.mxu0 0.0
        %4547 = vmatpush2.msra.mxu0 0.0
        %4548 = vmatprep.subr.mxu0 0.0
        %4549 = vmatpush2.msra.mxu0 0.0
        %4550 = vmatprep.subr.mxu0 0.0
        %4551 = vmatpush2.msra.mxu0 0.0
        %4552 = vmatprep.subr.mxu0 0.0
        %4553 = vmatpush2.msra.mxu0 0.0
        %4554 = vmatprep.subr.mxu0 0.0
        %4555 = vmatpush2.msra.mxu0 0.0
        %4556 = vmatprep.subr.mxu0 0.0
        %4557 = vmatpush2.msra.mxu0 0.0
        %4558 = vmatprep.subr.mxu0 0.0
        %4559 = vmatpush2.msra.mxu0 0.0
        %4560 = vmatprep.subr.mxu0 0.0
        %4561 = vmatpush2.msra.mxu0 0.0
        %4562 = vmatprep.subr.mxu0 0.0
        %4563 = vmatpush2.msra.mxu0 0.0
        %4564 = vmatprep.subr.mxu0 0.0
        %4565 = vmatpush2.msra.mxu0 0.0
        %4566 = vmatprep.subr.mxu0 0.0
        %4567 = vmatpush2.msra.mxu0 0.0
        %4568 = vmatprep.subr.mxu0 0.0
        %4569 = vmatpush2.msra.mxu0 0.0
        %4570 = vmatprep.subr.mxu0 0.0
        %4571 = vmatpush2.msra.mxu0 0.0
        %4572 = vmatprep.mubr.f32.mxu0 0.0
        %v4573 = vand.u32 %v4235, 4294901760
        %4574 = vmatmul.mubr.f32.gmra.mxu0 %v4573
        %v4575 = vpop.f32.mrf.mxu0
        %v4576 = vadd.f32 %v4355, %v4575
        %v4577 = vpop.f32.mrf.mxu0
        %4578 = vmatprep.mubr.f32.mxu0 0.0
        %v4579 = vand.u32 %v4236, 4294901760
        %4580 = vmatmul.mubr.f32.gmra.mxu0 %v4579
        %v4581 = vpop.f32.mrf.mxu0
        %v4582 = vadd.f32 %v4365, %v4581
        %v4583 = vpop.f32.mrf.mxu0
        %4584 = vmatprep.mubr.f32.mxu0 0.0
        %v4585 = vand.u32 %v4237, 4294901760
        %4586 = vmatmul.mubr.f32.gmra.mxu0 %v4585
        %v4587 = vpop.f32.mrf.mxu0
        %v4588 = vadd.f32 %v4375, %v4587
        %v4589 = vpop.f32.mrf.mxu0
        %4590 = vmatprep.mubr.f32.mxu0 0.0
        %v4591 = vand.u32 %v4238, 4294901760
        %4592 = vmatmul.mubr.f32.gmra.mxu0 %v4591
        %v4593 = vpop.f32.mrf.mxu0
        %v4594 = vadd.f32 %v4385, %v4593
        %v4595 = vpop.f32.mrf.mxu0
        %4596 = vmatprep.mubr.f32.mxu0 0.0
        %v4597 = vand.u32 %v4239, 4294901760
        %4598 = vmatmul.mubr.f32.gmra.mxu0 %v4597
        %v4599 = vpop.f32.mrf.mxu0
        %v4600 = vadd.f32 %v4395, %v4599
        %v4601 = vpop.f32.mrf.mxu0
        %4602 = vmatprep.mubr.f32.mxu0 0.0
        %v4603 = vand.u32 %v4240, 4294901760
        %4604 = vmatmul.mubr.f32.gmra.mxu0 %v4603
        %v4605 = vpop.f32.mrf.mxu0
        %v4606 = vadd.f32 %v4405, %v4605
        %v4607 = vpop.f32.mrf.mxu0
        %4608 = vmatprep.mubr.f32.mxu0 0.0
        %v4609 = vand.u32 %v4241, 4294901760
        %4610 = vmatmul.mubr.f32.gmra.mxu0 %v4609
        %v4611 = vpop.f32.mrf.mxu0
        %v4612 = vadd.f32 %v4415, %v4611
        %v4613 = vpop.f32.mrf.mxu0
        %4614 = vmatprep.mubr.f32.mxu0 0.0
        %v4615 = vand.u32 %v4242, 4294901760
        %4616 = vmatmul.mubr.f32.gmra.mxu0 %v4615
        %v4617 = vpop.f32.mrf.mxu0
        %v4618 = vadd.f32 %v4425, %v4617
        %v4619 = vpop.f32.mrf.mxu0
        %4620 = vdwg.mxu0
        %4621 = vmatprep.subr.mxu0 0.0
        %v4622 = vand.u32 %v4266, 4294901760
        %v4623 = vsub.f32 %v4266, %v4622
        %4624 = vmatpush1.msra.mxu0 %v4623
        %4625 = vmatprep.subr.mxu0 0.0
        %v4626 = vand.u32 %v4265, 4294901760
        %v4627 = vsub.f32 %v4265, %v4626
        %4628 = vmatpush1.msra.mxu0 %v4627
        %4629 = vmatprep.subr.mxu0 0.0
        %v4630 = vand.u32 %v4264, 4294901760
        %v4631 = vsub.f32 %v4264, %v4630
        %4632 = vmatpush1.msra.mxu0 %v4631
        %4633 = vmatprep.subr.mxu0 0.0
        %v4634 = vand.u32 %v4263, 4294901760
        %v4635 = vsub.f32 %v4263, %v4634
        %4636 = vmatpush1.msra.mxu0 %v4635
        %4637 = vmatprep.subr.mxu0 0.0
        %v4638 = vand.u32 %v4262, 4294901760
        %v4639 = vsub.f32 %v4262, %v4638
        %4640 = vmatpush1.msra.mxu0 %v4639
        %4641 = vmatprep.subr.mxu0 0.0
        %v4642 = vand.u32 %v4261, 4294901760
        %v4643 = vsub.f32 %v4261, %v4642
        %4644 = vmatpush1.msra.mxu0 %v4643
        %4645 = vmatprep.subr.mxu0 0.0
        %v4646 = vand.u32 %v4260, 4294901760
        %v4647 = vsub.f32 %v4260, %v4646
        %4648 = vmatpush1.msra.mxu0 %v4647
        %4649 = vmatprep.subr.mxu0 0.0
        %v4650 = vand.u32 %v4259, 4294901760
        %v4651 = vsub.f32 %v4259, %v4650
        %4652 = vmatpush1.msra.mxu0 %v4651
        %4653 = vmatprep.subr.mxu0 0.0
        %v4654 = vand.u32 %v4258, 4294901760
        %v4655 = vsub.f32 %v4258, %v4654
        %4656 = vmatpush1.msra.mxu0 %v4655
        %4657 = vmatprep.subr.mxu0 0.0
        %v4658 = vand.u32 %v4257, 4294901760
        %v4659 = vsub.f32 %v4257, %v4658
        %4660 = vmatpush1.msra.mxu0 %v4659
        %4661 = vmatprep.subr.mxu0 0.0
        %v4662 = vand.u32 %v4256, 4294901760
        %v4663 = vsub.f32 %v4256, %v4662
        %4664 = vmatpush1.msra.mxu0 %v4663
        %4665 = vmatprep.subr.mxu0 0.0
        %v4666 = vand.u32 %v4255, 4294901760
        %v4667 = vsub.f32 %v4255, %v4666
        %4668 = vmatpush1.msra.mxu0 %v4667
        %4669 = vmatprep.subr.mxu0 0.0
        %v4670 = vand.u32 %v4254, 4294901760
        %v4671 = vsub.f32 %v4254, %v4670
        %4672 = vmatpush1.msra.mxu0 %v4671
        %4673 = vmatprep.subr.mxu0 0.0
        %v4674 = vand.u32 %v4253, 4294901760
        %v4675 = vsub.f32 %v4253, %v4674
        %4676 = vmatpush1.msra.mxu0 %v4675
        %4677 = vmatprep.subr.mxu0 0.0
        %v4678 = vand.u32 %v4252, 4294901760
        %v4679 = vsub.f32 %v4252, %v4678
        %4680 = vmatpush1.msra.mxu0 %v4679
        %4681 = vmatprep.subr.mxu0 0.0
        %v4682 = vand.u32 %v4251, 4294901760
        %v4683 = vsub.f32 %v4251, %v4682
        %4684 = vmatpush1.msra.mxu0 %v4683
        %4685 = vmatprep.subr.mxu0 0.0
        %4686 = vmatpush2.msra.mxu0 0.0
        %4687 = vmatprep.subr.mxu0 0.0
        %4688 = vmatpush2.msra.mxu0 0.0
        %4689 = vmatprep.subr.mxu0 0.0
        %4690 = vmatpush2.msra.mxu0 0.0
        %4691 = vmatprep.subr.mxu0 0.0
        %4692 = vmatpush2.msra.mxu0 0.0
        %4693 = vmatprep.subr.mxu0 0.0
        %4694 = vmatpush2.msra.mxu0 0.0
        %4695 = vmatprep.subr.mxu0 0.0
        %4696 = vmatpush2.msra.mxu0 0.0
        %4697 = vmatprep.subr.mxu0 0.0
        %4698 = vmatpush2.msra.mxu0 0.0
        %4699 = vmatprep.subr.mxu0 0.0
        %4700 = vmatpush2.msra.mxu0 0.0
        %4701 = vmatprep.subr.mxu0 0.0
        %4702 = vmatpush2.msra.mxu0 0.0
        %4703 = vmatprep.subr.mxu0 0.0
        %4704 = vmatpush2.msra.mxu0 0.0
        %4705 = vmatprep.subr.mxu0 0.0
        %4706 = vmatpush2.msra.mxu0 0.0
        %4707 = vmatprep.subr.mxu0 0.0
        %4708 = vmatpush2.msra.mxu0 0.0
        %4709 = vmatprep.subr.mxu0 0.0
        %4710 = vmatpush2.msra.mxu0 0.0
        %4711 = vmatprep.subr.mxu0 0.0
        %4712 = vmatpush2.msra.mxu0 0.0
        %4713 = vmatprep.subr.mxu0 0.0
        %4714 = vmatpush2.msra.mxu0 0.0
        %4715 = vmatprep.subr.mxu0 0.0
        %4716 = vmatpush2.msra.mxu0 0.0
        %4717 = vmatprep.mubr.f32.mxu0 0.0
        %v4718 = vand.u32 %v4235, 4294901760
        %v4719 = vsub.f32 %v4235, %v4718
        %4720 = vmatmul.mubr.f32.gmra.mxu0 %v4719
        %v4721 = vpop.f32.mrf.mxu0
        %v4722 = vadd.f32 %v4576, %v4721
        %v4723 = vpop.f32.mrf.mxu0
        %4724 = vmatprep.mubr.f32.mxu0 0.0
        %v4725 = vand.u32 %v4236, 4294901760
        %v4726 = vsub.f32 %v4236, %v4725
        %4727 = vmatmul.mubr.f32.gmra.mxu0 %v4726
        %v4728 = vpop.f32.mrf.mxu0
        %v4729 = vadd.f32 %v4582, %v4728
        %v4730 = vpop.f32.mrf.mxu0
        %4731 = vmatprep.mubr.f32.mxu0 0.0
        %v4732 = vand.u32 %v4237, 4294901760
        %v4733 = vsub.f32 %v4237, %v4732
        %4734 = vmatmul.mubr.f32.gmra.mxu0 %v4733
        %v4735 = vpop.f32.mrf.mxu0
        %v4736 = vadd.f32 %v4588, %v4735
        %v4737 = vpop.f32.mrf.mxu0
        %4738 = vmatprep.mubr.f32.mxu0 0.0
        %v4739 = vand.u32 %v4238, 4294901760
        %v4740 = vsub.f32 %v4238, %v4739
        %4741 = vmatmul.mubr.f32.gmra.mxu0 %v4740
        %v4742 = vpop.f32.mrf.mxu0
        %v4743 = vadd.f32 %v4594, %v4742
        %v4744 = vpop.f32.mrf.mxu0
        %4745 = vmatprep.mubr.f32.mxu0 0.0
        %v4746 = vand.u32 %v4239, 4294901760
        %v4747 = vsub.f32 %v4239, %v4746
        %4748 = vmatmul.mubr.f32.gmra.mxu0 %v4747
        %v4749 = vpop.f32.mrf.mxu0
        %v4750 = vadd.f32 %v4600, %v4749
        %v4751 = vpop.f32.mrf.mxu0
        %4752 = vmatprep.mubr.f32.mxu0 0.0
        %v4753 = vand.u32 %v4240, 4294901760
        %v4754 = vsub.f32 %v4240, %v4753
        %4755 = vmatmul.mubr.f32.gmra.mxu0 %v4754
        %v4756 = vpop.f32.mrf.mxu0
        %v4757 = vadd.f32 %v4606, %v4756
        %v4758 = vpop.f32.mrf.mxu0
        %4759 = vmatprep.mubr.f32.mxu0 0.0
        %v4760 = vand.u32 %v4241, 4294901760
        %v4761 = vsub.f32 %v4241, %v4760
        %4762 = vmatmul.mubr.f32.gmra.mxu0 %v4761
        %v4763 = vpop.f32.mrf.mxu0
        %v4764 = vadd.f32 %v4612, %v4763
        %v4765 = vpop.f32.mrf.mxu0
        %4766 = vmatprep.mubr.f32.mxu0 0.0
        %v4767 = vand.u32 %v4242, 4294901760
        %v4768 = vsub.f32 %v4242, %v4767
        %4769 = vmatmul.mubr.f32.gmra.mxu0 %v4768
        %v4770 = vpop.f32.mrf.mxu0
        %v4771 = vadd.f32 %v4618, %v4770
        %v4772 = vpop.f32.mrf.mxu0
        %4773 = vdwg.mxu0
        %4774 = vmatprep.subr.mxu0 0.0
        %v4775 = vand.u32 %v4266, 4294901760
        %4776 = vmatpush1.msra.mxu0 %v4775
        %4777 = vmatprep.subr.mxu0 0.0
        %v4778 = vand.u32 %v4265, 4294901760
        %4779 = vmatpush1.msra.mxu0 %v4778
        %4780 = vmatprep.subr.mxu0 0.0
        %v4781 = vand.u32 %v4264, 4294901760
        %4782 = vmatpush1.msra.mxu0 %v4781
        %4783 = vmatprep.subr.mxu0 0.0
        %v4784 = vand.u32 %v4263, 4294901760
        %4785 = vmatpush1.msra.mxu0 %v4784
        %4786 = vmatprep.subr.mxu0 0.0
        %v4787 = vand.u32 %v4262, 4294901760
        %4788 = vmatpush1.msra.mxu0 %v4787
        %4789 = vmatprep.subr.mxu0 0.0
        %v4790 = vand.u32 %v4261, 4294901760
        %4791 = vmatpush1.msra.mxu0 %v4790
        %4792 = vmatprep.subr.mxu0 0.0
        %v4793 = vand.u32 %v4260, 4294901760
        %4794 = vmatpush1.msra.mxu0 %v4793
        %4795 = vmatprep.subr.mxu0 0.0
        %v4796 = vand.u32 %v4259, 4294901760
        %4797 = vmatpush1.msra.mxu0 %v4796
        %4798 = vmatprep.subr.mxu0 0.0
        %v4799 = vand.u32 %v4258, 4294901760
        %4800 = vmatpush1.msra.mxu0 %v4799
        %4801 = vmatprep.subr.mxu0 0.0
        %v4802 = vand.u32 %v4257, 4294901760
        %4803 = vmatpush1.msra.mxu0 %v4802
        %4804 = vmatprep.subr.mxu0 0.0
        %v4805 = vand.u32 %v4256, 4294901760
        %4806 = vmatpush1.msra.mxu0 %v4805
        %4807 = vmatprep.subr.mxu0 0.0
        %v4808 = vand.u32 %v4255, 4294901760
        %4809 = vmatpush1.msra.mxu0 %v4808
        %4810 = vmatprep.subr.mxu0 0.0
        %v4811 = vand.u32 %v4254, 4294901760
        %4812 = vmatpush1.msra.mxu0 %v4811
        %4813 = vmatprep.subr.mxu0 0.0
        %v4814 = vand.u32 %v4253, 4294901760
        %4815 = vmatpush1.msra.mxu0 %v4814
        %4816 = vmatprep.subr.mxu0 0.0
        %v4817 = vand.u32 %v4252, 4294901760
        %4818 = vmatpush1.msra.mxu0 %v4817
        %4819 = vmatprep.subr.mxu0 0.0
        %v4820 = vand.u32 %v4251, 4294901760
        %4821 = vmatpush1.msra.mxu0 %v4820
        %4822 = vmatprep.subr.mxu0 0.0
        %4823 = vmatpush2.msra.mxu0 0.0
        %4824 = vmatprep.subr.mxu0 0.0
        %4825 = vmatpush2.msra.mxu0 0.0
        %4826 = vmatprep.subr.mxu0 0.0
        %4827 = vmatpush2.msra.mxu0 0.0
        %4828 = vmatprep.subr.mxu0 0.0
        %4829 = vmatpush2.msra.mxu0 0.0
        %4830 = vmatprep.subr.mxu0 0.0
        %4831 = vmatpush2.msra.mxu0 0.0
        %4832 = vmatprep.subr.mxu0 0.0
        %4833 = vmatpush2.msra.mxu0 0.0
        %4834 = vmatprep.subr.mxu0 0.0
        %4835 = vmatpush2.msra.mxu0 0.0
        %4836 = vmatprep.subr.mxu0 0.0
        %4837 = vmatpush2.msra.mxu0 0.0
        %4838 = vmatprep.subr.mxu0 0.0
        %4839 = vmatpush2.msra.mxu0 0.0
        %4840 = vmatprep.subr.mxu0 0.0
        %4841 = vmatpush2.msra.mxu0 0.0
        %4842 = vmatprep.subr.mxu0 0.0
        %4843 = vmatpush2.msra.mxu0 0.0
        %4844 = vmatprep.subr.mxu0 0.0
        %4845 = vmatpush2.msra.mxu0 0.0
        %4846 = vmatprep.subr.mxu0 0.0
        %4847 = vmatpush2.msra.mxu0 0.0
        %4848 = vmatprep.subr.mxu0 0.0
        %4849 = vmatpush2.msra.mxu0 0.0
        %4850 = vmatprep.subr.mxu0 0.0
        %4851 = vmatpush2.msra.mxu0 0.0
        %4852 = vmatprep.subr.mxu0 0.0
        %4853 = vmatpush2.msra.mxu0 0.0
        %4854 = vmatprep.mubr.f32.mxu0 0.0
        %v4855 = vand.u32 %v4235, 4294901760
        %v4856 = vsub.f32 %v4235, %v4855
        %v4857 = vand.u32 %v4856, 4294901760
        %4858 = vmatmul.mubr.f32.gmra.mxu0 %v4857
        %v4859 = vpop.f32.mrf.mxu0
        %v4860 = vadd.f32 %v4722, %v4859
        %v4861 = vpop.f32.mrf.mxu0
        %4862 = vmatprep.mubr.f32.mxu0 0.0
        %v4863 = vand.u32 %v4236, 4294901760
        %v4864 = vsub.f32 %v4236, %v4863
        %v4865 = vand.u32 %v4864, 4294901760
        %4866 = vmatmul.mubr.f32.gmra.mxu0 %v4865
        %v4867 = vpop.f32.mrf.mxu0
        %v4868 = vadd.f32 %v4729, %v4867
        %v4869 = vpop.f32.mrf.mxu0
        %4870 = vmatprep.mubr.f32.mxu0 0.0
        %v4871 = vand.u32 %v4237, 4294901760
        %v4872 = vsub.f32 %v4237, %v4871
        %v4873 = vand.u32 %v4872, 4294901760
        %4874 = vmatmul.mubr.f32.gmra.mxu0 %v4873
        %v4875 = vpop.f32.mrf.mxu0
        %v4876 = vadd.f32 %v4736, %v4875
        %v4877 = vpop.f32.mrf.mxu0
        %4878 = vmatprep.mubr.f32.mxu0 0.0
        %v4879 = vand.u32 %v4238, 4294901760
        %v4880 = vsub.f32 %v4238, %v4879
        %v4881 = vand.u32 %v4880, 4294901760
        %4882 = vmatmul.mubr.f32.gmra.mxu0 %v4881
        %v4883 = vpop.f32.mrf.mxu0
        %v4884 = vadd.f32 %v4743, %v4883
        %v4885 = vpop.f32.mrf.mxu0
        %4886 = vmatprep.mubr.f32.mxu0 0.0
        %v4887 = vand.u32 %v4239, 4294901760
        %v4888 = vsub.f32 %v4239, %v4887
        %v4889 = vand.u32 %v4888, 4294901760
        %4890 = vmatmul.mubr.f32.gmra.mxu0 %v4889
        %v4891 = vpop.f32.mrf.mxu0
        %v4892 = vadd.f32 %v4750, %v4891
        %v4893 = vpop.f32.mrf.mxu0
        %4894 = vmatprep.mubr.f32.mxu0 0.0
        %v4895 = vand.u32 %v4240, 4294901760
        %v4896 = vsub.f32 %v4240, %v4895
        %v4897 = vand.u32 %v4896, 4294901760
        %4898 = vmatmul.mubr.f32.gmra.mxu0 %v4897
        %v4899 = vpop.f32.mrf.mxu0
        %v4900 = vadd.f32 %v4757, %v4899
        %v4901 = vpop.f32.mrf.mxu0
        %4902 = vmatprep.mubr.f32.mxu0 0.0
        %v4903 = vand.u32 %v4241, 4294901760
        %v4904 = vsub.f32 %v4241, %v4903
        %v4905 = vand.u32 %v4904, 4294901760
        %4906 = vmatmul.mubr.f32.gmra.mxu0 %v4905
        %v4907 = vpop.f32.mrf.mxu0
        %v4908 = vadd.f32 %v4764, %v4907
        %v4909 = vpop.f32.mrf.mxu0
        %4910 = vmatprep.mubr.f32.mxu0 0.0
        %v4911 = vand.u32 %v4242, 4294901760
        %v4912 = vsub.f32 %v4242, %v4911
        %v4913 = vand.u32 %v4912, 4294901760
        %4914 = vmatmul.mubr.f32.gmra.mxu0 %v4913
        %v4915 = vpop.f32.mrf.mxu0
        %v4916 = vadd.f32 %v4771, %v4915
        %v4917 = vpop.f32.mrf.mxu0
        %4918 = vdwg.mxu0
        %4919 = vmatprep.subr.mxu0 0.0
        %v4920 = vand.u32 %v4266, 4294901760
        %v4921 = vsub.f32 %v4266, %v4920
        %v4922 = vand.u32 %v4921, 4294901760
        %4923 = vmatpush1.msra.mxu0 %v4922
        %4924 = vmatprep.subr.mxu0 0.0
        %v4925 = vand.u32 %v4265, 4294901760
        %v4926 = vsub.f32 %v4265, %v4925
        %v4927 = vand.u32 %v4926, 4294901760
        %4928 = vmatpush1.msra.mxu0 %v4927
        %4929 = vmatprep.subr.mxu0 0.0
        %v4930 = vand.u32 %v4264, 4294901760
        %v4931 = vsub.f32 %v4264, %v4930
        %v4932 = vand.u32 %v4931, 4294901760
        %4933 = vmatpush1.msra.mxu0 %v4932
        %4934 = vmatprep.subr.mxu0 0.0
        %v4935 = vand.u32 %v4263, 4294901760
        %v4936 = vsub.f32 %v4263, %v4935
        %v4937 = vand.u32 %v4936, 4294901760
        %4938 = vmatpush1.msra.mxu0 %v4937
        %4939 = vmatprep.subr.mxu0 0.0
        %v4940 = vand.u32 %v4262, 4294901760
        %v4941 = vsub.f32 %v4262, %v4940
        %v4942 = vand.u32 %v4941, 4294901760
        %4943 = vmatpush1.msra.mxu0 %v4942
        %4944 = vmatprep.subr.mxu0 0.0
        %v4945 = vand.u32 %v4261, 4294901760
        %v4946 = vsub.f32 %v4261, %v4945
        %v4947 = vand.u32 %v4946, 4294901760
        %4948 = vmatpush1.msra.mxu0 %v4947
        %4949 = vmatprep.subr.mxu0 0.0
        %v4950 = vand.u32 %v4260, 4294901760
        %v4951 = vsub.f32 %v4260, %v4950
        %v4952 = vand.u32 %v4951, 4294901760
        %4953 = vmatpush1.msra.mxu0 %v4952
        %4954 = vmatprep.subr.mxu0 0.0
        %v4955 = vand.u32 %v4259, 4294901760
        %v4956 = vsub.f32 %v4259, %v4955
        %v4957 = vand.u32 %v4956, 4294901760
        %4958 = vmatpush1.msra.mxu0 %v4957
        %4959 = vmatprep.subr.mxu0 0.0
        %v4960 = vand.u32 %v4258, 4294901760
        %v4961 = vsub.f32 %v4258, %v4960
        %v4962 = vand.u32 %v4961, 4294901760
        %4963 = vmatpush1.msra.mxu0 %v4962
        %4964 = vmatprep.subr.mxu0 0.0
        %v4965 = vand.u32 %v4257, 4294901760
        %v4966 = vsub.f32 %v4257, %v4965
        %v4967 = vand.u32 %v4966, 4294901760
        %4968 = vmatpush1.msra.mxu0 %v4967
        %4969 = vmatprep.subr.mxu0 0.0
        %v4970 = vand.u32 %v4256, 4294901760
        %v4971 = vsub.f32 %v4256, %v4970
        %v4972 = vand.u32 %v4971, 4294901760
        %4973 = vmatpush1.msra.mxu0 %v4972
        %4974 = vmatprep.subr.mxu0 0.0
        %v4975 = vand.u32 %v4255, 4294901760
        %v4976 = vsub.f32 %v4255, %v4975
        %v4977 = vand.u32 %v4976, 4294901760
        %4978 = vmatpush1.msra.mxu0 %v4977
        %4979 = vmatprep.subr.mxu0 0.0
        %v4980 = vand.u32 %v4254, 4294901760
        %v4981 = vsub.f32 %v4254, %v4980
        %v4982 = vand.u32 %v4981, 4294901760
        %4983 = vmatpush1.msra.mxu0 %v4982
        %4984 = vmatprep.subr.mxu0 0.0
        %v4985 = vand.u32 %v4253, 4294901760
        %v4986 = vsub.f32 %v4253, %v4985
        %v4987 = vand.u32 %v4986, 4294901760
        %4988 = vmatpush1.msra.mxu0 %v4987
        %4989 = vmatprep.subr.mxu0 0.0
        %v4990 = vand.u32 %v4252, 4294901760
        %v4991 = vsub.f32 %v4252, %v4990
        %v4992 = vand.u32 %v4991, 4294901760
        %4993 = vmatpush1.msra.mxu0 %v4992
        %4994 = vmatprep.subr.mxu0 0.0
        %v4995 = vand.u32 %v4251, 4294901760
        %v4996 = vsub.f32 %v4251, %v4995
        %v4997 = vand.u32 %v4996, 4294901760
        %4998 = vmatpush1.msra.mxu0 %v4997
        %4999 = vmatprep.subr.mxu0 0.0
        %5000 = vmatpush2.msra.mxu0 0.0
        %5001 = vmatprep.subr.mxu0 0.0
        %5002 = vmatpush2.msra.mxu0 0.0
        %5003 = vmatprep.subr.mxu0 0.0
        %5004 = vmatpush2.msra.mxu0 0.0
        %5005 = vmatprep.subr.mxu0 0.0
        %5006 = vmatpush2.msra.mxu0 0.0
        %5007 = vmatprep.subr.mxu0 0.0
        %5008 = vmatpush2.msra.mxu0 0.0
        %5009 = vmatprep.subr.mxu0 0.0
        %5010 = vmatpush2.msra.mxu0 0.0
        %5011 = vmatprep.subr.mxu0 0.0
        %5012 = vmatpush2.msra.mxu0 0.0
        %5013 = vmatprep.subr.mxu0 0.0
        %5014 = vmatpush2.msra.mxu0 0.0
        %5015 = vmatprep.subr.mxu0 0.0
        %5016 = vmatpush2.msra.mxu0 0.0
        %5017 = vmatprep.subr.mxu0 0.0
        %5018 = vmatpush2.msra.mxu0 0.0
        %5019 = vmatprep.subr.mxu0 0.0
        %5020 = vmatpush2.msra.mxu0 0.0
        %5021 = vmatprep.subr.mxu0 0.0
        %5022 = vmatpush2.msra.mxu0 0.0
        %5023 = vmatprep.subr.mxu0 0.0
        %5024 = vmatpush2.msra.mxu0 0.0
        %5025 = vmatprep.subr.mxu0 0.0
        %5026 = vmatpush2.msra.mxu0 0.0
        %5027 = vmatprep.subr.mxu0 0.0
        %5028 = vmatpush2.msra.mxu0 0.0
        %5029 = vmatprep.subr.mxu0 0.0
        %5030 = vmatpush2.msra.mxu0 0.0
        %5031 = vmatprep.mubr.f32.mxu0 0.0
        %v5032 = vand.u32 %v4235, 4294901760
        %5033 = vmatmul.mubr.f32.gmra.mxu0 %v5032
        %v5034 = vpop.f32.mrf.mxu0
        %v5035 = vadd.f32 %v4860, %v5034
        %v5036 = vpop.f32.mrf.mxu0
        %5037 = vmatprep.mubr.f32.mxu0 0.0
        %v5038 = vand.u32 %v4236, 4294901760
        %5039 = vmatmul.mubr.f32.gmra.mxu0 %v5038
        %v5040 = vpop.f32.mrf.mxu0
        %v5041 = vadd.f32 %v4868, %v5040
        %v5042 = vpop.f32.mrf.mxu0
        %5043 = vmatprep.mubr.f32.mxu0 0.0
        %v5044 = vand.u32 %v4237, 4294901760
        %5045 = vmatmul.mubr.f32.gmra.mxu0 %v5044
        %v5046 = vpop.f32.mrf.mxu0
        %v5047 = vadd.f32 %v4876, %v5046
        %v5048 = vpop.f32.mrf.mxu0
        %5049 = vmatprep.mubr.f32.mxu0 0.0
        %v5050 = vand.u32 %v4238, 4294901760
        %5051 = vmatmul.mubr.f32.gmra.mxu0 %v5050
        %v5052 = vpop.f32.mrf.mxu0
        %v5053 = vadd.f32 %v4884, %v5052
        %v5054 = vpop.f32.mrf.mxu0
        %5055 = vmatprep.mubr.f32.mxu0 0.0
        %v5056 = vand.u32 %v4239, 4294901760
        %5057 = vmatmul.mubr.f32.gmra.mxu0 %v5056
        %v5058 = vpop.f32.mrf.mxu0
        %v5059 = vadd.f32 %v4892, %v5058
        %v5060 = vpop.f32.mrf.mxu0
        %5061 = vmatprep.mubr.f32.mxu0 0.0
        %v5062 = vand.u32 %v4240, 4294901760
        %5063 = vmatmul.mubr.f32.gmra.mxu0 %v5062
        %v5064 = vpop.f32.mrf.mxu0
        %v5065 = vadd.f32 %v4900, %v5064
        %v5066 = vpop.f32.mrf.mxu0
        %5067 = vmatprep.mubr.f32.mxu0 0.0
        %v5068 = vand.u32 %v4241, 4294901760
        %5069 = vmatmul.mubr.f32.gmra.mxu0 %v5068
        %v5070 = vpop.f32.mrf.mxu0
        %v5071 = vadd.f32 %v4908, %v5070
        %v5072 = vpop.f32.mrf.mxu0
        %5073 = vmatprep.mubr.f32.mxu0 0.0
        %v5074 = vand.u32 %v4242, 4294901760
        %5075 = vmatmul.mubr.f32.gmra.mxu0 %v5074
        %v5076 = vpop.f32.mrf.mxu0
        %v5077 = vadd.f32 %v4916, %v5076
        %v5078 = vpop.f32.mrf.mxu0
        %5079 = vdwg.mxu0
        %5080 = vmatprep.subr.mxu0 0.0
        %v5081 = vand.u32 %v4266, 4294901760
        %5082 = vmatpush1.msra.mxu0 %v5081
        %5083 = vmatprep.subr.mxu0 0.0
        %v5084 = vand.u32 %v4265, 4294901760
        %5085 = vmatpush1.msra.mxu0 %v5084
        %5086 = vmatprep.subr.mxu0 0.0
        %v5087 = vand.u32 %v4264, 4294901760
        %5088 = vmatpush1.msra.mxu0 %v5087
        %5089 = vmatprep.subr.mxu0 0.0
        %v5090 = vand.u32 %v4263, 4294901760
        %5091 = vmatpush1.msra.mxu0 %v5090
        %5092 = vmatprep.subr.mxu0 0.0
        %v5093 = vand.u32 %v4262, 4294901760
        %5094 = vmatpush1.msra.mxu0 %v5093
        %5095 = vmatprep.subr.mxu0 0.0
        %v5096 = vand.u32 %v4261, 4294901760
        %5097 = vmatpush1.msra.mxu0 %v5096
        %5098 = vmatprep.subr.mxu0 0.0
        %v5099 = vand.u32 %v4260, 4294901760
        %5100 = vmatpush1.msra.mxu0 %v5099
        %5101 = vmatprep.subr.mxu0 0.0
        %v5102 = vand.u32 %v4259, 4294901760
        %5103 = vmatpush1.msra.mxu0 %v5102
        %5104 = vmatprep.subr.mxu0 0.0
        %v5105 = vand.u32 %v4258, 4294901760
        %5106 = vmatpush1.msra.mxu0 %v5105
        %5107 = vmatprep.subr.mxu0 0.0
        %v5108 = vand.u32 %v4257, 4294901760
        %5109 = vmatpush1.msra.mxu0 %v5108
        %5110 = vmatprep.subr.mxu0 0.0
        %v5111 = vand.u32 %v4256, 4294901760
        %5112 = vmatpush1.msra.mxu0 %v5111
        %5113 = vmatprep.subr.mxu0 0.0
        %v5114 = vand.u32 %v4255, 4294901760
        %5115 = vmatpush1.msra.mxu0 %v5114
        %5116 = vmatprep.subr.mxu0 0.0
        %v5117 = vand.u32 %v4254, 4294901760
        %5118 = vmatpush1.msra.mxu0 %v5117
        %5119 = vmatprep.subr.mxu0 0.0
        %v5120 = vand.u32 %v4253, 4294901760
        %5121 = vmatpush1.msra.mxu0 %v5120
        %5122 = vmatprep.subr.mxu0 0.0
        %v5123 = vand.u32 %v4252, 4294901760
        %5124 = vmatpush1.msra.mxu0 %v5123
        %5125 = vmatprep.subr.mxu0 0.0
        %v5126 = vand.u32 %v4251, 4294901760
        %5127 = vmatpush1.msra.mxu0 %v5126
        %5128 = vmatprep.subr.mxu0 0.0
        %5129 = vmatpush2.msra.mxu0 0.0
        %5130 = vmatprep.subr.mxu0 0.0
        %5131 = vmatpush2.msra.mxu0 0.0
        %5132 = vmatprep.subr.mxu0 0.0
        %5133 = vmatpush2.msra.mxu0 0.0
        %5134 = vmatprep.subr.mxu0 0.0
        %5135 = vmatpush2.msra.mxu0 0.0
        %5136 = vmatprep.subr.mxu0 0.0
        %5137 = vmatpush2.msra.mxu0 0.0
        %5138 = vmatprep.subr.mxu0 0.0
        %5139 = vmatpush2.msra.mxu0 0.0
        %5140 = vmatprep.subr.mxu0 0.0
        %5141 = vmatpush2.msra.mxu0 0.0
        %5142 = vmatprep.subr.mxu0 0.0
        %5143 = vmatpush2.msra.mxu0 0.0
        %5144 = vmatprep.subr.mxu0 0.0
        %5145 = vmatpush2.msra.mxu0 0.0
        %5146 = vmatprep.subr.mxu0 0.0
        %5147 = vmatpush2.msra.mxu0 0.0
        %5148 = vmatprep.subr.mxu0 0.0
        %5149 = vmatpush2.msra.mxu0 0.0
        %5150 = vmatprep.subr.mxu0 0.0
        %5151 = vmatpush2.msra.mxu0 0.0
        %5152 = vmatprep.subr.mxu0 0.0
        %5153 = vmatpush2.msra.mxu0 0.0
        %5154 = vmatprep.subr.mxu0 0.0
        %5155 = vmatpush2.msra.mxu0 0.0
        %5156 = vmatprep.subr.mxu0 0.0
        %5157 = vmatpush2.msra.mxu0 0.0
        %5158 = vmatprep.subr.mxu0 0.0
        %5159 = vmatpush2.msra.mxu0 0.0
        %5160 = vmatprep.mubr.f32.mxu0 0.0
        %v5161 = vand.u32 %v4235, 4294901760
        %5162 = vmatmul.mubr.f32.gmra.mxu0 %v5161
        %v5163 = vpop.f32.mrf.mxu0
        %v5164 = vadd.f32 %v5035, %v5163
        %v5165 = vpop.f32.mrf.mxu0
        %5166 = vmatprep.mubr.f32.mxu0 0.0
        %v5167 = vand.u32 %v4236, 4294901760
        %5168 = vmatmul.mubr.f32.gmra.mxu0 %v5167
        %v5169 = vpop.f32.mrf.mxu0
        %v5170 = vadd.f32 %v5041, %v5169
        %v5171 = vpop.f32.mrf.mxu0
        %5172 = vmatprep.mubr.f32.mxu0 0.0
        %v5173 = vand.u32 %v4237, 4294901760
        %5174 = vmatmul.mubr.f32.gmra.mxu0 %v5173
        %v5175 = vpop.f32.mrf.mxu0
        %v5176 = vadd.f32 %v5047, %v5175
        %v5177 = vpop.f32.mrf.mxu0
        %5178 = vmatprep.mubr.f32.mxu0 0.0
        %v5179 = vand.u32 %v4238, 4294901760
        %5180 = vmatmul.mubr.f32.gmra.mxu0 %v5179
        %v5181 = vpop.f32.mrf.mxu0
        %v5182 = vadd.f32 %v5053, %v5181
        %v5183 = vpop.f32.mrf.mxu0
        %5184 = vmatprep.mubr.f32.mxu0 0.0
        %v5185 = vand.u32 %v4239, 4294901760
        %5186 = vmatmul.mubr.f32.gmra.mxu0 %v5185
        %v5187 = vpop.f32.mrf.mxu0
        %v5188 = vadd.f32 %v5059, %v5187
        %v5189 = vpop.f32.mrf.mxu0
        %5190 = vmatprep.mubr.f32.mxu0 0.0
        %v5191 = vand.u32 %v4240, 4294901760
        %5192 = vmatmul.mubr.f32.gmra.mxu0 %v5191
        %v5193 = vpop.f32.mrf.mxu0
        %v5194 = vadd.f32 %v5065, %v5193
        %v5195 = vpop.f32.mrf.mxu0
        %5196 = vmatprep.mubr.f32.mxu0 0.0
        %v5197 = vand.u32 %v4241, 4294901760
        %5198 = vmatmul.mubr.f32.gmra.mxu0 %v5197
        %v5199 = vpop.f32.mrf.mxu0
        %v5200 = vadd.f32 %v5071, %v5199
        %v5201 = vpop.f32.mrf.mxu0
        %5202 = vmatprep.mubr.f32.mxu0 0.0
        %v5203 = vand.u32 %v4242, 4294901760
        %5204 = vmatmul.mubr.f32.gmra.mxu0 %v5203
        %v5205 = vpop.f32.mrf.mxu0
        %v5206 = vadd.f32 %v5077, %v5205
        %v5207 = vpop.f32.mrf.mxu0
        %5208 = vdwg.mxu0
        %v5209 = vmax.f32 %v5164, -5.0
        %v5210 = vmax.f32 %v5170, -5.0
        %v5211 = vmax.f32 %v5176, -5.0
        %v5212 = vmax.f32 %v5182, -5.0
        %v5213 = vmax.f32 %v5188, -5.0
        %v5214 = vmax.f32 %v5194, -5.0
        %v5215 = vmax.f32 %v5200, -5.0
        %v5216 = vmax.f32 %v5206, -5.0
        %v5217 = vmin.f32 %v5209, 5.0
        %v5218 = vmin.f32 %v5210, 5.0
        %v5219 = vmin.f32 %v5211, 5.0
        %v5220 = vmin.f32 %v5212, 5.0
        %v5221 = vmin.f32 %v5213, 5.0
        %v5222 = vmin.f32 %v5214, 5.0
        %v5223 = vmin.f32 %v5215, 5.0
        %v5224 = vmin.f32 %v5216, 5.0
        %v5225 = vmul.f32 %v5217, 1.442695
        %v5226 = vpow.pop %v5225
        %v5227 = vmul.f32 %v5218, 1.442695
        %v5228 = vpow.pop %v5227
        %v5229 = vmul.f32 %v5219, 1.442695
        %v5230 = vpow.pop %v5229
        %v5231 = vmul.f32 %v5220, 1.442695
        %v5232 = vpow.pop %v5231
        %v5233 = vmul.f32 %v5221, 1.442695
        %v5234 = vpow.pop %v5233
        %v5235 = vmul.f32 %v5222, 1.442695
        %v5236 = vpow.pop %v5235
        %v5237 = vmul.f32 %v5223, 1.442695
        %v5238 = vpow.pop %v5237
        %v5239 = vmul.f32 %v5224, 1.442695
        %v5240 = vpow.pop %v5239
        %v5241 = vld [vmem:[%s9] sm:$0xff]
        %v5242 = vld [vmem:[%s9 + $0x8] sm:$0xff]
        %v5243 = vld [vmem:[%s9 + $0x10] sm:$0xff]
        %v5244 = vld [vmem:[%s9 + $0x18] sm:$0xff]
        %v5245 = vld [vmem:[%s9 + $0x20] sm:$0xff]
        %v5246 = vld [vmem:[%s9 + $0x28] sm:$0xff]
        %v5247 = vld [vmem:[%s9 + $0x30] sm:$0xff]
        %v5248 = vld [vmem:[%s9 + $0x38] sm:$0xff]
        %v5249 = vld [vmem:[%s9 + $0x40] sm:$0xff]
        %v5250 = vld [vmem:[%s9 + $0x48] sm:$0xff]
        %v5251 = vld [vmem:[%s9 + $0x50] sm:$0xff]
        %v5252 = vld [vmem:[%s9 + $0x58] sm:$0xff]
        %v5253 = vld [vmem:[%s9 + $0x60] sm:$0xff]
        %v5254 = vld [vmem:[%s9 + $0x68] sm:$0xff]
        %v5255 = vld [vmem:[%s9 + $0x70] sm:$0xff]
        %v5256 = vld [vmem:[%s9 + $0x78] sm:$0xff]
        %5257 = vmatprep.subr.mxu0 0.0
        %v5258 = vand.u32 %v5256, 4294901760
        %5259 = vmatpush1.msra.mxu0 %v5258
        %5260 = vmatprep.subr.mxu0 0.0
        %v5261 = vand.u32 %v5255, 4294901760
        %5262 = vmatpush1.msra.mxu0 %v5261
        %5263 = vmatprep.subr.mxu0 0.0
        %v5264 = vand.u32 %v5254, 4294901760
        %5265 = vmatpush1.msra.mxu0 %v5264
        %5266 = vmatprep.subr.mxu0 0.0
        %v5267 = vand.u32 %v5253, 4294901760
        %5268 = vmatpush1.msra.mxu0 %v5267
        %5269 = vmatprep.subr.mxu0 0.0
        %v5270 = vand.u32 %v5252, 4294901760
        %5271 = vmatpush1.msra.mxu0 %v5270
        %5272 = vmatprep.subr.mxu0 0.0
        %v5273 = vand.u32 %v5251, 4294901760
        %5274 = vmatpush1.msra.mxu0 %v5273
        %5275 = vmatprep.subr.mxu0 0.0
        %v5276 = vand.u32 %v5250, 4294901760
        %5277 = vmatpush1.msra.mxu0 %v5276
        %5278 = vmatprep.subr.mxu0 0.0
        %v5279 = vand.u32 %v5249, 4294901760
        %5280 = vmatpush1.msra.mxu0 %v5279
        %5281 = vmatprep.subr.mxu0 0.0
        %v5282 = vand.u32 %v5248, 4294901760
        %5283 = vmatpush1.msra.mxu0 %v5282
        %5284 = vmatprep.subr.mxu0 0.0
        %v5285 = vand.u32 %v5247, 4294901760
        %5286 = vmatpush1.msra.mxu0 %v5285
        %5287 = vmatprep.subr.mxu0 0.0
        %v5288 = vand.u32 %v5246, 4294901760
        %5289 = vmatpush1.msra.mxu0 %v5288
        %5290 = vmatprep.subr.mxu0 0.0
        %v5291 = vand.u32 %v5245, 4294901760
        %5292 = vmatpush1.msra.mxu0 %v5291
        %5293 = vmatprep.subr.mxu0 0.0
        %v5294 = vand.u32 %v5244, 4294901760
        %5295 = vmatpush1.msra.mxu0 %v5294
        %5296 = vmatprep.subr.mxu0 0.0
        %v5297 = vand.u32 %v5243, 4294901760
        %5298 = vmatpush1.msra.mxu0 %v5297
        %5299 = vmatprep.subr.mxu0 0.0
        %v5300 = vand.u32 %v5242, 4294901760
        %5301 = vmatpush1.msra.mxu0 %v5300
        %5302 = vmatprep.subr.mxu0 0.0
        %v5303 = vand.u32 %v5241, 4294901760
        %5304 = vmatpush1.msra.mxu0 %v5303
        %5305 = vmatprep.subr.mxu0 0.0
        %5306 = vmatpush2.msra.mxu0 0.0
        %5307 = vmatprep.subr.mxu0 0.0
        %5308 = vmatpush2.msra.mxu0 0.0
        %5309 = vmatprep.subr.mxu0 0.0
        %5310 = vmatpush2.msra.mxu0 0.0
        %5311 = vmatprep.subr.mxu0 0.0
        %5312 = vmatpush2.msra.mxu0 0.0
        %5313 = vmatprep.subr.mxu0 0.0
        %5314 = vmatpush2.msra.mxu0 0.0
        %5315 = vmatprep.subr.mxu0 0.0
        %5316 = vmatpush2.msra.mxu0 0.0
        %5317 = vmatprep.subr.mxu0 0.0
        %5318 = vmatpush2.msra.mxu0 0.0
        %5319 = vmatprep.subr.mxu0 0.0
        %5320 = vmatpush2.msra.mxu0 0.0
        %5321 = vmatprep.subr.mxu0 0.0
        %5322 = vmatpush2.msra.mxu0 0.0
        %5323 = vmatprep.subr.mxu0 0.0
        %5324 = vmatpush2.msra.mxu0 0.0
        %5325 = vmatprep.subr.mxu0 0.0
        %5326 = vmatpush2.msra.mxu0 0.0
        %5327 = vmatprep.subr.mxu0 0.0
        %5328 = vmatpush2.msra.mxu0 0.0
        %5329 = vmatprep.subr.mxu0 0.0
        %5330 = vmatpush2.msra.mxu0 0.0
        %5331 = vmatprep.subr.mxu0 0.0
        %5332 = vmatpush2.msra.mxu0 0.0
        %5333 = vmatprep.subr.mxu0 0.0
        %5334 = vmatpush2.msra.mxu0 0.0
        %5335 = vmatprep.subr.mxu0 0.0
        %5336 = vmatpush2.msra.mxu0 0.0
        %5337 = vmatprep.mubr.f32.mxu0 0.0
        %v5338 = vand.u32 %v5226, 4294901760
        %v5339 = vsub.f32 %v5226, %v5338
        %v5340 = vand.u32 %v5339, 4294901760
        %v5341 = vsub.f32 %v5339, %v5340
        %v5342 = vand.u32 %v5341, 4294901760
        %5343 = vmatmul.mubr.f32.gmra.mxu0 %v5342
        %v5344 = vpop.f32.mrf.mxu0
        %v5345 = vadd.f32 0.0, %v5344
        %v5346 = vpop.f32.mrf.mxu0
        %5347 = vmatprep.mubr.f32.mxu0 0.0
        %v5348 = vand.u32 %v5228, 4294901760
        %v5349 = vsub.f32 %v5228, %v5348
        %v5350 = vand.u32 %v5349, 4294901760
        %v5351 = vsub.f32 %v5349, %v5350
        %v5352 = vand.u32 %v5351, 4294901760
        %5353 = vmatmul.mubr.f32.gmra.mxu0 %v5352
        %v5354 = vpop.f32.mrf.mxu0
        %v5355 = vadd.f32 0.0, %v5354
        %v5356 = vpop.f32.mrf.mxu0
        %5357 = vmatprep.mubr.f32.mxu0 0.0
        %v5358 = vand.u32 %v5230, 4294901760
        %v5359 = vsub.f32 %v5230, %v5358
        %v5360 = vand.u32 %v5359, 4294901760
        %v5361 = vsub.f32 %v5359, %v5360
        %v5362 = vand.u32 %v5361, 4294901760
        %5363 = vmatmul.mubr.f32.gmra.mxu0 %v5362
        %v5364 = vpop.f32.mrf.mxu0
        %v5365 = vadd.f32 0.0, %v5364
        %v5366 = vpop.f32.mrf.mxu0
        %5367 = vmatprep.mubr.f32.mxu0 0.0
        %v5368 = vand.u32 %v5232, 4294901760
        %v5369 = vsub.f32 %v5232, %v5368
        %v5370 = vand.u32 %v5369, 4294901760
        %v5371 = vsub.f32 %v5369, %v5370
        %v5372 = vand.u32 %v5371, 4294901760
        %5373 = vmatmul.mubr.f32.gmra.mxu0 %v5372
        %v5374 = vpop.f32.mrf.mxu0
        %v5375 = vadd.f32 0.0, %v5374
        %v5376 = vpop.f32.mrf.mxu0
        %5377 = vmatprep.mubr.f32.mxu0 0.0
        %v5378 = vand.u32 %v5234, 4294901760
        %v5379 = vsub.f32 %v5234, %v5378
        %v5380 = vand.u32 %v5379, 4294901760
        %v5381 = vsub.f32 %v5379, %v5380
        %v5382 = vand.u32 %v5381, 4294901760
        %5383 = vmatmul.mubr.f32.gmra.mxu0 %v5382
        %v5384 = vpop.f32.mrf.mxu0
        %v5385 = vadd.f32 0.0, %v5384
        %v5386 = vpop.f32.mrf.mxu0
        %5387 = vmatprep.mubr.f32.mxu0 0.0
        %v5388 = vand.u32 %v5236, 4294901760
        %v5389 = vsub.f32 %v5236, %v5388
        %v5390 = vand.u32 %v5389, 4294901760
        %v5391 = vsub.f32 %v5389, %v5390
        %v5392 = vand.u32 %v5391, 4294901760
        %5393 = vmatmul.mubr.f32.gmra.mxu0 %v5392
        %v5394 = vpop.f32.mrf.mxu0
        %v5395 = vadd.f32 0.0, %v5394
        %v5396 = vpop.f32.mrf.mxu0
        %5397 = vmatprep.mubr.f32.mxu0 0.0
        %v5398 = vand.u32 %v5238, 4294901760
        %v5399 = vsub.f32 %v5238, %v5398
        %v5400 = vand.u32 %v5399, 4294901760
        %v5401 = vsub.f32 %v5399, %v5400
        %v5402 = vand.u32 %v5401, 4294901760
        %5403 = vmatmul.mubr.f32.gmra.mxu0 %v5402
        %v5404 = vpop.f32.mrf.mxu0
        %v5405 = vadd.f32 0.0, %v5404
        %v5406 = vpop.f32.mrf.mxu0
        %5407 = vmatprep.mubr.f32.mxu0 0.0
        %v5408 = vand.u32 %v5240, 4294901760
        %v5409 = vsub.f32 %v5240, %v5408
        %v5410 = vand.u32 %v5409, 4294901760
        %v5411 = vsub.f32 %v5409, %v5410
        %v5412 = vand.u32 %v5411, 4294901760
        %5413 = vmatmul.mubr.f32.gmra.mxu0 %v5412
        %v5414 = vpop.f32.mrf.mxu0
        %v5415 = vadd.f32 0.0, %v5414
        %v5416 = vpop.f32.mrf.mxu0
        %5417 = vdwg.mxu0
        %5418 = vmatprep.subr.mxu0 0.0
        %v5419 = vand.u32 %v5256, 4294901760
        %v5420 = vsub.f32 %v5256, %v5419
        %v5421 = vand.u32 %v5420, 4294901760
        %v5422 = vsub.f32 %v5420, %v5421
        %v5423 = vand.u32 %v5422, 4294901760
        %5424 = vmatpush1.msra.mxu0 %v5423
        %5425 = vmatprep.subr.mxu0 0.0
        %v5426 = vand.u32 %v5255, 4294901760
        %v5427 = vsub.f32 %v5255, %v5426
        %v5428 = vand.u32 %v5427, 4294901760
        %v5429 = vsub.f32 %v5427, %v5428
        %v5430 = vand.u32 %v5429, 4294901760
        %5431 = vmatpush1.msra.mxu0 %v5430
        %5432 = vmatprep.subr.mxu0 0.0
        %v5433 = vand.u32 %v5254, 4294901760
        %v5434 = vsub.f32 %v5254, %v5433
        %v5435 = vand.u32 %v5434, 4294901760
        %v5436 = vsub.f32 %v5434, %v5435
        %v5437 = vand.u32 %v5436, 4294901760
        %5438 = vmatpush1.msra.mxu0 %v5437
        %5439 = vmatprep.subr.mxu0 0.0
        %v5440 = vand.u32 %v5253, 4294901760
        %v5441 = vsub.f32 %v5253, %v5440
        %v5442 = vand.u32 %v5441, 4294901760
        %v5443 = vsub.f32 %v5441, %v5442
        %v5444 = vand.u32 %v5443, 4294901760
        %5445 = vmatpush1.msra.mxu0 %v5444
        %5446 = vmatprep.subr.mxu0 0.0
        %v5447 = vand.u32 %v5252, 4294901760
        %v5448 = vsub.f32 %v5252, %v5447
        %v5449 = vand.u32 %v5448, 4294901760
        %v5450 = vsub.f32 %v5448, %v5449
        %v5451 = vand.u32 %v5450, 4294901760
        %5452 = vmatpush1.msra.mxu0 %v5451
        %5453 = vmatprep.subr.mxu0 0.0
        %v5454 = vand.u32 %v5251, 4294901760
        %v5455 = vsub.f32 %v5251, %v5454
        %v5456 = vand.u32 %v5455, 4294901760
        %v5457 = vsub.f32 %v5455, %v5456
        %v5458 = vand.u32 %v5457, 4294901760
        %5459 = vmatpush1.msra.mxu0 %v5458
        %5460 = vmatprep.subr.mxu0 0.0
        %v5461 = vand.u32 %v5250, 4294901760
        %v5462 = vsub.f32 %v5250, %v5461
        %v5463 = vand.u32 %v5462, 4294901760
        %v5464 = vsub.f32 %v5462, %v5463
        %v5465 = vand.u32 %v5464, 4294901760
        %5466 = vmatpush1.msra.mxu0 %v5465
        %5467 = vmatprep.subr.mxu0 0.0
        %v5468 = vand.u32 %v5249, 4294901760
        %v5469 = vsub.f32 %v5249, %v5468
        %v5470 = vand.u32 %v5469, 4294901760
        %v5471 = vsub.f32 %v5469, %v5470
        %v5472 = vand.u32 %v5471, 4294901760
        %5473 = vmatpush1.msra.mxu0 %v5472
        %5474 = vmatprep.subr.mxu0 0.0
        %v5475 = vand.u32 %v5248, 4294901760
        %v5476 = vsub.f32 %v5248, %v5475
        %v5477 = vand.u32 %v5476, 4294901760
        %v5478 = vsub.f32 %v5476, %v5477
        %v5479 = vand.u32 %v5478, 4294901760
        %5480 = vmatpush1.msra.mxu0 %v5479
        %5481 = vmatprep.subr.mxu0 0.0
        %v5482 = vand.u32 %v5247, 4294901760
        %v5483 = vsub.f32 %v5247, %v5482
        %v5484 = vand.u32 %v5483, 4294901760
        %v5485 = vsub.f32 %v5483, %v5484
        %v5486 = vand.u32 %v5485, 4294901760
        %5487 = vmatpush1.msra.mxu0 %v5486
        %5488 = vmatprep.subr.mxu0 0.0
        %v5489 = vand.u32 %v5246, 4294901760
        %v5490 = vsub.f32 %v5246, %v5489
        %v5491 = vand.u32 %v5490, 4294901760
        %v5492 = vsub.f32 %v5490, %v5491
        %v5493 = vand.u32 %v5492, 4294901760
        %5494 = vmatpush1.msra.mxu0 %v5493
        %5495 = vmatprep.subr.mxu0 0.0
        %v5496 = vand.u32 %v5245, 4294901760
        %v5497 = vsub.f32 %v5245, %v5496
        %v5498 = vand.u32 %v5497, 4294901760
        %v5499 = vsub.f32 %v5497, %v5498
        %v5500 = vand.u32 %v5499, 4294901760
        %5501 = vmatpush1.msra.mxu0 %v5500
        %5502 = vmatprep.subr.mxu0 0.0
        %v5503 = vand.u32 %v5244, 4294901760
        %v5504 = vsub.f32 %v5244, %v5503
        %v5505 = vand.u32 %v5504, 4294901760
        %v5506 = vsub.f32 %v5504, %v5505
        %v5507 = vand.u32 %v5506, 4294901760
        %5508 = vmatpush1.msra.mxu0 %v5507
        %5509 = vmatprep.subr.mxu0 0.0
        %v5510 = vand.u32 %v5243, 4294901760
        %v5511 = vsub.f32 %v5243, %v5510
        %v5512 = vand.u32 %v5511, 4294901760
        %v5513 = vsub.f32 %v5511, %v5512
        %v5514 = vand.u32 %v5513, 4294901760
        %5515 = vmatpush1.msra.mxu0 %v5514
        %5516 = vmatprep.subr.mxu0 0.0
        %v5517 = vand.u32 %v5242, 4294901760
        %v5518 = vsub.f32 %v5242, %v5517
        %v5519 = vand.u32 %v5518, 4294901760
        %v5520 = vsub.f32 %v5518, %v5519
        %v5521 = vand.u32 %v5520, 4294901760
        %5522 = vmatpush1.msra.mxu0 %v5521
        %5523 = vmatprep.subr.mxu0 0.0
        %v5524 = vand.u32 %v5241, 4294901760
        %v5525 = vsub.f32 %v5241, %v5524
        %v5526 = vand.u32 %v5525, 4294901760
        %v5527 = vsub.f32 %v5525, %v5526
        %v5528 = vand.u32 %v5527, 4294901760
        %5529 = vmatpush1.msra.mxu0 %v5528
        %5530 = vmatprep.subr.mxu0 0.0
        %5531 = vmatpush2.msra.mxu0 0.0
        %5532 = vmatprep.subr.mxu0 0.0
        %5533 = vmatpush2.msra.mxu0 0.0
        %5534 = vmatprep.subr.mxu0 0.0
        %5535 = vmatpush2.msra.mxu0 0.0
        %5536 = vmatprep.subr.mxu0 0.0
        %5537 = vmatpush2.msra.mxu0 0.0
        %5538 = vmatprep.subr.mxu0 0.0
        %5539 = vmatpush2.msra.mxu0 0.0
        %5540 = vmatprep.subr.mxu0 0.0
        %5541 = vmatpush2.msra.mxu0 0.0
        %5542 = vmatprep.subr.mxu0 0.0
        %5543 = vmatpush2.msra.mxu0 0.0
        %5544 = vmatprep.subr.mxu0 0.0
        %5545 = vmatpush2.msra.mxu0 0.0
        %5546 = vmatprep.subr.mxu0 0.0
        %5547 = vmatpush2.msra.mxu0 0.0
        %5548 = vmatprep.subr.mxu0 0.0
        %5549 = vmatpush2.msra.mxu0 0.0
        %5550 = vmatprep.subr.mxu0 0.0
        %5551 = vmatpush2.msra.mxu0 0.0
        %5552 = vmatprep.subr.mxu0 0.0
        %5553 = vmatpush2.msra.mxu0 0.0
        %5554 = vmatprep.subr.mxu0 0.0
        %5555 = vmatpush2.msra.mxu0 0.0
        %5556 = vmatprep.subr.mxu0 0.0
        %5557 = vmatpush2.msra.mxu0 0.0
        %5558 = vmatprep.subr.mxu0 0.0
        %5559 = vmatpush2.msra.mxu0 0.0
        %5560 = vmatprep.subr.mxu0 0.0
        %5561 = vmatpush2.msra.mxu0 0.0
        %5562 = vmatprep.mubr.f32.mxu0 0.0
        %v5563 = vand.u32 %v5226, 4294901760
        %5564 = vmatmul.mubr.f32.gmra.mxu0 %v5563
        %v5565 = vpop.f32.mrf.mxu0
        %v5566 = vadd.f32 %v5345, %v5565
        %v5567 = vpop.f32.mrf.mxu0
        %5568 = vmatprep.mubr.f32.mxu0 0.0
        %v5569 = vand.u32 %v5228, 4294901760
        %5570 = vmatmul.mubr.f32.gmra.mxu0 %v5569
        %v5571 = vpop.f32.mrf.mxu0
        %v5572 = vadd.f32 %v5355, %v5571
        %v5573 = vpop.f32.mrf.mxu0
        %5574 = vmatprep.mubr.f32.mxu0 0.0
        %v5575 = vand.u32 %v5230, 4294901760
        %5576 = vmatmul.mubr.f32.gmra.mxu0 %v5575
        %v5577 = vpop.f32.mrf.mxu0
        %v5578 = vadd.f32 %v5365, %v5577
        %v5579 = vpop.f32.mrf.mxu0
        %5580 = vmatprep.mubr.f32.mxu0 0.0
        %v5581 = vand.u32 %v5232, 4294901760
        %5582 = vmatmul.mubr.f32.gmra.mxu0 %v5581
        %v5583 = vpop.f32.mrf.mxu0
        %v5584 = vadd.f32 %v5375, %v5583
        %v5585 = vpop.f32.mrf.mxu0
        %5586 = vmatprep.mubr.f32.mxu0 0.0
        %v5587 = vand.u32 %v5234, 4294901760
        %5588 = vmatmul.mubr.f32.gmra.mxu0 %v5587
        %v5589 = vpop.f32.mrf.mxu0
        %v5590 = vadd.f32 %v5385, %v5589
        %v5591 = vpop.f32.mrf.mxu0
        %5592 = vmatprep.mubr.f32.mxu0 0.0
        %v5593 = vand.u32 %v5236, 4294901760
        %5594 = vmatmul.mubr.f32.gmra.mxu0 %v5593
        %v5595 = vpop.f32.mrf.mxu0
        %v5596 = vadd.f32 %v5395, %v5595
        %v5597 = vpop.f32.mrf.mxu0
        %5598 = vmatprep.mubr.f32.mxu0 0.0
        %v5599 = vand.u32 %v5238, 4294901760
        %5600 = vmatmul.mubr.f32.gmra.mxu0 %v5599
        %v5601 = vpop.f32.mrf.mxu0
        %v5602 = vadd.f32 %v5405, %v5601
        %v5603 = vpop.f32.mrf.mxu0
        %5604 = vmatprep.mubr.f32.mxu0 0.0
        %v5605 = vand.u32 %v5240, 4294901760
        %5606 = vmatmul.mubr.f32.gmra.mxu0 %v5605
        %v5607 = vpop.f32.mrf.mxu0
        %v5608 = vadd.f32 %v5415, %v5607
        %v5609 = vpop.f32.mrf.mxu0
        %5610 = vdwg.mxu0
        %5611 = vmatprep.subr.mxu0 0.0
        %v5612 = vand.u32 %v5256, 4294901760
        %v5613 = vsub.f32 %v5256, %v5612
        %5614 = vmatpush1.msra.mxu0 %v5613
        %5615 = vmatprep.subr.mxu0 0.0
        %v5616 = vand.u32 %v5255, 4294901760
        %v5617 = vsub.f32 %v5255, %v5616
        %5618 = vmatpush1.msra.mxu0 %v5617
        %5619 = vmatprep.subr.mxu0 0.0
        %v5620 = vand.u32 %v5254, 4294901760
        %v5621 = vsub.f32 %v5254, %v5620
        %5622 = vmatpush1.msra.mxu0 %v5621
        %5623 = vmatprep.subr.mxu0 0.0
        %v5624 = vand.u32 %v5253, 4294901760
        %v5625 = vsub.f32 %v5253, %v5624
        %5626 = vmatpush1.msra.mxu0 %v5625
        %5627 = vmatprep.subr.mxu0 0.0
        %v5628 = vand.u32 %v5252, 4294901760
        %v5629 = vsub.f32 %v5252, %v5628
        %5630 = vmatpush1.msra.mxu0 %v5629
        %5631 = vmatprep.subr.mxu0 0.0
        %v5632 = vand.u32 %v5251, 4294901760
        %v5633 = vsub.f32 %v5251, %v5632
        %5634 = vmatpush1.msra.mxu0 %v5633
        %5635 = vmatprep.subr.mxu0 0.0
        %v5636 = vand.u32 %v5250, 4294901760
        %v5637 = vsub.f32 %v5250, %v5636
        %5638 = vmatpush1.msra.mxu0 %v5637
        %5639 = vmatprep.subr.mxu0 0.0
        %v5640 = vand.u32 %v5249, 4294901760
        %v5641 = vsub.f32 %v5249, %v5640
        %5642 = vmatpush1.msra.mxu0 %v5641
        %5643 = vmatprep.subr.mxu0 0.0
        %v5644 = vand.u32 %v5248, 4294901760
        %v5645 = vsub.f32 %v5248, %v5644
        %5646 = vmatpush1.msra.mxu0 %v5645
        %5647 = vmatprep.subr.mxu0 0.0
        %v5648 = vand.u32 %v5247, 4294901760
        %v5649 = vsub.f32 %v5247, %v5648
        %5650 = vmatpush1.msra.mxu0 %v5649
        %5651 = vmatprep.subr.mxu0 0.0
        %v5652 = vand.u32 %v5246, 4294901760
        %v5653 = vsub.f32 %v5246, %v5652
        %5654 = vmatpush1.msra.mxu0 %v5653
        %5655 = vmatprep.subr.mxu0 0.0
        %v5656 = vand.u32 %v5245, 4294901760
        %v5657 = vsub.f32 %v5245, %v5656
        %5658 = vmatpush1.msra.mxu0 %v5657
        %5659 = vmatprep.subr.mxu0 0.0
        %v5660 = vand.u32 %v5244, 4294901760
        %v5661 = vsub.f32 %v5244, %v5660
        %5662 = vmatpush1.msra.mxu0 %v5661
        %5663 = vmatprep.subr.mxu0 0.0
        %v5664 = vand.u32 %v5243, 4294901760
        %v5665 = vsub.f32 %v5243, %v5664
        %5666 = vmatpush1.msra.mxu0 %v5665
        %5667 = vmatprep.subr.mxu0 0.0
        %v5668 = vand.u32 %v5242, 4294901760
        %v5669 = vsub.f32 %v5242, %v5668
        %5670 = vmatpush1.msra.mxu0 %v5669
        %5671 = vmatprep.subr.mxu0 0.0
        %v5672 = vand.u32 %v5241, 4294901760
        %v5673 = vsub.f32 %v5241, %v5672
        %5674 = vmatpush1.msra.mxu0 %v5673
        %5675 = vmatprep.subr.mxu0 0.0
        %5676 = vmatpush2.msra.mxu0 0.0
        %5677 = vmatprep.subr.mxu0 0.0
        %5678 = vmatpush2.msra.mxu0 0.0
        %5679 = vmatprep.subr.mxu0 0.0
        %5680 = vmatpush2.msra.mxu0 0.0
        %5681 = vmatprep.subr.mxu0 0.0
        %5682 = vmatpush2.msra.mxu0 0.0
        %5683 = vmatprep.subr.mxu0 0.0
        %5684 = vmatpush2.msra.mxu0 0.0
        %5685 = vmatprep.subr.mxu0 0.0
        %5686 = vmatpush2.msra.mxu0 0.0
        %5687 = vmatprep.subr.mxu0 0.0
        %5688 = vmatpush2.msra.mxu0 0.0
        %5689 = vmatprep.subr.mxu0 0.0
        %5690 = vmatpush2.msra.mxu0 0.0
        %5691 = vmatprep.subr.mxu0 0.0
        %5692 = vmatpush2.msra.mxu0 0.0
        %5693 = vmatprep.subr.mxu0 0.0
        %5694 = vmatpush2.msra.mxu0 0.0
        %5695 = vmatprep.subr.mxu0 0.0
        %5696 = vmatpush2.msra.mxu0 0.0
        %5697 = vmatprep.subr.mxu0 0.0
        %5698 = vmatpush2.msra.mxu0 0.0
        %5699 = vmatprep.subr.mxu0 0.0
        %5700 = vmatpush2.msra.mxu0 0.0
        %5701 = vmatprep.subr.mxu0 0.0
        %5702 = vmatpush2.msra.mxu0 0.0
        %5703 = vmatprep.subr.mxu0 0.0
        %5704 = vmatpush2.msra.mxu0 0.0
        %5705 = vmatprep.subr.mxu0 0.0
        %5706 = vmatpush2.msra.mxu0 0.0
        %5707 = vmatprep.mubr.f32.mxu0 0.0
        %v5708 = vand.u32 %v5226, 4294901760
        %v5709 = vsub.f32 %v5226, %v5708
        %5710 = vmatmul.mubr.f32.gmra.mxu0 %v5709
        %v5711 = vpop.f32.mrf.mxu0
        %v5712 = vadd.f32 %v5566, %v5711
        %v5713 = vpop.f32.mrf.mxu0
        %5714 = vmatprep.mubr.f32.mxu0 0.0
        %v5715 = vand.u32 %v5228, 4294901760
        %v5716 = vsub.f32 %v5228, %v5715
        %5717 = vmatmul.mubr.f32.gmra.mxu0 %v5716
        %v5718 = vpop.f32.mrf.mxu0
        %v5719 = vadd.f32 %v5572, %v5718
        %v5720 = vpop.f32.mrf.mxu0
        %5721 = vmatprep.mubr.f32.mxu0 0.0
        %v5722 = vand.u32 %v5230, 4294901760
        %v5723 = vsub.f32 %v5230, %v5722
        %5724 = vmatmul.mubr.f32.gmra.mxu0 %v5723
        %v5725 = vpop.f32.mrf.mxu0
        %v5726 = vadd.f32 %v5578, %v5725
        %v5727 = vpop.f32.mrf.mxu0
        %5728 = vmatprep.mubr.f32.mxu0 0.0
        %v5729 = vand.u32 %v5232, 4294901760
        %v5730 = vsub.f32 %v5232, %v5729
        %5731 = vmatmul.mubr.f32.gmra.mxu0 %v5730
        %v5732 = vpop.f32.mrf.mxu0
        %v5733 = vadd.f32 %v5584, %v5732
        %v5734 = vpop.f32.mrf.mxu0
        %5735 = vmatprep.mubr.f32.mxu0 0.0
        %v5736 = vand.u32 %v5234, 4294901760
        %v5737 = vsub.f32 %v5234, %v5736
        %5738 = vmatmul.mubr.f32.gmra.mxu0 %v5737
        %v5739 = vpop.f32.mrf.mxu0
        %v5740 = vadd.f32 %v5590, %v5739
        %v5741 = vpop.f32.mrf.mxu0
        %5742 = vmatprep.mubr.f32.mxu0 0.0
        %v5743 = vand.u32 %v5236, 4294901760
        %v5744 = vsub.f32 %v5236, %v5743
        %5745 = vmatmul.mubr.f32.gmra.mxu0 %v5744
        %v5746 = vpop.f32.mrf.mxu0
        %v5747 = vadd.f32 %v5596, %v5746
        %v5748 = vpop.f32.mrf.mxu0
        %5749 = vmatprep.mubr.f32.mxu0 0.0
        %v5750 = vand.u32 %v5238, 4294901760
        %v5751 = vsub.f32 %v5238, %v5750
        %5752 = vmatmul.mubr.f32.gmra.mxu0 %v5751
        %v5753 = vpop.f32.mrf.mxu0
        %v5754 = vadd.f32 %v5602, %v5753
        %v5755 = vpop.f32.mrf.mxu0
        %5756 = vmatprep.mubr.f32.mxu0 0.0
        %v5757 = vand.u32 %v5240, 4294901760
        %v5758 = vsub.f32 %v5240, %v5757
        %5759 = vmatmul.mubr.f32.gmra.mxu0 %v5758
        %v5760 = vpop.f32.mrf.mxu0
        %v5761 = vadd.f32 %v5608, %v5760
        %v5762 = vpop.f32.mrf.mxu0
        %5763 = vdwg.mxu0
        %5764 = vmatprep.subr.mxu0 0.0
        %v5765 = vand.u32 %v5256, 4294901760
        %5766 = vmatpush1.msra.mxu0 %v5765
        %5767 = vmatprep.subr.mxu0 0.0
        %v5768 = vand.u32 %v5255, 4294901760
        %5769 = vmatpush1.msra.mxu0 %v5768
        %5770 = vmatprep.subr.mxu0 0.0
        %v5771 = vand.u32 %v5254, 4294901760
        %5772 = vmatpush1.msra.mxu0 %v5771
        %5773 = vmatprep.subr.mxu0 0.0
        %v5774 = vand.u32 %v5253, 4294901760
        %5775 = vmatpush1.msra.mxu0 %v5774
        %5776 = vmatprep.subr.mxu0 0.0
        %v5777 = vand.u32 %v5252, 4294901760
        %5778 = vmatpush1.msra.mxu0 %v5777
        %5779 = vmatprep.subr.mxu0 0.0
        %v5780 = vand.u32 %v5251, 4294901760
        %5781 = vmatpush1.msra.mxu0 %v5780
        %5782 = vmatprep.subr.mxu0 0.0
        %v5783 = vand.u32 %v5250, 4294901760
        %5784 = vmatpush1.msra.mxu0 %v5783
        %5785 = vmatprep.subr.mxu0 0.0
        %v5786 = vand.u32 %v5249, 4294901760
        %5787 = vmatpush1.msra.mxu0 %v5786
        %5788 = vmatprep.subr.mxu0 0.0
        %v5789 = vand.u32 %v5248, 4294901760
        %5790 = vmatpush1.msra.mxu0 %v5789
        %5791 = vmatprep.subr.mxu0 0.0
        %v5792 = vand.u32 %v5247, 4294901760
        %5793 = vmatpush1.msra.mxu0 %v5792
        %5794 = vmatprep.subr.mxu0 0.0
        %v5795 = vand.u32 %v5246, 4294901760
        %5796 = vmatpush1.msra.mxu0 %v5795
        %5797 = vmatprep.subr.mxu0 0.0
        %v5798 = vand.u32 %v5245, 4294901760
        %5799 = vmatpush1.msra.mxu0 %v5798
        %5800 = vmatprep.subr.mxu0 0.0
        %v5801 = vand.u32 %v5244, 4294901760
        %5802 = vmatpush1.msra.mxu0 %v5801
        %5803 = vmatprep.subr.mxu0 0.0
        %v5804 = vand.u32 %v5243, 4294901760
        %5805 = vmatpush1.msra.mxu0 %v5804
        %5806 = vmatprep.subr.mxu0 0.0
        %v5807 = vand.u32 %v5242, 4294901760
        %5808 = vmatpush1.msra.mxu0 %v5807
        %5809 = vmatprep.subr.mxu0 0.0
        %v5810 = vand.u32 %v5241, 4294901760
        %5811 = vmatpush1.msra.mxu0 %v5810
        %5812 = vmatprep.subr.mxu0 0.0
        %5813 = vmatpush2.msra.mxu0 0.0
        %5814 = vmatprep.subr.mxu0 0.0
        %5815 = vmatpush2.msra.mxu0 0.0
        %5816 = vmatprep.subr.mxu0 0.0
        %5817 = vmatpush2.msra.mxu0 0.0
        %5818 = vmatprep.subr.mxu0 0.0
        %5819 = vmatpush2.msra.mxu0 0.0
        %5820 = vmatprep.subr.mxu0 0.0
        %5821 = vmatpush2.msra.mxu0 0.0
        %5822 = vmatprep.subr.mxu0 0.0
        %5823 = vmatpush2.msra.mxu0 0.0
        %5824 = vmatprep.subr.mxu0 0.0
        %5825 = vmatpush2.msra.mxu0 0.0
        %5826 = vmatprep.subr.mxu0 0.0
        %5827 = vmatpush2.msra.mxu0 0.0
        %5828 = vmatprep.subr.mxu0 0.0
        %5829 = vmatpush2.msra.mxu0 0.0
        %5830 = vmatprep.subr.mxu0 0.0
        %5831 = vmatpush2.msra.mxu0 0.0
        %5832 = vmatprep.subr.mxu0 0.0
        %5833 = vmatpush2.msra.mxu0 0.0
        %5834 = vmatprep.subr.mxu0 0.0
        %5835 = vmatpush2.msra.mxu0 0.0
        %5836 = vmatprep.subr.mxu0 0.0
        %5837 = vmatpush2.msra.mxu0 0.0
        %5838 = vmatprep.subr.mxu0 0.0
        %5839 = vmatpush2.msra.mxu0 0.0
        %5840 = vmatprep.subr.mxu0 0.0
        %5841 = vmatpush2.msra.mxu0 0.0
        %5842 = vmatprep.subr.mxu0 0.0
        %5843 = vmatpush2.msra.mxu0 0.0
        %5844 = vmatprep.mubr.f32.mxu0 0.0
        %v5845 = vand.u32 %v5226, 4294901760
        %v5846 = vsub.f32 %v5226, %v5845
        %v5847 = vand.u32 %v5846, 4294901760
        %5848 = vmatmul.mubr.f32.gmra.mxu0 %v5847
        %v5849 = vpop.f32.mrf.mxu0
        %v5850 = vadd.f32 %v5712, %v5849
        %v5851 = vpop.f32.mrf.mxu0
        %5852 = vmatprep.mubr.f32.mxu0 0.0
        %v5853 = vand.u32 %v5228, 4294901760
        %v5854 = vsub.f32 %v5228, %v5853
        %v5855 = vand.u32 %v5854, 4294901760
        %5856 = vmatmul.mubr.f32.gmra.mxu0 %v5855
        %v5857 = vpop.f32.mrf.mxu0
        %v5858 = vadd.f32 %v5719, %v5857
        %v5859 = vpop.f32.mrf.mxu0
        %5860 = vmatprep.mubr.f32.mxu0 0.0
        %v5861 = vand.u32 %v5230, 4294901760
        %v5862 = vsub.f32 %v5230, %v5861
        %v5863 = vand.u32 %v5862, 4294901760
        %5864 = vmatmul.mubr.f32.gmra.mxu0 %v5863
        %v5865 = vpop.f32.mrf.mxu0
        %v5866 = vadd.f32 %v5726, %v5865
        %v5867 = vpop.f32.mrf.mxu0
        %5868 = vmatprep.mubr.f32.mxu0 0.0
        %v5869 = vand.u32 %v5232, 4294901760
        %v5870 = vsub.f32 %v5232, %v5869
        %v5871 = vand.u32 %v5870, 4294901760
        %5872 = vmatmul.mubr.f32.gmra.mxu0 %v5871
        %v5873 = vpop.f32.mrf.mxu0
        %v5874 = vadd.f32 %v5733, %v5873
        %v5875 = vpop.f32.mrf.mxu0
        %5876 = vmatprep.mubr.f32.mxu0 0.0
        %v5877 = vand.u32 %v5234, 4294901760
        %v5878 = vsub.f32 %v5234, %v5877
        %v5879 = vand.u32 %v5878, 4294901760
        %5880 = vmatmul.mubr.f32.gmra.mxu0 %v5879
        %v5881 = vpop.f32.mrf.mxu0
        %v5882 = vadd.f32 %v5740, %v5881
        %v5883 = vpop.f32.mrf.mxu0
        %5884 = vmatprep.mubr.f32.mxu0 0.0
        %v5885 = vand.u32 %v5236, 4294901760
        %v5886 = vsub.f32 %v5236, %v5885
        %v5887 = vand.u32 %v5886, 4294901760
        %5888 = vmatmul.mubr.f32.gmra.mxu0 %v5887
        %v5889 = vpop.f32.mrf.mxu0
        %v5890 = vadd.f32 %v5747, %v5889
        %v5891 = vpop.f32.mrf.mxu0
        %5892 = vmatprep.mubr.f32.mxu0 0.0
        %v5893 = vand.u32 %v5238, 4294901760
        %v5894 = vsub.f32 %v5238, %v5893
        %v5895 = vand.u32 %v5894, 4294901760
        %5896 = vmatmul.mubr.f32.gmra.mxu0 %v5895
        %v5897 = vpop.f32.mrf.mxu0
        %v5898 = vadd.f32 %v5754, %v5897
        %v5899 = vpop.f32.mrf.mxu0
        %5900 = vmatprep.mubr.f32.mxu0 0.0
        %v5901 = vand.u32 %v5240, 4294901760
        %v5902 = vsub.f32 %v5240, %v5901
        %v5903 = vand.u32 %v5902, 4294901760
        %5904 = vmatmul.mubr.f32.gmra.mxu0 %v5903
        %v5905 = vpop.f32.mrf.mxu0
        %v5906 = vadd.f32 %v5761, %v5905
        %v5907 = vpop.f32.mrf.mxu0
        %5908 = vdwg.mxu0
        %5909 = vmatprep.subr.mxu0 0.0
        %v5910 = vand.u32 %v5256, 4294901760
        %v5911 = vsub.f32 %v5256, %v5910
        %v5912 = vand.u32 %v5911, 4294901760
        %5913 = vmatpush1.msra.mxu0 %v5912
        %5914 = vmatprep.subr.mxu0 0.0
        %v5915 = vand.u32 %v5255, 4294901760
        %v5916 = vsub.f32 %v5255, %v5915
        %v5917 = vand.u32 %v5916, 4294901760
        %5918 = vmatpush1.msra.mxu0 %v5917
        %5919 = vmatprep.subr.mxu0 0.0
        %v5920 = vand.u32 %v5254, 4294901760
        %v5921 = vsub.f32 %v5254, %v5920
        %v5922 = vand.u32 %v5921, 4294901760
        %5923 = vmatpush1.msra.mxu0 %v5922
        %5924 = vmatprep.subr.mxu0 0.0
        %v5925 = vand.u32 %v5253, 4294901760
        %v5926 = vsub.f32 %v5253, %v5925
        %v5927 = vand.u32 %v5926, 4294901760
        %5928 = vmatpush1.msra.mxu0 %v5927
        %5929 = vmatprep.subr.mxu0 0.0
        %v5930 = vand.u32 %v5252, 4294901760
        %v5931 = vsub.f32 %v5252, %v5930
        %v5932 = vand.u32 %v5931, 4294901760
        %5933 = vmatpush1.msra.mxu0 %v5932
        %5934 = vmatprep.subr.mxu0 0.0
        %v5935 = vand.u32 %v5251, 4294901760
        %v5936 = vsub.f32 %v5251, %v5935
        %v5937 = vand.u32 %v5936, 4294901760
        %5938 = vmatpush1.msra.mxu0 %v5937
        %5939 = vmatprep.subr.mxu0 0.0
        %v5940 = vand.u32 %v5250, 4294901760
        %v5941 = vsub.f32 %v5250, %v5940
        %v5942 = vand.u32 %v5941, 4294901760
        %5943 = vmatpush1.msra.mxu0 %v5942
        %5944 = vmatprep.subr.mxu0 0.0
        %v5945 = vand.u32 %v5249, 4294901760
        %v5946 = vsub.f32 %v5249, %v5945
        %v5947 = vand.u32 %v5946, 4294901760
        %5948 = vmatpush1.msra.mxu0 %v5947
        %5949 = vmatprep.subr.mxu0 0.0
        %v5950 = vand.u32 %v5248, 4294901760
        %v5951 = vsub.f32 %v5248, %v5950
        %v5952 = vand.u32 %v5951, 4294901760
        %5953 = vmatpush1.msra.mxu0 %v5952
        %5954 = vmatprep.subr.mxu0 0.0
        %v5955 = vand.u32 %v5247, 4294901760
        %v5956 = vsub.f32 %v5247, %v5955
        %v5957 = vand.u32 %v5956, 4294901760
        %5958 = vmatpush1.msra.mxu0 %v5957
        %5959 = vmatprep.subr.mxu0 0.0
        %v5960 = vand.u32 %v5246, 4294901760
        %v5961 = vsub.f32 %v5246, %v5960
        %v5962 = vand.u32 %v5961, 4294901760
        %5963 = vmatpush1.msra.mxu0 %v5962
        %5964 = vmatprep.subr.mxu0 0.0
        %v5965 = vand.u32 %v5245, 4294901760
        %v5966 = vsub.f32 %v5245, %v5965
        %v5967 = vand.u32 %v5966, 4294901760
        %5968 = vmatpush1.msra.mxu0 %v5967
        %5969 = vmatprep.subr.mxu0 0.0
        %v5970 = vand.u32 %v5244, 4294901760
        %v5971 = vsub.f32 %v5244, %v5970
        %v5972 = vand.u32 %v5971, 4294901760
        %5973 = vmatpush1.msra.mxu0 %v5972
        %5974 = vmatprep.subr.mxu0 0.0
        %v5975 = vand.u32 %v5243, 4294901760
        %v5976 = vsub.f32 %v5243, %v5975
        %v5977 = vand.u32 %v5976, 4294901760
        %5978 = vmatpush1.msra.mxu0 %v5977
        %5979 = vmatprep.subr.mxu0 0.0
        %v5980 = vand.u32 %v5242, 4294901760
        %v5981 = vsub.f32 %v5242, %v5980
        %v5982 = vand.u32 %v5981, 4294901760
        %5983 = vmatpush1.msra.mxu0 %v5982
        %5984 = vmatprep.subr.mxu0 0.0
        %v5985 = vand.u32 %v5241, 4294901760
        %v5986 = vsub.f32 %v5241, %v5985
        %v5987 = vand.u32 %v5986, 4294901760
        %5988 = vmatpush1.msra.mxu0 %v5987
        %5989 = vmatprep.subr.mxu0 0.0
        %5990 = vmatpush2.msra.mxu0 0.0
        %5991 = vmatprep.subr.mxu0 0.0
        %5992 = vmatpush2.msra.mxu0 0.0
        %5993 = vmatprep.subr.mxu0 0.0
        %5994 = vmatpush2.msra.mxu0 0.0
        %5995 = vmatprep.subr.mxu0 0.0
        %5996 = vmatpush2.msra.mxu0 0.0
        %5997 = vmatprep.subr.mxu0 0.0
        %5998 = vmatpush2.msra.mxu0 0.0
        %5999 = vmatprep.subr.mxu0 0.0
        %6000 = vmatpush2.msra.mxu0 0.0
        %6001 = vmatprep.subr.mxu0 0.0
        %6002 = vmatpush2.msra.mxu0 0.0
        %6003 = vmatprep.subr.mxu0 0.0
        %6004 = vmatpush2.msra.mxu0 0.0
        %6005 = vmatprep.subr.mxu0 0.0
        %6006 = vmatpush2.msra.mxu0 0.0
        %6007 = vmatprep.subr.mxu0 0.0
        %6008 = vmatpush2.msra.mxu0 0.0
        %6009 = vmatprep.subr.mxu0 0.0
        %6010 = vmatpush2.msra.mxu0 0.0
        %6011 = vmatprep.subr.mxu0 0.0
        %6012 = vmatpush2.msra.mxu0 0.0
        %6013 = vmatprep.subr.mxu0 0.0
        %6014 = vmatpush2.msra.mxu0 0.0
        %6015 = vmatprep.subr.mxu0 0.0
        %6016 = vmatpush2.msra.mxu0 0.0
        %6017 = vmatprep.subr.mxu0 0.0
        %6018 = vmatpush2.msra.mxu0 0.0
        %6019 = vmatprep.subr.mxu0 0.0
        %6020 = vmatpush2.msra.mxu0 0.0
        %6021 = vmatprep.mubr.f32.mxu0 0.0
        %v6022 = vand.u32 %v5226, 4294901760
        %6023 = vmatmul.mubr.f32.gmra.mxu0 %v6022
        %v6024 = vpop.f32.mrf.mxu0
        %v6025 = vadd.f32 %v5850, %v6024
        %v6026 = vpop.f32.mrf.mxu0
        %6027 = vmatprep.mubr.f32.mxu0 0.0
        %v6028 = vand.u32 %v5228, 4294901760
        %6029 = vmatmul.mubr.f32.gmra.mxu0 %v6028
        %v6030 = vpop.f32.mrf.mxu0
        %v6031 = vadd.f32 %v5858, %v6030
        %v6032 = vpop.f32.mrf.mxu0
        %6033 = vmatprep.mubr.f32.mxu0 0.0
        %v6034 = vand.u32 %v5230, 4294901760
        %6035 = vmatmul.mubr.f32.gmra.mxu0 %v6034
        %v6036 = vpop.f32.mrf.mxu0
        %v6037 = vadd.f32 %v5866, %v6036
        %v6038 = vpop.f32.mrf.mxu0
        %6039 = vmatprep.mubr.f32.mxu0 0.0
        %v6040 = vand.u32 %v5232, 4294901760
        %6041 = vmatmul.mubr.f32.gmra.mxu0 %v6040
        %v6042 = vpop.f32.mrf.mxu0
        %v6043 = vadd.f32 %v5874, %v6042
        %v6044 = vpop.f32.mrf.mxu0
        %6045 = vmatprep.mubr.f32.mxu0 0.0
        %v6046 = vand.u32 %v5234, 4294901760
        %6047 = vmatmul.mubr.f32.gmra.mxu0 %v6046
        %v6048 = vpop.f32.mrf.mxu0
        %v6049 = vadd.f32 %v5882, %v6048
        %v6050 = vpop.f32.mrf.mxu0
        %6051 = vmatprep.mubr.f32.mxu0 0.0
        %v6052 = vand.u32 %v5236, 4294901760
        %6053 = vmatmul.mubr.f32.gmra.mxu0 %v6052
        %v6054 = vpop.f32.mrf.mxu0
        %v6055 = vadd.f32 %v5890, %v6054
        %v6056 = vpop.f32.mrf.mxu0
        %6057 = vmatprep.mubr.f32.mxu0 0.0
        %v6058 = vand.u32 %v5238, 4294901760
        %6059 = vmatmul.mubr.f32.gmra.mxu0 %v6058
        %v6060 = vpop.f32.mrf.mxu0
        %v6061 = vadd.f32 %v5898, %v6060
        %v6062 = vpop.f32.mrf.mxu0
        %6063 = vmatprep.mubr.f32.mxu0 0.0
        %v6064 = vand.u32 %v5240, 4294901760
        %6065 = vmatmul.mubr.f32.gmra.mxu0 %v6064
        %v6066 = vpop.f32.mrf.mxu0
        %v6067 = vadd.f32 %v5906, %v6066
        %v6068 = vpop.f32.mrf.mxu0
        %6069 = vdwg.mxu0
        %6070 = vmatprep.subr.mxu0 0.0
        %v6071 = vand.u32 %v5256, 4294901760
        %6072 = vmatpush1.msra.mxu0 %v6071
        %6073 = vmatprep.subr.mxu0 0.0
        %v6074 = vand.u32 %v5255, 4294901760
        %6075 = vmatpush1.msra.mxu0 %v6074
        %6076 = vmatprep.subr.mxu0 0.0
        %v6077 = vand.u32 %v5254, 4294901760
        %6078 = vmatpush1.msra.mxu0 %v6077
        %6079 = vmatprep.subr.mxu0 0.0
        %v6080 = vand.u32 %v5253, 4294901760
        %6081 = vmatpush1.msra.mxu0 %v6080
        %6082 = vmatprep.subr.mxu0 0.0
        %v6083 = vand.u32 %v5252, 4294901760
        %6084 = vmatpush1.msra.mxu0 %v6083
        %6085 = vmatprep.subr.mxu0 0.0
        %v6086 = vand.u32 %v5251, 4294901760
        %6087 = vmatpush1.msra.mxu0 %v6086
        %6088 = vmatprep.subr.mxu0 0.0
        %v6089 = vand.u32 %v5250, 4294901760
        %6090 = vmatpush1.msra.mxu0 %v6089
        %6091 = vmatprep.subr.mxu0 0.0
        %v6092 = vand.u32 %v5249, 4294901760
        %6093 = vmatpush1.msra.mxu0 %v6092
        %6094 = vmatprep.subr.mxu0 0.0
        %v6095 = vand.u32 %v5248, 4294901760
        %6096 = vmatpush1.msra.mxu0 %v6095
        %6097 = vmatprep.subr.mxu0 0.0
        %v6098 = vand.u32 %v5247, 4294901760
        %6099 = vmatpush1.msra.mxu0 %v6098
        %6100 = vmatprep.subr.mxu0 0.0
        %v6101 = vand.u32 %v5246, 4294901760
        %6102 = vmatpush1.msra.mxu0 %v6101
        %6103 = vmatprep.subr.mxu0 0.0
        %v6104 = vand.u32 %v5245, 4294901760
        %6105 = vmatpush1.msra.mxu0 %v6104
        %6106 = vmatprep.subr.mxu0 0.0
        %v6107 = vand.u32 %v5244, 4294901760
        %6108 = vmatpush1.msra.mxu0 %v6107
        %6109 = vmatprep.subr.mxu0 0.0
        %v6110 = vand.u32 %v5243, 4294901760
        %6111 = vmatpush1.msra.mxu0 %v6110
        %6112 = vmatprep.subr.mxu0 0.0
        %v6113 = vand.u32 %v5242, 4294901760
        %6114 = vmatpush1.msra.mxu0 %v6113
        %6115 = vmatprep.subr.mxu0 0.0
        %v6116 = vand.u32 %v5241, 4294901760
        %6117 = vmatpush1.msra.mxu0 %v6116
        %6118 = vmatprep.subr.mxu0 0.0
        %6119 = vmatpush2.msra.mxu0 0.0
        %6120 = vmatprep.subr.mxu0 0.0
        %6121 = vmatpush2.msra.mxu0 0.0
        %6122 = vmatprep.subr.mxu0 0.0
        %6123 = vmatpush2.msra.mxu0 0.0
        %6124 = vmatprep.subr.mxu0 0.0
        %6125 = vmatpush2.msra.mxu0 0.0
        %6126 = vmatprep.subr.mxu0 0.0
        %6127 = vmatpush2.msra.mxu0 0.0
        %6128 = vmatprep.subr.mxu0 0.0
        %6129 = vmatpush2.msra.mxu0 0.0
        %6130 = vmatprep.subr.mxu0 0.0
        %6131 = vmatpush2.msra.mxu0 0.0
        %6132 = vmatprep.subr.mxu0 0.0
        %6133 = vmatpush2.msra.mxu0 0.0
        %6134 = vmatprep.subr.mxu0 0.0
        %6135 = vmatpush2.msra.mxu0 0.0
        %6136 = vmatprep.subr.mxu0 0.0
        %6137 = vmatpush2.msra.mxu0 0.0
        %6138 = vmatprep.subr.mxu0 0.0
        %6139 = vmatpush2.msra.mxu0 0.0
        %6140 = vmatprep.subr.mxu0 0.0
        %6141 = vmatpush2.msra.mxu0 0.0
        %6142 = vmatprep.subr.mxu0 0.0
        %6143 = vmatpush2.msra.mxu0 0.0
        %6144 = vmatprep.subr.mxu0 0.0
        %6145 = vmatpush2.msra.mxu0 0.0
        %6146 = vmatprep.subr.mxu0 0.0
        %6147 = vmatpush2.msra.mxu0 0.0
        %6148 = vmatprep.subr.mxu0 0.0
        %6149 = vmatpush2.msra.mxu0 0.0
        %6150 = vmatprep.mubr.f32.mxu0 0.0
        %v6151 = vand.u32 %v5226, 4294901760
        %6152 = vmatmul.mubr.f32.gmra.mxu0 %v6151
        %v6153 = vpop.f32.mrf.mxu0
        %v6154 = vadd.f32 %v6025, %v6153
        %v6155 = vpop.f32.mrf.mxu0
        %6156 = vmatprep.mubr.f32.mxu0 0.0
        %v6157 = vand.u32 %v5228, 4294901760
        %6158 = vmatmul.mubr.f32.gmra.mxu0 %v6157
        %v6159 = vpop.f32.mrf.mxu0
        %v6160 = vadd.f32 %v6031, %v6159
        %v6161 = vpop.f32.mrf.mxu0
        %6162 = vmatprep.mubr.f32.mxu0 0.0
        %v6163 = vand.u32 %v5230, 4294901760
        %6164 = vmatmul.mubr.f32.gmra.mxu0 %v6163
        %v6165 = vpop.f32.mrf.mxu0
        %v6166 = vadd.f32 %v6037, %v6165
        %v6167 = vpop.f32.mrf.mxu0
        %6168 = vmatprep.mubr.f32.mxu0 0.0
        %v6169 = vand.u32 %v5232, 4294901760
        %6170 = vmatmul.mubr.f32.gmra.mxu0 %v6169
        %v6171 = vpop.f32.mrf.mxu0
        %v6172 = vadd.f32 %v6043, %v6171
        %v6173 = vpop.f32.mrf.mxu0
        %6174 = vmatprep.mubr.f32.mxu0 0.0
        %v6175 = vand.u32 %v5234, 4294901760
        %6176 = vmatmul.mubr.f32.gmra.mxu0 %v6175
        %v6177 = vpop.f32.mrf.mxu0
        %v6178 = vadd.f32 %v6049, %v6177
        %v6179 = vpop.f32.mrf.mxu0
        %6180 = vmatprep.mubr.f32.mxu0 0.0
        %v6181 = vand.u32 %v5236, 4294901760
        %6182 = vmatmul.mubr.f32.gmra.mxu0 %v6181
        %v6183 = vpop.f32.mrf.mxu0
        %v6184 = vadd.f32 %v6055, %v6183
        %v6185 = vpop.f32.mrf.mxu0
        %6186 = vmatprep.mubr.f32.mxu0 0.0
        %v6187 = vand.u32 %v5238, 4294901760
        %6188 = vmatmul.mubr.f32.gmra.mxu0 %v6187
        %v6189 = vpop.f32.mrf.mxu0
        %v6190 = vadd.f32 %v6061, %v6189
        %v6191 = vpop.f32.mrf.mxu0
        %6192 = vmatprep.mubr.f32.mxu0 0.0
        %v6193 = vand.u32 %v5240, 4294901760
        %6194 = vmatmul.mubr.f32.gmra.mxu0 %v6193
        %v6195 = vpop.f32.mrf.mxu0
        %v6196 = vadd.f32 %v6067, %v6195
        %v6197 = vpop.f32.mrf.mxu0
        %6198 = vdwg.mxu0
        %v6199 = vld [vmem:[#allocation3] sm:$0xff]
        %v6200 = vld [vmem:[#allocation3 + $0x8] sm:$0xff]
        %v6201 = vld [vmem:[#allocation3 + $0x10] sm:$0xff]
        %v6202 = vmul.f32 %v3379, %v6154
        %v6203 = vmul.f32 %v3386, %v6160
        %v6204 = vmul.f32 %v3393, %v6166
        %v6205 = vmul.f32 %v3400, %v6172
        %v6206 = vmul.f32 %v3407, %v6178
        %v6207 = vmul.f32 %v3414, %v6184
        %v6208 = vmul.f32 %v3421, %v6190
        %v6209 = vmul.f32 %v3428, %v6196
        %6210 = vxpose.xlu0.b32.start [1/16] %v2537, 128
        %6211 = vxpose.xlu0.b32.cont [2/16] %v2538, 128
        %6212 = vxpose.xlu0.b32.cont [3/16] %v2539, 128
        %6213 = vxpose.xlu0.b32.cont [4/16] %v2540, 128
        %6214 = vxpose.xlu0.b32.cont [5/16] %v2541, 128
        %6215 = vxpose.xlu0.b32.cont [6/16] %v2542, 128
        %6216 = vxpose.xlu0.b32.cont [7/16] %v2543, 128
        %6217 = vxpose.xlu0.b32.cont [8/16] %v2544, 128
        %6218 = vxpose.xlu0.b32.cont [9/16] 0.0, 128
        %6219 = vxpose.xlu0.b32.cont [10/16] 0.0, 128
        %6220 = vxpose.xlu0.b32.cont [11/16] 0.0, 128
        %6221 = vxpose.xlu0.b32.cont [12/16] 0.0, 128
        %6222 = vxpose.xlu0.b32.cont [13/16] 0.0, 128
        %6223 = vxpose.xlu0.b32.cont [14/16] 0.0, 128
        %6224 = vxpose.xlu0.b32.cont [15/16] 0.0, 128
        %6225 = vxpose.xlu0.b32.end [16/16] 0.0, 128
        %v6226 = vpop.trf.xlu0
        %v6227 = vpop.trf.xlu0
        %v6228 = vpop.trf.xlu0
        %v6229 = vpop.trf.xlu0
        %v6230 = vpop.trf.xlu0
        %v6231 = vpop.trf.xlu0
        %v6232 = vpop.trf.xlu0
        %v6233 = vpop.trf.xlu0
        %v6234 = vpop.trf.xlu0
        %v6235 = vpop.trf.xlu0
        %v6236 = vpop.trf.xlu0
        %v6237 = vpop.trf.xlu0
        %v6238 = vpop.trf.xlu0
        %v6239 = vpop.trf.xlu0
        %v6240 = vpop.trf.xlu0
        %v6241 = vpop.trf.xlu0
        %vm6242 = vcmask 523264
        %v6244 = vsel %vm6242, %v6226, 0
        %v6247 = vsel %vm6242, %v6227, 0
        %v6250 = vsel %vm6242, %v6228, 0
        %6252 = vmatprep.subr.mxu0 0.0
        %6253 = vmatpush1.msra.mxu0 0.0
        %6254 = vmatprep.subr.mxu0 0.0
        %6255 = vmatpush1.msra.mxu0 0.0
        %6256 = vmatprep.subr.mxu0 0.0
        %6257 = vmatpush1.msra.mxu0 0.0
        %6258 = vmatprep.subr.mxu0 0.0
        %6259 = vmatpush1.msra.mxu0 0.0
        %6260 = vmatprep.subr.mxu0 0.0
        %6261 = vmatpush1.msra.mxu0 0.0
        %6262 = vmatprep.subr.mxu0 0.0
        %6263 = vmatpush1.msra.mxu0 0.0
        %6264 = vmatprep.subr.mxu0 0.0
        %6265 = vmatpush1.msra.mxu0 0.0
        %6266 = vmatprep.subr.mxu0 0.0
        %6267 = vmatpush1.msra.mxu0 0.0
        %6268 = vmatprep.subr.mxu0 0.0
        %v6269 = vand.u32 %v6209, 4294901760
        %6270 = vmatpush1.msra.mxu0 %v6269
        %6271 = vmatprep.subr.mxu0 0.0
        %v6272 = vand.u32 %v6208, 4294901760
        %6273 = vmatpush1.msra.mxu0 %v6272
        %6274 = vmatprep.subr.mxu0 0.0
        %v6275 = vand.u32 %v6207, 4294901760
        %6276 = vmatpush1.msra.mxu0 %v6275
        %6277 = vmatprep.subr.mxu0 0.0
        %v6278 = vand.u32 %v6206, 4294901760
        %6279 = vmatpush1.msra.mxu0 %v6278
        %6280 = vmatprep.subr.mxu0 0.0
        %v6281 = vand.u32 %v6205, 4294901760
        %6282 = vmatpush1.msra.mxu0 %v6281
        %6283 = vmatprep.subr.mxu0 0.0
        %v6284 = vand.u32 %v6204, 4294901760
        %6285 = vmatpush1.msra.mxu0 %v6284
        %6286 = vmatprep.subr.mxu0 0.0
        %v6287 = vand.u32 %v6203, 4294901760
        %6288 = vmatpush1.msra.mxu0 %v6287
        %6289 = vmatprep.subr.mxu0 0.0
        %v6290 = vand.u32 %v6202, 4294901760
        %6291 = vmatpush1.msra.mxu0 %v6290
        %6292 = vmatprep.subr.mxu0 0.0
        %6293 = vmatpush2.msra.mxu0 0.0
        %6294 = vmatprep.subr.mxu0 0.0
        %6295 = vmatpush2.msra.mxu0 0.0
        %6296 = vmatprep.subr.mxu0 0.0
        %6297 = vmatpush2.msra.mxu0 0.0
        %6298 = vmatprep.subr.mxu0 0.0
        %6299 = vmatpush2.msra.mxu0 0.0
        %6300 = vmatprep.subr.mxu0 0.0
        %6301 = vmatpush2.msra.mxu0 0.0
        %6302 = vmatprep.subr.mxu0 0.0
        %6303 = vmatpush2.msra.mxu0 0.0
        %6304 = vmatprep.subr.mxu0 0.0
        %6305 = vmatpush2.msra.mxu0 0.0
        %6306 = vmatprep.subr.mxu0 0.0
        %6307 = vmatpush2.msra.mxu0 0.0
        %6308 = vmatprep.subr.mxu0 0.0
        %6309 = vmatpush2.msra.mxu0 0.0
        %6310 = vmatprep.subr.mxu0 0.0
        %6311 = vmatpush2.msra.mxu0 0.0
        %6312 = vmatprep.subr.mxu0 0.0
        %6313 = vmatpush2.msra.mxu0 0.0
        %6314 = vmatprep.subr.mxu0 0.0
        %6315 = vmatpush2.msra.mxu0 0.0
        %6316 = vmatprep.subr.mxu0 0.0
        %6317 = vmatpush2.msra.mxu0 0.0
        %6318 = vmatprep.subr.mxu0 0.0
        %6319 = vmatpush2.msra.mxu0 0.0
        %6320 = vmatprep.subr.mxu0 0.0
        %6321 = vmatpush2.msra.mxu0 0.0
        %6322 = vmatprep.subr.mxu0 0.0
        %6323 = vmatpush2.msra.mxu0 0.0
        %6324 = vmatprep.mubr.f32.mxu0 0.0
        %v6325 = vand.u32 %v6244, 4294901760
        %v6326 = vsub.f32 %v6244, %v6325
        %v6327 = vand.u32 %v6326, 4294901760
        %v6328 = vsub.f32 %v6326, %v6327
        %v6329 = vand.u32 %v6328, 4294901760
        %6330 = vmatmul.mubr.f32.gmra.mxu0 %v6329
        %v6331 = vpop.f32.mrf.mxu0
        %v6332 = vadd.f32 0.0, %v6331
        %v6333 = vpop.f32.mrf.mxu0
        %6334 = vmatprep.mubr.f32.mxu0 0.0
        %v6335 = vand.u32 %v6247, 4294901760
        %v6336 = vsub.f32 %v6247, %v6335
        %v6337 = vand.u32 %v6336, 4294901760
        %v6338 = vsub.f32 %v6336, %v6337
        %v6339 = vand.u32 %v6338, 4294901760
        %6340 = vmatmul.mubr.f32.gmra.mxu0 %v6339
        %v6341 = vpop.f32.mrf.mxu0
        %v6342 = vadd.f32 0.0, %v6341
        %v6343 = vpop.f32.mrf.mxu0
        %6344 = vmatprep.mubr.f32.mxu0 0.0
        %v6345 = vand.u32 %v6250, 4294901760
        %v6346 = vsub.f32 %v6250, %v6345
        %v6347 = vand.u32 %v6346, 4294901760
        %v6348 = vsub.f32 %v6346, %v6347
        %v6349 = vand.u32 %v6348, 4294901760
        %6350 = vmatmul.mubr.f32.gmra.mxu0 %v6349
        %v6351 = vpop.f32.mrf.mxu0
        %v6352 = vadd.f32 0.0, %v6351
        %v6353 = vpop.f32.mrf.mxu0
        %6354 = vdwg.mxu0
        %6355 = vmatprep.subr.mxu0 0.0
        %6356 = vmatpush1.msra.mxu0 0.0
        %6357 = vmatprep.subr.mxu0 0.0
        %6358 = vmatpush1.msra.mxu0 0.0
        %6359 = vmatprep.subr.mxu0 0.0
        %6360 = vmatpush1.msra.mxu0 0.0
        %6361 = vmatprep.subr.mxu0 0.0
        %6362 = vmatpush1.msra.mxu0 0.0
        %6363 = vmatprep.subr.mxu0 0.0
        %6364 = vmatpush1.msra.mxu0 0.0
        %6365 = vmatprep.subr.mxu0 0.0
        %6366 = vmatpush1.msra.mxu0 0.0
        %6367 = vmatprep.subr.mxu0 0.0
        %6368 = vmatpush1.msra.mxu0 0.0
        %6369 = vmatprep.subr.mxu0 0.0
        %6370 = vmatpush1.msra.mxu0 0.0
        %6371 = vmatprep.subr.mxu0 0.0
        %v6372 = vand.u32 %v6209, 4294901760
        %v6373 = vsub.f32 %v6209, %v6372
        %v6374 = vand.u32 %v6373, 4294901760
        %v6375 = vsub.f32 %v6373, %v6374
        %v6376 = vand.u32 %v6375, 4294901760
        %6377 = vmatpush1.msra.mxu0 %v6376
        %6378 = vmatprep.subr.mxu0 0.0
        %v6379 = vand.u32 %v6208, 4294901760
        %v6380 = vsub.f32 %v6208, %v6379
        %v6381 = vand.u32 %v6380, 4294901760
        %v6382 = vsub.f32 %v6380, %v6381
        %v6383 = vand.u32 %v6382, 4294901760
        %6384 = vmatpush1.msra.mxu0 %v6383
        %6385 = vmatprep.subr.mxu0 0.0
        %v6386 = vand.u32 %v6207, 4294901760
        %v6387 = vsub.f32 %v6207, %v6386
        %v6388 = vand.u32 %v6387, 4294901760
        %v6389 = vsub.f32 %v6387, %v6388
        %v6390 = vand.u32 %v6389, 4294901760
        %6391 = vmatpush1.msra.mxu0 %v6390
        %6392 = vmatprep.subr.mxu0 0.0
        %v6393 = vand.u32 %v6206, 4294901760
        %v6394 = vsub.f32 %v6206, %v6393
        %v6395 = vand.u32 %v6394, 4294901760
        %v6396 = vsub.f32 %v6394, %v6395
        %v6397 = vand.u32 %v6396, 4294901760
        %6398 = vmatpush1.msra.mxu0 %v6397
        %6399 = vmatprep.subr.mxu0 0.0
        %v6400 = vand.u32 %v6205, 4294901760
        %v6401 = vsub.f32 %v6205, %v6400
        %v6402 = vand.u32 %v6401, 4294901760
        %v6403 = vsub.f32 %v6401, %v6402
        %v6404 = vand.u32 %v6403, 4294901760
        %6405 = vmatpush1.msra.mxu0 %v6404
        %6406 = vmatprep.subr.mxu0 0.0
        %v6407 = vand.u32 %v6204, 4294901760
        %v6408 = vsub.f32 %v6204, %v6407
        %v6409 = vand.u32 %v6408, 4294901760
        %v6410 = vsub.f32 %v6408, %v6409
        %v6411 = vand.u32 %v6410, 4294901760
        %6412 = vmatpush1.msra.mxu0 %v6411
        %6413 = vmatprep.subr.mxu0 0.0
        %v6414 = vand.u32 %v6203, 4294901760
        %v6415 = vsub.f32 %v6203, %v6414
        %v6416 = vand.u32 %v6415, 4294901760
        %v6417 = vsub.f32 %v6415, %v6416
        %v6418 = vand.u32 %v6417, 4294901760
        %6419 = vmatpush1.msra.mxu0 %v6418
        %6420 = vmatprep.subr.mxu0 0.0
        %v6421 = vand.u32 %v6202, 4294901760
        %v6422 = vsub.f32 %v6202, %v6421
        %v6423 = vand.u32 %v6422, 4294901760
        %v6424 = vsub.f32 %v6422, %v6423
        %v6425 = vand.u32 %v6424, 4294901760
        %6426 = vmatpush1.msra.mxu0 %v6425
        %6427 = vmatprep.subr.mxu0 0.0
        %6428 = vmatpush2.msra.mxu0 0.0
        %6429 = vmatprep.subr.mxu0 0.0
        %6430 = vmatpush2.msra.mxu0 0.0
        %6431 = vmatprep.subr.mxu0 0.0
        %6432 = vmatpush2.msra.mxu0 0.0
        %6433 = vmatprep.subr.mxu0 0.0
        %6434 = vmatpush2.msra.mxu0 0.0
        %6435 = vmatprep.subr.mxu0 0.0
        %6436 = vmatpush2.msra.mxu0 0.0
        %6437 = vmatprep.subr.mxu0 0.0
        %6438 = vmatpush2.msra.mxu0 0.0
        %6439 = vmatprep.subr.mxu0 0.0
        %6440 = vmatpush2.msra.mxu0 0.0
        %6441 = vmatprep.subr.mxu0 0.0
        %6442 = vmatpush2.msra.mxu0 0.0
        %6443 = vmatprep.subr.mxu0 0.0
        %6444 = vmatpush2.msra.mxu0 0.0
        %6445 = vmatprep.subr.mxu0 0.0
        %6446 = vmatpush2.msra.mxu0 0.0
        %6447 = vmatprep.subr.mxu0 0.0
        %6448 = vmatpush2.msra.mxu0 0.0
        %6449 = vmatprep.subr.mxu0 0.0
        %6450 = vmatpush2.msra.mxu0 0.0
        %6451 = vmatprep.subr.mxu0 0.0
        %6452 = vmatpush2.msra.mxu0 0.0
        %6453 = vmatprep.subr.mxu0 0.0
        %6454 = vmatpush2.msra.mxu0 0.0
        %6455 = vmatprep.subr.mxu0 0.0
        %6456 = vmatpush2.msra.mxu0 0.0
        %6457 = vmatprep.subr.mxu0 0.0
        %6458 = vmatpush2.msra.mxu0 0.0
        %6459 = vmatprep.mubr.f32.mxu0 0.0
        %v6460 = vand.u32 %v6244, 4294901760
        %6461 = vmatmul.mubr.f32.gmra.mxu0 %v6460
        %v6462 = vpop.f32.mrf.mxu0
        %v6463 = vadd.f32 %v6332, %v6462
        %v6464 = vpop.f32.mrf.mxu0
        %6465 = vmatprep.mubr.f32.mxu0 0.0
        %v6466 = vand.u32 %v6247, 4294901760
        %6467 = vmatmul.mubr.f32.gmra.mxu0 %v6466
        %v6468 = vpop.f32.mrf.mxu0
        %v6469 = vadd.f32 %v6342, %v6468
        %v6470 = vpop.f32.mrf.mxu0
        %6471 = vmatprep.mubr.f32.mxu0 0.0
        %v6472 = vand.u32 %v6250, 4294901760
        %6473 = vmatmul.mubr.f32.gmra.mxu0 %v6472
        %v6474 = vpop.f32.mrf.mxu0
        %v6475 = vadd.f32 %v6352, %v6474
        %v6476 = vpop.f32.mrf.mxu0
        %6477 = vdwg.mxu0
        %6478 = vmatprep.subr.mxu0 0.0
        %6479 = vmatpush1.msra.mxu0 0.0
        %6480 = vmatprep.subr.mxu0 0.0
        %6481 = vmatpush1.msra.mxu0 0.0
        %6482 = vmatprep.subr.mxu0 0.0
        %6483 = vmatpush1.msra.mxu0 0.0
        %6484 = vmatprep.subr.mxu0 0.0
        %6485 = vmatpush1.msra.mxu0 0.0
        %6486 = vmatprep.subr.mxu0 0.0
        %6487 = vmatpush1.msra.mxu0 0.0
        %6488 = vmatprep.subr.mxu0 0.0
        %6489 = vmatpush1.msra.mxu0 0.0
        %6490 = vmatprep.subr.mxu0 0.0
        %6491 = vmatpush1.msra.mxu0 0.0
        %6492 = vmatprep.subr.mxu0 0.0
        %6493 = vmatpush1.msra.mxu0 0.0
        %6494 = vmatprep.subr.mxu0 0.0
        %v6495 = vand.u32 %v6209, 4294901760
        %v6496 = vsub.f32 %v6209, %v6495
        %6497 = vmatpush1.msra.mxu0 %v6496
        %6498 = vmatprep.subr.mxu0 0.0
        %v6499 = vand.u32 %v6208, 4294901760
        %v6500 = vsub.f32 %v6208, %v6499
        %6501 = vmatpush1.msra.mxu0 %v6500
        %6502 = vmatprep.subr.mxu0 0.0
        %v6503 = vand.u32 %v6207, 4294901760
        %v6504 = vsub.f32 %v6207, %v6503
        %6505 = vmatpush1.msra.mxu0 %v6504
        %6506 = vmatprep.subr.mxu0 0.0
        %v6507 = vand.u32 %v6206, 4294901760
        %v6508 = vsub.f32 %v6206, %v6507
        %6509 = vmatpush1.msra.mxu0 %v6508
        %6510 = vmatprep.subr.mxu0 0.0
        %v6511 = vand.u32 %v6205, 4294901760
        %v6512 = vsub.f32 %v6205, %v6511
        %6513 = vmatpush1.msra.mxu0 %v6512
        %6514 = vmatprep.subr.mxu0 0.0
        %v6515 = vand.u32 %v6204, 4294901760
        %v6516 = vsub.f32 %v6204, %v6515
        %6517 = vmatpush1.msra.mxu0 %v6516
        %6518 = vmatprep.subr.mxu0 0.0
        %v6519 = vand.u32 %v6203, 4294901760
        %v6520 = vsub.f32 %v6203, %v6519
        %6521 = vmatpush1.msra.mxu0 %v6520
        %6522 = vmatprep.subr.mxu0 0.0
        %v6523 = vand.u32 %v6202, 4294901760
        %v6524 = vsub.f32 %v6202, %v6523
        %6525 = vmatpush1.msra.mxu0 %v6524
        %6526 = vmatprep.subr.mxu0 0.0
        %6527 = vmatpush2.msra.mxu0 0.0
        %6528 = vmatprep.subr.mxu0 0.0
        %6529 = vmatpush2.msra.mxu0 0.0
        %6530 = vmatprep.subr.mxu0 0.0
        %6531 = vmatpush2.msra.mxu0 0.0
        %6532 = vmatprep.subr.mxu0 0.0
        %6533 = vmatpush2.msra.mxu0 0.0
        %6534 = vmatprep.subr.mxu0 0.0
        %6535 = vmatpush2.msra.mxu0 0.0
        %6536 = vmatprep.subr.mxu0 0.0
        %6537 = vmatpush2.msra.mxu0 0.0
        %6538 = vmatprep.subr.mxu0 0.0
        %6539 = vmatpush2.msra.mxu0 0.0
        %6540 = vmatprep.subr.mxu0 0.0
        %6541 = vmatpush2.msra.mxu0 0.0
        %6542 = vmatprep.subr.mxu0 0.0
        %6543 = vmatpush2.msra.mxu0 0.0
        %6544 = vmatprep.subr.mxu0 0.0
        %6545 = vmatpush2.msra.mxu0 0.0
        %6546 = vmatprep.subr.mxu0 0.0
        %6547 = vmatpush2.msra.mxu0 0.0
        %6548 = vmatprep.subr.mxu0 0.0
        %6549 = vmatpush2.msra.mxu0 0.0
        %6550 = vmatprep.subr.mxu0 0.0
        %6551 = vmatpush2.msra.mxu0 0.0
        %6552 = vmatprep.subr.mxu0 0.0
        %6553 = vmatpush2.msra.mxu0 0.0
        %6554 = vmatprep.subr.mxu0 0.0
        %6555 = vmatpush2.msra.mxu0 0.0
        %6556 = vmatprep.subr.mxu0 0.0
        %6557 = vmatpush2.msra.mxu0 0.0
        %6558 = vmatprep.mubr.f32.mxu0 0.0
        %v6559 = vand.u32 %v6244, 4294901760
        %v6560 = vsub.f32 %v6244, %v6559
        %6561 = vmatmul.mubr.f32.gmra.mxu0 %v6560
        %v6562 = vpop.f32.mrf.mxu0
        %v6563 = vadd.f32 %v6463, %v6562
        %v6564 = vpop.f32.mrf.mxu0
        %6565 = vmatprep.mubr.f32.mxu0 0.0
        %v6566 = vand.u32 %v6247, 4294901760
        %v6567 = vsub.f32 %v6247, %v6566
        %6568 = vmatmul.mubr.f32.gmra.mxu0 %v6567
        %v6569 = vpop.f32.mrf.mxu0
        %v6570 = vadd.f32 %v6469, %v6569
        %v6571 = vpop.f32.mrf.mxu0
        %6572 = vmatprep.mubr.f32.mxu0 0.0
        %v6573 = vand.u32 %v6250, 4294901760
        %v6574 = vsub.f32 %v6250, %v6573
        %6575 = vmatmul.mubr.f32.gmra.mxu0 %v6574
        %v6576 = vpop.f32.mrf.mxu0
        %v6577 = vadd.f32 %v6475, %v6576
        %v6578 = vpop.f32.mrf.mxu0
        %6579 = vdwg.mxu0
        %6580 = vmatprep.subr.mxu0 0.0
        %6581 = vmatpush1.msra.mxu0 0.0
        %6582 = vmatprep.subr.mxu0 0.0
        %6583 = vmatpush1.msra.mxu0 0.0
        %6584 = vmatprep.subr.mxu0 0.0
        %6585 = vmatpush1.msra.mxu0 0.0
        %6586 = vmatprep.subr.mxu0 0.0
        %6587 = vmatpush1.msra.mxu0 0.0
        %6588 = vmatprep.subr.mxu0 0.0
        %6589 = vmatpush1.msra.mxu0 0.0
        %6590 = vmatprep.subr.mxu0 0.0
        %6591 = vmatpush1.msra.mxu0 0.0
        %6592 = vmatprep.subr.mxu0 0.0
        %6593 = vmatpush1.msra.mxu0 0.0
        %6594 = vmatprep.subr.mxu0 0.0
        %6595 = vmatpush1.msra.mxu0 0.0
        %6596 = vmatprep.subr.mxu0 0.0
        %v6597 = vand.u32 %v6209, 4294901760
        %6598 = vmatpush1.msra.mxu0 %v6597
        %6599 = vmatprep.subr.mxu0 0.0
        %v6600 = vand.u32 %v6208, 4294901760
        %6601 = vmatpush1.msra.mxu0 %v6600
        %6602 = vmatprep.subr.mxu0 0.0
        %v6603 = vand.u32 %v6207, 4294901760
        %6604 = vmatpush1.msra.mxu0 %v6603
        %6605 = vmatprep.subr.mxu0 0.0
        %v6606 = vand.u32 %v6206, 4294901760
        %6607 = vmatpush1.msra.mxu0 %v6606
        %6608 = vmatprep.subr.mxu0 0.0
        %v6609 = vand.u32 %v6205, 4294901760
        %6610 = vmatpush1.msra.mxu0 %v6609
        %6611 = vmatprep.subr.mxu0 0.0
        %v6612 = vand.u32 %v6204, 4294901760
        %6613 = vmatpush1.msra.mxu0 %v6612
        %6614 = vmatprep.subr.mxu0 0.0
        %v6615 = vand.u32 %v6203, 4294901760
        %6616 = vmatpush1.msra.mxu0 %v6615
        %6617 = vmatprep.subr.mxu0 0.0
        %v6618 = vand.u32 %v6202, 4294901760
        %6619 = vmatpush1.msra.mxu0 %v6618
        %6620 = vmatprep.subr.mxu0 0.0
        %6621 = vmatpush2.msra.mxu0 0.0
        %6622 = vmatprep.subr.mxu0 0.0
        %6623 = vmatpush2.msra.mxu0 0.0
        %6624 = vmatprep.subr.mxu0 0.0
        %6625 = vmatpush2.msra.mxu0 0.0
        %6626 = vmatprep.subr.mxu0 0.0
        %6627 = vmatpush2.msra.mxu0 0.0
        %6628 = vmatprep.subr.mxu0 0.0
        %6629 = vmatpush2.msra.mxu0 0.0
        %6630 = vmatprep.subr.mxu0 0.0
        %6631 = vmatpush2.msra.mxu0 0.0
        %6632 = vmatprep.subr.mxu0 0.0
        %6633 = vmatpush2.msra.mxu0 0.0
        %6634 = vmatprep.subr.mxu0 0.0
        %6635 = vmatpush2.msra.mxu0 0.0
        %6636 = vmatprep.subr.mxu0 0.0
        %6637 = vmatpush2.msra.mxu0 0.0
        %6638 = vmatprep.subr.mxu0 0.0
        %6639 = vmatpush2.msra.mxu0 0.0
        %6640 = vmatprep.subr.mxu0 0.0
        %6641 = vmatpush2.msra.mxu0 0.0
        %6642 = vmatprep.subr.mxu0 0.0
        %6643 = vmatpush2.msra.mxu0 0.0
        %6644 = vmatprep.subr.mxu0 0.0
        %6645 = vmatpush2.msra.mxu0 0.0
        %6646 = vmatprep.subr.mxu0 0.0
        %6647 = vmatpush2.msra.mxu0 0.0
        %6648 = vmatprep.subr.mxu0 0.0
        %6649 = vmatpush2.msra.mxu0 0.0
        %6650 = vmatprep.subr.mxu0 0.0
        %6651 = vmatpush2.msra.mxu0 0.0
        %6652 = vmatprep.mubr.f32.mxu0 0.0
        %v6653 = vand.u32 %v6244, 4294901760
        %v6654 = vsub.f32 %v6244, %v6653
        %v6655 = vand.u32 %v6654, 4294901760
        %6656 = vmatmul.mubr.f32.gmra.mxu0 %v6655
        %v6657 = vpop.f32.mrf.mxu0
        %v6658 = vadd.f32 %v6563, %v6657
        %v6659 = vpop.f32.mrf.mxu0
        %6660 = vmatprep.mubr.f32.mxu0 0.0
        %v6661 = vand.u32 %v6247, 4294901760
        %v6662 = vsub.f32 %v6247, %v6661
        %v6663 = vand.u32 %v6662, 4294901760
        %6664 = vmatmul.mubr.f32.gmra.mxu0 %v6663
        %v6665 = vpop.f32.mrf.mxu0
        %v6666 = vadd.f32 %v6570, %v6665
        %v6667 = vpop.f32.mrf.mxu0
        %6668 = vmatprep.mubr.f32.mxu0 0.0
        %v6669 = vand.u32 %v6250, 4294901760
        %v6670 = vsub.f32 %v6250, %v6669
        %v6671 = vand.u32 %v6670, 4294901760
        %6672 = vmatmul.mubr.f32.gmra.mxu0 %v6671
        %v6673 = vpop.f32.mrf.mxu0
        %v6674 = vadd.f32 %v6577, %v6673
        %v6675 = vpop.f32.mrf.mxu0
        %6676 = vdwg.mxu0
        %6677 = vmatprep.subr.mxu0 0.0
        %6678 = vmatpush1.msra.mxu0 0.0
        %6679 = vmatprep.subr.mxu0 0.0
        %6680 = vmatpush1.msra.mxu0 0.0
        %6681 = vmatprep.subr.mxu0 0.0
        %6682 = vmatpush1.msra.mxu0 0.0
        %6683 = vmatprep.subr.mxu0 0.0
        %6684 = vmatpush1.msra.mxu0 0.0
        %6685 = vmatprep.subr.mxu0 0.0
        %6686 = vmatpush1.msra.mxu0 0.0
        %6687 = vmatprep.subr.mxu0 0.0
        %6688 = vmatpush1.msra.mxu0 0.0
        %6689 = vmatprep.subr.mxu0 0.0
        %6690 = vmatpush1.msra.mxu0 0.0
        %6691 = vmatprep.subr.mxu0 0.0
        %6692 = vmatpush1.msra.mxu0 0.0
        %6693 = vmatprep.subr.mxu0 0.0
        %v6694 = vand.u32 %v6209, 4294901760
        %v6695 = vsub.f32 %v6209, %v6694
        %v6696 = vand.u32 %v6695, 4294901760
        %6697 = vmatpush1.msra.mxu0 %v6696
        %6698 = vmatprep.subr.mxu0 0.0
        %v6699 = vand.u32 %v6208, 4294901760
        %v6700 = vsub.f32 %v6208, %v6699
        %v6701 = vand.u32 %v6700, 4294901760
        %6702 = vmatpush1.msra.mxu0 %v6701
        %6703 = vmatprep.subr.mxu0 0.0
        %v6704 = vand.u32 %v6207, 4294901760
        %v6705 = vsub.f32 %v6207, %v6704
        %v6706 = vand.u32 %v6705, 4294901760
        %6707 = vmatpush1.msra.mxu0 %v6706
        %6708 = vmatprep.subr.mxu0 0.0
        %v6709 = vand.u32 %v6206, 4294901760
        %v6710 = vsub.f32 %v6206, %v6709
        %v6711 = vand.u32 %v6710, 4294901760
        %6712 = vmatpush1.msra.mxu0 %v6711
        %6713 = vmatprep.subr.mxu0 0.0
        %v6714 = vand.u32 %v6205, 4294901760
        %v6715 = vsub.f32 %v6205, %v6714
        %v6716 = vand.u32 %v6715, 4294901760
        %6717 = vmatpush1.msra.mxu0 %v6716
        %6718 = vmatprep.subr.mxu0 0.0
        %v6719 = vand.u32 %v6204, 4294901760
        %v6720 = vsub.f32 %v6204, %v6719
        %v6721 = vand.u32 %v6720, 4294901760
        %6722 = vmatpush1.msra.mxu0 %v6721
        %6723 = vmatprep.subr.mxu0 0.0
        %v6724 = vand.u32 %v6203, 4294901760
        %v6725 = vsub.f32 %v6203, %v6724
        %v6726 = vand.u32 %v6725, 4294901760
        %6727 = vmatpush1.msra.mxu0 %v6726
        %6728 = vmatprep.subr.mxu0 0.0
        %v6729 = vand.u32 %v6202, 4294901760
        %v6730 = vsub.f32 %v6202, %v6729
        %v6731 = vand.u32 %v6730, 4294901760
        %6732 = vmatpush1.msra.mxu0 %v6731
        %6733 = vmatprep.subr.mxu0 0.0
        %6734 = vmatpush2.msra.mxu0 0.0
        %6735 = vmatprep.subr.mxu0 0.0
        %6736 = vmatpush2.msra.mxu0 0.0
        %6737 = vmatprep.subr.mxu0 0.0
        %6738 = vmatpush2.msra.mxu0 0.0
        %6739 = vmatprep.subr.mxu0 0.0
        %6740 = vmatpush2.msra.mxu0 0.0
        %6741 = vmatprep.subr.mxu0 0.0
        %6742 = vmatpush2.msra.mxu0 0.0
        %6743 = vmatprep.subr.mxu0 0.0
        %6744 = vmatpush2.msra.mxu0 0.0
        %6745 = vmatprep.subr.mxu0 0.0
        %6746 = vmatpush2.msra.mxu0 0.0
        %6747 = vmatprep.subr.mxu0 0.0
        %6748 = vmatpush2.msra.mxu0 0.0
        %6749 = vmatprep.subr.mxu0 0.0
        %6750 = vmatpush2.msra.mxu0 0.0
        %6751 = vmatprep.subr.mxu0 0.0
        %6752 = vmatpush2.msra.mxu0 0.0
        %6753 = vmatprep.subr.mxu0 0.0
        %6754 = vmatpush2.msra.mxu0 0.0
        %6755 = vmatprep.subr.mxu0 0.0
        %6756 = vmatpush2.msra.mxu0 0.0
        %6757 = vmatprep.subr.mxu0 0.0
        %6758 = vmatpush2.msra.mxu0 0.0
        %6759 = vmatprep.subr.mxu0 0.0
        %6760 = vmatpush2.msra.mxu0 0.0
        %6761 = vmatprep.subr.mxu0 0.0
        %6762 = vmatpush2.msra.mxu0 0.0
        %6763 = vmatprep.subr.mxu0 0.0
        %6764 = vmatpush2.msra.mxu0 0.0
        %6765 = vmatprep.mubr.f32.mxu0 0.0
        %v6766 = vand.u32 %v6244, 4294901760
        %6767 = vmatmul.mubr.f32.gmra.mxu0 %v6766
        %v6768 = vpop.f32.mrf.mxu0
        %v6769 = vadd.f32 %v6658, %v6768
        %v6770 = vpop.f32.mrf.mxu0
        %6771 = vmatprep.mubr.f32.mxu0 0.0
        %v6772 = vand.u32 %v6247, 4294901760
        %6773 = vmatmul.mubr.f32.gmra.mxu0 %v6772
        %v6774 = vpop.f32.mrf.mxu0
        %v6775 = vadd.f32 %v6666, %v6774
        %v6776 = vpop.f32.mrf.mxu0
        %6777 = vmatprep.mubr.f32.mxu0 0.0
        %v6778 = vand.u32 %v6250, 4294901760
        %6779 = vmatmul.mubr.f32.gmra.mxu0 %v6778
        %v6780 = vpop.f32.mrf.mxu0
        %v6781 = vadd.f32 %v6674, %v6780
        %v6782 = vpop.f32.mrf.mxu0
        %6783 = vdwg.mxu0
        %6784 = vmatprep.subr.mxu0 0.0
        %6785 = vmatpush1.msra.mxu0 0.0
        %6786 = vmatprep.subr.mxu0 0.0
        %6787 = vmatpush1.msra.mxu0 0.0
        %6788 = vmatprep.subr.mxu0 0.0
        %6789 = vmatpush1.msra.mxu0 0.0
        %6790 = vmatprep.subr.mxu0 0.0
        %6791 = vmatpush1.msra.mxu0 0.0
        %6792 = vmatprep.subr.mxu0 0.0
        %6793 = vmatpush1.msra.mxu0 0.0
        %6794 = vmatprep.subr.mxu0 0.0
        %6795 = vmatpush1.msra.mxu0 0.0
        %6796 = vmatprep.subr.mxu0 0.0
        %6797 = vmatpush1.msra.mxu0 0.0
        %6798 = vmatprep.subr.mxu0 0.0
        %6799 = vmatpush1.msra.mxu0 0.0
        %6800 = vmatprep.subr.mxu0 0.0
        %v6801 = vand.u32 %v6209, 4294901760
        %6802 = vmatpush1.msra.mxu0 %v6801
        %6803 = vmatprep.subr.mxu0 0.0
        %v6804 = vand.u32 %v6208, 4294901760
        %6805 = vmatpush1.msra.mxu0 %v6804
        %6806 = vmatprep.subr.mxu0 0.0
        %v6807 = vand.u32 %v6207, 4294901760
        %6808 = vmatpush1.msra.mxu0 %v6807
        %6809 = vmatprep.subr.mxu0 0.0
        %v6810 = vand.u32 %v6206, 4294901760
        %6811 = vmatpush1.msra.mxu0 %v6810
        %6812 = vmatprep.subr.mxu0 0.0
        %v6813 = vand.u32 %v6205, 4294901760
        %6814 = vmatpush1.msra.mxu0 %v6813
        %6815 = vmatprep.subr.mxu0 0.0
        %v6816 = vand.u32 %v6204, 4294901760
        %6817 = vmatpush1.msra.mxu0 %v6816
        %6818 = vmatprep.subr.mxu0 0.0
        %v6819 = vand.u32 %v6203, 4294901760
        %6820 = vmatpush1.msra.mxu0 %v6819
        %6821 = vmatprep.subr.mxu0 0.0
        %v6822 = vand.u32 %v6202, 4294901760
        %6823 = vmatpush1.msra.mxu0 %v6822
        %6824 = vmatprep.subr.mxu0 0.0
        %6825 = vmatpush2.msra.mxu0 0.0
        %6826 = vmatprep.subr.mxu0 0.0
        %6827 = vmatpush2.msra.mxu0 0.0
        %6828 = vmatprep.subr.mxu0 0.0
        %6829 = vmatpush2.msra.mxu0 0.0
        %6830 = vmatprep.subr.mxu0 0.0
        %6831 = vmatpush2.msra.mxu0 0.0
        %6832 = vmatprep.subr.mxu0 0.0
        %6833 = vmatpush2.msra.mxu0 0.0
        %6834 = vmatprep.subr.mxu0 0.0
        %6835 = vmatpush2.msra.mxu0 0.0
        %6836 = vmatprep.subr.mxu0 0.0
        %6837 = vmatpush2.msra.mxu0 0.0
        %6838 = vmatprep.subr.mxu0 0.0
        %6839 = vmatpush2.msra.mxu0 0.0
        %6840 = vmatprep.subr.mxu0 0.0
        %6841 = vmatpush2.msra.mxu0 0.0
        %6842 = vmatprep.subr.mxu0 0.0
        %6843 = vmatpush2.msra.mxu0 0.0
        %6844 = vmatprep.subr.mxu0 0.0
        %6845 = vmatpush2.msra.mxu0 0.0
        %6846 = vmatprep.subr.mxu0 0.0
        %6847 = vmatpush2.msra.mxu0 0.0
        %6848 = vmatprep.subr.mxu0 0.0
        %6849 = vmatpush2.msra.mxu0 0.0
        %6850 = vmatprep.subr.mxu0 0.0
        %6851 = vmatpush2.msra.mxu0 0.0
        %6852 = vmatprep.subr.mxu0 0.0
        %6853 = vmatpush2.msra.mxu0 0.0
        %6854 = vmatprep.subr.mxu0 0.0
        %6855 = vmatpush2.msra.mxu0 0.0
        %6856 = vmatprep.mubr.f32.mxu0 0.0
        %v6857 = vand.u32 %v6244, 4294901760
        %6858 = vmatmul.mubr.f32.gmra.mxu0 %v6857
        %v6859 = vpop.f32.mrf.mxu0
        %v6860 = vadd.f32 %v6769, %v6859
        %v6861 = vpop.f32.mrf.mxu0
        %6862 = vmatprep.mubr.f32.mxu0 0.0
        %v6863 = vand.u32 %v6247, 4294901760
        %6864 = vmatmul.mubr.f32.gmra.mxu0 %v6863
        %v6865 = vpop.f32.mrf.mxu0
        %v6866 = vadd.f32 %v6775, %v6865
        %v6867 = vpop.f32.mrf.mxu0
        %6868 = vmatprep.mubr.f32.mxu0 0.0
        %v6869 = vand.u32 %v6250, 4294901760
        %6870 = vmatmul.mubr.f32.gmra.mxu0 %v6869
        %v6871 = vpop.f32.mrf.mxu0
        %v6872 = vadd.f32 %v6781, %v6871
        %v6873 = vpop.f32.mrf.mxu0
        %6874 = vdwg.mxu0
        %v6875 = vadd.f32 %v6199, %v6860
        %v6876 = vadd.f32 %v6200, %v6866
        %v6877 = vadd.f32 %v6201, %v6872
        %6878 = vst [vmem:[#allocation3] sm:$0xff] %v6875
        %6879 = vst [vmem:[#allocation3 + $0x8] sm:$0xff] %v6876
        %6880 = vst [vmem:[#allocation3 + $0x10] sm:$0xff] %v6877
        %v6881 = vld [vmem:[#allocation4] sm:$0xff]
        %v6882 = vld [vmem:[#allocation4 + $0x8] sm:$0xff]
        %v6883 = vld [vmem:[#allocation4 + $0x10] sm:$0xff]
        %6884 = vmatprep.subr.mxu0 0.0
        %6885 = vmatpush1.msra.mxu0 0.0
        %6886 = vmatprep.subr.mxu0 0.0
        %6887 = vmatpush1.msra.mxu0 0.0
        %6888 = vmatprep.subr.mxu0 0.0
        %6889 = vmatpush1.msra.mxu0 0.0
        %6890 = vmatprep.subr.mxu0 0.0
        %6891 = vmatpush1.msra.mxu0 0.0
        %6892 = vmatprep.subr.mxu0 0.0
        %6893 = vmatpush1.msra.mxu0 0.0
        %6894 = vmatprep.subr.mxu0 0.0
        %6895 = vmatpush1.msra.mxu0 0.0
        %6896 = vmatprep.subr.mxu0 0.0
        %6897 = vmatpush1.msra.mxu0 0.0
        %6898 = vmatprep.subr.mxu0 0.0
        %6899 = vmatpush1.msra.mxu0 0.0
        %6900 = vmatprep.subr.mxu0 0.0
        %v6901 = vand.u32 %v5240, 4294901760
        %6902 = vmatpush1.msra.mxu0 %v6901
        %6903 = vmatprep.subr.mxu0 0.0
        %v6904 = vand.u32 %v5238, 4294901760
        %6905 = vmatpush1.msra.mxu0 %v6904
        %6906 = vmatprep.subr.mxu0 0.0
        %v6907 = vand.u32 %v5236, 4294901760
        %6908 = vmatpush1.msra.mxu0 %v6907
        %6909 = vmatprep.subr.mxu0 0.0
        %v6910 = vand.u32 %v5234, 4294901760
        %6911 = vmatpush1.msra.mxu0 %v6910
        %6912 = vmatprep.subr.mxu0 0.0
        %v6913 = vand.u32 %v5232, 4294901760
        %6914 = vmatpush1.msra.mxu0 %v6913
        %6915 = vmatprep.subr.mxu0 0.0
        %v6916 = vand.u32 %v5230, 4294901760
        %6917 = vmatpush1.msra.mxu0 %v6916
        %6918 = vmatprep.subr.mxu0 0.0
        %v6919 = vand.u32 %v5228, 4294901760
        %6920 = vmatpush1.msra.mxu0 %v6919
        %6921 = vmatprep.subr.mxu0 0.0
        %v6922 = vand.u32 %v5226, 4294901760
        %6923 = vmatpush1.msra.mxu0 %v6922
        %6924 = vmatprep.subr.mxu0 0.0
        %6925 = vmatpush2.msra.mxu0 0.0
        %6926 = vmatprep.subr.mxu0 0.0
        %6927 = vmatpush2.msra.mxu0 0.0
        %6928 = vmatprep.subr.mxu0 0.0
        %6929 = vmatpush2.msra.mxu0 0.0
        %6930 = vmatprep.subr.mxu0 0.0
        %6931 = vmatpush2.msra.mxu0 0.0
        %6932 = vmatprep.subr.mxu0 0.0
        %6933 = vmatpush2.msra.mxu0 0.0
        %6934 = vmatprep.subr.mxu0 0.0
        %6935 = vmatpush2.msra.mxu0 0.0
        %6936 = vmatprep.subr.mxu0 0.0
        %6937 = vmatpush2.msra.mxu0 0.0
        %6938 = vmatprep.subr.mxu0 0.0
        %6939 = vmatpush2.msra.mxu0 0.0
        %6940 = vmatprep.subr.mxu0 0.0
        %6941 = vmatpush2.msra.mxu0 0.0
        %6942 = vmatprep.subr.mxu0 0.0
        %6943 = vmatpush2.msra.mxu0 0.0
        %6944 = vmatprep.subr.mxu0 0.0
        %6945 = vmatpush2.msra.mxu0 0.0
        %6946 = vmatprep.subr.mxu0 0.0
        %6947 = vmatpush2.msra.mxu0 0.0
        %6948 = vmatprep.subr.mxu0 0.0
        %6949 = vmatpush2.msra.mxu0 0.0
        %6950 = vmatprep.subr.mxu0 0.0
        %6951 = vmatpush2.msra.mxu0 0.0
        %6952 = vmatprep.subr.mxu0 0.0
        %6953 = vmatpush2.msra.mxu0 0.0
        %6954 = vmatprep.subr.mxu0 0.0
        %6955 = vmatpush2.msra.mxu0 0.0
        %6956 = vmatprep.mubr.f32.mxu0 0.0
        %v6957 = vand.u32 %v6244, 4294901760
        %v6958 = vsub.f32 %v6244, %v6957
        %v6959 = vand.u32 %v6958, 4294901760
        %v6960 = vsub.f32 %v6958, %v6959
        %v6961 = vand.u32 %v6960, 4294901760
        %6962 = vmatmul.mubr.f32.gmra.mxu0 %v6961
        %v6963 = vpop.f32.mrf.mxu0
        %v6964 = vadd.f32 0.0, %v6963
        %v6965 = vpop.f32.mrf.mxu0
        %6966 = vmatprep.mubr.f32.mxu0 0.0
        %v6967 = vand.u32 %v6247, 4294901760
        %v6968 = vsub.f32 %v6247, %v6967
        %v6969 = vand.u32 %v6968, 4294901760
        %v6970 = vsub.f32 %v6968, %v6969
        %v6971 = vand.u32 %v6970, 4294901760
        %6972 = vmatmul.mubr.f32.gmra.mxu0 %v6971
        %v6973 = vpop.f32.mrf.mxu0
        %v6974 = vadd.f32 0.0, %v6973
        %v6975 = vpop.f32.mrf.mxu0
        %6976 = vmatprep.mubr.f32.mxu0 0.0
        %v6977 = vand.u32 %v6250, 4294901760
        %v6978 = vsub.f32 %v6250, %v6977
        %v6979 = vand.u32 %v6978, 4294901760
        %v6980 = vsub.f32 %v6978, %v6979
        %v6981 = vand.u32 %v6980, 4294901760
        %6982 = vmatmul.mubr.f32.gmra.mxu0 %v6981
        %v6983 = vpop.f32.mrf.mxu0
        %v6984 = vadd.f32 0.0, %v6983
        %v6985 = vpop.f32.mrf.mxu0
        %6986 = vdwg.mxu0
        %6987 = vmatprep.subr.mxu0 0.0
        %6988 = vmatpush1.msra.mxu0 0.0
        %6989 = vmatprep.subr.mxu0 0.0
        %6990 = vmatpush1.msra.mxu0 0.0
        %6991 = vmatprep.subr.mxu0 0.0
        %6992 = vmatpush1.msra.mxu0 0.0
        %6993 = vmatprep.subr.mxu0 0.0
        %6994 = vmatpush1.msra.mxu0 0.0
        %6995 = vmatprep.subr.mxu0 0.0
        %6996 = vmatpush1.msra.mxu0 0.0
        %6997 = vmatprep.subr.mxu0 0.0
        %6998 = vmatpush1.msra.mxu0 0.0
        %6999 = vmatprep.subr.mxu0 0.0
        %7000 = vmatpush1.msra.mxu0 0.0
        %7001 = vmatprep.subr.mxu0 0.0
        %7002 = vmatpush1.msra.mxu0 0.0
        %7003 = vmatprep.subr.mxu0 0.0
        %v7004 = vand.u32 %v5240, 4294901760
        %v7005 = vsub.f32 %v5240, %v7004
        %v7006 = vand.u32 %v7005, 4294901760
        %v7007 = vsub.f32 %v7005, %v7006
        %v7008 = vand.u32 %v7007, 4294901760
        %7009 = vmatpush1.msra.mxu0 %v7008
        %7010 = vmatprep.subr.mxu0 0.0
        %v7011 = vand.u32 %v5238, 4294901760
        %v7012 = vsub.f32 %v5238, %v7011
        %v7013 = vand.u32 %v7012, 4294901760
        %v7014 = vsub.f32 %v7012, %v7013
        %v7015 = vand.u32 %v7014, 4294901760
        %7016 = vmatpush1.msra.mxu0 %v7015
        %7017 = vmatprep.subr.mxu0 0.0
        %v7018 = vand.u32 %v5236, 4294901760
        %v7019 = vsub.f32 %v5236, %v7018
        %v7020 = vand.u32 %v7019, 4294901760
        %v7021 = vsub.f32 %v7019, %v7020
        %v7022 = vand.u32 %v7021, 4294901760
        %7023 = vmatpush1.msra.mxu0 %v7022
        %7024 = vmatprep.subr.mxu0 0.0
        %v7025 = vand.u32 %v5234, 4294901760
        %v7026 = vsub.f32 %v5234, %v7025
        %v7027 = vand.u32 %v7026, 4294901760
        %v7028 = vsub.f32 %v7026, %v7027
        %v7029 = vand.u32 %v7028, 4294901760
        %7030 = vmatpush1.msra.mxu0 %v7029
        %7031 = vmatprep.subr.mxu0 0.0
        %v7032 = vand.u32 %v5232, 4294901760
        %v7033 = vsub.f32 %v5232, %v7032
        %v7034 = vand.u32 %v7033, 4294901760
        %v7035 = vsub.f32 %v7033, %v7034
        %v7036 = vand.u32 %v7035, 4294901760
        %7037 = vmatpush1.msra.mxu0 %v7036
        %7038 = vmatprep.subr.mxu0 0.0
        %v7039 = vand.u32 %v5230, 4294901760
        %v7040 = vsub.f32 %v5230, %v7039
        %v7041 = vand.u32 %v7040, 4294901760
        %v7042 = vsub.f32 %v7040, %v7041
        %v7043 = vand.u32 %v7042, 4294901760
        %7044 = vmatpush1.msra.mxu0 %v7043
        %7045 = vmatprep.subr.mxu0 0.0
        %v7046 = vand.u32 %v5228, 4294901760
        %v7047 = vsub.f32 %v5228, %v7046
        %v7048 = vand.u32 %v7047, 4294901760
        %v7049 = vsub.f32 %v7047, %v7048
        %v7050 = vand.u32 %v7049, 4294901760
        %7051 = vmatpush1.msra.mxu0 %v7050
        %7052 = vmatprep.subr.mxu0 0.0
        %v7053 = vand.u32 %v5226, 4294901760
        %v7054 = vsub.f32 %v5226, %v7053
        %v7055 = vand.u32 %v7054, 4294901760
        %v7056 = vsub.f32 %v7054, %v7055
        %v7057 = vand.u32 %v7056, 4294901760
        %7058 = vmatpush1.msra.mxu0 %v7057
        %7059 = vmatprep.subr.mxu0 0.0
        %7060 = vmatpush2.msra.mxu0 0.0
        %7061 = vmatprep.subr.mxu0 0.0
        %7062 = vmatpush2.msra.mxu0 0.0
        %7063 = vmatprep.subr.mxu0 0.0
        %7064 = vmatpush2.msra.mxu0 0.0
        %7065 = vmatprep.subr.mxu0 0.0
        %7066 = vmatpush2.msra.mxu0 0.0
        %7067 = vmatprep.subr.mxu0 0.0
        %7068 = vmatpush2.msra.mxu0 0.0
        %7069 = vmatprep.subr.mxu0 0.0
        %7070 = vmatpush2.msra.mxu0 0.0
        %7071 = vmatprep.subr.mxu0 0.0
        %7072 = vmatpush2.msra.mxu0 0.0
        %7073 = vmatprep.subr.mxu0 0.0
        %7074 = vmatpush2.msra.mxu0 0.0
        %7075 = vmatprep.subr.mxu0 0.0
        %7076 = vmatpush2.msra.mxu0 0.0
        %7077 = vmatprep.subr.mxu0 0.0
        %7078 = vmatpush2.msra.mxu0 0.0
        %7079 = vmatprep.subr.mxu0 0.0
        %7080 = vmatpush2.msra.mxu0 0.0
        %7081 = vmatprep.subr.mxu0 0.0
        %7082 = vmatpush2.msra.mxu0 0.0
        %7083 = vmatprep.subr.mxu0 0.0
        %7084 = vmatpush2.msra.mxu0 0.0
        %7085 = vmatprep.subr.mxu0 0.0
        %7086 = vmatpush2.msra.mxu0 0.0
        %7087 = vmatprep.subr.mxu0 0.0
        %7088 = vmatpush2.msra.mxu0 0.0
        %7089 = vmatprep.subr.mxu0 0.0
        %7090 = vmatpush2.msra.mxu0 0.0
        %7091 = vmatprep.mubr.f32.mxu0 0.0
        %v7092 = vand.u32 %v6244, 4294901760
        %7093 = vmatmul.mubr.f32.gmra.mxu0 %v7092
        %v7094 = vpop.f32.mrf.mxu0
        %v7095 = vadd.f32 %v6964, %v7094
        %v7096 = vpop.f32.mrf.mxu0
        %7097 = vmatprep.mubr.f32.mxu0 0.0
        %v7098 = vand.u32 %v6247, 4294901760
        %7099 = vmatmul.mubr.f32.gmra.mxu0 %v7098
        %v7100 = vpop.f32.mrf.mxu0
        %v7101 = vadd.f32 %v6974, %v7100
        %v7102 = vpop.f32.mrf.mxu0
        %7103 = vmatprep.mubr.f32.mxu0 0.0
        %v7104 = vand.u32 %v6250, 4294901760
        %7105 = vmatmul.mubr.f32.gmra.mxu0 %v7104
        %v7106 = vpop.f32.mrf.mxu0
        %v7107 = vadd.f32 %v6984, %v7106
        %v7108 = vpop.f32.mrf.mxu0
        %7109 = vdwg.mxu0
        %7110 = vmatprep.subr.mxu0 0.0
        %7111 = vmatpush1.msra.mxu0 0.0
        %7112 = vmatprep.subr.mxu0 0.0
        %7113 = vmatpush1.msra.mxu0 0.0
        %7114 = vmatprep.subr.mxu0 0.0
        %7115 = vmatpush1.msra.mxu0 0.0
        %7116 = vmatprep.subr.mxu0 0.0
        %7117 = vmatpush1.msra.mxu0 0.0
        %7118 = vmatprep.subr.mxu0 0.0
        %7119 = vmatpush1.msra.mxu0 0.0
        %7120 = vmatprep.subr.mxu0 0.0
        %7121 = vmatpush1.msra.mxu0 0.0
        %7122 = vmatprep.subr.mxu0 0.0
        %7123 = vmatpush1.msra.mxu0 0.0
        %7124 = vmatprep.subr.mxu0 0.0
        %7125 = vmatpush1.msra.mxu0 0.0
        %7126 = vmatprep.subr.mxu0 0.0
        %v7127 = vand.u32 %v5240, 4294901760
        %v7128 = vsub.f32 %v5240, %v7127
        %7129 = vmatpush1.msra.mxu0 %v7128
        %7130 = vmatprep.subr.mxu0 0.0
        %v7131 = vand.u32 %v5238, 4294901760
        %v7132 = vsub.f32 %v5238, %v7131
        %7133 = vmatpush1.msra.mxu0 %v7132
        %7134 = vmatprep.subr.mxu0 0.0
        %v7135 = vand.u32 %v5236, 4294901760
        %v7136 = vsub.f32 %v5236, %v7135
        %7137 = vmatpush1.msra.mxu0 %v7136
        %7138 = vmatprep.subr.mxu0 0.0
        %v7139 = vand.u32 %v5234, 4294901760
        %v7140 = vsub.f32 %v5234, %v7139
        %7141 = vmatpush1.msra.mxu0 %v7140
        %7142 = vmatprep.subr.mxu0 0.0
        %v7143 = vand.u32 %v5232, 4294901760
        %v7144 = vsub.f32 %v5232, %v7143
        %7145 = vmatpush1.msra.mxu0 %v7144
        %7146 = vmatprep.subr.mxu0 0.0
        %v7147 = vand.u32 %v5230, 4294901760
        %v7148 = vsub.f32 %v5230, %v7147
        %7149 = vmatpush1.msra.mxu0 %v7148
        %7150 = vmatprep.subr.mxu0 0.0
        %v7151 = vand.u32 %v5228, 4294901760
        %v7152 = vsub.f32 %v5228, %v7151
        %7153 = vmatpush1.msra.mxu0 %v7152
        %7154 = vmatprep.subr.mxu0 0.0
        %v7155 = vand.u32 %v5226, 4294901760
        %v7156 = vsub.f32 %v5226, %v7155
        %7157 = vmatpush1.msra.mxu0 %v7156
        %7158 = vmatprep.subr.mxu0 0.0
        %7159 = vmatpush2.msra.mxu0 0.0
        %7160 = vmatprep.subr.mxu0 0.0
        %7161 = vmatpush2.msra.mxu0 0.0
        %7162 = vmatprep.subr.mxu0 0.0
        %7163 = vmatpush2.msra.mxu0 0.0
        %7164 = vmatprep.subr.mxu0 0.0
        %7165 = vmatpush2.msra.mxu0 0.0
        %7166 = vmatprep.subr.mxu0 0.0
        %7167 = vmatpush2.msra.mxu0 0.0
        %7168 = vmatprep.subr.mxu0 0.0
        %7169 = vmatpush2.msra.mxu0 0.0
        %7170 = vmatprep.subr.mxu0 0.0
        %7171 = vmatpush2.msra.mxu0 0.0
        %7172 = vmatprep.subr.mxu0 0.0
        %7173 = vmatpush2.msra.mxu0 0.0
        %7174 = vmatprep.subr.mxu0 0.0
        %7175 = vmatpush2.msra.mxu0 0.0
        %7176 = vmatprep.subr.mxu0 0.0
        %7177 = vmatpush2.msra.mxu0 0.0
        %7178 = vmatprep.subr.mxu0 0.0
        %7179 = vmatpush2.msra.mxu0 0.0
        %7180 = vmatprep.subr.mxu0 0.0
        %7181 = vmatpush2.msra.mxu0 0.0
        %7182 = vmatprep.subr.mxu0 0.0
        %7183 = vmatpush2.msra.mxu0 0.0
        %7184 = vmatprep.subr.mxu0 0.0
        %7185 = vmatpush2.msra.mxu0 0.0
        %7186 = vmatprep.subr.mxu0 0.0
        %7187 = vmatpush2.msra.mxu0 0.0
        %7188 = vmatprep.subr.mxu0 0.0
        %7189 = vmatpush2.msra.mxu0 0.0
        %7190 = vmatprep.mubr.f32.mxu0 0.0
        %v7191 = vand.u32 %v6244, 4294901760
        %v7192 = vsub.f32 %v6244, %v7191
        %7193 = vmatmul.mubr.f32.gmra.mxu0 %v7192
        %v7194 = vpop.f32.mrf.mxu0
        %v7195 = vadd.f32 %v7095, %v7194
        %v7196 = vpop.f32.mrf.mxu0
        %7197 = vmatprep.mubr.f32.mxu0 0.0
        %v7198 = vand.u32 %v6247, 4294901760
        %v7199 = vsub.f32 %v6247, %v7198
        %7200 = vmatmul.mubr.f32.gmra.mxu0 %v7199
        %v7201 = vpop.f32.mrf.mxu0
        %v7202 = vadd.f32 %v7101, %v7201
        %v7203 = vpop.f32.mrf.mxu0
        %7204 = vmatprep.mubr.f32.mxu0 0.0
        %v7205 = vand.u32 %v6250, 4294901760
        %v7206 = vsub.f32 %v6250, %v7205
        %7207 = vmatmul.mubr.f32.gmra.mxu0 %v7206
        %v7208 = vpop.f32.mrf.mxu0
        %v7209 = vadd.f32 %v7107, %v7208
        %v7210 = vpop.f32.mrf.mxu0
        %7211 = vdwg.mxu0
        %7212 = vmatprep.subr.mxu0 0.0
        %7213 = vmatpush1.msra.mxu0 0.0
        %7214 = vmatprep.subr.mxu0 0.0
        %7215 = vmatpush1.msra.mxu0 0.0
        %7216 = vmatprep.subr.mxu0 0.0
        %7217 = vmatpush1.msra.mxu0 0.0
        %7218 = vmatprep.subr.mxu0 0.0
        %7219 = vmatpush1.msra.mxu0 0.0
        %7220 = vmatprep.subr.mxu0 0.0
        %7221 = vmatpush1.msra.mxu0 0.0
        %7222 = vmatprep.subr.mxu0 0.0
        %7223 = vmatpush1.msra.mxu0 0.0
        %7224 = vmatprep.subr.mxu0 0.0
        %7225 = vmatpush1.msra.mxu0 0.0
        %7226 = vmatprep.subr.mxu0 0.0
        %7227 = vmatpush1.msra.mxu0 0.0
        %7228 = vmatprep.subr.mxu0 0.0
        %v7229 = vand.u32 %v5240, 4294901760
        %7230 = vmatpush1.msra.mxu0 %v7229
        %7231 = vmatprep.subr.mxu0 0.0
        %v7232 = vand.u32 %v5238, 4294901760
        %7233 = vmatpush1.msra.mxu0 %v7232
        %7234 = vmatprep.subr.mxu0 0.0
        %v7235 = vand.u32 %v5236, 4294901760
        %7236 = vmatpush1.msra.mxu0 %v7235
        %7237 = vmatprep.subr.mxu0 0.0
        %v7238 = vand.u32 %v5234, 4294901760
        %7239 = vmatpush1.msra.mxu0 %v7238
        %7240 = vmatprep.subr.mxu0 0.0
        %v7241 = vand.u32 %v5232, 4294901760
        %7242 = vmatpush1.msra.mxu0 %v7241
        %7243 = vmatprep.subr.mxu0 0.0
        %v7244 = vand.u32 %v5230, 4294901760
        %7245 = vmatpush1.msra.mxu0 %v7244
        %7246 = vmatprep.subr.mxu0 0.0
        %v7247 = vand.u32 %v5228, 4294901760
        %7248 = vmatpush1.msra.mxu0 %v7247
        %7249 = vmatprep.subr.mxu0 0.0
        %v7250 = vand.u32 %v5226, 4294901760
        %7251 = vmatpush1.msra.mxu0 %v7250
        %7252 = vmatprep.subr.mxu0 0.0
        %7253 = vmatpush2.msra.mxu0 0.0
        %7254 = vmatprep.subr.mxu0 0.0
        %7255 = vmatpush2.msra.mxu0 0.0
        %7256 = vmatprep.subr.mxu0 0.0
        %7257 = vmatpush2.msra.mxu0 0.0
        %7258 = vmatprep.subr.mxu0 0.0
        %7259 = vmatpush2.msra.mxu0 0.0
        %7260 = vmatprep.subr.mxu0 0.0
        %7261 = vmatpush2.msra.mxu0 0.0
        %7262 = vmatprep.subr.mxu0 0.0
        %7263 = vmatpush2.msra.mxu0 0.0
        %7264 = vmatprep.subr.mxu0 0.0
        %7265 = vmatpush2.msra.mxu0 0.0
        %7266 = vmatprep.subr.mxu0 0.0
        %7267 = vmatpush2.msra.mxu0 0.0
        %7268 = vmatprep.subr.mxu0 0.0
        %7269 = vmatpush2.msra.mxu0 0.0
        %7270 = vmatprep.subr.mxu0 0.0
        %7271 = vmatpush2.msra.mxu0 0.0
        %7272 = vmatprep.subr.mxu0 0.0
        %7273 = vmatpush2.msra.mxu0 0.0
        %7274 = vmatprep.subr.mxu0 0.0
        %7275 = vmatpush2.msra.mxu0 0.0
        %7276 = vmatprep.subr.mxu0 0.0
        %7277 = vmatpush2.msra.mxu0 0.0
        %7278 = vmatprep.subr.mxu0 0.0
        %7279 = vmatpush2.msra.mxu0 0.0
        %7280 = vmatprep.subr.mxu0 0.0
        %7281 = vmatpush2.msra.mxu0 0.0
        %7282 = vmatprep.subr.mxu0 0.0
        %7283 = vmatpush2.msra.mxu0 0.0
        %7284 = vmatprep.mubr.f32.mxu0 0.0
        %v7285 = vand.u32 %v6244, 4294901760
        %v7286 = vsub.f32 %v6244, %v7285
        %v7287 = vand.u32 %v7286, 4294901760
        %7288 = vmatmul.mubr.f32.gmra.mxu0 %v7287
        %v7289 = vpop.f32.mrf.mxu0
        %v7290 = vadd.f32 %v7195, %v7289
        %v7291 = vpop.f32.mrf.mxu0
        %7292 = vmatprep.mubr.f32.mxu0 0.0
        %v7293 = vand.u32 %v6247, 4294901760
        %v7294 = vsub.f32 %v6247, %v7293
        %v7295 = vand.u32 %v7294, 4294901760
        %7296 = vmatmul.mubr.f32.gmra.mxu0 %v7295
        %v7297 = vpop.f32.mrf.mxu0
        %v7298 = vadd.f32 %v7202, %v7297
        %v7299 = vpop.f32.mrf.mxu0
        %7300 = vmatprep.mubr.f32.mxu0 0.0
        %v7301 = vand.u32 %v6250, 4294901760
        %v7302 = vsub.f32 %v6250, %v7301
        %v7303 = vand.u32 %v7302, 4294901760
        %7304 = vmatmul.mubr.f32.gmra.mxu0 %v7303
        %v7305 = vpop.f32.mrf.mxu0
        %v7306 = vadd.f32 %v7209, %v7305
        %v7307 = vpop.f32.mrf.mxu0
        %7308 = vdwg.mxu0
        %7309 = vmatprep.subr.mxu0 0.0
        %7310 = vmatpush1.msra.mxu0 0.0
        %7311 = vmatprep.subr.mxu0 0.0
        %7312 = vmatpush1.msra.mxu0 0.0
        %7313 = vmatprep.subr.mxu0 0.0
        %7314 = vmatpush1.msra.mxu0 0.0
        %7315 = vmatprep.subr.mxu0 0.0
        %7316 = vmatpush1.msra.mxu0 0.0
        %7317 = vmatprep.subr.mxu0 0.0
        %7318 = vmatpush1.msra.mxu0 0.0
        %7319 = vmatprep.subr.mxu0 0.0
        %7320 = vmatpush1.msra.mxu0 0.0
        %7321 = vmatprep.subr.mxu0 0.0
        %7322 = vmatpush1.msra.mxu0 0.0
        %7323 = vmatprep.subr.mxu0 0.0
        %7324 = vmatpush1.msra.mxu0 0.0
        %7325 = vmatprep.subr.mxu0 0.0
        %v7326 = vand.u32 %v5240, 4294901760
        %v7327 = vsub.f32 %v5240, %v7326
        %v7328 = vand.u32 %v7327, 4294901760
        %7329 = vmatpush1.msra.mxu0 %v7328
        %7330 = vmatprep.subr.mxu0 0.0
        %v7331 = vand.u32 %v5238, 4294901760
        %v7332 = vsub.f32 %v5238, %v7331
        %v7333 = vand.u32 %v7332, 4294901760
        %7334 = vmatpush1.msra.mxu0 %v7333
        %7335 = vmatprep.subr.mxu0 0.0
        %v7336 = vand.u32 %v5236, 4294901760
        %v7337 = vsub.f32 %v5236, %v7336
        %v7338 = vand.u32 %v7337, 4294901760
        %7339 = vmatpush1.msra.mxu0 %v7338
        %7340 = vmatprep.subr.mxu0 0.0
        %v7341 = vand.u32 %v5234, 4294901760
        %v7342 = vsub.f32 %v5234, %v7341
        %v7343 = vand.u32 %v7342, 4294901760
        %7344 = vmatpush1.msra.mxu0 %v7343
        %7345 = vmatprep.subr.mxu0 0.0
        %v7346 = vand.u32 %v5232, 4294901760
        %v7347 = vsub.f32 %v5232, %v7346
        %v7348 = vand.u32 %v7347, 4294901760
        %7349 = vmatpush1.msra.mxu0 %v7348
        %7350 = vmatprep.subr.mxu0 0.0
        %v7351 = vand.u32 %v5230, 4294901760
        %v7352 = vsub.f32 %v5230, %v7351
        %v7353 = vand.u32 %v7352, 4294901760
        %7354 = vmatpush1.msra.mxu0 %v7353
        %7355 = vmatprep.subr.mxu0 0.0
        %v7356 = vand.u32 %v5228, 4294901760
        %v7357 = vsub.f32 %v5228, %v7356
        %v7358 = vand.u32 %v7357, 4294901760
        %7359 = vmatpush1.msra.mxu0 %v7358
        %7360 = vmatprep.subr.mxu0 0.0
        %v7361 = vand.u32 %v5226, 4294901760
        %v7362 = vsub.f32 %v5226, %v7361
        %v7363 = vand.u32 %v7362, 4294901760
        %7364 = vmatpush1.msra.mxu0 %v7363
        %7365 = vmatprep.subr.mxu0 0.0
        %7366 = vmatpush2.msra.mxu0 0.0
        %7367 = vmatprep.subr.mxu0 0.0
        %7368 = vmatpush2.msra.mxu0 0.0
        %7369 = vmatprep.subr.mxu0 0.0
        %7370 = vmatpush2.msra.mxu0 0.0
        %7371 = vmatprep.subr.mxu0 0.0
        %7372 = vmatpush2.msra.mxu0 0.0
        %7373 = vmatprep.subr.mxu0 0.0
        %7374 = vmatpush2.msra.mxu0 0.0
        %7375 = vmatprep.subr.mxu0 0.0
        %7376 = vmatpush2.msra.mxu0 0.0
        %7377 = vmatprep.subr.mxu0 0.0
        %7378 = vmatpush2.msra.mxu0 0.0
        %7379 = vmatprep.subr.mxu0 0.0
        %7380 = vmatpush2.msra.mxu0 0.0
        %7381 = vmatprep.subr.mxu0 0.0
        %7382 = vmatpush2.msra.mxu0 0.0
        %7383 = vmatprep.subr.mxu0 0.0
        %7384 = vmatpush2.msra.mxu0 0.0
        %7385 = vmatprep.subr.mxu0 0.0
        %7386 = vmatpush2.msra.mxu0 0.0
        %7387 = vmatprep.subr.mxu0 0.0
        %7388 = vmatpush2.msra.mxu0 0.0
        %7389 = vmatprep.subr.mxu0 0.0
        %7390 = vmatpush2.msra.mxu0 0.0
        %7391 = vmatprep.subr.mxu0 0.0
        %7392 = vmatpush2.msra.mxu0 0.0
        %7393 = vmatprep.subr.mxu0 0.0
        %7394 = vmatpush2.msra.mxu0 0.0
        %7395 = vmatprep.subr.mxu0 0.0
        %7396 = vmatpush2.msra.mxu0 0.0
        %7397 = vmatprep.mubr.f32.mxu0 0.0
        %v7398 = vand.u32 %v6244, 4294901760
        %7399 = vmatmul.mubr.f32.gmra.mxu0 %v7398
        %v7400 = vpop.f32.mrf.mxu0
        %v7401 = vadd.f32 %v7290, %v7400
        %v7402 = vpop.f32.mrf.mxu0
        %7403 = vmatprep.mubr.f32.mxu0 0.0
        %v7404 = vand.u32 %v6247, 4294901760
        %7405 = vmatmul.mubr.f32.gmra.mxu0 %v7404
        %v7406 = vpop.f32.mrf.mxu0
        %v7407 = vadd.f32 %v7298, %v7406
        %v7408 = vpop.f32.mrf.mxu0
        %7409 = vmatprep.mubr.f32.mxu0 0.0
        %v7410 = vand.u32 %v6250, 4294901760
        %7411 = vmatmul.mubr.f32.gmra.mxu0 %v7410
        %v7412 = vpop.f32.mrf.mxu0
        %v7413 = vadd.f32 %v7306, %v7412
        %v7414 = vpop.f32.mrf.mxu0
        %7415 = vdwg.mxu0
        %7416 = vmatprep.subr.mxu0 0.0
        %7417 = vmatpush1.msra.mxu0 0.0
        %7418 = vmatprep.subr.mxu0 0.0
        %7419 = vmatpush1.msra.mxu0 0.0
        %7420 = vmatprep.subr.mxu0 0.0
        %7421 = vmatpush1.msra.mxu0 0.0
        %7422 = vmatprep.subr.mxu0 0.0
        %7423 = vmatpush1.msra.mxu0 0.0
        %7424 = vmatprep.subr.mxu0 0.0
        %7425 = vmatpush1.msra.mxu0 0.0
        %7426 = vmatprep.subr.mxu0 0.0
        %7427 = vmatpush1.msra.mxu0 0.0
        %7428 = vmatprep.subr.mxu0 0.0
        %7429 = vmatpush1.msra.mxu0 0.0
        %7430 = vmatprep.subr.mxu0 0.0
        %7431 = vmatpush1.msra.mxu0 0.0
        %7432 = vmatprep.subr.mxu0 0.0
        %v7433 = vand.u32 %v5240, 4294901760
        %7434 = vmatpush1.msra.mxu0 %v7433
        %7435 = vmatprep.subr.mxu0 0.0
        %v7436 = vand.u32 %v5238, 4294901760
        %7437 = vmatpush1.msra.mxu0 %v7436
        %7438 = vmatprep.subr.mxu0 0.0
        %v7439 = vand.u32 %v5236, 4294901760
        %7440 = vmatpush1.msra.mxu0 %v7439
        %7441 = vmatprep.subr.mxu0 0.0
        %v7442 = vand.u32 %v5234, 4294901760
        %7443 = vmatpush1.msra.mxu0 %v7442
        %7444 = vmatprep.subr.mxu0 0.0
        %v7445 = vand.u32 %v5232, 4294901760
        %7446 = vmatpush1.msra.mxu0 %v7445
        %7447 = vmatprep.subr.mxu0 0.0
        %v7448 = vand.u32 %v5230, 4294901760
        %7449 = vmatpush1.msra.mxu0 %v7448
        %7450 = vmatprep.subr.mxu0 0.0
        %v7451 = vand.u32 %v5228, 4294901760
        %7452 = vmatpush1.msra.mxu0 %v7451
        %7453 = vmatprep.subr.mxu0 0.0
        %v7454 = vand.u32 %v5226, 4294901760
        %7455 = vmatpush1.msra.mxu0 %v7454
        %7456 = vmatprep.subr.mxu0 0.0
        %7457 = vmatpush2.msra.mxu0 0.0
        %7458 = vmatprep.subr.mxu0 0.0
        %7459 = vmatpush2.msra.mxu0 0.0
        %7460 = vmatprep.subr.mxu0 0.0
        %7461 = vmatpush2.msra.mxu0 0.0
        %7462 = vmatprep.subr.mxu0 0.0
        %7463 = vmatpush2.msra.mxu0 0.0
        %7464 = vmatprep.subr.mxu0 0.0
        %7465 = vmatpush2.msra.mxu0 0.0
        %7466 = vmatprep.subr.mxu0 0.0
        %7467 = vmatpush2.msra.mxu0 0.0
        %7468 = vmatprep.subr.mxu0 0.0
        %7469 = vmatpush2.msra.mxu0 0.0
        %7470 = vmatprep.subr.mxu0 0.0
        %7471 = vmatpush2.msra.mxu0 0.0
        %7472 = vmatprep.subr.mxu0 0.0
        %7473 = vmatpush2.msra.mxu0 0.0
        %7474 = vmatprep.subr.mxu0 0.0
        %7475 = vmatpush2.msra.mxu0 0.0
        %7476 = vmatprep.subr.mxu0 0.0
        %7477 = vmatpush2.msra.mxu0 0.0
        %7478 = vmatprep.subr.mxu0 0.0
        %7479 = vmatpush2.msra.mxu0 0.0
        %7480 = vmatprep.subr.mxu0 0.0
        %7481 = vmatpush2.msra.mxu0 0.0
        %7482 = vmatprep.subr.mxu0 0.0
        %7483 = vmatpush2.msra.mxu0 0.0
        %7484 = vmatprep.subr.mxu0 0.0
        %7485 = vmatpush2.msra.mxu0 0.0
        %7486 = vmatprep.subr.mxu0 0.0
        %7487 = vmatpush2.msra.mxu0 0.0
        %7488 = vmatprep.mubr.f32.mxu0 0.0
        %v7489 = vand.u32 %v6244, 4294901760
        %7490 = vmatmul.mubr.f32.gmra.mxu0 %v7489
        %v7491 = vpop.f32.mrf.mxu0
        %v7492 = vadd.f32 %v7401, %v7491
        %v7493 = vpop.f32.mrf.mxu0
        %7494 = vmatprep.mubr.f32.mxu0 0.0
        %v7495 = vand.u32 %v6247, 4294901760
        %7496 = vmatmul.mubr.f32.gmra.mxu0 %v7495
        %v7497 = vpop.f32.mrf.mxu0
        %v7498 = vadd.f32 %v7407, %v7497
        %v7499 = vpop.f32.mrf.mxu0
        %7500 = vmatprep.mubr.f32.mxu0 0.0
        %v7501 = vand.u32 %v6250, 4294901760
        %7502 = vmatmul.mubr.f32.gmra.mxu0 %v7501
        %v7503 = vpop.f32.mrf.mxu0
        %v7504 = vadd.f32 %v7413, %v7503
        %v7505 = vpop.f32.mrf.mxu0
        %7506 = vdwg.mxu0
        %v7507 = vadd.f32 %v6881, %v7492
        %v7508 = vadd.f32 %v6882, %v7498
        %v7509 = vadd.f32 %v6883, %v7504
        %7510 = vst [vmem:[#allocation4] sm:$0xff] %v7507
        %7511 = vst [vmem:[#allocation4 + $0x8] sm:$0xff] %v7508
        %7512 = vst [vmem:[#allocation4 + $0x10] sm:$0xff] %v7509
        %p7513 = scmp.eq.s32.totalorder %s27, 2
        // Predicated region
        $region65: #{tpu_custom_call.1} parent=59 // pred_check
          %p7514 = pneg %p7513
        $region66: #{tpu_custom_call.1} parent=59 // pred_check_branch
          %7516 = sbr.rel (%p7514) target = $region68
        $region67: #{tpu_custom_call.1} parent=59 // pred_region
          %v7517 = vld [vmem:[#allocation4] sm:$0xff]
          %v7518 = vld [vmem:[#allocation4 + $0x8] sm:$0xff]
          %v7519 = vld [vmem:[#allocation4 + $0x10] sm:$0xff]
          %v7520 = vld [vmem:[%s9] sm:$0xff]
          %v7521 = vld [vmem:[%s9 + $0x8] sm:$0xff]
          %v7522 = vld [vmem:[%s9 + $0x10] sm:$0xff]
          %v7523 = vld [vmem:[%s9 + $0x18] sm:$0xff]
          %v7524 = vld [vmem:[%s9 + $0x20] sm:$0xff]
          %v7525 = vld [vmem:[%s9 + $0x28] sm:$0xff]
          %v7526 = vld [vmem:[%s9 + $0x30] sm:$0xff]
          %v7527 = vld [vmem:[%s9 + $0x38] sm:$0xff]
          %v7528 = vld [vmem:[%s9 + $0x40] sm:$0xff]
          %v7529 = vld [vmem:[%s9 + $0x48] sm:$0xff]
          %v7530 = vld [vmem:[%s9 + $0x50] sm:$0xff]
          %v7531 = vld [vmem:[%s9 + $0x58] sm:$0xff]
          %v7532 = vld [vmem:[%s9 + $0x60] sm:$0xff]
          %v7533 = vld [vmem:[%s9 + $0x68] sm:$0xff]
          %v7534 = vld [vmem:[%s9 + $0x70] sm:$0xff]
          %v7535 = vld [vmem:[%s9 + $0x78] sm:$0xff]
          %7536 = vmatprep.subr.mxu0 0.0
          %v7537 = vand.u32 %v7535, 4294901760
          %7538 = vmatpush1.msra.mxu0 %v7537
          %7539 = vmatprep.subr.mxu0 0.0
          %v7540 = vand.u32 %v7534, 4294901760
          %7541 = vmatpush1.msra.mxu0 %v7540
          %7542 = vmatprep.subr.mxu0 0.0
          %v7543 = vand.u32 %v7533, 4294901760
          %7544 = vmatpush1.msra.mxu0 %v7543
          %7545 = vmatprep.subr.mxu0 0.0
          %v7546 = vand.u32 %v7532, 4294901760
          %7547 = vmatpush1.msra.mxu0 %v7546
          %7548 = vmatprep.subr.mxu0 0.0
          %v7549 = vand.u32 %v7531, 4294901760
          %7550 = vmatpush1.msra.mxu0 %v7549
          %7551 = vmatprep.subr.mxu0 0.0
          %v7552 = vand.u32 %v7530, 4294901760
          %7553 = vmatpush1.msra.mxu0 %v7552
          %7554 = vmatprep.subr.mxu0 0.0
          %v7555 = vand.u32 %v7529, 4294901760
          %7556 = vmatpush1.msra.mxu0 %v7555
          %7557 = vmatprep.subr.mxu0 0.0
          %v7558 = vand.u32 %v7528, 4294901760
          %7559 = vmatpush1.msra.mxu0 %v7558
          %7560 = vmatprep.subr.mxu0 0.0
          %v7561 = vand.u32 %v7527, 4294901760
          %7562 = vmatpush1.msra.mxu0 %v7561
          %7563 = vmatprep.subr.mxu0 0.0
          %v7564 = vand.u32 %v7526, 4294901760
          %7565 = vmatpush1.msra.mxu0 %v7564
          %7566 = vmatprep.subr.mxu0 0.0
          %v7567 = vand.u32 %v7525, 4294901760
          %7568 = vmatpush1.msra.mxu0 %v7567
          %7569 = vmatprep.subr.mxu0 0.0
          %v7570 = vand.u32 %v7524, 4294901760
          %7571 = vmatpush1.msra.mxu0 %v7570
          %7572 = vmatprep.subr.mxu0 0.0
          %v7573 = vand.u32 %v7523, 4294901760
          %7574 = vmatpush1.msra.mxu0 %v7573
          %7575 = vmatprep.subr.mxu0 0.0
          %v7576 = vand.u32 %v7522, 4294901760
          %7577 = vmatpush1.msra.mxu0 %v7576
          %7578 = vmatprep.subr.mxu0 0.0
          %v7579 = vand.u32 %v7521, 4294901760
          %7580 = vmatpush1.msra.mxu0 %v7579
          %7581 = vmatprep.subr.mxu0 0.0
          %v7582 = vand.u32 %v7520, 4294901760
          %7583 = vmatpush1.msra.mxu0 %v7582
          %7584 = vmatprep.subr.mxu0 0.0
          %7585 = vmatpush2.msra.mxu0 0.0
          %7586 = vmatprep.subr.mxu0 0.0
          %7587 = vmatpush2.msra.mxu0 0.0
          %7588 = vmatprep.subr.mxu0 0.0
          %7589 = vmatpush2.msra.mxu0 0.0
          %7590 = vmatprep.subr.mxu0 0.0
          %7591 = vmatpush2.msra.mxu0 0.0
          %7592 = vmatprep.subr.mxu0 0.0
          %7593 = vmatpush2.msra.mxu0 0.0
          %7594 = vmatprep.subr.mxu0 0.0
          %7595 = vmatpush2.msra.mxu0 0.0
          %7596 = vmatprep.subr.mxu0 0.0
          %7597 = vmatpush2.msra.mxu0 0.0
          %7598 = vmatprep.subr.mxu0 0.0
          %7599 = vmatpush2.msra.mxu0 0.0
          %7600 = vmatprep.subr.mxu0 0.0
          %7601 = vmatpush2.msra.mxu0 0.0
          %7602 = vmatprep.subr.mxu0 0.0
          %7603 = vmatpush2.msra.mxu0 0.0
          %7604 = vmatprep.subr.mxu0 0.0
          %7605 = vmatpush2.msra.mxu0 0.0
          %7606 = vmatprep.subr.mxu0 0.0
          %7607 = vmatpush2.msra.mxu0 0.0
          %7608 = vmatprep.subr.mxu0 0.0
          %7609 = vmatpush2.msra.mxu0 0.0
          %7610 = vmatprep.subr.mxu0 0.0
          %7611 = vmatpush2.msra.mxu0 0.0
          %7612 = vmatprep.subr.mxu0 0.0
          %7613 = vmatpush2.msra.mxu0 0.0
          %7614 = vmatprep.subr.mxu0 0.0
          %7615 = vmatpush2.msra.mxu0 0.0
          %7616 = vmatprep.mubr.f32.mxu0 0.0
          %v7617 = vand.u32 %v7517, 4294901760
          %v7618 = vsub.f32 %v7517, %v7617
          %v7619 = vand.u32 %v7618, 4294901760
          %v7620 = vsub.f32 %v7618, %v7619
          %v7621 = vand.u32 %v7620, 4294901760
          %7622 = vmatmul.mubr.f32.gmra.mxu0 %v7621
          %v7623 = vpop.f32.mrf.mxu0
          %v7624 = vadd.f32 1e-06, %v7623
          %v7625 = vpop.f32.mrf.mxu0
          %7626 = vmatprep.mubr.f32.mxu0 0.0
          %v7627 = vand.u32 %v7518, 4294901760
          %v7628 = vsub.f32 %v7518, %v7627
          %v7629 = vand.u32 %v7628, 4294901760
          %v7630 = vsub.f32 %v7628, %v7629
          %v7631 = vand.u32 %v7630, 4294901760
          %7632 = vmatmul.mubr.f32.gmra.mxu0 %v7631
          %v7633 = vpop.f32.mrf.mxu0
          %v7634 = vadd.f32 1e-06, %v7633
          %v7635 = vpop.f32.mrf.mxu0
          %7636 = vmatprep.mubr.f32.mxu0 0.0
          %v7637 = vand.u32 %v7519, 4294901760
          %v7638 = vsub.f32 %v7519, %v7637
          %v7639 = vand.u32 %v7638, 4294901760
          %v7640 = vsub.f32 %v7638, %v7639
          %v7641 = vand.u32 %v7640, 4294901760
          %7642 = vmatmul.mubr.f32.gmra.mxu0 %v7641
          %v7643 = vpop.f32.mrf.mxu0
          %v7644 = vadd.f32 1e-06, %v7643
          %v7645 = vpop.f32.mrf.mxu0
          %7646 = vdwg.mxu0
          %7647 = vmatprep.subr.mxu0 0.0
          %v7648 = vand.u32 %v7535, 4294901760
          %v7649 = vsub.f32 %v7535, %v7648
          %v7650 = vand.u32 %v7649, 4294901760
          %v7651 = vsub.f32 %v7649, %v7650
          %v7652 = vand.u32 %v7651, 4294901760
          %7653 = vmatpush1.msra.mxu0 %v7652
          %7654 = vmatprep.subr.mxu0 0.0
          %v7655 = vand.u32 %v7534, 4294901760
          %v7656 = vsub.f32 %v7534, %v7655
          %v7657 = vand.u32 %v7656, 4294901760
          %v7658 = vsub.f32 %v7656, %v7657
          %v7659 = vand.u32 %v7658, 4294901760
          %7660 = vmatpush1.msra.mxu0 %v7659
          %7661 = vmatprep.subr.mxu0 0.0
          %v7662 = vand.u32 %v7533, 4294901760
          %v7663 = vsub.f32 %v7533, %v7662
          %v7664 = vand.u32 %v7663, 4294901760
          %v7665 = vsub.f32 %v7663, %v7664
          %v7666 = vand.u32 %v7665, 4294901760
          %7667 = vmatpush1.msra.mxu0 %v7666
          %7668 = vmatprep.subr.mxu0 0.0
          %v7669 = vand.u32 %v7532, 4294901760
          %v7670 = vsub.f32 %v7532, %v7669
          %v7671 = vand.u32 %v7670, 4294901760
          %v7672 = vsub.f32 %v7670, %v7671
          %v7673 = vand.u32 %v7672, 4294901760
          %7674 = vmatpush1.msra.mxu0 %v7673
          %7675 = vmatprep.subr.mxu0 0.0
          %v7676 = vand.u32 %v7531, 4294901760
          %v7677 = vsub.f32 %v7531, %v7676
          %v7678 = vand.u32 %v7677, 4294901760
          %v7679 = vsub.f32 %v7677, %v7678
          %v7680 = vand.u32 %v7679, 4294901760
          %7681 = vmatpush1.msra.mxu0 %v7680
          %7682 = vmatprep.subr.mxu0 0.0
          %v7683 = vand.u32 %v7530, 4294901760
          %v7684 = vsub.f32 %v7530, %v7683
          %v7685 = vand.u32 %v7684, 4294901760
          %v7686 = vsub.f32 %v7684, %v7685
          %v7687 = vand.u32 %v7686, 4294901760
          %7688 = vmatpush1.msra.mxu0 %v7687
          %7689 = vmatprep.subr.mxu0 0.0
          %v7690 = vand.u32 %v7529, 4294901760
          %v7691 = vsub.f32 %v7529, %v7690
          %v7692 = vand.u32 %v7691, 4294901760
          %v7693 = vsub.f32 %v7691, %v7692
          %v7694 = vand.u32 %v7693, 4294901760
          %7695 = vmatpush1.msra.mxu0 %v7694
          %7696 = vmatprep.subr.mxu0 0.0
          %v7697 = vand.u32 %v7528, 4294901760
          %v7698 = vsub.f32 %v7528, %v7697
          %v7699 = vand.u32 %v7698, 4294901760
          %v7700 = vsub.f32 %v7698, %v7699
          %v7701 = vand.u32 %v7700, 4294901760
          %7702 = vmatpush1.msra.mxu0 %v7701
          %7703 = vmatprep.subr.mxu0 0.0
          %v7704 = vand.u32 %v7527, 4294901760
          %v7705 = vsub.f32 %v7527, %v7704
          %v7706 = vand.u32 %v7705, 4294901760
          %v7707 = vsub.f32 %v7705, %v7706
          %v7708 = vand.u32 %v7707, 4294901760
          %7709 = vmatpush1.msra.mxu0 %v7708
          %7710 = vmatprep.subr.mxu0 0.0
          %v7711 = vand.u32 %v7526, 4294901760
          %v7712 = vsub.f32 %v7526, %v7711
          %v7713 = vand.u32 %v7712, 4294901760
          %v7714 = vsub.f32 %v7712, %v7713
          %v7715 = vand.u32 %v7714, 4294901760
          %7716 = vmatpush1.msra.mxu0 %v7715
          %7717 = vmatprep.subr.mxu0 0.0
          %v7718 = vand.u32 %v7525, 4294901760
          %v7719 = vsub.f32 %v7525, %v7718
          %v7720 = vand.u32 %v7719, 4294901760
          %v7721 = vsub.f32 %v7719, %v7720
          %v7722 = vand.u32 %v7721, 4294901760
          %7723 = vmatpush1.msra.mxu0 %v7722
          %7724 = vmatprep.subr.mxu0 0.0
          %v7725 = vand.u32 %v7524, 4294901760
          %v7726 = vsub.f32 %v7524, %v7725
          %v7727 = vand.u32 %v7726, 4294901760
          %v7728 = vsub.f32 %v7726, %v7727
          %v7729 = vand.u32 %v7728, 4294901760
          %7730 = vmatpush1.msra.mxu0 %v7729
          %7731 = vmatprep.subr.mxu0 0.0
          %v7732 = vand.u32 %v7523, 4294901760
          %v7733 = vsub.f32 %v7523, %v7732
          %v7734 = vand.u32 %v7733, 4294901760
          %v7735 = vsub.f32 %v7733, %v7734
          %v7736 = vand.u32 %v7735, 4294901760
          %7737 = vmatpush1.msra.mxu0 %v7736
          %7738 = vmatprep.subr.mxu0 0.0
          %v7739 = vand.u32 %v7522, 4294901760
          %v7740 = vsub.f32 %v7522, %v7739
          %v7741 = vand.u32 %v7740, 4294901760
          %v7742 = vsub.f32 %v7740, %v7741
          %v7743 = vand.u32 %v7742, 4294901760
          %7744 = vmatpush1.msra.mxu0 %v7743
          %7745 = vmatprep.subr.mxu0 0.0
          %v7746 = vand.u32 %v7521, 4294901760
          %v7747 = vsub.f32 %v7521, %v7746
          %v7748 = vand.u32 %v7747, 4294901760
          %v7749 = vsub.f32 %v7747, %v7748
          %v7750 = vand.u32 %v7749, 4294901760
          %7751 = vmatpush1.msra.mxu0 %v7750
          %7752 = vmatprep.subr.mxu0 0.0
          %v7753 = vand.u32 %v7520, 4294901760
          %v7754 = vsub.f32 %v7520, %v7753
          %v7755 = vand.u32 %v7754, 4294901760
          %v7756 = vsub.f32 %v7754, %v7755
          %v7757 = vand.u32 %v7756, 4294901760
          %7758 = vmatpush1.msra.mxu0 %v7757
          %7759 = vmatprep.subr.mxu0 0.0
          %7760 = vmatpush2.msra.mxu0 0.0
          %7761 = vmatprep.subr.mxu0 0.0
          %7762 = vmatpush2.msra.mxu0 0.0
          %7763 = vmatprep.subr.mxu0 0.0
          %7764 = vmatpush2.msra.mxu0 0.0
          %7765 = vmatprep.subr.mxu0 0.0
          %7766 = vmatpush2.msra.mxu0 0.0
          %7767 = vmatprep.subr.mxu0 0.0
          %7768 = vmatpush2.msra.mxu0 0.0
          %7769 = vmatprep.subr.mxu0 0.0
          %7770 = vmatpush2.msra.mxu0 0.0
          %7771 = vmatprep.subr.mxu0 0.0
          %7772 = vmatpush2.msra.mxu0 0.0
          %7773 = vmatprep.subr.mxu0 0.0
          %7774 = vmatpush2.msra.mxu0 0.0
          %7775 = vmatprep.subr.mxu0 0.0
          %7776 = vmatpush2.msra.mxu0 0.0
          %7777 = vmatprep.subr.mxu0 0.0
          %7778 = vmatpush2.msra.mxu0 0.0
          %7779 = vmatprep.subr.mxu0 0.0
          %7780 = vmatpush2.msra.mxu0 0.0
          %7781 = vmatprep.subr.mxu0 0.0
          %7782 = vmatpush2.msra.mxu0 0.0
          %7783 = vmatprep.subr.mxu0 0.0
          %7784 = vmatpush2.msra.mxu0 0.0
          %7785 = vmatprep.subr.mxu0 0.0
          %7786 = vmatpush2.msra.mxu0 0.0
          %7787 = vmatprep.subr.mxu0 0.0
          %7788 = vmatpush2.msra.mxu0 0.0
          %7789 = vmatprep.subr.mxu0 0.0
          %7790 = vmatpush2.msra.mxu0 0.0
          %7791 = vmatprep.mubr.f32.mxu0 0.0
          %v7792 = vand.u32 %v7517, 4294901760
          %7793 = vmatmul.mubr.f32.gmra.mxu0 %v7792
          %v7794 = vpop.f32.mrf.mxu0
          %v7795 = vadd.f32 %v7624, %v7794
          %v7796 = vpop.f32.mrf.mxu0
          %7797 = vmatprep.mubr.f32.mxu0 0.0
          %v7798 = vand.u32 %v7518, 4294901760
          %7799 = vmatmul.mubr.f32.gmra.mxu0 %v7798
          %v7800 = vpop.f32.mrf.mxu0
          %v7801 = vadd.f32 %v7634, %v7800
          %v7802 = vpop.f32.mrf.mxu0
          %7803 = vmatprep.mubr.f32.mxu0 0.0
          %v7804 = vand.u32 %v7519, 4294901760
          %7805 = vmatmul.mubr.f32.gmra.mxu0 %v7804
          %v7806 = vpop.f32.mrf.mxu0
          %v7807 = vadd.f32 %v7644, %v7806
          %v7808 = vpop.f32.mrf.mxu0
          %7809 = vdwg.mxu0
          %7810 = vmatprep.subr.mxu0 0.0
          %v7811 = vand.u32 %v7535, 4294901760
          %v7812 = vsub.f32 %v7535, %v7811
          %7813 = vmatpush1.msra.mxu0 %v7812
          %7814 = vmatprep.subr.mxu0 0.0
          %v7815 = vand.u32 %v7534, 4294901760
          %v7816 = vsub.f32 %v7534, %v7815
          %7817 = vmatpush1.msra.mxu0 %v7816
          %7818 = vmatprep.subr.mxu0 0.0
          %v7819 = vand.u32 %v7533, 4294901760
          %v7820 = vsub.f32 %v7533, %v7819
          %7821 = vmatpush1.msra.mxu0 %v7820
          %7822 = vmatprep.subr.mxu0 0.0
          %v7823 = vand.u32 %v7532, 4294901760
          %v7824 = vsub.f32 %v7532, %v7823
          %7825 = vmatpush1.msra.mxu0 %v7824
          %7826 = vmatprep.subr.mxu0 0.0
          %v7827 = vand.u32 %v7531, 4294901760
          %v7828 = vsub.f32 %v7531, %v7827
          %7829 = vmatpush1.msra.mxu0 %v7828
          %7830 = vmatprep.subr.mxu0 0.0
          %v7831 = vand.u32 %v7530, 4294901760
          %v7832 = vsub.f32 %v7530, %v7831
          %7833 = vmatpush1.msra.mxu0 %v7832
          %7834 = vmatprep.subr.mxu0 0.0
          %v7835 = vand.u32 %v7529, 4294901760
          %v7836 = vsub.f32 %v7529, %v7835
          %7837 = vmatpush1.msra.mxu0 %v7836
          %7838 = vmatprep.subr.mxu0 0.0
          %v7839 = vand.u32 %v7528, 4294901760
          %v7840 = vsub.f32 %v7528, %v7839
          %7841 = vmatpush1.msra.mxu0 %v7840
          %7842 = vmatprep.subr.mxu0 0.0
          %v7843 = vand.u32 %v7527, 4294901760
          %v7844 = vsub.f32 %v7527, %v7843
          %7845 = vmatpush1.msra.mxu0 %v7844
          %7846 = vmatprep.subr.mxu0 0.0
          %v7847 = vand.u32 %v7526, 4294901760
          %v7848 = vsub.f32 %v7526, %v7847
          %7849 = vmatpush1.msra.mxu0 %v7848
          %7850 = vmatprep.subr.mxu0 0.0
          %v7851 = vand.u32 %v7525, 4294901760
          %v7852 = vsub.f32 %v7525, %v7851
          %7853 = vmatpush1.msra.mxu0 %v7852
          %7854 = vmatprep.subr.mxu0 0.0
          %v7855 = vand.u32 %v7524, 4294901760
          %v7856 = vsub.f32 %v7524, %v7855
          %7857 = vmatpush1.msra.mxu0 %v7856
          %7858 = vmatprep.subr.mxu0 0.0
          %v7859 = vand.u32 %v7523, 4294901760
          %v7860 = vsub.f32 %v7523, %v7859
          %7861 = vmatpush1.msra.mxu0 %v7860
          %7862 = vmatprep.subr.mxu0 0.0
          %v7863 = vand.u32 %v7522, 4294901760
          %v7864 = vsub.f32 %v7522, %v7863
          %7865 = vmatpush1.msra.mxu0 %v7864
          %7866 = vmatprep.subr.mxu0 0.0
          %v7867 = vand.u32 %v7521, 4294901760
          %v7868 = vsub.f32 %v7521, %v7867
          %7869 = vmatpush1.msra.mxu0 %v7868
          %7870 = vmatprep.subr.mxu0 0.0
          %v7871 = vand.u32 %v7520, 4294901760
          %v7872 = vsub.f32 %v7520, %v7871
          %7873 = vmatpush1.msra.mxu0 %v7872
          %7874 = vmatprep.subr.mxu0 0.0
          %7875 = vmatpush2.msra.mxu0 0.0
          %7876 = vmatprep.subr.mxu0 0.0
          %7877 = vmatpush2.msra.mxu0 0.0
          %7878 = vmatprep.subr.mxu0 0.0
          %7879 = vmatpush2.msra.mxu0 0.0
          %7880 = vmatprep.subr.mxu0 0.0
          %7881 = vmatpush2.msra.mxu0 0.0
          %7882 = vmatprep.subr.mxu0 0.0
          %7883 = vmatpush2.msra.mxu0 0.0
          %7884 = vmatprep.subr.mxu0 0.0
          %7885 = vmatpush2.msra.mxu0 0.0
          %7886 = vmatprep.subr.mxu0 0.0
          %7887 = vmatpush2.msra.mxu0 0.0
          %7888 = vmatprep.subr.mxu0 0.0
          %7889 = vmatpush2.msra.mxu0 0.0
          %7890 = vmatprep.subr.mxu0 0.0
          %7891 = vmatpush2.msra.mxu0 0.0
          %7892 = vmatprep.subr.mxu0 0.0
          %7893 = vmatpush2.msra.mxu0 0.0
          %7894 = vmatprep.subr.mxu0 0.0
          %7895 = vmatpush2.msra.mxu0 0.0
          %7896 = vmatprep.subr.mxu0 0.0
          %7897 = vmatpush2.msra.mxu0 0.0
          %7898 = vmatprep.subr.mxu0 0.0
          %7899 = vmatpush2.msra.mxu0 0.0
          %7900 = vmatprep.subr.mxu0 0.0
          %7901 = vmatpush2.msra.mxu0 0.0
          %7902 = vmatprep.subr.mxu0 0.0
          %7903 = vmatpush2.msra.mxu0 0.0
          %7904 = vmatprep.subr.mxu0 0.0
          %7905 = vmatpush2.msra.mxu0 0.0
          %7906 = vmatprep.mubr.f32.mxu0 0.0
          %v7907 = vand.u32 %v7517, 4294901760
          %v7908 = vsub.f32 %v7517, %v7907
          %7909 = vmatmul.mubr.f32.gmra.mxu0 %v7908
          %v7910 = vpop.f32.mrf.mxu0
          %v7911 = vadd.f32 %v7795, %v7910
          %v7912 = vpop.f32.mrf.mxu0
          %7913 = vmatprep.mubr.f32.mxu0 0.0
          %v7914 = vand.u32 %v7518, 4294901760
          %v7915 = vsub.f32 %v7518, %v7914
          %7916 = vmatmul.mubr.f32.gmra.mxu0 %v7915
          %v7917 = vpop.f32.mrf.mxu0
          %v7918 = vadd.f32 %v7801, %v7917
          %v7919 = vpop.f32.mrf.mxu0
          %7920 = vmatprep.mubr.f32.mxu0 0.0
          %v7921 = vand.u32 %v7519, 4294901760
          %v7922 = vsub.f32 %v7519, %v7921
          %7923 = vmatmul.mubr.f32.gmra.mxu0 %v7922
          %v7924 = vpop.f32.mrf.mxu0
          %v7925 = vadd.f32 %v7807, %v7924
          %v7926 = vpop.f32.mrf.mxu0
          %7927 = vdwg.mxu0
          %7928 = vmatprep.subr.mxu0 0.0
          %v7929 = vand.u32 %v7535, 4294901760
          %7930 = vmatpush1.msra.mxu0 %v7929
          %7931 = vmatprep.subr.mxu0 0.0
          %v7932 = vand.u32 %v7534, 4294901760
          %7933 = vmatpush1.msra.mxu0 %v7932
          %7934 = vmatprep.subr.mxu0 0.0
          %v7935 = vand.u32 %v7533, 4294901760
          %7936 = vmatpush1.msra.mxu0 %v7935
          %7937 = vmatprep.subr.mxu0 0.0
          %v7938 = vand.u32 %v7532, 4294901760
          %7939 = vmatpush1.msra.mxu0 %v7938
          %7940 = vmatprep.subr.mxu0 0.0
          %v7941 = vand.u32 %v7531, 4294901760
          %7942 = vmatpush1.msra.mxu0 %v7941
          %7943 = vmatprep.subr.mxu0 0.0
          %v7944 = vand.u32 %v7530, 4294901760
          %7945 = vmatpush1.msra.mxu0 %v7944
          %7946 = vmatprep.subr.mxu0 0.0
          %v7947 = vand.u32 %v7529, 4294901760
          %7948 = vmatpush1.msra.mxu0 %v7947
          %7949 = vmatprep.subr.mxu0 0.0
          %v7950 = vand.u32 %v7528, 4294901760
          %7951 = vmatpush1.msra.mxu0 %v7950
          %7952 = vmatprep.subr.mxu0 0.0
          %v7953 = vand.u32 %v7527, 4294901760
          %7954 = vmatpush1.msra.mxu0 %v7953
          %7955 = vmatprep.subr.mxu0 0.0
          %v7956 = vand.u32 %v7526, 4294901760
          %7957 = vmatpush1.msra.mxu0 %v7956
          %7958 = vmatprep.subr.mxu0 0.0
          %v7959 = vand.u32 %v7525, 4294901760
          %7960 = vmatpush1.msra.mxu0 %v7959
          %7961 = vmatprep.subr.mxu0 0.0
          %v7962 = vand.u32 %v7524, 4294901760
          %7963 = vmatpush1.msra.mxu0 %v7962
          %7964 = vmatprep.subr.mxu0 0.0
          %v7965 = vand.u32 %v7523, 4294901760
          %7966 = vmatpush1.msra.mxu0 %v7965
          %7967 = vmatprep.subr.mxu0 0.0
          %v7968 = vand.u32 %v7522, 4294901760
          %7969 = vmatpush1.msra.mxu0 %v7968
          %7970 = vmatprep.subr.mxu0 0.0
          %v7971 = vand.u32 %v7521, 4294901760
          %7972 = vmatpush1.msra.mxu0 %v7971
          %7973 = vmatprep.subr.mxu0 0.0
          %v7974 = vand.u32 %v7520, 4294901760
          %7975 = vmatpush1.msra.mxu0 %v7974
          %7976 = vmatprep.subr.mxu0 0.0
          %7977 = vmatpush2.msra.mxu0 0.0
          %7978 = vmatprep.subr.mxu0 0.0
          %7979 = vmatpush2.msra.mxu0 0.0
          %7980 = vmatprep.subr.mxu0 0.0
          %7981 = vmatpush2.msra.mxu0 0.0
          %7982 = vmatprep.subr.mxu0 0.0
          %7983 = vmatpush2.msra.mxu0 0.0
          %7984 = vmatprep.subr.mxu0 0.0
          %7985 = vmatpush2.msra.mxu0 0.0
          %7986 = vmatprep.subr.mxu0 0.0
          %7987 = vmatpush2.msra.mxu0 0.0
          %7988 = vmatprep.subr.mxu0 0.0
          %7989 = vmatpush2.msra.mxu0 0.0
          %7990 = vmatprep.subr.mxu0 0.0
          %7991 = vmatpush2.msra.mxu0 0.0
          %7992 = vmatprep.subr.mxu0 0.0
          %7993 = vmatpush2.msra.mxu0 0.0
          %7994 = vmatprep.subr.mxu0 0.0
          %7995 = vmatpush2.msra.mxu0 0.0
          %7996 = vmatprep.subr.mxu0 0.0
          %7997 = vmatpush2.msra.mxu0 0.0
          %7998 = vmatprep.subr.mxu0 0.0
          %7999 = vmatpush2.msra.mxu0 0.0
          %8000 = vmatprep.subr.mxu0 0.0
          %8001 = vmatpush2.msra.mxu0 0.0
          %8002 = vmatprep.subr.mxu0 0.0
          %8003 = vmatpush2.msra.mxu0 0.0
          %8004 = vmatprep.subr.mxu0 0.0
          %8005 = vmatpush2.msra.mxu0 0.0
          %8006 = vmatprep.subr.mxu0 0.0
          %8007 = vmatpush2.msra.mxu0 0.0
          %8008 = vmatprep.mubr.f32.mxu0 0.0
          %v8009 = vand.u32 %v7517, 4294901760
          %v8010 = vsub.f32 %v7517, %v8009
          %v8011 = vand.u32 %v8010, 4294901760
          %8012 = vmatmul.mubr.f32.gmra.mxu0 %v8011
          %v8013 = vpop.f32.mrf.mxu0
          %v8014 = vadd.f32 %v7911, %v8013
          %v8015 = vpop.f32.mrf.mxu0
          %8016 = vmatprep.mubr.f32.mxu0 0.0
          %v8017 = vand.u32 %v7518, 4294901760
          %v8018 = vsub.f32 %v7518, %v8017
          %v8019 = vand.u32 %v8018, 4294901760
          %8020 = vmatmul.mubr.f32.gmra.mxu0 %v8019
          %v8021 = vpop.f32.mrf.mxu0
          %v8022 = vadd.f32 %v7918, %v8021
          %v8023 = vpop.f32.mrf.mxu0
          %8024 = vmatprep.mubr.f32.mxu0 0.0
          %v8025 = vand.u32 %v7519, 4294901760
          %v8026 = vsub.f32 %v7519, %v8025
          %v8027 = vand.u32 %v8026, 4294901760
          %8028 = vmatmul.mubr.f32.gmra.mxu0 %v8027
          %v8029 = vpop.f32.mrf.mxu0
          %v8030 = vadd.f32 %v7925, %v8029
          %v8031 = vpop.f32.mrf.mxu0
          %8032 = vdwg.mxu0
          %8033 = vmatprep.subr.mxu0 0.0
          %v8034 = vand.u32 %v7535, 4294901760
          %v8035 = vsub.f32 %v7535, %v8034
          %v8036 = vand.u32 %v8035, 4294901760
          %8037 = vmatpush1.msra.mxu0 %v8036
          %8038 = vmatprep.subr.mxu0 0.0
          %v8039 = vand.u32 %v7534, 4294901760
          %v8040 = vsub.f32 %v7534, %v8039
          %v8041 = vand.u32 %v8040, 4294901760
          %8042 = vmatpush1.msra.mxu0 %v8041
          %8043 = vmatprep.subr.mxu0 0.0
          %v8044 = vand.u32 %v7533, 4294901760
          %v8045 = vsub.f32 %v7533, %v8044
          %v8046 = vand.u32 %v8045, 4294901760
          %8047 = vmatpush1.msra.mxu0 %v8046
          %8048 = vmatprep.subr.mxu0 0.0
          %v8049 = vand.u32 %v7532, 4294901760
          %v8050 = vsub.f32 %v7532, %v8049
          %v8051 = vand.u32 %v8050, 4294901760
          %8052 = vmatpush1.msra.mxu0 %v8051
          %8053 = vmatprep.subr.mxu0 0.0
          %v8054 = vand.u32 %v7531, 4294901760
          %v8055 = vsub.f32 %v7531, %v8054
          %v8056 = vand.u32 %v8055, 4294901760
          %8057 = vmatpush1.msra.mxu0 %v8056
          %8058 = vmatprep.subr.mxu0 0.0
          %v8059 = vand.u32 %v7530, 4294901760
          %v8060 = vsub.f32 %v7530, %v8059
          %v8061 = vand.u32 %v8060, 4294901760
          %8062 = vmatpush1.msra.mxu0 %v8061
          %8063 = vmatprep.subr.mxu0 0.0
          %v8064 = vand.u32 %v7529, 4294901760
          %v8065 = vsub.f32 %v7529, %v8064
          %v8066 = vand.u32 %v8065, 4294901760
          %8067 = vmatpush1.msra.mxu0 %v8066
          %8068 = vmatprep.subr.mxu0 0.0
          %v8069 = vand.u32 %v7528, 4294901760
          %v8070 = vsub.f32 %v7528, %v8069
          %v8071 = vand.u32 %v8070, 4294901760
          %8072 = vmatpush1.msra.mxu0 %v8071
          %8073 = vmatprep.subr.mxu0 0.0
          %v8074 = vand.u32 %v7527, 4294901760
          %v8075 = vsub.f32 %v7527, %v8074
          %v8076 = vand.u32 %v8075, 4294901760
          %8077 = vmatpush1.msra.mxu0 %v8076
          %8078 = vmatprep.subr.mxu0 0.0
          %v8079 = vand.u32 %v7526, 4294901760
          %v8080 = vsub.f32 %v7526, %v8079
          %v8081 = vand.u32 %v8080, 4294901760
          %8082 = vmatpush1.msra.mxu0 %v8081
          %8083 = vmatprep.subr.mxu0 0.0
          %v8084 = vand.u32 %v7525, 4294901760
          %v8085 = vsub.f32 %v7525, %v8084
          %v8086 = vand.u32 %v8085, 4294901760
          %8087 = vmatpush1.msra.mxu0 %v8086
          %8088 = vmatprep.subr.mxu0 0.0
          %v8089 = vand.u32 %v7524, 4294901760
          %v8090 = vsub.f32 %v7524, %v8089
          %v8091 = vand.u32 %v8090, 4294901760
          %8092 = vmatpush1.msra.mxu0 %v8091
          %8093 = vmatprep.subr.mxu0 0.0
          %v8094 = vand.u32 %v7523, 4294901760
          %v8095 = vsub.f32 %v7523, %v8094
          %v8096 = vand.u32 %v8095, 4294901760
          %8097 = vmatpush1.msra.mxu0 %v8096
          %8098 = vmatprep.subr.mxu0 0.0
          %v8099 = vand.u32 %v7522, 4294901760
          %v8100 = vsub.f32 %v7522, %v8099
          %v8101 = vand.u32 %v8100, 4294901760
          %8102 = vmatpush1.msra.mxu0 %v8101
          %8103 = vmatprep.subr.mxu0 0.0
          %v8104 = vand.u32 %v7521, 4294901760
          %v8105 = vsub.f32 %v7521, %v8104
          %v8106 = vand.u32 %v8105, 4294901760
          %8107 = vmatpush1.msra.mxu0 %v8106
          %8108 = vmatprep.subr.mxu0 0.0
          %v8109 = vand.u32 %v7520, 4294901760
          %v8110 = vsub.f32 %v7520, %v8109
          %v8111 = vand.u32 %v8110, 4294901760
          %8112 = vmatpush1.msra.mxu0 %v8111
          %8113 = vmatprep.subr.mxu0 0.0
          %8114 = vmatpush2.msra.mxu0 0.0
          %8115 = vmatprep.subr.mxu0 0.0
          %8116 = vmatpush2.msra.mxu0 0.0
          %8117 = vmatprep.subr.mxu0 0.0
          %8118 = vmatpush2.msra.mxu0 0.0
          %8119 = vmatprep.subr.mxu0 0.0
          %8120 = vmatpush2.msra.mxu0 0.0
          %8121 = vmatprep.subr.mxu0 0.0
          %8122 = vmatpush2.msra.mxu0 0.0
          %8123 = vmatprep.subr.mxu0 0.0
          %8124 = vmatpush2.msra.mxu0 0.0
          %8125 = vmatprep.subr.mxu0 0.0
          %8126 = vmatpush2.msra.mxu0 0.0
          %8127 = vmatprep.subr.mxu0 0.0
          %8128 = vmatpush2.msra.mxu0 0.0
          %8129 = vmatprep.subr.mxu0 0.0
          %8130 = vmatpush2.msra.mxu0 0.0
          %8131 = vmatprep.subr.mxu0 0.0
          %8132 = vmatpush2.msra.mxu0 0.0
          %8133 = vmatprep.subr.mxu0 0.0
          %8134 = vmatpush2.msra.mxu0 0.0
          %8135 = vmatprep.subr.mxu0 0.0
          %8136 = vmatpush2.msra.mxu0 0.0
          %8137 = vmatprep.subr.mxu0 0.0
          %8138 = vmatpush2.msra.mxu0 0.0
          %8139 = vmatprep.subr.mxu0 0.0
          %8140 = vmatpush2.msra.mxu0 0.0
          %8141 = vmatprep.subr.mxu0 0.0
          %8142 = vmatpush2.msra.mxu0 0.0
          %8143 = vmatprep.subr.mxu0 0.0
          %8144 = vmatpush2.msra.mxu0 0.0
          %8145 = vmatprep.mubr.f32.mxu0 0.0
          %v8146 = vand.u32 %v7517, 4294901760
          %8147 = vmatmul.mubr.f32.gmra.mxu0 %v8146
          %v8148 = vpop.f32.mrf.mxu0
          %v8149 = vadd.f32 %v8014, %v8148
          %v8150 = vpop.f32.mrf.mxu0
          %8151 = vmatprep.mubr.f32.mxu0 0.0
          %v8152 = vand.u32 %v7518, 4294901760
          %8153 = vmatmul.mubr.f32.gmra.mxu0 %v8152
          %v8154 = vpop.f32.mrf.mxu0
          %v8155 = vadd.f32 %v8022, %v8154
          %v8156 = vpop.f32.mrf.mxu0
          %8157 = vmatprep.mubr.f32.mxu0 0.0
          %v8158 = vand.u32 %v7519, 4294901760
          %8159 = vmatmul.mubr.f32.gmra.mxu0 %v8158
          %v8160 = vpop.f32.mrf.mxu0
          %v8161 = vadd.f32 %v8030, %v8160
          %v8162 = vpop.f32.mrf.mxu0
          %8163 = vdwg.mxu0
          %8164 = vmatprep.subr.mxu0 0.0
          %v8165 = vand.u32 %v7535, 4294901760
          %8166 = vmatpush1.msra.mxu0 %v8165
          %8167 = vmatprep.subr.mxu0 0.0
          %v8168 = vand.u32 %v7534, 4294901760
          %8169 = vmatpush1.msra.mxu0 %v8168
          %8170 = vmatprep.subr.mxu0 0.0
          %v8171 = vand.u32 %v7533, 4294901760
          %8172 = vmatpush1.msra.mxu0 %v8171
          %8173 = vmatprep.subr.mxu0 0.0
          %v8174 = vand.u32 %v7532, 4294901760
          %8175 = vmatpush1.msra.mxu0 %v8174
          %8176 = vmatprep.subr.mxu0 0.0
          %v8177 = vand.u32 %v7531, 4294901760
          %8178 = vmatpush1.msra.mxu0 %v8177
          %8179 = vmatprep.subr.mxu0 0.0
          %v8180 = vand.u32 %v7530, 4294901760
          %8181 = vmatpush1.msra.mxu0 %v8180
          %8182 = vmatprep.subr.mxu0 0.0
          %v8183 = vand.u32 %v7529, 4294901760
          %8184 = vmatpush1.msra.mxu0 %v8183
          %8185 = vmatprep.subr.mxu0 0.0
          %v8186 = vand.u32 %v7528, 4294901760
          %8187 = vmatpush1.msra.mxu0 %v8186
          %8188 = vmatprep.subr.mxu0 0.0
          %v8189 = vand.u32 %v7527, 4294901760
          %8190 = vmatpush1.msra.mxu0 %v8189
          %8191 = vmatprep.subr.mxu0 0.0
          %v8192 = vand.u32 %v7526, 4294901760
          %8193 = vmatpush1.msra.mxu0 %v8192
          %8194 = vmatprep.subr.mxu0 0.0
          %v8195 = vand.u32 %v7525, 4294901760
          %8196 = vmatpush1.msra.mxu0 %v8195
          %8197 = vmatprep.subr.mxu0 0.0
          %v8198 = vand.u32 %v7524, 4294901760
          %8199 = vmatpush1.msra.mxu0 %v8198
          %8200 = vmatprep.subr.mxu0 0.0
          %v8201 = vand.u32 %v7523, 4294901760
          %8202 = vmatpush1.msra.mxu0 %v8201
          %8203 = vmatprep.subr.mxu0 0.0
          %v8204 = vand.u32 %v7522, 4294901760
          %8205 = vmatpush1.msra.mxu0 %v8204
          %8206 = vmatprep.subr.mxu0 0.0
          %v8207 = vand.u32 %v7521, 4294901760
          %8208 = vmatpush1.msra.mxu0 %v8207
          %8209 = vmatprep.subr.mxu0 0.0
          %v8210 = vand.u32 %v7520, 4294901760
          %8211 = vmatpush1.msra.mxu0 %v8210
          %8212 = vmatprep.subr.mxu0 0.0
          %8213 = vmatpush2.msra.mxu0 0.0
          %8214 = vmatprep.subr.mxu0 0.0
          %8215 = vmatpush2.msra.mxu0 0.0
          %8216 = vmatprep.subr.mxu0 0.0
          %8217 = vmatpush2.msra.mxu0 0.0
          %8218 = vmatprep.subr.mxu0 0.0
          %8219 = vmatpush2.msra.mxu0 0.0
          %8220 = vmatprep.subr.mxu0 0.0
          %8221 = vmatpush2.msra.mxu0 0.0
          %8222 = vmatprep.subr.mxu0 0.0
          %8223 = vmatpush2.msra.mxu0 0.0
          %8224 = vmatprep.subr.mxu0 0.0
          %8225 = vmatpush2.msra.mxu0 0.0
          %8226 = vmatprep.subr.mxu0 0.0
          %8227 = vmatpush2.msra.mxu0 0.0
          %8228 = vmatprep.subr.mxu0 0.0
          %8229 = vmatpush2.msra.mxu0 0.0
          %8230 = vmatprep.subr.mxu0 0.0
          %8231 = vmatpush2.msra.mxu0 0.0
          %8232 = vmatprep.subr.mxu0 0.0
          %8233 = vmatpush2.msra.mxu0 0.0
          %8234 = vmatprep.subr.mxu0 0.0
          %8235 = vmatpush2.msra.mxu0 0.0
          %8236 = vmatprep.subr.mxu0 0.0
          %8237 = vmatpush2.msra.mxu0 0.0
          %8238 = vmatprep.subr.mxu0 0.0
          %8239 = vmatpush2.msra.mxu0 0.0
          %8240 = vmatprep.subr.mxu0 0.0
          %8241 = vmatpush2.msra.mxu0 0.0
          %8242 = vmatprep.subr.mxu0 0.0
          %8243 = vmatpush2.msra.mxu0 0.0
          %8244 = vmatprep.mubr.f32.mxu0 0.0
          %v8245 = vand.u32 %v7517, 4294901760
          %8246 = vmatmul.mubr.f32.gmra.mxu0 %v8245
          %v8247 = vpop.f32.mrf.mxu0
          %v8248 = vadd.f32 %v8149, %v8247
          %v8249 = vpop.f32.mrf.mxu0
          %8250 = vmatprep.mubr.f32.mxu0 0.0
          %v8251 = vand.u32 %v7518, 4294901760
          %8252 = vmatmul.mubr.f32.gmra.mxu0 %v8251
          %v8253 = vpop.f32.mrf.mxu0
          %v8254 = vadd.f32 %v8155, %v8253
          %v8255 = vpop.f32.mrf.mxu0
          %8256 = vmatprep.mubr.f32.mxu0 0.0
          %v8257 = vand.u32 %v7519, 4294901760
          %8258 = vmatmul.mubr.f32.gmra.mxu0 %v8257
          %v8259 = vpop.f32.mrf.mxu0
          %v8260 = vadd.f32 %v8161, %v8259
          %v8261 = vpop.f32.mrf.mxu0
          %8262 = vdwg.mxu0
          %v8263 = vrcp.pop %v8248
          %v8264 = vrcp.pop %v8254
          %v8265 = vrcp.pop %v8260
          %v8266 = vmul.f32 %v8248, %v8263
          %v8267 = vmul.f32 %v8254, %v8264
          %v8268 = vmul.f32 %v8260, %v8265
          %v8269 = vsub.f32 2.0, %v8266
          %v8270 = vsub.f32 2.0, %v8267
          %v8271 = vsub.f32 2.0, %v8268
          %v8272 = vmul.f32 %v8263, %v8269
          %v8273 = vmul.f32 %v8264, %v8270
          %v8274 = vmul.f32 %v8265, %v8271
          %v8275 = vld [vmem:[#allocation3] sm:$0xff]
          %v8276 = vld [vmem:[#allocation3 + $0x8] sm:$0xff]
          %v8277 = vld [vmem:[#allocation3 + $0x10] sm:$0xff]
          %v8278 = vmul.f32 %v8275, %v8272
          %v8279 = vmul.f32 %v8276, %v8273
          %v8280 = vmul.f32 %v8277, %v8274
          %8281 = vst [vmem:[#allocation5] sm:$0xff] %v8278
          %8282 = vst [vmem:[#allocation5 + $0x8] sm:$0xff] %v8279
          %8283 = vst [vmem:[#allocation5 + $0x10] sm:$0xff] %v8280
        $region68: #{tpu_custom_call.1} parent=59 // pred_fallthru
          _
        %s8284 = sand.u32 %s281, 1
        %s8285 = scalar_lea.sflag [#allocation8], %s8284
        %s8286 = sand.u32 %s281, 1
        %s8287 = smul.addr %s8286, 64
        %s8288 = scalar_lea.vmem [#allocation7], %s8287
        // Predicated region
        $region69: #{tpu_custom_call.1} parent=59 // pred_check
          %p8289 = pneg %p265
        $region70: #{tpu_custom_call.1} parent=59 // pred_check_branch
          %8291 = sbr.rel (%p8289) target = $region72
        $region71: #{tpu_custom_call.1} parent=59 // pred_region
          %s8293 = ssub.s32 384, 384
          %8294 = vsyncadd [#allocation6], %s8293
          %s8295 = sshll.u32 [#allocation5], 4
          %s8296 = int_to_ptr.vmem [resolvable:$true] %s8295
          %8301 = dma.vmem_to_hbm [thread:$0]  %s8296, 384, %s10, [#allocation6], 128, 128, 8
        $region72: #{tpu_custom_call.1} parent=59 // pred_fallthru
          _
        // Predicated region
        $region73: #{tpu_custom_call.1} parent=59 // pred_check
          %p8302 = pneg %p291
        $region74: #{tpu_custom_call.1} parent=59 // pred_check_branch
          %8304 = sbr.rel (%p8302) target = $region76
        $region75: #{tpu_custom_call.1} parent=59 // pred_region
          %s8305 = smul.u32 8, %s27
          %s8307 = ssub.s32 1024, 1024
          %8308 = vsyncadd %s8285, %s8307
          %s8309 = smul.addr %s8305, 128
          %s8310 = scalar_lea.hbm %s11, %s8309
          %s8311 = sshll.u32 %s8288, 4
          %s8312 = int_to_ptr.vmem [resolvable:$true] %s8311
          %8317 = dma.vmem_to_hbm [thread:$0]  %s8312, 1024, %s8310, %s8285, 128, 128, 8
        $region76: #{tpu_custom_call.1} parent=59 // pred_fallthru
          _
        // Predicated region
        $region77: #{tpu_custom_call.1} parent=59 // pred_check
          %p8318 = pneg %p265
        $region78: #{tpu_custom_call.1} parent=59 // pred_check_branch
          %8320 = sbr.rel (%p8318) target = $region80
        $region79: #{tpu_custom_call.1} parent=59 // pred_region
          %8321 = dma.done [#allocation6], 384
        $region80: #{tpu_custom_call.1} parent=59 // pred_fallthru
          _
      $region60: #{tpu_custom_call.1} parent=5 // pred_fallthru
        _
      %p8322 = scmp.le.s32.totalorder 2, %s22
      // Predicated region
      $region81: #{tpu_custom_call.1} parent=5 // pred_check
        %p8323 = pneg %p8322
      $region82: #{tpu_custom_call.1} parent=5 // pred_check_branch
        %8325 = sbr.rel (%p8323) target = $region84
      $region83: #{tpu_custom_call.1} parent=5 // pred_region
        %s8326 = ssub.s32 %s22, 2
        // Predicated region
        $region85: #{tpu_custom_call.1} parent=83 // pred_check
          %p8327 = pneg %p297
        $region86: #{tpu_custom_call.1} parent=83 // pred_check_branch
          %8329 = sbr.rel (%p8327) target = $region88
        $region87: #{tpu_custom_call.1} parent=83 // pred_region
          %s8330 = sand.u32 %s282, 1
          %s8331 = scalar_lea.sflag [#allocation8], %s8330
          %s8332 = sand.u32 %s282, 1
          %s8333 = smul.addr %s8332, 64
          %s8334 = scalar_lea.vmem [#allocation7], %s8333
          %8335 = dma.done %s8331, 1024
        $region88: #{tpu_custom_call.1} parent=83 // pred_fallthru
          _
      $region84: #{tpu_custom_call.1} parent=5 // pred_fallthru
        _
    $region6: #{tpu_custom_call.1} parent=1 // loop_footer
      %s26 = sadd.s32 1, %s22
    $region7: #{tpu_custom_call.1} parent=1 // loop_footer_branch
      %21 = sbr.rel target = $region3
    $region8: #{tpu_custom_call.1} parent=1 // loop_exit
      _
    %8336 = vsyncpa [#allocation6], 1
    %s8337 = scalar_lea.sflag [#allocation6], 1
    %8338 = vsyncpa %s8337, 1
    %8339 = vsyncpa [#allocation8], 1
    %s8340 = scalar_lea.sflag [#allocation8], 1
    %8341 = vsyncpa %s8340, 1

</llo_original>
